<compile_context>
chip_gen: v7x
topology: tpu7x:2x2x1
jax: 0.10.0
libtpu: 0.0.40
codegen_flags: <defaults>
</compile_context>

<pallas_src>
import jax
import jax.numpy as jnp
import numpy as np
from jax.experimental import pallas as pl
from jax.experimental.pallas import tpu as pltpu

# ----------------------------------------------------------------------------
# Static model geometry (toy sizes consistent with the module's forward)
# ----------------------------------------------------------------------------
C1, C2 = 16, 32              # backbone channel widths
KSIZE = 3                    # backbone conv kernel size
H = W = 16                   # input spatial size
HP = WP = H + 2              # padded spatial size (pad = 1)
N_FULL = H * WP              # 288 rows of the "full pitch" accumulator (r in [0,16), c in [0,18))
SLACK = 328                  # flat padded length: >= HP*WP (324) and >= max tap read (326), 8-aligned
PAD_OFF = WP + 1             # 19: flat offset of (row 1, col 1) inside the padded grid
N_POOL = (H // 2) * (W // 2) # 64 pooled positions after the stride-2 block


# ----------------------------------------------------------------------------
# Fused kernel: conv1(3x3,s1,p1)+BN+ReLU -> conv2(3x3,s2,p1)+BN+ReLU
#               -> 1x1 conv+BN+ReLU -> global average pool
# One grid step per batch element; everything stays in VMEM/vregs.
# ----------------------------------------------------------------------------
def _fused_forward_kernel(x_ref, w1_ref, b1_ref, w2_ref, b2_ref,
                          wc_ref, bc_ref, m1_ref, m2_ref, o_ref, p2_ref):
    w1 = w1_ref[...]                                   # (9, Cin, C1), BN scale folded in
    w2 = w2_ref[...]                                   # (9, C1,  C2), BN scale folded in

    # ---- backbone block 1: 3x3 conv (stride 1, pad 1) + shift + ReLU --------
    # x_ref holds the zero-padded input flattened with row pitch WP (plus slack
    # zeros), so tap (dy, dx) is just a contiguous slice at offset dy*WP + dx.
    acc1 = jnp.zeros((N_FULL, C1), jnp.float32)
    for dy in range(KSIZE):
        for dx in range(KSIZE):
            off = dy * WP + dx
            patch = x_ref[0, pl.ds(off, N_FULL), :]    # (288, Cin)
            acc1 = acc1 + jnp.dot(patch, w1[dy * KSIZE + dx],
                                  preferred_element_type=jnp.float32)
    # m1 zeroes the 2 wrap-around columns per row (full-pitch garbage).
    h1 = jnp.maximum(acc1 + b1_ref[...], 0.0) * m1_ref[...]     # (288, C1)

    # Re-pad conv1 output (zero border) into a full-pitch VMEM scratch buffer.
    p2_ref[...] = jnp.zeros_like(p2_ref)
    p2_ref[pl.ds(PAD_OFF, N_FULL), :] = h1

    # ---- backbone block 2: 3x3 conv, stride 2 (computed densely) ------------
    # Dense (stride-1) conv over the padded conv1 output; the stride-2
    # decimation is applied later via the pooling mask m2.
    acc2 = jnp.zeros((N_FULL, C2), jnp.float32)
    for dy in range(KSIZE):
        for dx in range(KSIZE):
            off = dy * WP + dx
            patch = p2_ref[pl.ds(off, N_FULL), :]      # (288, C1)
            acc2 = acc2 + jnp.dot(patch, w2[dy * KSIZE + dx],
                                  preferred_element_type=jnp.float32)
    h2 = jnp.maximum(acc2 + b2_ref[...], 0.0)          # (288, C2)

    # ---- classifier: 1x1 conv + shift + ReLU, then global average pool ------
    y = jnp.maximum(jnp.dot(h2, wc_ref[...],
                            preferred_element_type=jnp.float32) + bc_ref[...],
                    0.0)                               # (288, num_classes)
    # m2 is (1/64) at the 64 valid stride-2 positions and 0 elsewhere, so the
    # masked sum is exactly AdaptiveAvgPool2d(1) of the stride-2 output.
    pooled = jnp.sum(y * m2_ref[...], axis=0, keepdims=True)    # (1, num_classes)
    o_ref[0] = pooled.astype(o_ref.dtype)


def anomaly_model_forward(params, x_nchw):
    N, Cin, Hh, Ww = x_nchw.shape
    assert (Hh, Ww) == (H, W)
    nc = params["wc"].shape[1]

    # Tiny wrapper-side layout prep of the raw input only (a few KB): NCHW ->
    # NHWC, zero-pad by 1, flatten spatial with pitch WP, add zero slack rows.
    x = jnp.transpose(x_nchw, (0, 2, 3, 1))
    xp = jnp.pad(x, ((0, 0), (1, 1), (1, 1), (0, 0)))
    xf = xp.reshape(N, HP * WP, Cin)
    xf = jnp.pad(xf, ((0, 0), (0, SLACK - HP * WP), (0, 0)))     # (N, SLACK, Cin)

    out = pl.pallas_call(
        _fused_forward_kernel,
        out_shape=jax.ShapeDtypeStruct((N, 1, nc), jnp.float32),
        grid_spec=pltpu.PrefetchScalarGridSpec(
            num_scalar_prefetch=0,
            grid=(N,),
            in_specs=[
                pl.BlockSpec((1, SLACK, Cin), lambda b: (b, 0, 0)),   # input
                pl.BlockSpec((9, Cin, C1), lambda b: (0, 0, 0)),      # w1 (scale-folded)
                pl.BlockSpec((1, C1), lambda b: (0, 0)),              # shift1
                pl.BlockSpec((9, C1, C2), lambda b: (0, 0, 0)),       # w2 (scale-folded)
                pl.BlockSpec((1, C2), lambda b: (0, 0)),              # shift2
                pl.BlockSpec((C2, nc), lambda b: (0, 0)),             # wc (scale-folded)
                pl.BlockSpec((1, nc), lambda b: (0, 0)),              # shiftc
                pl.BlockSpec((N_FULL, 1), lambda b: (0, 0)),          # mask1
                pl.BlockSpec((N_FULL, 1), lambda b: (0, 0)),          # mask2 / 64
            ],
            out_specs=pl.BlockSpec((1, 1, nc), lambda b: (b, 0, 0)),
            scratch_shapes=[pltpu.VMEM((SLACK, C1), jnp.float32)],
        ),
        compiler_params=pltpu.CompilerParams(
            dimension_semantics=("parallel",)),
    )(xf, params["w1"], params["b1"], params["w2"], params["b2"],
      params["wc"], params["bc"], params["m1"], params["m2"])
    return out.reshape(N, nc)


# ----------------------------------------------------------------------------
# Parameters (BN folded: scale merged into weights, shift kept) + masks
# ----------------------------------------------------------------------------
def fold_bn(gamma, beta, mean, var, eps=1e-5):
    scale = gamma / jnp.sqrt(var + eps)
    shift = beta - mean * scale
    return scale, shift


def init_params(key, in_channels, num_classes):
    ks = jax.random.split(key, 15)

    def bn(k0, k1, k2, k3, c):
        gamma = 0.5 + jax.random.uniform(k0, (c,), jnp.float32)
        beta = 0.1 * jax.random.normal(k1, (c,), jnp.float32)
        mean = 0.1 * jax.random.normal(k2, (c,), jnp.float32)
        var = 0.5 + jax.random.uniform(k3, (c,), jnp.float32)
        return fold_bn(gamma, beta, mean, var)

    # Conv weights stored as (tap = dy*3+dx, Cin, Cout)
    w1 = 0.1 * jax.random.normal(ks[0], (9, in_channels, C1), jnp.float32)
    s1, b1 = bn(ks[1], ks[2], ks[3], ks[4], C1)
    w2 = 0.1 * jax.random.normal(ks[5], (9, C1, C2), jnp.float32)
    s2, b2 = bn(ks[6], ks[7], ks[8], ks[9], C2)
    wc = 0.1 * jax.random.normal(ks[10], (C2, num_classes), jnp.float32)
    sc, bc = bn(ks[11], ks[12], ks[13], ks[14], num_classes)

    # Fold BN scale into the weights (per output channel); keep only the shift.
    w1 = w1 * s1[None, None, :]
    w2 = w2 * s2[None, None, :]
    wc = wc * sc[None, :]

    # Masks over the full-pitch (288-row) layout.
    q = np.arange(N_FULL)
    c = q % WP
    r = q // WP
    m1 = (c < W).astype(np.float32).reshape(N_FULL, 1)
    m2 = (((r % 2 == 0) & (c % 2 == 0) & (c < W)).astype(np.float32)
          / float(N_POOL)).reshape(N_FULL, 1)

    return dict(w1=w1, b1=b1.reshape(1, C1),
                w2=w2, b2=b2.reshape(1, C2),
                wc=wc, bc=bc.reshape(1, num_classes),
                m1=jnp.asarray(m1), m2=jnp.asarray(m2))


# ----------------------------------------------------------------------------
# Pure-JAX reference for correctness
# ----------------------------------------------------------------------------
def _reference_forward(params, x_nchw):
    x = jnp.transpose(x_nchw, (0, 2, 3, 1))

    def block(x, w9, shift, stride):
        cin, cout = w9.shape[1], w9.shape[2]
        w = w9.reshape(3, 3, cin, cout)
        y = jax.lax.conv_general_dilated(
            x, w, window_strides=(stride, stride), padding=((1, 1), (1, 1)),
            dimension_numbers=("NHWC", "HWIO", "NHWC"))
        return jnp.maximum(y + shift.reshape(1, 1, 1, cout), 0.0)

    x = block(x, params["w1"], params["b1"], 1)
    x = block(x, params["w2"], params["b2"], 2)
    y = jnp.maximum(jnp.einsum("nhwc,cd->nhwd", x, params["wc"])
                    + params["bc"].reshape(1, 1, 1, -1), 0.0)
    return jnp.mean(y, axis=(1, 2))


if __name__ == "__main__":
    batch, in_channels, input_size, num_classes = 2, 4, 16, 8
    key = jax.random.PRNGKey(0)
    kx, kp = jax.random.split(key)
    x = jax.random.normal(kx, (batch, in_channels, input_size, input_size),
                          dtype=jnp.float32)
    params = init_params(kp, in_channels, num_classes)

    out = jax.block_until_ready(anomaly_model_forward(params, x))
    assert out.shape == (batch, num_classes), out.shape

    ref = _reference_forward(params, x)
    np.testing.assert_allclose(np.asarray(out), np.asarray(ref),
                               rtol=1e-4, atol=1e-4)
    print("KERNEL_OK")
</pallas_src>

<mosaic_0001>
module attributes {stable_mosaic.version = 11 : i64} {
  func.func @_fused_forward_kernel(%arg0: i32, %arg1: memref<1x328x4xf32, #tpu.memory_space<vmem>>, %arg2: memref<9x4x16xf32, #tpu.memory_space<vmem>>, %arg3: memref<1x16xf32, #tpu.memory_space<vmem>>, %arg4: memref<9x16x32xf32, #tpu.memory_space<vmem>>, %arg5: memref<1x32xf32, #tpu.memory_space<vmem>>, %arg6: memref<32x8xf32, #tpu.memory_space<vmem>>, %arg7: memref<1x8xf32, #tpu.memory_space<vmem>>, %arg8: memref<288x1xf32, #tpu.memory_space<vmem>>, %arg9: memref<288x1xf32, #tpu.memory_space<vmem>>, %arg10: memref<1x1x8xf32, #tpu.memory_space<vmem>>, %arg11: memref<328x16xf32, #tpu.memory_space<vmem>>) attributes {dimension_semantics = [#tpu.dimension_semantics<parallel>], iteration_bounds = array<i64: 2>, scalar_prefetch = 0 : i64, scratch_operands = 1 : i64, tpu.core_type = #tpu.core_type<tc>, window_params = [{transform_indices = @transform_0, window_bounds = array<i64: 1, 328, 4>}, {pipeline_mode = #tpu.pipeline_mode<synchronous>, transform_indices = @transform_1, window_bounds = array<i64: 9, 4, 16>}, {pipeline_mode = #tpu.pipeline_mode<synchronous>, transform_indices = @transform_2, window_bounds = array<i64: 1, 16>}, {pipeline_mode = #tpu.pipeline_mode<synchronous>, transform_indices = @transform_3, window_bounds = array<i64: 9, 16, 32>}, {pipeline_mode = #tpu.pipeline_mode<synchronous>, transform_indices = @transform_4, window_bounds = array<i64: 1, 32>}, {pipeline_mode = #tpu.pipeline_mode<synchronous>, transform_indices = @transform_5, window_bounds = array<i64: 32, 8>}, {pipeline_mode = #tpu.pipeline_mode<synchronous>, transform_indices = @transform_6, window_bounds = array<i64: 1, 8>}, {pipeline_mode = #tpu.pipeline_mode<synchronous>, transform_indices = @transform_7, window_bounds = array<i64: 288, 1>}, {pipeline_mode = #tpu.pipeline_mode<synchronous>, transform_indices = @transform_8, window_bounds = array<i64: 288, 1>}, {transform_indices = @transform_9, window_bounds = array<i64: 1, 1, 8>}]} {
    %c0 = arith.constant 0 : index
    %c0_0 = arith.constant 0 : index
    %c0_1 = arith.constant 0 : index
    %0 = vector.load %arg2[%c0, %c0_0, %c0_1] : memref<9x4x16xf32, #tpu.memory_space<vmem>>, vector<9x4x16xf32>
    %c0_2 = arith.constant 0 : index
    %c0_3 = arith.constant 0 : index
    %c0_4 = arith.constant 0 : index
    %1 = vector.load %arg4[%c0_2, %c0_3, %c0_4] : memref<9x16x32xf32, #tpu.memory_space<vmem>>, vector<9x16x32xf32>
    %cst = arith.constant 0.000000e+00 : f32
    %2 = vector.broadcast %cst : f32 to vector<288x16xf32>
    %c0_5 = arith.constant 0 : index
    %c0_6 = arith.constant 0 : index
    %c0_7 = arith.constant 0 : index
    %3 = vector.load %arg1[%c0_5, %c0_6, %c0_7] : memref<1x328x4xf32, #tpu.memory_space<vmem>>, vector<1x288x4xf32>
    %4 = vector.shape_cast %3 : vector<1x288x4xf32> to vector<288x4xf32>
    %5 = vector.extract_strided_slice %0 {offsets = [0, 0, 0], sizes = [1, 4, 16], strides = [1, 1, 1]} : vector<9x4x16xf32> to vector<1x4x16xf32>
    %6 = vector.shape_cast %5 : vector<1x4x16xf32> to vector<4x16xf32>
    %cst_8 = arith.constant dense<0.000000e+00> : vector<288x16xf32>
    %7 = tpu.matmul %4, %6, %cst_8 {dimension_numbers = #tpu.dot_dimension_numbers<[1], [0], [0], [1], [0, 0, 1, 1], [], []>} : vector<288x4xf32>, vector<4x16xf32>, vector<288x16xf32> -> vector<288x16xf32>
    %8 = arith.addf %2, %7 : vector<288x16xf32>
    %c0_9 = arith.constant 0 : index
    %c1 = arith.constant 1 : index
    %c0_10 = arith.constant 0 : index
    %9 = vector.load %arg1[%c0_9, %c1, %c0_10] : memref<1x328x4xf32, #tpu.memory_space<vmem>>, vector<1x288x4xf32>
    %10 = vector.shape_cast %9 : vector<1x288x4xf32> to vector<288x4xf32>
    %11 = vector.extract_strided_slice %0 {offsets = [1, 0, 0], sizes = [1, 4, 16], strides = [1, 1, 1]} : vector<9x4x16xf32> to vector<1x4x16xf32>
    %12 = vector.shape_cast %11 : vector<1x4x16xf32> to vector<4x16xf32>
    %cst_11 = arith.constant dense<0.000000e+00> : vector<288x16xf32>
    %13 = tpu.matmul %10, %12, %cst_11 {dimension_numbers = #tpu.dot_dimension_numbers<[1], [0], [0], [1], [0, 0, 1, 1], [], []>} : vector<288x4xf32>, vector<4x16xf32>, vector<288x16xf32> -> vector<288x16xf32>
    %14 = arith.addf %8, %13 : vector<288x16xf32>
    %c0_12 = arith.constant 0 : index
    %c2 = arith.constant 2 : index
    %c0_13 = arith.constant 0 : index
    %15 = vector.load %arg1[%c0_12, %c2, %c0_13] : memref<1x328x4xf32, #tpu.memory_space<vmem>>, vector<1x288x4xf32>
    %16 = vector.shape_cast %15 : vector<1x288x4xf32> to vector<288x4xf32>
    %17 = vector.extract_strided_slice %0 {offsets = [2, 0, 0], sizes = [1, 4, 16], strides = [1, 1, 1]} : vector<9x4x16xf32> to vector<1x4x16xf32>
    %18 = vector.shape_cast %17 : vector<1x4x16xf32> to vector<4x16xf32>
    %cst_14 = arith.constant dense<0.000000e+00> : vector<288x16xf32>
    %19 = tpu.matmul %16, %18, %cst_14 {dimension_numbers = #tpu.dot_dimension_numbers<[1], [0], [0], [1], [0, 0, 1, 1], [], []>} : vector<288x4xf32>, vector<4x16xf32>, vector<288x16xf32> -> vector<288x16xf32>
    %20 = arith.addf %14, %19 : vector<288x16xf32>
    %c0_15 = arith.constant 0 : index
    %c18 = arith.constant 18 : index
    %c0_16 = arith.constant 0 : index
    %21 = vector.load %arg1[%c0_15, %c18, %c0_16] : memref<1x328x4xf32, #tpu.memory_space<vmem>>, vector<1x288x4xf32>
    %22 = vector.shape_cast %21 : vector<1x288x4xf32> to vector<288x4xf32>
    %23 = vector.extract_strided_slice %0 {offsets = [3, 0, 0], sizes = [1, 4, 16], strides = [1, 1, 1]} : vector<9x4x16xf32> to vector<1x4x16xf32>
    %24 = vector.shape_cast %23 : vector<1x4x16xf32> to vector<4x16xf32>
    %cst_17 = arith.constant dense<0.000000e+00> : vector<288x16xf32>
    %25 = tpu.matmul %22, %24, %cst_17 {dimension_numbers = #tpu.dot_dimension_numbers<[1], [0], [0], [1], [0, 0, 1, 1], [], []>} : vector<288x4xf32>, vector<4x16xf32>, vector<288x16xf32> -> vector<288x16xf32>
    %26 = arith.addf %20, %25 : vector<288x16xf32>
    %c0_18 = arith.constant 0 : index
    %c19 = arith.constant 19 : index
    %c0_19 = arith.constant 0 : index
    %27 = vector.load %arg1[%c0_18, %c19, %c0_19] : memref<1x328x4xf32, #tpu.memory_space<vmem>>, vector<1x288x4xf32>
    %28 = vector.shape_cast %27 : vector<1x288x4xf32> to vector<288x4xf32>
    %29 = vector.extract_strided_slice %0 {offsets = [4, 0, 0], sizes = [1, 4, 16], strides = [1, 1, 1]} : vector<9x4x16xf32> to vector<1x4x16xf32>
    %30 = vector.shape_cast %29 : vector<1x4x16xf32> to vector<4x16xf32>
    %cst_20 = arith.constant dense<0.000000e+00> : vector<288x16xf32>
    %31 = tpu.matmul %28, %30, %cst_20 {dimension_numbers = #tpu.dot_dimension_numbers<[1], [0], [0], [1], [0, 0, 1, 1], [], []>} : vector<288x4xf32>, vector<4x16xf32>, vector<288x16xf32> -> vector<288x16xf32>
    %32 = arith.addf %26, %31 : vector<288x16xf32>
    %c0_21 = arith.constant 0 : index
    %c20 = arith.constant 20 : index
    %c0_22 = arith.constant 0 : index
    %33 = vector.load %arg1[%c0_21, %c20, %c0_22] : memref<1x328x4xf32, #tpu.memory_space<vmem>>, vector<1x288x4xf32>
    %34 = vector.shape_cast %33 : vector<1x288x4xf32> to vector<288x4xf32>
    %35 = vector.extract_strided_slice %0 {offsets = [5, 0, 0], sizes = [1, 4, 16], strides = [1, 1, 1]} : vector<9x4x16xf32> to vector<1x4x16xf32>
    %36 = vector.shape_cast %35 : vector<1x4x16xf32> to vector<4x16xf32>
    %cst_23 = arith.constant dense<0.000000e+00> : vector<288x16xf32>
    %37 = tpu.matmul %34, %36, %cst_23 {dimension_numbers = #tpu.dot_dimension_numbers<[1], [0], [0], [1], [0, 0, 1, 1], [], []>} : vector<288x4xf32>, vector<4x16xf32>, vector<288x16xf32> -> vector<288x16xf32>
    %38 = arith.addf %32, %37 : vector<288x16xf32>
    %c0_24 = arith.constant 0 : index
    %c36 = arith.constant 36 : index
    %c0_25 = arith.constant 0 : index
    %39 = vector.load %arg1[%c0_24, %c36, %c0_25] : memref<1x328x4xf32, #tpu.memory_space<vmem>>, vector<1x288x4xf32>
    %40 = vector.shape_cast %39 : vector<1x288x4xf32> to vector<288x4xf32>
    %41 = vector.extract_strided_slice %0 {offsets = [6, 0, 0], sizes = [1, 4, 16], strides = [1, 1, 1]} : vector<9x4x16xf32> to vector<1x4x16xf32>
    %42 = vector.shape_cast %41 : vector<1x4x16xf32> to vector<4x16xf32>
    %cst_26 = arith.constant dense<0.000000e+00> : vector<288x16xf32>
    %43 = tpu.matmul %40, %42, %cst_26 {dimension_numbers = #tpu.dot_dimension_numbers<[1], [0], [0], [1], [0, 0, 1, 1], [], []>} : vector<288x4xf32>, vector<4x16xf32>, vector<288x16xf32> -> vector<288x16xf32>
    %44 = arith.addf %38, %43 : vector<288x16xf32>
    %c0_27 = arith.constant 0 : index
    %c37 = arith.constant 37 : index
    %c0_28 = arith.constant 0 : index
    %45 = vector.load %arg1[%c0_27, %c37, %c0_28] : memref<1x328x4xf32, #tpu.memory_space<vmem>>, vector<1x288x4xf32>
    %46 = vector.shape_cast %45 : vector<1x288x4xf32> to vector<288x4xf32>
    %47 = vector.extract_strided_slice %0 {offsets = [7, 0, 0], sizes = [1, 4, 16], strides = [1, 1, 1]} : vector<9x4x16xf32> to vector<1x4x16xf32>
    %48 = vector.shape_cast %47 : vector<1x4x16xf32> to vector<4x16xf32>
    %cst_29 = arith.constant dense<0.000000e+00> : vector<288x16xf32>
    %49 = tpu.matmul %46, %48, %cst_29 {dimension_numbers = #tpu.dot_dimension_numbers<[1], [0], [0], [1], [0, 0, 1, 1], [], []>} : vector<288x4xf32>, vector<4x16xf32>, vector<288x16xf32> -> vector<288x16xf32>
    %50 = arith.addf %44, %49 : vector<288x16xf32>
    %c0_30 = arith.constant 0 : index
    %c38 = arith.constant 38 : index
    %c0_31 = arith.constant 0 : index
    %51 = vector.load %arg1[%c0_30, %c38, %c0_31] : memref<1x328x4xf32, #tpu.memory_space<vmem>>, vector<1x288x4xf32>
    %52 = vector.shape_cast %51 : vector<1x288x4xf32> to vector<288x4xf32>
    %53 = vector.extract_strided_slice %0 {offsets = [8, 0, 0], sizes = [1, 4, 16], strides = [1, 1, 1]} : vector<9x4x16xf32> to vector<1x4x16xf32>
    %54 = vector.shape_cast %53 : vector<1x4x16xf32> to vector<4x16xf32>
    %cst_32 = arith.constant dense<0.000000e+00> : vector<288x16xf32>
    %55 = tpu.matmul %52, %54, %cst_32 {dimension_numbers = #tpu.dot_dimension_numbers<[1], [0], [0], [1], [0, 0, 1, 1], [], []>} : vector<288x4xf32>, vector<4x16xf32>, vector<288x16xf32> -> vector<288x16xf32>
    %56 = arith.addf %50, %55 : vector<288x16xf32>
    %c0_33 = arith.constant 0 : index
    %c0_34 = arith.constant 0 : index
    %57 = vector.load %arg3[%c0_33, %c0_34] : memref<1x16xf32, #tpu.memory_space<vmem>>, vector<1x16xf32>
    %58 = vector.broadcast %57 : vector<1x16xf32> to vector<288x16xf32>
    %59 = arith.addf %56, %58 : vector<288x16xf32>
    %cst_35 = arith.constant 0.000000e+00 : f32
    %60 = vector.broadcast %cst_35 : f32 to vector<288x16xf32>
    %61 = arith.maximumf %59, %60 : vector<288x16xf32>
    %c0_36 = arith.constant 0 : index
    %c0_37 = arith.constant 0 : index
    %62 = vector.load %arg8[%c0_36, %c0_37] : memref<288x1xf32, #tpu.memory_space<vmem>>, vector<288x1xf32>
    %63 = vector.broadcast %62 : vector<288x1xf32> to vector<288x16xf32>
    %64 = arith.mulf %61, %63 : vector<288x16xf32>
    %cst_38 = arith.constant 0.000000e+00 : f32
    %65 = vector.broadcast %cst_38 : f32 to vector<328x16xf32>
    %c0_39 = arith.constant 0 : index
    %c0_40 = arith.constant 0 : index
    %66 = vector.load %arg11[%c0_39, %c0_40] : memref<328x16xf32, #tpu.memory_space<vmem>>, vector<328x16xf32>
    tpu.vector_store %arg11[%c0_39, %c0_40], %65 {strides = array<i32>} : memref<328x16xf32, #tpu.memory_space<vmem>>, vector<328x16xf32>,
    %c19_41 = arith.constant 19 : index
    %c0_42 = arith.constant 0 : index
    %67 = vector.load %arg11[%c19_41, %c0_42] : memref<328x16xf32, #tpu.memory_space<vmem>>, vector<288x16xf32>
    tpu.vector_store %arg11[%c19_41, %c0_42], %64 {strides = array<i32>} : memref<328x16xf32, #tpu.memory_space<vmem>>, vector<288x16xf32>,
    %cst_43 = arith.constant 0.000000e+00 : f32
    %68 = vector.broadcast %cst_43 : f32 to vector<288x32xf32>
    %c0_44 = arith.constant 0 : index
    %c0_45 = arith.constant 0 : index
    %69 = vector.load %arg11[%c0_44, %c0_45] : memref<328x16xf32, #tpu.memory_space<vmem>>, vector<288x16xf32>
    %70 = vector.extract_strided_slice %1 {offsets = [0, 0, 0], sizes = [1, 16, 32], strides = [1, 1, 1]} : vector<9x16x32xf32> to vector<1x16x32xf32>
    %71 = vector.shape_cast %70 : vector<1x16x32xf32> to vector<16x32xf32>
    %cst_46 = arith.constant dense<0.000000e+00> : vector<288x32xf32>
    %72 = tpu.matmul %69, %71, %cst_46 {dimension_numbers = #tpu.dot_dimension_numbers<[1], [0], [0], [1], [0, 0, 1, 1], [], []>} : vector<288x16xf32>, vector<16x32xf32>, vector<288x32xf32> -> vector<288x32xf32>
    %73 = arith.addf %68, %72 : vector<288x32xf32>
    %c1_47 = arith.constant 1 : index
    %c0_48 = arith.constant 0 : index
    %74 = vector.load %arg11[%c1_47, %c0_48] : memref<328x16xf32, #tpu.memory_space<vmem>>, vector<288x16xf32>
    %75 = vector.extract_strided_slice %1 {offsets = [1, 0, 0], sizes = [1, 16, 32], strides = [1, 1, 1]} : vector<9x16x32xf32> to vector<1x16x32xf32>
    %76 = vector.shape_cast %75 : vector<1x16x32xf32> to vector<16x32xf32>
    %cst_49 = arith.constant dense<0.000000e+00> : vector<288x32xf32>
    %77 = tpu.matmul %74, %76, %cst_49 {dimension_numbers = #tpu.dot_dimension_numbers<[1], [0], [0], [1], [0, 0, 1, 1], [], []>} : vector<288x16xf32>, vector<16x32xf32>, vector<288x32xf32> -> vector<288x32xf32>
    %78 = arith.addf %73, %77 : vector<288x32xf32>
    %c2_50 = arith.constant 2 : index
    %c0_51 = arith.constant 0 : index
    %79 = vector.load %arg11[%c2_50, %c0_51] : memref<328x16xf32, #tpu.memory_space<vmem>>, vector<288x16xf32>
    %80 = vector.extract_strided_slice %1 {offsets = [2, 0, 0], sizes = [1, 16, 32], strides = [1, 1, 1]} : vector<9x16x32xf32> to vector<1x16x32xf32>
    %81 = vector.shape_cast %80 : vector<1x16x32xf32> to vector<16x32xf32>
    %cst_52 = arith.constant dense<0.000000e+00> : vector<288x32xf32>
    %82 = tpu.matmul %79, %81, %cst_52 {dimension_numbers = #tpu.dot_dimension_numbers<[1], [0], [0], [1], [0, 0, 1, 1], [], []>} : vector<288x16xf32>, vector<16x32xf32>, vector<288x32xf32> -> vector<288x32xf32>
    %83 = arith.addf %78, %82 : vector<288x32xf32>
    %c18_53 = arith.constant 18 : index
    %c0_54 = arith.constant 0 : index
    %84 = vector.load %arg11[%c18_53, %c0_54] : memref<328x16xf32, #tpu.memory_space<vmem>>, vector<288x16xf32>
    %85 = vector.extract_strided_slice %1 {offsets = [3, 0, 0], sizes = [1, 16, 32], strides = [1, 1, 1]} : vector<9x16x32xf32> to vector<1x16x32xf32>
    %86 = vector.shape_cast %85 : vector<1x16x32xf32> to vector<16x32xf32>
    %cst_55 = arith.constant dense<0.000000e+00> : vector<288x32xf32>
    %87 = tpu.matmul %84, %86, %cst_55 {dimension_numbers = #tpu.dot_dimension_numbers<[1], [0], [0], [1], [0, 0, 1, 1], [], []>} : vector<288x16xf32>, vector<16x32xf32>, vector<288x32xf32> -> vector<288x32xf32>
    %88 = arith.addf %83, %87 : vector<288x32xf32>
    %c19_56 = arith.constant 19 : index
    %c0_57 = arith.constant 0 : index
    %89 = vector.load %arg11[%c19_56, %c0_57] : memref<328x16xf32, #tpu.memory_space<vmem>>, vector<288x16xf32>
    %90 = vector.extract_strided_slice %1 {offsets = [4, 0, 0], sizes = [1, 16, 32], strides = [1, 1, 1]} : vector<9x16x32xf32> to vector<1x16x32xf32>
    %91 = vector.shape_cast %90 : vector<1x16x32xf32> to vector<16x32xf32>
    %cst_58 = arith.constant dense<0.000000e+00> : vector<288x32xf32>
    %92 = tpu.matmul %89, %91, %cst_58 {dimension_numbers = #tpu.dot_dimension_numbers<[1], [0], [0], [1], [0, 0, 1, 1], [], []>} : vector<288x16xf32>, vector<16x32xf32>, vector<288x32xf32> -> vector<288x32xf32>
    %93 = arith.addf %88, %92 : vector<288x32xf32>
    %c20_59 = arith.constant 20 : index
    %c0_60 = arith.constant 0 : index
    %94 = vector.load %arg11[%c20_59, %c0_60] : memref<328x16xf32, #tpu.memory_space<vmem>>, vector<288x16xf32>
    %95 = vector.extract_strided_slice %1 {offsets = [5, 0, 0], sizes = [1, 16, 32], strides = [1, 1, 1]} : vector<9x16x32xf32> to vector<1x16x32xf32>
    %96 = vector.shape_cast %95 : vector<1x16x32xf32> to vector<16x32xf32>
    %cst_61 = arith.constant dense<0.000000e+00> : vector<288x32xf32>
    %97 = tpu.matmul %94, %96, %cst_61 {dimension_numbers = #tpu.dot_dimension_numbers<[1], [0], [0], [1], [0, 0, 1, 1], [], []>} : vector<288x16xf32>, vector<16x32xf32>, vector<288x32xf32> -> vector<288x32xf32>
    %98 = arith.addf %93, %97 : vector<288x32xf32>
    %c36_62 = arith.constant 36 : index
    %c0_63 = arith.constant 0 : index
    %99 = vector.load %arg11[%c36_62, %c0_63] : memref<328x16xf32, #tpu.memory_space<vmem>>, vector<288x16xf32>
    %100 = vector.extract_strided_slice %1 {offsets = [6, 0, 0], sizes = [1, 16, 32], strides = [1, 1, 1]} : vector<9x16x32xf32> to vector<1x16x32xf32>
    %101 = vector.shape_cast %100 : vector<1x16x32xf32> to vector<16x32xf32>
    %cst_64 = arith.constant dense<0.000000e+00> : vector<288x32xf32>
    %102 = tpu.matmul %99, %101, %cst_64 {dimension_numbers = #tpu.dot_dimension_numbers<[1], [0], [0], [1], [0, 0, 1, 1], [], []>} : vector<288x16xf32>, vector<16x32xf32>, vector<288x32xf32> -> vector<288x32xf32>
    %103 = arith.addf %98, %102 : vector<288x32xf32>
    %c37_65 = arith.constant 37 : index
    %c0_66 = arith.constant 0 : index
    %104 = vector.load %arg11[%c37_65, %c0_66] : memref<328x16xf32, #tpu.memory_space<vmem>>, vector<288x16xf32>
    %105 = vector.extract_strided_slice %1 {offsets = [7, 0, 0], sizes = [1, 16, 32], strides = [1, 1, 1]} : vector<9x16x32xf32> to vector<1x16x32xf32>
    %106 = vector.shape_cast %105 : vector<1x16x32xf32> to vector<16x32xf32>
    %cst_67 = arith.constant dense<0.000000e+00> : vector<288x32xf32>
    %107 = tpu.matmul %104, %106, %cst_67 {dimension_numbers = #tpu.dot_dimension_numbers<[1], [0], [0], [1], [0, 0, 1, 1], [], []>} : vector<288x16xf32>, vector<16x32xf32>, vector<288x32xf32> -> vector<288x32xf32>
    %108 = arith.addf %103, %107 : vector<288x32xf32>
    %c38_68 = arith.constant 38 : index
    %c0_69 = arith.constant 0 : index
    %109 = vector.load %arg11[%c38_68, %c0_69] : memref<328x16xf32, #tpu.memory_space<vmem>>, vector<288x16xf32>
    %110 = vector.extract_strided_slice %1 {offsets = [8, 0, 0], sizes = [1, 16, 32], strides = [1, 1, 1]} : vector<9x16x32xf32> to vector<1x16x32xf32>
    %111 = vector.shape_cast %110 : vector<1x16x32xf32> to vector<16x32xf32>
    %cst_70 = arith.constant dense<0.000000e+00> : vector<288x32xf32>
    %112 = tpu.matmul %109, %111, %cst_70 {dimension_numbers = #tpu.dot_dimension_numbers<[1], [0], [0], [1], [0, 0, 1, 1], [], []>} : vector<288x16xf32>, vector<16x32xf32>, vector<288x32xf32> -> vector<288x32xf32>
    %113 = arith.addf %108, %112 : vector<288x32xf32>
    %c0_71 = arith.constant 0 : index
    %c0_72 = arith.constant 0 : index
    %114 = vector.load %arg5[%c0_71, %c0_72] : memref<1x32xf32, #tpu.memory_space<vmem>>, vector<1x32xf32>
    %115 = vector.broadcast %114 : vector<1x32xf32> to vector<288x32xf32>
    %116 = arith.addf %113, %115 : vector<288x32xf32>
    %cst_73 = arith.constant 0.000000e+00 : f32
    %117 = vector.broadcast %cst_73 : f32 to vector<288x32xf32>
    %118 = arith.maximumf %116, %117 : vector<288x32xf32>
    %c0_74 = arith.constant 0 : index
    %c0_75 = arith.constant 0 : index
    %119 = vector.load %arg6[%c0_74, %c0_75] : memref<32x8xf32, #tpu.memory_space<vmem>>, vector<32x8xf32>
    %cst_76 = arith.constant dense<0.000000e+00> : vector<288x8xf32>
    %120 = tpu.matmul %118, %119, %cst_76 {dimension_numbers = #tpu.dot_dimension_numbers<[1], [0], [0], [1], [0, 0, 1, 1], [], []>} : vector<288x32xf32>, vector<32x8xf32>, vector<288x8xf32> -> vector<288x8xf32>
    %c0_77 = arith.constant 0 : index
    %c0_78 = arith.constant 0 : index
    %121 = vector.load %arg7[%c0_77, %c0_78] : memref<1x8xf32, #tpu.memory_space<vmem>>, vector<1x8xf32>
    %122 = vector.broadcast %121 : vector<1x8xf32> to vector<288x8xf32>
    %123 = arith.addf %120, %122 : vector<288x8xf32>
    %cst_79 = arith.constant 0.000000e+00 : f32
    %124 = vector.broadcast %cst_79 : f32 to vector<288x8xf32>
    %125 = arith.maximumf %123, %124 : vector<288x8xf32>
    %c0_80 = arith.constant 0 : index
    %c0_81 = arith.constant 0 : index
    %126 = vector.load %arg9[%c0_80, %c0_81] : memref<288x1xf32, #tpu.memory_space<vmem>>, vector<288x1xf32>
    %127 = vector.broadcast %126 : vector<288x1xf32> to vector<288x8xf32>
    %128 = arith.mulf %125, %127 : vector<288x8xf32>
    %cst_82 = arith.constant dense<0.000000e+00> : vector<8xf32>
    %129 = vector.multi_reduction <add>, %128, %cst_82 [0] : vector<288x8xf32> to vector<8xf32>
    %130 = vector.shape_cast %129 : vector<8xf32> to vector<1x8xf32>
    %c0_83 = arith.constant 0 : index
    %c0_84 = arith.constant 0 : index
    %c0_85 = arith.constant 0 : index
    %131 = vector.load %arg10[%c0_83, %c0_84, %c0_85] : memref<1x1x8xf32, #tpu.memory_space<vmem>>, vector<1x1x8xf32>
    %132 = vector.shape_cast %131 : vector<1x1x8xf32> to vector<1x8xf32>
    %133 = vector.shape_cast %130 : vector<1x8xf32> to vector<1x1x8xf32>
    tpu.vector_store %arg10[%c0_83, %c0_84, %c0_85], %133 {strides = array<i32>} : memref<1x1x8xf32, #tpu.memory_space<vmem>>, vector<1x1x8xf32>,
    return
  }
  func.func @transform_0(%arg0: i32) -> (i32, i32, i32) {
    %c0_i32 = arith.constant 0 : i32
    %c0_i32_0 = arith.constant 0 : i32
    %c0_i32_1 = arith.constant 0 : i32
    return %arg0, %c0_i32, %c0_i32_0 : i32, i32, i32
  }
  func.func @transform_1(%arg0: i32) -> (i32, i32, i32) {
    %c0_i32 = arith.constant 0 : i32
    %c0_i32_0 = arith.constant 0 : i32
    %c0_i32_1 = arith.constant 0 : i32
    %c0_i32_2 = arith.constant 0 : i32
    return %c0_i32, %c0_i32_0, %c0_i32_1 : i32, i32, i32
  }
  func.func @transform_2(%arg0: i32) -> (i32, i32) {
    %c0_i32 = arith.constant 0 : i32
    %c0_i32_0 = arith.constant 0 : i32
    %c0_i32_1 = arith.constant 0 : i32
    return %c0_i32, %c0_i32_0 : i32, i32
  }
  func.func @transform_3(%arg0: i32) -> (i32, i32, i32) {
    %c0_i32 = arith.constant 0 : i32
    %c0_i32_0 = arith.constant 0 : i32
    %c0_i32_1 = arith.constant 0 : i32
    %c0_i32_2 = arith.constant 0 : i32
    return %c0_i32, %c0_i32_0, %c0_i32_1 : i32, i32, i32
  }
  func.func @transform_4(%arg0: i32) -> (i32, i32) {
    %c0_i32 = arith.constant 0 : i32
    %c0_i32_0 = arith.constant 0 : i32
    %c0_i32_1 = arith.constant 0 : i32
    return %c0_i32, %c0_i32_0 : i32, i32
  }
  func.func @transform_5(%arg0: i32) -> (i32, i32) {
    %c0_i32 = arith.constant 0 : i32
    %c0_i32_0 = arith.constant 0 : i32
    %c0_i32_1 = arith.constant 0 : i32
    return %c0_i32, %c0_i32_0 : i32, i32
  }
  func.func @transform_6(%arg0: i32) -> (i32, i32) {
    %c0_i32 = arith.constant 0 : i32
    %c0_i32_0 = arith.constant 0 : i32
    %c0_i32_1 = arith.constant 0 : i32
    return %c0_i32, %c0_i32_0 : i32, i32
  }
  func.func @transform_7(%arg0: i32) -> (i32, i32) {
    %c0_i32 = arith.constant 0 : i32
    %c0_i32_0 = arith.constant 0 : i32
    %c0_i32_1 = arith.constant 0 : i32
    return %c0_i32, %c0_i32_0 : i32, i32
  }
  func.func @transform_8(%arg0: i32) -> (i32, i32) {
    %c0_i32 = arith.constant 0 : i32
    %c0_i32_0 = arith.constant 0 : i32
    %c0_i32_1 = arith.constant 0 : i32
    return %c0_i32, %c0_i32_0 : i32, i32
  }
  func.func @transform_9(%arg0: i32) -> (i32, i32, i32) {
    %c0_i32 = arith.constant 0 : i32
    %c0_i32_0 = arith.constant 0 : i32
    %c0_i32_1 = arith.constant 0 : i32
    return %arg0, %c0_i32, %c0_i32_0 : i32, i32, i32
  }
}

</mosaic_0001>

<llo_original>
// kernel: tpu_custom_call.1
$region0: #{tpu_custom_call.1}
  #allocation0 [shape = 'u32[]', space=smem, size = 0x4, offset = 0x4, fixed_abs, tag = 'smem constant byte address 0x4 - core index']
  #allocation1 [shape = 'u32[144,128]{1,0:T(1,128)}', space=vmem, size = 0x12000, scoped, tag = 'internal scratch']
  #allocation2 [shape = 'f32[328,16]{1,0:T(8,128)}', space=vmem, size = 0x29000, scoped, tag = 'scratch operand']
  %s0 = inlined_call_operand.vmem [shape: f32[2,328,4], index: 0, kind: input, shape index: {}]
  %s1 = inlined_call_operand.vmem [shape: f32[9,4,16], index: 1, kind: input, shape index: {}]
  %s2 = inlined_call_operand.vmem [shape: f32[1,16], index: 2, kind: input, shape index: {}]
  %s3 = inlined_call_operand.vmem [shape: f32[9,16,32], index: 3, kind: input, shape index: {}]
  %s4 = inlined_call_operand.vmem [shape: f32[1,32], index: 4, kind: input, shape index: {}]
  %s5 = inlined_call_operand.vmem [shape: f32[32,8], index: 5, kind: input, shape index: {}]
  %s6 = inlined_call_operand.vmem [shape: f32[1,8], index: 6, kind: input, shape index: {}]
  %s7 = inlined_call_operand.vmem [shape: f32[288,1], index: 7, kind: input, shape index: {}]
  %s8 = inlined_call_operand.vmem [shape: f32[288,1], index: 8, kind: input, shape index: {}]
  %s9 = inlined_call_operand.hbm [shape: f32[2,1,8], index: 9, kind: output, shape index: {}]
  %s10 = sld [smem:[#allocation0]]
  $region69: #{tpu_custom_call.1} parent=0
    _
  %s12 = ssub.s32 1, %s10
  %s13 = scalar_select 0, %s12, %s10
  $region1: #{tpu_custom_call.1} parent=0
    #allocation3 [shape = 'u8[1024]{0}', space=vmem, size = 0x400, scoped, tag = 'output window, operand 0']
    #allocation4 [shape = 's32[2]{0}', space=sflag, size = 0x8, scoped, tag = 'scoped memory for tpu_custom_call.1']
    %14 = vsyncpa [#allocation4], 0
    %s15 = scalar_lea.sflag [#allocation4], 1
    %16 = vsyncpa %s15, 0
    loop: start=0, step=1, limit=4
    $region2: #{tpu_custom_call.1} parent=1 // loop_pre_header
      _
    $region3: #{tpu_custom_call.1} parent=1 // loop_header
      %s18 = sphi 0, %s22
      %p19 = scmp.ge.s32.totalorder %s18, 4
      %s28 = sphi 0, %s30
      %s31 = sphi 0, %s28
      %s32 = sphi 0, %s31
      %s48 = sphi 0, %s32
      %s52 = sphi 0, %s52
      %s54 = sphi 0, %s52
      %s55 = sphi 0, %s54
      %s69 = sphi 0, %s55
      %s73 = sphi 0, %s73
      %s75 = sphi 0, %s73
      %s76 = sphi 0, %s75
      %s90 = sphi 0, %s76
      %s94 = sphi 0, %s94
      %s96 = sphi 0, %s94
      %s97 = sphi 0, %s96
      %s111 = sphi 0, %s97
      %s115 = sphi 0, %s115
      %s117 = sphi 0, %s115
      %s118 = sphi 0, %s117
      %s132 = sphi 0, %s118
      %s136 = sphi 0, %s136
      %s138 = sphi 0, %s136
      %s139 = sphi 0, %s138
      %s153 = sphi 0, %s139
      %s157 = sphi 0, %s157
      %s159 = sphi 0, %s157
      %s160 = sphi 0, %s159
      %s174 = sphi 0, %s160
      %s178 = sphi 0, %s178
      %s180 = sphi 0, %s178
      %s181 = sphi 0, %s180
      %s195 = sphi 0, %s181
      %s199 = sphi 0, %s199
      %s201 = sphi 0, %s199
      %s202 = sphi 0, %s201
      %s216 = sphi 0, %s202
      %s222 = sphi 0, %s224
      %s225 = sphi 0, %s222
      %s226 = sphi 0, %s225
      %s242 = sphi 0, %s226
    $region4: #{tpu_custom_call.1} parent=1 // loop_header_branch
      %21 = sbr.rel (%p19) target = $region8
    $region5: #{tpu_custom_call.1} parent=1 // loop_body
      %s23 = ssub.s32 %s18, 1
      %s24 = ssub.s32 %s18, 2
      %s25 = sadd.s32 %s18, 1
      %s26 = ssub.s32 %s18, %s25
      %p27 = scmp.eq.s32.totalorder %s26, 0
      %s29 = sadd.s32 %s28, 1
      %s30 = scalar_select %p27, %s28, %s29
      %p33 = pneg %p27
      %p34 = scmp.eq.s32.totalorder %s18, 1
      %p35 = por %p33, %p34
      %p36 = scmp.ne.s32.totalorder %s28, %s31
      %p37 = scmp.eq.s32.totalorder %s18, 0
      %p38 = por %p36, %p37
      %p39 = scmp.ne.s32.totalorder %s28, %s31
      %p40 = scmp.eq.s32.totalorder %s23, 1
      %p41 = por %p39, %p40
      %p42 = scmp.ne.s32.totalorder %s31, %s32
      %p43 = scmp.eq.s32.totalorder %s23, 0
      %p44 = por %p42, %p43
      %p45 = scmp.ne.s32.totalorder %s31, %s32
      %p46 = scmp.eq.s32.totalorder %s24, 1
      %p47 = por %p45, %p46
      %p49 = scmp.ne.s32.totalorder %s32, %s48
      %p50 = scmp.eq.s32.totalorder %s24, 0
      %p51 = por %p49, %p50
      %s53 = sadd.s32 %s52, 1
      %p56 = scmp.eq.s32.totalorder %s18, 1
      %p57 = scmp.ne.s32.totalorder %s52, %s54
      %p58 = scmp.eq.s32.totalorder %s18, 0
      %p59 = por %p57, %p58
      %p60 = scmp.ne.s32.totalorder %s52, %s54
      %p61 = scmp.eq.s32.totalorder %s23, 1
      %p62 = por %p60, %p61
      %p63 = scmp.ne.s32.totalorder %s54, %s55
      %p64 = scmp.eq.s32.totalorder %s23, 0
      %p65 = por %p63, %p64
      %p66 = scmp.ne.s32.totalorder %s54, %s55
      %p67 = scmp.eq.s32.totalorder %s24, 1
      %p68 = por %p66, %p67
      %p70 = scmp.ne.s32.totalorder %s55, %s69
      %p71 = scmp.eq.s32.totalorder %s24, 0
      %p72 = por %p70, %p71
      %s74 = sadd.s32 %s73, 1
      %p77 = scmp.eq.s32.totalorder %s18, 1
      %p78 = scmp.ne.s32.totalorder %s73, %s75
      %p79 = scmp.eq.s32.totalorder %s18, 0
      %p80 = por %p78, %p79
      %p81 = scmp.ne.s32.totalorder %s73, %s75
      %p82 = scmp.eq.s32.totalorder %s23, 1
      %p83 = por %p81, %p82
      %p84 = scmp.ne.s32.totalorder %s75, %s76
      %p85 = scmp.eq.s32.totalorder %s23, 0
      %p86 = por %p84, %p85
      %p87 = scmp.ne.s32.totalorder %s75, %s76
      %p88 = scmp.eq.s32.totalorder %s24, 1
      %p89 = por %p87, %p88
      %p91 = scmp.ne.s32.totalorder %s76, %s90
      %p92 = scmp.eq.s32.totalorder %s24, 0
      %p93 = por %p91, %p92
      %s95 = sadd.s32 %s94, 1
      %p98 = scmp.eq.s32.totalorder %s18, 1
      %p99 = scmp.ne.s32.totalorder %s94, %s96
      %p100 = scmp.eq.s32.totalorder %s18, 0
      %p101 = por %p99, %p100
      %p102 = scmp.ne.s32.totalorder %s94, %s96
      %p103 = scmp.eq.s32.totalorder %s23, 1
      %p104 = por %p102, %p103
      %p105 = scmp.ne.s32.totalorder %s96, %s97
      %p106 = scmp.eq.s32.totalorder %s23, 0
      %p107 = por %p105, %p106
      %p108 = scmp.ne.s32.totalorder %s96, %s97
      %p109 = scmp.eq.s32.totalorder %s24, 1
      %p110 = por %p108, %p109
      %p112 = scmp.ne.s32.totalorder %s97, %s111
      %p113 = scmp.eq.s32.totalorder %s24, 0
      %p114 = por %p112, %p113
      %s116 = sadd.s32 %s115, 1
      %p119 = scmp.eq.s32.totalorder %s18, 1
      %p120 = scmp.ne.s32.totalorder %s115, %s117
      %p121 = scmp.eq.s32.totalorder %s18, 0
      %p122 = por %p120, %p121
      %p123 = scmp.ne.s32.totalorder %s115, %s117
      %p124 = scmp.eq.s32.totalorder %s23, 1
      %p125 = por %p123, %p124
      %p126 = scmp.ne.s32.totalorder %s117, %s118
      %p127 = scmp.eq.s32.totalorder %s23, 0
      %p128 = por %p126, %p127
      %p129 = scmp.ne.s32.totalorder %s117, %s118
      %p130 = scmp.eq.s32.totalorder %s24, 1
      %p131 = por %p129, %p130
      %p133 = scmp.ne.s32.totalorder %s118, %s132
      %p134 = scmp.eq.s32.totalorder %s24, 0
      %p135 = por %p133, %p134
      %s137 = sadd.s32 %s136, 1
      %p140 = scmp.eq.s32.totalorder %s18, 1
      %p141 = scmp.ne.s32.totalorder %s136, %s138
      %p142 = scmp.eq.s32.totalorder %s18, 0
      %p143 = por %p141, %p142
      %p144 = scmp.ne.s32.totalorder %s136, %s138
      %p145 = scmp.eq.s32.totalorder %s23, 1
      %p146 = por %p144, %p145
      %p147 = scmp.ne.s32.totalorder %s138, %s139
      %p148 = scmp.eq.s32.totalorder %s23, 0
      %p149 = por %p147, %p148
      %p150 = scmp.ne.s32.totalorder %s138, %s139
      %p151 = scmp.eq.s32.totalorder %s24, 1
      %p152 = por %p150, %p151
      %p154 = scmp.ne.s32.totalorder %s139, %s153
      %p155 = scmp.eq.s32.totalorder %s24, 0
      %p156 = por %p154, %p155
      %s158 = sadd.s32 %s157, 1
      %p161 = scmp.eq.s32.totalorder %s18, 1
      %p162 = scmp.ne.s32.totalorder %s157, %s159
      %p163 = scmp.eq.s32.totalorder %s18, 0
      %p164 = por %p162, %p163
      %p165 = scmp.ne.s32.totalorder %s157, %s159
      %p166 = scmp.eq.s32.totalorder %s23, 1
      %p167 = por %p165, %p166
      %p168 = scmp.ne.s32.totalorder %s159, %s160
      %p169 = scmp.eq.s32.totalorder %s23, 0
      %p170 = por %p168, %p169
      %p171 = scmp.ne.s32.totalorder %s159, %s160
      %p172 = scmp.eq.s32.totalorder %s24, 1
      %p173 = por %p171, %p172
      %p175 = scmp.ne.s32.totalorder %s160, %s174
      %p176 = scmp.eq.s32.totalorder %s24, 0
      %p177 = por %p175, %p176
      %s179 = sadd.s32 %s178, 1
      %p182 = scmp.eq.s32.totalorder %s18, 1
      %p183 = scmp.ne.s32.totalorder %s178, %s180
      %p184 = scmp.eq.s32.totalorder %s18, 0
      %p185 = por %p183, %p184
      %p186 = scmp.ne.s32.totalorder %s178, %s180
      %p187 = scmp.eq.s32.totalorder %s23, 1
      %p188 = por %p186, %p187
      %p189 = scmp.ne.s32.totalorder %s180, %s181
      %p190 = scmp.eq.s32.totalorder %s23, 0
      %p191 = por %p189, %p190
      %p192 = scmp.ne.s32.totalorder %s180, %s181
      %p193 = scmp.eq.s32.totalorder %s24, 1
      %p194 = por %p192, %p193
      %p196 = scmp.ne.s32.totalorder %s181, %s195
      %p197 = scmp.eq.s32.totalorder %s24, 0
      %p198 = por %p196, %p197
      %s200 = sadd.s32 %s199, 1
      %p203 = scmp.eq.s32.totalorder %s18, 1
      %p204 = scmp.ne.s32.totalorder %s199, %s201
      %p205 = scmp.eq.s32.totalorder %s18, 0
      %p206 = por %p204, %p205
      %p207 = scmp.ne.s32.totalorder %s199, %s201
      %p208 = scmp.eq.s32.totalorder %s23, 1
      %p209 = por %p207, %p208
      %p210 = scmp.ne.s32.totalorder %s201, %s202
      %p211 = scmp.eq.s32.totalorder %s23, 0
      %p212 = por %p210, %p211
      %p213 = scmp.ne.s32.totalorder %s201, %s202
      %p214 = scmp.eq.s32.totalorder %s24, 1
      %p215 = por %p213, %p214
      %p217 = scmp.ne.s32.totalorder %s202, %s216
      %p218 = scmp.eq.s32.totalorder %s24, 0
      %p219 = por %p217, %p218
      %s220 = ssub.s32 %s18, %s25
      %p221 = scmp.eq.s32.totalorder %s220, 0
      %s223 = sadd.s32 %s222, 1
      %s224 = scalar_select %p221, %s222, %s223
      %p227 = pneg %p221
      %p228 = scmp.eq.s32.totalorder %s18, 1
      %p229 = por %p227, %p228
      %p230 = scmp.ne.s32.totalorder %s222, %s225
      %p231 = scmp.eq.s32.totalorder %s18, 0
      %p232 = por %p230, %p231
      %p233 = scmp.ne.s32.totalorder %s222, %s225
      %p234 = scmp.eq.s32.totalorder %s23, 1
      %p235 = por %p233, %p234
      %p236 = scmp.ne.s32.totalorder %s225, %s226
      %p237 = scmp.eq.s32.totalorder %s23, 0
      %p238 = por %p236, %p237
      %p239 = scmp.ne.s32.totalorder %s225, %s226
      %p240 = scmp.eq.s32.totalorder %s24, 1
      %p241 = por %p239, %p240
      %p243 = scmp.ne.s32.totalorder %s226, %s242
      %p244 = scmp.eq.s32.totalorder %s24, 0
      %p245 = por %p243, %p244
      %p246 = scmp.le.s32.totalorder 1, %s18
      %p247 = scmp.lt.s32.totalorder %s18, 3
      %p248 = pnand %p246, %p247
      %p249 = pneg %p248
      // Predicated region
      $region9: #{tpu_custom_call.1} parent=5 // pred_check
        _
      $region10: #{tpu_custom_call.1} parent=5 // pred_check_branch
        %251 = sbr.rel (%p248) target = $region12
      $region11: #{tpu_custom_call.1} parent=5 // pred_region
        %s252 = ssub.s32 %s18, 1
        // Predicated region
        $region13: #{tpu_custom_call.1} parent=11 // pred_check
          %p253 = pneg %p65
        $region14: #{tpu_custom_call.1} parent=11 // pred_check_branch
          %255 = sbr.rel (%p253) target = $region16
        $region15: #{tpu_custom_call.1} parent=11 // pred_region
          _
        $region16: #{tpu_custom_call.1} parent=11 // pred_fallthru
          _
        // Predicated region
        $region17: #{tpu_custom_call.1} parent=11 // pred_check
          %p256 = pneg %p86
        $region18: #{tpu_custom_call.1} parent=11 // pred_check_branch
          %258 = sbr.rel (%p256) target = $region20
        $region19: #{tpu_custom_call.1} parent=11 // pred_region
          _
        $region20: #{tpu_custom_call.1} parent=11 // pred_fallthru
          _
        // Predicated region
        $region21: #{tpu_custom_call.1} parent=11 // pred_check
          %p259 = pneg %p107
        $region22: #{tpu_custom_call.1} parent=11 // pred_check_branch
          %261 = sbr.rel (%p259) target = $region24
        $region23: #{tpu_custom_call.1} parent=11 // pred_region
          _
        $region24: #{tpu_custom_call.1} parent=11 // pred_fallthru
          _
        // Predicated region
        $region25: #{tpu_custom_call.1} parent=11 // pred_check
          %p262 = pneg %p128
        $region26: #{tpu_custom_call.1} parent=11 // pred_check_branch
          %264 = sbr.rel (%p262) target = $region28
        $region27: #{tpu_custom_call.1} parent=11 // pred_region
          _
        $region28: #{tpu_custom_call.1} parent=11 // pred_fallthru
          _
        // Predicated region
        $region29: #{tpu_custom_call.1} parent=11 // pred_check
          %p265 = pneg %p149
        $region30: #{tpu_custom_call.1} parent=11 // pred_check_branch
          %267 = sbr.rel (%p265) target = $region32
        $region31: #{tpu_custom_call.1} parent=11 // pred_region
          _
        $region32: #{tpu_custom_call.1} parent=11 // pred_fallthru
          _
        // Predicated region
        $region33: #{tpu_custom_call.1} parent=11 // pred_check
          %p268 = pneg %p170
        $region34: #{tpu_custom_call.1} parent=11 // pred_check_branch
          %270 = sbr.rel (%p268) target = $region36
        $region35: #{tpu_custom_call.1} parent=11 // pred_region
          _
        $region36: #{tpu_custom_call.1} parent=11 // pred_fallthru
          _
        // Predicated region
        $region37: #{tpu_custom_call.1} parent=11 // pred_check
          %p271 = pneg %p191
        $region38: #{tpu_custom_call.1} parent=11 // pred_check_branch
          %273 = sbr.rel (%p271) target = $region40
        $region39: #{tpu_custom_call.1} parent=11 // pred_region
          _
        $region40: #{tpu_custom_call.1} parent=11 // pred_fallthru
          _
        // Predicated region
        $region41: #{tpu_custom_call.1} parent=11 // pred_check
          %p274 = pneg %p212
        $region42: #{tpu_custom_call.1} parent=11 // pred_check_branch
          %276 = sbr.rel (%p274) target = $region44
        $region43: #{tpu_custom_call.1} parent=11 // pred_region
          _
        $region44: #{tpu_custom_call.1} parent=11 // pred_fallthru
          _
      $region12: #{tpu_custom_call.1} parent=5 // pred_fallthru
        _
      %p277 = scmp.lt.s32.totalorder %s18, 2
      // Predicated region
      $region45: #{tpu_custom_call.1} parent=5 // pred_check
        %p278 = pneg %p277
      $region46: #{tpu_custom_call.1} parent=5 // pred_check_branch
        %280 = sbr.rel (%p278) target = $region48
      $region47: #{tpu_custom_call.1} parent=5 // pred_region
        // Predicated region
        $region49: #{tpu_custom_call.1} parent=47 // pred_check
          %p281 = pneg %p38
        $region50: #{tpu_custom_call.1} parent=47 // pred_check_branch
          %283 = sbr.rel (%p281) target = $region52
        $region51: #{tpu_custom_call.1} parent=47 // pred_region
          %p284 = scmp.lt.s32.totalorder %s18, 1
          %s285 = scalar_select %p284, %s18, 1
          %s286 = smul.addr %s285, 41
          %s287 = smul.addr %s286, 8
          %s288 = scalar_lea.vmem %s0, %s287
        $region52: #{tpu_custom_call.1} parent=47 // pred_fallthru
          _
      $region48: #{tpu_custom_call.1} parent=5 // pred_fallthru
        _
      %p289 = scmp.le.s32.totalorder 1, %s18
      %p290 = scmp.lt.s32.totalorder %s18, 3
      %p291 = pnand %p289, %p290
      %p292 = pneg %p291
      // Predicated region
      $region53: #{tpu_custom_call.1} parent=5 // pred_check
        _
      $region54: #{tpu_custom_call.1} parent=5 // pred_check_branch
        %294 = sbr.rel (%p291) target = $region56
      $region55: #{tpu_custom_call.1} parent=5 // pred_region
        %s295 = ssub.s32 %s18, 1
        %p296 = scmp.lt.s32.totalorder %s23, 1
        %s297 = scalar_select %p296, %s23, 1
        %s298 = smul.addr %s297, 41
        %s299 = smul.addr %s298, 8
        %s300 = scalar_lea.vmem %s0, %s299
        %p301 = pneg %p44
        %p302 = pneg %p41
        %p303 = pneg %p65
        %p304 = pneg %p62
        %p305 = pneg %p86
        %p306 = pneg %p83
        %p307 = pneg %p107
        %p308 = pneg %p104
        %p309 = pneg %p128
        %p310 = pneg %p125
        %p311 = pneg %p149
        %p312 = pneg %p146
        %p313 = pneg %p170
        %p314 = pneg %p167
        %p315 = pneg %p191
        %p316 = pneg %p188
        %p317 = pneg %p212
        %p318 = pneg %p209
        %p319 = pneg %p238
        %p320 = pneg %p235
        %s321 = sand.u32 %s225, 1
        %s322 = scalar_lea.sflag [#allocation4], %s321
        %s323 = sand.u32 %s225, 1
        %s324 = scalar_lea.vmem [#allocation3], %s323
        %p325 = scmp.lt.s32.totalorder %s23, 1
        %s326 = scalar_select %p325, %s23, 1
        %s327 = smul.addr %s326, 41
        %s328 = smul.addr %s327, 8
        %s329 = scalar_lea.vmem %s0, %s328
        %v330 = vld [vmem:[%s1] sm:$0xf]
        %v331 = vld [vmem:[%s1 + $0x4] sm:$0xf]
        %v332 = vld [vmem:[%s1 + $0x8] sm:$0xf]
        %v333 = vld [vmem:[%s1 + $0xc] sm:$0xf]
        %v334 = vld [vmem:[%s1 + $0x10] sm:$0xf]
        %v335 = vld [vmem:[%s1 + $0x14] sm:$0xf]
        %v336 = vld [vmem:[%s1 + $0x18] sm:$0xf]
        %v337 = vld [vmem:[%s1 + $0x1c] sm:$0xf]
        %v338 = vld [vmem:[%s1 + $0x20] sm:$0xf]
        %v339 = vld [vmem:[%s3] sm:$0xff]
        %v340 = vld [vmem:[%s3 + $0x8] sm:$0xff]
        %v341 = vld [vmem:[%s3 + $0x10] sm:$0xff]
        %v342 = vld [vmem:[%s3 + $0x18] sm:$0xff]
        %v343 = vld [vmem:[%s3 + $0x20] sm:$0xff]
        %v344 = vld [vmem:[%s3 + $0x28] sm:$0xff]
        %v345 = vld [vmem:[%s3 + $0x30] sm:$0xff]
        %v346 = vld [vmem:[%s3 + $0x38] sm:$0xff]
        %v347 = vld [vmem:[%s3 + $0x40] sm:$0xff]
        %v348 = vld [vmem:[%s3 + $0x48] sm:$0xff]
        %v349 = vld [vmem:[%s3 + $0x50] sm:$0xff]
        %v350 = vld [vmem:[%s3 + $0x58] sm:$0xff]
        %v351 = vld [vmem:[%s3 + $0x60] sm:$0xff]
        %v352 = vld [vmem:[%s3 + $0x68] sm:$0xff]
        %v353 = vld [vmem:[%s3 + $0x70] sm:$0xff]
        %v354 = vld [vmem:[%s3 + $0x78] sm:$0xff]
        %v355 = vld [vmem:[%s3 + $0x80] sm:$0xff]
        %v356 = vld [vmem:[%s3 + $0x88] sm:$0xff]
        %v357 = vld [vmem:[%s329] sm:$0xff]
        %v358 = vld [vmem:[%s329 + $0x8] sm:$0xff]
        %v359 = vld [vmem:[%s329 + $0x10] sm:$0xff]
        %v360 = vld [vmem:[%s329 + $0x18] sm:$0xff]
        %v361 = vld [vmem:[%s329 + $0x20] sm:$0xff]
        %v362 = vld [vmem:[%s329 + $0x28] sm:$0xff]
        %v363 = vld [vmem:[%s329 + $0x30] sm:$0xff]
        %v364 = vld [vmem:[%s329 + $0x38] sm:$0xff]
        %v365 = vld [vmem:[%s329 + $0x40] sm:$0xff]
        %v366 = vld [vmem:[%s329 + $0x48] sm:$0xff]
        %v367 = vld [vmem:[%s329 + $0x50] sm:$0xff]
        %v368 = vld [vmem:[%s329 + $0x58] sm:$0xff]
        %v369 = vld [vmem:[%s329 + $0x60] sm:$0xff]
        %v370 = vld [vmem:[%s329 + $0x68] sm:$0xff]
        %v371 = vld [vmem:[%s329 + $0x70] sm:$0xff]
        %v372 = vld [vmem:[%s329 + $0x78] sm:$0xff]
        %v373 = vld [vmem:[%s329 + $0x80] sm:$0xff]
        %v374 = vld [vmem:[%s329 + $0x88] sm:$0xff]
        %v375 = vld [vmem:[%s329 + $0x90] sm:$0xff]
        %v376 = vld [vmem:[%s329 + $0x98] sm:$0xff]
        %v377 = vld [vmem:[%s329 + $0xa0] sm:$0xff]
        %v378 = vld [vmem:[%s329 + $0xa8] sm:$0xff]
        %v379 = vld [vmem:[%s329 + $0xb0] sm:$0xff]
        %v380 = vld [vmem:[%s329 + $0xb8] sm:$0xff]
        %v381 = vld [vmem:[%s329 + $0xc0] sm:$0xff]
        %v382 = vld [vmem:[%s329 + $0xc8] sm:$0xff]
        %v383 = vld [vmem:[%s329 + $0xd0] sm:$0xff]
        %v384 = vld [vmem:[%s329 + $0xd8] sm:$0xff]
        %v385 = vld [vmem:[%s329 + $0xe0] sm:$0xff]
        %v386 = vld [vmem:[%s329 + $0xe8] sm:$0xff]
        %v387 = vld [vmem:[%s329 + $0xf0] sm:$0xff]
        %v388 = vld [vmem:[%s329 + $0xf8] sm:$0xff]
        %v389 = vld [vmem:[%s329 + $0x100] sm:$0xff]
        %v390 = vld [vmem:[%s329 + $0x108] sm:$0xff]
        %v391 = vld [vmem:[%s329 + $0x110] sm:$0xff]
        %v392 = vld [vmem:[%s329 + $0x118] sm:$0xff]
        %v393 = vld [vmem:[%s329 + $0x1] sm:$0xff]
        %v394 = vld [vmem:[%s329 + $0x9] sm:$0xff]
        %v395 = vld [vmem:[%s329 + $0x11] sm:$0xff]
        %v396 = vld [vmem:[%s329 + $0x19] sm:$0xff]
        %v397 = vld [vmem:[%s329 + $0x21] sm:$0xff]
        %v398 = vld [vmem:[%s329 + $0x29] sm:$0xff]
        %v399 = vld [vmem:[%s329 + $0x31] sm:$0xff]
        %v400 = vld [vmem:[%s329 + $0x39] sm:$0xff]
        %v401 = vld [vmem:[%s329 + $0x41] sm:$0xff]
        %v402 = vld [vmem:[%s329 + $0x49] sm:$0xff]
        %v403 = vld [vmem:[%s329 + $0x51] sm:$0xff]
        %v404 = vld [vmem:[%s329 + $0x59] sm:$0xff]
        %v405 = vld [vmem:[%s329 + $0x61] sm:$0xff]
        %v406 = vld [vmem:[%s329 + $0x69] sm:$0xff]
        %v407 = vld [vmem:[%s329 + $0x71] sm:$0xff]
        %v408 = vld [vmem:[%s329 + $0x79] sm:$0xff]
        %v409 = vld [vmem:[%s329 + $0x81] sm:$0xff]
        %v410 = vld [vmem:[%s329 + $0x89] sm:$0xff]
        %v411 = vld [vmem:[%s329 + $0x91] sm:$0xff]
        %v412 = vld [vmem:[%s329 + $0x99] sm:$0xff]
        %v413 = vld [vmem:[%s329 + $0xa1] sm:$0xff]
        %v414 = vld [vmem:[%s329 + $0xa9] sm:$0xff]
        %v415 = vld [vmem:[%s329 + $0xb1] sm:$0xff]
        %v416 = vld [vmem:[%s329 + $0xb9] sm:$0xff]
        %v417 = vld [vmem:[%s329 + $0xc1] sm:$0xff]
        %v418 = vld [vmem:[%s329 + $0xc9] sm:$0xff]
        %v419 = vld [vmem:[%s329 + $0xd1] sm:$0xff]
        %v420 = vld [vmem:[%s329 + $0xd9] sm:$0xff]
        %v421 = vld [vmem:[%s329 + $0xe1] sm:$0xff]
        %v422 = vld [vmem:[%s329 + $0xe9] sm:$0xff]
        %v423 = vld [vmem:[%s329 + $0xf1] sm:$0xff]
        %v424 = vld [vmem:[%s329 + $0xf9] sm:$0xff]
        %v425 = vld [vmem:[%s329 + $0x101] sm:$0xff]
        %v426 = vld [vmem:[%s329 + $0x109] sm:$0xff]
        %v427 = vld [vmem:[%s329 + $0x111] sm:$0xff]
        %v428 = vld [vmem:[%s329 + $0x119] sm:$0xff]
        %vm429 = vcmask 31744
        %v431 = vsel %vm429, %v393, 0
        %v434 = vsel %vm429, %v394, 0
        %v437 = vsel %vm429, %v395, 0
        %v440 = vsel %vm429, %v396, 0
        %v443 = vsel %vm429, %v397, 0
        %v446 = vsel %vm429, %v398, 0
        %v449 = vsel %vm429, %v399, 0
        %v452 = vsel %vm429, %v400, 0
        %v455 = vsel %vm429, %v401, 0
        %v458 = vsel %vm429, %v402, 0
        %v461 = vsel %vm429, %v403, 0
        %v464 = vsel %vm429, %v404, 0
        %v467 = vsel %vm429, %v405, 0
        %v470 = vsel %vm429, %v406, 0
        %v473 = vsel %vm429, %v407, 0
        %v476 = vsel %vm429, %v408, 0
        %v479 = vsel %vm429, %v409, 0
        %v482 = vsel %vm429, %v410, 0
        %v485 = vsel %vm429, %v411, 0
        %v488 = vsel %vm429, %v412, 0
        %v491 = vsel %vm429, %v413, 0
        %v494 = vsel %vm429, %v414, 0
        %v497 = vsel %vm429, %v415, 0
        %v500 = vsel %vm429, %v416, 0
        %v503 = vsel %vm429, %v417, 0
        %v506 = vsel %vm429, %v418, 0
        %v509 = vsel %vm429, %v419, 0
        %v512 = vsel %vm429, %v420, 0
        %v515 = vsel %vm429, %v421, 0
        %v518 = vsel %vm429, %v422, 0
        %v521 = vsel %vm429, %v423, 0
        %v524 = vsel %vm429, %v424, 0
        %v527 = vsel %vm429, %v425, 0
        %v530 = vsel %vm429, %v426, 0
        %v533 = vsel %vm429, %v427, 0
        %v536 = vsel %vm429, %v428, 0
        %vm538 = vcmask 1043456
        %v540 = vsel %vm538, %v331, 0
        %542 = vmatprep.subr.mxu0 0.0
        %543 = vmatpush1.msra.mxu0 %v540
        %544 = vmatprep.subr.mxu0 0.0
        %545 = vmatpush1.msra.mxu0 0.0
        %546 = vmatprep.subr.mxu0 0.0
        %547 = vmatpush1.msra.mxu0 0.0
        %548 = vmatprep.subr.mxu0 0.0
        %549 = vmatpush1.msra.mxu0 0.0
        %550 = vmatprep.subr.mxu0 0.0
        %551 = vmatpush1.msra.mxu0 0.0
        %552 = vmatprep.subr.mxu0 0.0
        %553 = vmatpush1.msra.mxu0 0.0
        %554 = vmatprep.subr.mxu0 0.0
        %555 = vmatpush1.msra.mxu0 0.0
        %556 = vmatprep.subr.mxu0 0.0
        %557 = vmatpush1.msra.mxu0 0.0
        %558 = vmatprep.subr.mxu0 0.0
        %559 = vmatpush1.msra.mxu0 0.0
        %560 = vmatprep.subr.mxu0 0.0
        %561 = vmatpush1.msra.mxu0 0.0
        %562 = vmatprep.subr.mxu0 0.0
        %563 = vmatpush1.msra.mxu0 0.0
        %564 = vmatprep.subr.mxu0 0.0
        %565 = vmatpush1.msra.mxu0 0.0
        %566 = vmatprep.subr.mxu0 0.0
        %567 = vmatpush1.msra.mxu0 0.0
        %568 = vmatprep.subr.mxu0 0.0
        %569 = vmatpush1.msra.mxu0 0.0
        %570 = vmatprep.subr.mxu0 0.0
        %571 = vmatpush1.msra.mxu0 0.0
        %572 = vmatprep.subr.mxu0 0.0
        %573 = vmatpush1.msra.mxu0 0.0
        %574 = vmatprep.subr.mxu0 0.0
        %575 = vmatpush1.msra.mxu0 0.0
        %576 = vmatprep.subr.mxu0 0.0
        %577 = vmatpush1.msra.mxu0 0.0
        %578 = vmatprep.subr.mxu0 0.0
        %579 = vmatpush1.msra.mxu0 0.0
        %580 = vmatprep.subr.mxu0 0.0
        %581 = vmatpush1.msra.mxu0 0.0
        %582 = vmatprep.subr.mxu0 0.0
        %583 = vmatpush1.msra.mxu0 0.0
        %584 = vmatprep.subr.mxu0 0.0
        %585 = vmatpush1.msra.mxu0 0.0
        %586 = vmatprep.subr.mxu0 0.0
        %587 = vmatpush1.msra.mxu0 0.0
        %588 = vmatprep.subr.mxu0 0.0
        %589 = vmatpush1.msra.mxu0 0.0
        %590 = vmatprep.subr.mxu0 0.0
        %591 = vmatpush1.msra.mxu0 0.0
        %592 = vmatprep.subr.mxu0 0.0
        %593 = vmatpush1.msra.mxu0 0.0
        %594 = vmatprep.subr.mxu0 0.0
        %595 = vmatpush1.msra.mxu0 0.0
        %596 = vmatprep.subr.mxu0 0.0
        %597 = vmatpush1.msra.mxu0 0.0
        %598 = vmatprep.subr.mxu0 0.0
        %599 = vmatpush1.msra.mxu0 0.0
        %600 = vmatprep.subr.mxu0 0.0
        %601 = vmatpush1.msra.mxu0 0.0
        %602 = vmatprep.subr.mxu0 0.0
        %603 = vmatpush1.msra.mxu0 0.0
        %604 = vmatprep.subr.mxu0 0.0
        %605 = vmatpush1.msra.mxu0 0.0
        %606 = vmatprep.mubr.f32.mxu0 0.0
        %607 = vmatmul.mubr.f32.gmra.mrb[0].mxu0 %v431
        %v608 = vpop.f32.mrb[0].mxu0
        %v609 = vadd.f32 0.0, %v608
        %v610 = vpop.f32.mrb[0].mxu0
        %611 = vmatprep.mubr.f32.mxu0 0.0
        %612 = vmatmul.mubr.f32.gmra.mrb[0].mxu0 %v434
        %v613 = vpop.f32.mrb[0].mxu0
        %v614 = vadd.f32 0.0, %v613
        %v615 = vpop.f32.mrb[0].mxu0
        %616 = vmatprep.mubr.f32.mxu0 0.0
        %617 = vmatmul.mubr.f32.gmra.mrb[0].mxu0 %v437
        %v618 = vpop.f32.mrb[0].mxu0
        %v619 = vadd.f32 0.0, %v618
        %v620 = vpop.f32.mrb[0].mxu0
        %621 = vmatprep.mubr.f32.mxu0 0.0
        %622 = vmatmul.mubr.f32.gmra.mrb[0].mxu0 %v440
        %v623 = vpop.f32.mrb[0].mxu0
        %v624 = vadd.f32 0.0, %v623
        %v625 = vpop.f32.mrb[0].mxu0
        %626 = vmatprep.mubr.f32.mxu0 0.0
        %627 = vmatmul.mubr.f32.gmra.mrb[0].mxu0 %v443
        %v628 = vpop.f32.mrb[0].mxu0
        %v629 = vadd.f32 0.0, %v628
        %v630 = vpop.f32.mrb[0].mxu0
        %631 = vmatprep.mubr.f32.mxu0 0.0
        %632 = vmatmul.mubr.f32.gmra.mrb[0].mxu0 %v446
        %v633 = vpop.f32.mrb[0].mxu0
        %v634 = vadd.f32 0.0, %v633
        %v635 = vpop.f32.mrb[0].mxu0
        %636 = vmatprep.mubr.f32.mxu0 0.0
        %637 = vmatmul.mubr.f32.gmra.mrb[0].mxu0 %v449
        %v638 = vpop.f32.mrb[0].mxu0
        %v639 = vadd.f32 0.0, %v638
        %v640 = vpop.f32.mrb[0].mxu0
        %641 = vmatprep.mubr.f32.mxu0 0.0
        %642 = vmatmul.mubr.f32.gmra.mrb[0].mxu0 %v452
        %v643 = vpop.f32.mrb[0].mxu0
        %v644 = vadd.f32 0.0, %v643
        %v645 = vpop.f32.mrb[0].mxu0
        %646 = vmatprep.mubr.f32.mxu0 0.0
        %647 = vmatmul.mubr.f32.gmra.mrb[0].mxu0 %v455
        %v648 = vpop.f32.mrb[0].mxu0
        %v649 = vadd.f32 0.0, %v648
        %v650 = vpop.f32.mrb[0].mxu0
        %651 = vmatprep.mubr.f32.mxu0 0.0
        %652 = vmatmul.mubr.f32.gmra.mrb[0].mxu0 %v458
        %v653 = vpop.f32.mrb[0].mxu0
        %v654 = vadd.f32 0.0, %v653
        %v655 = vpop.f32.mrb[0].mxu0
        %656 = vmatprep.mubr.f32.mxu0 0.0
        %657 = vmatmul.mubr.f32.gmra.mrb[0].mxu0 %v461
        %v658 = vpop.f32.mrb[0].mxu0
        %v659 = vadd.f32 0.0, %v658
        %v660 = vpop.f32.mrb[0].mxu0
        %661 = vmatprep.mubr.f32.mxu0 0.0
        %662 = vmatmul.mubr.f32.gmra.mrb[0].mxu0 %v464
        %v663 = vpop.f32.mrb[0].mxu0
        %v664 = vadd.f32 0.0, %v663
        %v665 = vpop.f32.mrb[0].mxu0
        %666 = vmatprep.mubr.f32.mxu0 0.0
        %667 = vmatmul.mubr.f32.gmra.mrb[0].mxu0 %v467
        %v668 = vpop.f32.mrb[0].mxu0
        %v669 = vadd.f32 0.0, %v668
        %v670 = vpop.f32.mrb[0].mxu0
        %671 = vmatprep.mubr.f32.mxu0 0.0
        %672 = vmatmul.mubr.f32.gmra.mrb[0].mxu0 %v470
        %v673 = vpop.f32.mrb[0].mxu0
        %v674 = vadd.f32 0.0, %v673
        %v675 = vpop.f32.mrb[0].mxu0
        %676 = vmatprep.mubr.f32.mxu0 0.0
        %677 = vmatmul.mubr.f32.gmra.mrb[0].mxu0 %v473
        %v678 = vpop.f32.mrb[0].mxu0
        %v679 = vadd.f32 0.0, %v678
        %v680 = vpop.f32.mrb[0].mxu0
        %681 = vmatprep.mubr.f32.mxu0 0.0
        %682 = vmatmul.mubr.f32.gmra.mrb[0].mxu0 %v476
        %v683 = vpop.f32.mrb[0].mxu0
        %v684 = vadd.f32 0.0, %v683
        %v685 = vpop.f32.mrb[0].mxu0
        %686 = vmatprep.mubr.f32.mxu0 0.0
        %687 = vmatmul.mubr.f32.gmra.mrb[0].mxu0 %v479
        %v688 = vpop.f32.mrb[0].mxu0
        %v689 = vadd.f32 0.0, %v688
        %v690 = vpop.f32.mrb[0].mxu0
        %691 = vmatprep.mubr.f32.mxu0 0.0
        %692 = vmatmul.mubr.f32.gmra.mrb[0].mxu0 %v482
        %v693 = vpop.f32.mrb[0].mxu0
        %v694 = vadd.f32 0.0, %v693
        %v695 = vpop.f32.mrb[0].mxu0
        %696 = vmatprep.mubr.f32.mxu0 0.0
        %697 = vmatmul.mubr.f32.gmra.mrb[0].mxu0 %v485
        %v698 = vpop.f32.mrb[0].mxu0
        %v699 = vadd.f32 0.0, %v698
        %v700 = vpop.f32.mrb[0].mxu0
        %701 = vmatprep.mubr.f32.mxu0 0.0
        %702 = vmatmul.mubr.f32.gmra.mrb[0].mxu0 %v488
        %v703 = vpop.f32.mrb[0].mxu0
        %v704 = vadd.f32 0.0, %v703
        %v705 = vpop.f32.mrb[0].mxu0
        %706 = vmatprep.mubr.f32.mxu0 0.0
        %707 = vmatmul.mubr.f32.gmra.mrb[0].mxu0 %v491
        %v708 = vpop.f32.mrb[0].mxu0
        %v709 = vadd.f32 0.0, %v708
        %v710 = vpop.f32.mrb[0].mxu0
        %711 = vmatprep.mubr.f32.mxu0 0.0
        %712 = vmatmul.mubr.f32.gmra.mrb[0].mxu0 %v494
        %v713 = vpop.f32.mrb[0].mxu0
        %v714 = vadd.f32 0.0, %v713
        %v715 = vpop.f32.mrb[0].mxu0
        %716 = vmatprep.mubr.f32.mxu0 0.0
        %717 = vmatmul.mubr.f32.gmra.mrb[0].mxu0 %v497
        %v718 = vpop.f32.mrb[0].mxu0
        %v719 = vadd.f32 0.0, %v718
        %v720 = vpop.f32.mrb[0].mxu0
        %721 = vmatprep.mubr.f32.mxu0 0.0
        %722 = vmatmul.mubr.f32.gmra.mrb[0].mxu0 %v500
        %v723 = vpop.f32.mrb[0].mxu0
        %v724 = vadd.f32 0.0, %v723
        %v725 = vpop.f32.mrb[0].mxu0
        %726 = vmatprep.mubr.f32.mxu0 0.0
        %727 = vmatmul.mubr.f32.gmra.mrb[0].mxu0 %v503
        %v728 = vpop.f32.mrb[0].mxu0
        %v729 = vadd.f32 0.0, %v728
        %v730 = vpop.f32.mrb[0].mxu0
        %731 = vmatprep.mubr.f32.mxu0 0.0
        %732 = vmatmul.mubr.f32.gmra.mrb[0].mxu0 %v506
        %v733 = vpop.f32.mrb[0].mxu0
        %v734 = vadd.f32 0.0, %v733
        %v735 = vpop.f32.mrb[0].mxu0
        %736 = vmatprep.mubr.f32.mxu0 0.0
        %737 = vmatmul.mubr.f32.gmra.mrb[0].mxu0 %v509
        %v738 = vpop.f32.mrb[0].mxu0
        %v739 = vadd.f32 0.0, %v738
        %v740 = vpop.f32.mrb[0].mxu0
        %741 = vmatprep.mubr.f32.mxu0 0.0
        %742 = vmatmul.mubr.f32.gmra.mrb[0].mxu0 %v512
        %v743 = vpop.f32.mrb[0].mxu0
        %v744 = vadd.f32 0.0, %v743
        %v745 = vpop.f32.mrb[0].mxu0
        %746 = vmatprep.mubr.f32.mxu0 0.0
        %747 = vmatmul.mubr.f32.gmra.mrb[0].mxu0 %v515
        %v748 = vpop.f32.mrb[0].mxu0
        %v749 = vadd.f32 0.0, %v748
        %v750 = vpop.f32.mrb[0].mxu0
        %751 = vmatprep.mubr.f32.mxu0 0.0
        %752 = vmatmul.mubr.f32.gmra.mrb[0].mxu0 %v518
        %v753 = vpop.f32.mrb[0].mxu0
        %v754 = vadd.f32 0.0, %v753
        %v755 = vpop.f32.mrb[0].mxu0
        %756 = vmatprep.mubr.f32.mxu0 0.0
        %757 = vmatmul.mubr.f32.gmra.mrb[0].mxu0 %v521
        %v758 = vpop.f32.mrb[0].mxu0
        %v759 = vadd.f32 0.0, %v758
        %v760 = vpop.f32.mrb[0].mxu0
        %761 = vmatprep.mubr.f32.mxu0 0.0
        %762 = vmatmul.mubr.f32.gmra.mrb[0].mxu0 %v524
        %v763 = vpop.f32.mrb[0].mxu0
        %v764 = vadd.f32 0.0, %v763
        %v765 = vpop.f32.mrb[0].mxu0
        %766 = vmatprep.mubr.f32.mxu0 0.0
        %767 = vmatmul.mubr.f32.gmra.mrb[0].mxu0 %v527
        %v768 = vpop.f32.mrb[0].mxu0
        %v769 = vadd.f32 0.0, %v768
        %v770 = vpop.f32.mrb[0].mxu0
        %771 = vmatprep.mubr.f32.mxu0 0.0
        %772 = vmatmul.mubr.f32.gmra.mrb[0].mxu0 %v530
        %v773 = vpop.f32.mrb[0].mxu0
        %v774 = vadd.f32 0.0, %v773
        %v775 = vpop.f32.mrb[0].mxu0
        %776 = vmatprep.mubr.f32.mxu0 0.0
        %777 = vmatmul.mubr.f32.gmra.mrb[0].mxu0 %v533
        %v778 = vpop.f32.mrb[0].mxu0
        %v779 = vadd.f32 0.0, %v778
        %v780 = vpop.f32.mrb[0].mxu0
        %781 = vmatprep.mubr.f32.mxu0 0.0
        %782 = vmatmul.mubr.f32.gmra.mrb[0].mxu0 %v536
        %v783 = vpop.f32.mrb[0].mxu0
        %v784 = vadd.f32 0.0, %v783
        %v785 = vpop.f32.mrb[0].mxu0
        %786 = vdwg.mxu0
        %v788 = vsel %vm429, %v357, 0
        %v791 = vsel %vm429, %v358, 0
        %v794 = vsel %vm429, %v359, 0
        %v797 = vsel %vm429, %v360, 0
        %v800 = vsel %vm429, %v361, 0
        %v803 = vsel %vm429, %v362, 0
        %v806 = vsel %vm429, %v363, 0
        %v809 = vsel %vm429, %v364, 0
        %v812 = vsel %vm429, %v365, 0
        %v815 = vsel %vm429, %v366, 0
        %v818 = vsel %vm429, %v367, 0
        %v821 = vsel %vm429, %v368, 0
        %v824 = vsel %vm429, %v369, 0
        %v827 = vsel %vm429, %v370, 0
        %v830 = vsel %vm429, %v371, 0
        %v833 = vsel %vm429, %v372, 0
        %v836 = vsel %vm429, %v373, 0
        %v839 = vsel %vm429, %v374, 0
        %v842 = vsel %vm429, %v375, 0
        %v845 = vsel %vm429, %v376, 0
        %v848 = vsel %vm429, %v377, 0
        %v851 = vsel %vm429, %v378, 0
        %v854 = vsel %vm429, %v379, 0
        %v857 = vsel %vm429, %v380, 0
        %v860 = vsel %vm429, %v381, 0
        %v863 = vsel %vm429, %v382, 0
        %v866 = vsel %vm429, %v383, 0
        %v869 = vsel %vm429, %v384, 0
        %v872 = vsel %vm429, %v385, 0
        %v875 = vsel %vm429, %v386, 0
        %v878 = vsel %vm429, %v387, 0
        %v881 = vsel %vm429, %v388, 0
        %v884 = vsel %vm429, %v389, 0
        %v887 = vsel %vm429, %v390, 0
        %v890 = vsel %vm429, %v391, 0
        %v893 = vsel %vm429, %v392, 0
        %v896 = vsel %vm538, %v330, 0
        %898 = vmatprep.subr.mxu0 0.0
        %899 = vmatpush1.msra.mxu0 %v896
        %900 = vmatprep.subr.mxu0 0.0
        %901 = vmatpush1.msra.mxu0 0.0
        %902 = vmatprep.subr.mxu0 0.0
        %903 = vmatpush1.msra.mxu0 0.0
        %904 = vmatprep.subr.mxu0 0.0
        %905 = vmatpush1.msra.mxu0 0.0
        %906 = vmatprep.subr.mxu0 0.0
        %907 = vmatpush1.msra.mxu0 0.0
        %908 = vmatprep.subr.mxu0 0.0
        %909 = vmatpush1.msra.mxu0 0.0
        %910 = vmatprep.subr.mxu0 0.0
        %911 = vmatpush1.msra.mxu0 0.0
        %912 = vmatprep.subr.mxu0 0.0
        %913 = vmatpush1.msra.mxu0 0.0
        %914 = vmatprep.subr.mxu0 0.0
        %915 = vmatpush1.msra.mxu0 0.0
        %916 = vmatprep.subr.mxu0 0.0
        %917 = vmatpush1.msra.mxu0 0.0
        %918 = vmatprep.subr.mxu0 0.0
        %919 = vmatpush1.msra.mxu0 0.0
        %920 = vmatprep.subr.mxu0 0.0
        %921 = vmatpush1.msra.mxu0 0.0
        %922 = vmatprep.subr.mxu0 0.0
        %923 = vmatpush1.msra.mxu0 0.0
        %924 = vmatprep.subr.mxu0 0.0
        %925 = vmatpush1.msra.mxu0 0.0
        %926 = vmatprep.subr.mxu0 0.0
        %927 = vmatpush1.msra.mxu0 0.0
        %928 = vmatprep.subr.mxu0 0.0
        %929 = vmatpush1.msra.mxu0 0.0
        %930 = vmatprep.subr.mxu0 0.0
        %931 = vmatpush1.msra.mxu0 0.0
        %932 = vmatprep.subr.mxu0 0.0
        %933 = vmatpush1.msra.mxu0 0.0
        %934 = vmatprep.subr.mxu0 0.0
        %935 = vmatpush1.msra.mxu0 0.0
        %936 = vmatprep.subr.mxu0 0.0
        %937 = vmatpush1.msra.mxu0 0.0
        %938 = vmatprep.subr.mxu0 0.0
        %939 = vmatpush1.msra.mxu0 0.0
        %940 = vmatprep.subr.mxu0 0.0
        %941 = vmatpush1.msra.mxu0 0.0
        %942 = vmatprep.subr.mxu0 0.0
        %943 = vmatpush1.msra.mxu0 0.0
        %944 = vmatprep.subr.mxu0 0.0
        %945 = vmatpush1.msra.mxu0 0.0
        %946 = vmatprep.subr.mxu0 0.0
        %947 = vmatpush1.msra.mxu0 0.0
        %948 = vmatprep.subr.mxu0 0.0
        %949 = vmatpush1.msra.mxu0 0.0
        %950 = vmatprep.subr.mxu0 0.0
        %951 = vmatpush1.msra.mxu0 0.0
        %952 = vmatprep.subr.mxu0 0.0
        %953 = vmatpush1.msra.mxu0 0.0
        %954 = vmatprep.subr.mxu0 0.0
        %955 = vmatpush1.msra.mxu0 0.0
        %956 = vmatprep.subr.mxu0 0.0
        %957 = vmatpush1.msra.mxu0 0.0
        %958 = vmatprep.subr.mxu0 0.0
        %959 = vmatpush1.msra.mxu0 0.0
        %960 = vmatprep.subr.mxu0 0.0
        %961 = vmatpush1.msra.mxu0 0.0
        %962 = vmatprep.mubr.f32.mxu0 0.0
        %963 = vmatmul.mubr.f32.gmra.mrb[0].mxu0 %v788
        %v964 = vpop.f32.mrb[0].mxu0
        %v965 = vadd.f32 %v609, %v964
        %v966 = vpop.f32.mrb[0].mxu0
        %967 = vmatprep.mubr.f32.mxu0 0.0
        %968 = vmatmul.mubr.f32.gmra.mrb[0].mxu0 %v791
        %v969 = vpop.f32.mrb[0].mxu0
        %v970 = vadd.f32 %v614, %v969
        %v971 = vpop.f32.mrb[0].mxu0
        %972 = vmatprep.mubr.f32.mxu0 0.0
        %973 = vmatmul.mubr.f32.gmra.mrb[0].mxu0 %v794
        %v974 = vpop.f32.mrb[0].mxu0
        %v975 = vadd.f32 %v619, %v974
        %v976 = vpop.f32.mrb[0].mxu0
        %977 = vmatprep.mubr.f32.mxu0 0.0
        %978 = vmatmul.mubr.f32.gmra.mrb[0].mxu0 %v797
        %v979 = vpop.f32.mrb[0].mxu0
        %v980 = vadd.f32 %v624, %v979
        %v981 = vpop.f32.mrb[0].mxu0
        %982 = vmatprep.mubr.f32.mxu0 0.0
        %983 = vmatmul.mubr.f32.gmra.mrb[0].mxu0 %v800
        %v984 = vpop.f32.mrb[0].mxu0
        %v985 = vadd.f32 %v629, %v984
        %v986 = vpop.f32.mrb[0].mxu0
        %987 = vmatprep.mubr.f32.mxu0 0.0
        %988 = vmatmul.mubr.f32.gmra.mrb[0].mxu0 %v803
        %v989 = vpop.f32.mrb[0].mxu0
        %v990 = vadd.f32 %v634, %v989
        %v991 = vpop.f32.mrb[0].mxu0
        %992 = vmatprep.mubr.f32.mxu0 0.0
        %993 = vmatmul.mubr.f32.gmra.mrb[0].mxu0 %v806
        %v994 = vpop.f32.mrb[0].mxu0
        %v995 = vadd.f32 %v639, %v994
        %v996 = vpop.f32.mrb[0].mxu0
        %997 = vmatprep.mubr.f32.mxu0 0.0
        %998 = vmatmul.mubr.f32.gmra.mrb[0].mxu0 %v809
        %v999 = vpop.f32.mrb[0].mxu0
        %v1000 = vadd.f32 %v644, %v999
        %v1001 = vpop.f32.mrb[0].mxu0
        %1002 = vmatprep.mubr.f32.mxu0 0.0
        %1003 = vmatmul.mubr.f32.gmra.mrb[0].mxu0 %v812
        %v1004 = vpop.f32.mrb[0].mxu0
        %v1005 = vadd.f32 %v649, %v1004
        %v1006 = vpop.f32.mrb[0].mxu0
        %1007 = vmatprep.mubr.f32.mxu0 0.0
        %1008 = vmatmul.mubr.f32.gmra.mrb[0].mxu0 %v815
        %v1009 = vpop.f32.mrb[0].mxu0
        %v1010 = vadd.f32 %v654, %v1009
        %v1011 = vpop.f32.mrb[0].mxu0
        %1012 = vmatprep.mubr.f32.mxu0 0.0
        %1013 = vmatmul.mubr.f32.gmra.mrb[0].mxu0 %v818
        %v1014 = vpop.f32.mrb[0].mxu0
        %v1015 = vadd.f32 %v659, %v1014
        %v1016 = vpop.f32.mrb[0].mxu0
        %1017 = vmatprep.mubr.f32.mxu0 0.0
        %1018 = vmatmul.mubr.f32.gmra.mrb[0].mxu0 %v821
        %v1019 = vpop.f32.mrb[0].mxu0
        %v1020 = vadd.f32 %v664, %v1019
        %v1021 = vpop.f32.mrb[0].mxu0
        %1022 = vmatprep.mubr.f32.mxu0 0.0
        %1023 = vmatmul.mubr.f32.gmra.mrb[0].mxu0 %v824
        %v1024 = vpop.f32.mrb[0].mxu0
        %v1025 = vadd.f32 %v669, %v1024
        %v1026 = vpop.f32.mrb[0].mxu0
        %1027 = vmatprep.mubr.f32.mxu0 0.0
        %1028 = vmatmul.mubr.f32.gmra.mrb[0].mxu0 %v827
        %v1029 = vpop.f32.mrb[0].mxu0
        %v1030 = vadd.f32 %v674, %v1029
        %v1031 = vpop.f32.mrb[0].mxu0
        %1032 = vmatprep.mubr.f32.mxu0 0.0
        %1033 = vmatmul.mubr.f32.gmra.mrb[0].mxu0 %v830
        %v1034 = vpop.f32.mrb[0].mxu0
        %v1035 = vadd.f32 %v679, %v1034
        %v1036 = vpop.f32.mrb[0].mxu0
        %1037 = vmatprep.mubr.f32.mxu0 0.0
        %1038 = vmatmul.mubr.f32.gmra.mrb[0].mxu0 %v833
        %v1039 = vpop.f32.mrb[0].mxu0
        %v1040 = vadd.f32 %v684, %v1039
        %v1041 = vpop.f32.mrb[0].mxu0
        %1042 = vmatprep.mubr.f32.mxu0 0.0
        %1043 = vmatmul.mubr.f32.gmra.mrb[0].mxu0 %v836
        %v1044 = vpop.f32.mrb[0].mxu0
        %v1045 = vadd.f32 %v689, %v1044
        %v1046 = vpop.f32.mrb[0].mxu0
        %1047 = vmatprep.mubr.f32.mxu0 0.0
        %1048 = vmatmul.mubr.f32.gmra.mrb[0].mxu0 %v839
        %v1049 = vpop.f32.mrb[0].mxu0
        %v1050 = vadd.f32 %v694, %v1049
        %v1051 = vpop.f32.mrb[0].mxu0
        %1052 = vmatprep.mubr.f32.mxu0 0.0
        %1053 = vmatmul.mubr.f32.gmra.mrb[0].mxu0 %v842
        %v1054 = vpop.f32.mrb[0].mxu0
        %v1055 = vadd.f32 %v699, %v1054
        %v1056 = vpop.f32.mrb[0].mxu0
        %1057 = vmatprep.mubr.f32.mxu0 0.0
        %1058 = vmatmul.mubr.f32.gmra.mrb[0].mxu0 %v845
        %v1059 = vpop.f32.mrb[0].mxu0
        %v1060 = vadd.f32 %v704, %v1059
        %v1061 = vpop.f32.mrb[0].mxu0
        %1062 = vmatprep.mubr.f32.mxu0 0.0
        %1063 = vmatmul.mubr.f32.gmra.mrb[0].mxu0 %v848
        %v1064 = vpop.f32.mrb[0].mxu0
        %v1065 = vadd.f32 %v709, %v1064
        %v1066 = vpop.f32.mrb[0].mxu0
        %1067 = vmatprep.mubr.f32.mxu0 0.0
        %1068 = vmatmul.mubr.f32.gmra.mrb[0].mxu0 %v851
        %v1069 = vpop.f32.mrb[0].mxu0
        %v1070 = vadd.f32 %v714, %v1069
        %v1071 = vpop.f32.mrb[0].mxu0
        %1072 = vmatprep.mubr.f32.mxu0 0.0
        %1073 = vmatmul.mubr.f32.gmra.mrb[0].mxu0 %v854
        %v1074 = vpop.f32.mrb[0].mxu0
        %v1075 = vadd.f32 %v719, %v1074
        %v1076 = vpop.f32.mrb[0].mxu0
        %1077 = vmatprep.mubr.f32.mxu0 0.0
        %1078 = vmatmul.mubr.f32.gmra.mrb[0].mxu0 %v857
        %v1079 = vpop.f32.mrb[0].mxu0
        %v1080 = vadd.f32 %v724, %v1079
        %v1081 = vpop.f32.mrb[0].mxu0
        %1082 = vmatprep.mubr.f32.mxu0 0.0
        %1083 = vmatmul.mubr.f32.gmra.mrb[0].mxu0 %v860
        %v1084 = vpop.f32.mrb[0].mxu0
        %v1085 = vadd.f32 %v729, %v1084
        %v1086 = vpop.f32.mrb[0].mxu0
        %1087 = vmatprep.mubr.f32.mxu0 0.0
        %1088 = vmatmul.mubr.f32.gmra.mrb[0].mxu0 %v863
        %v1089 = vpop.f32.mrb[0].mxu0
        %v1090 = vadd.f32 %v734, %v1089
        %v1091 = vpop.f32.mrb[0].mxu0
        %1092 = vmatprep.mubr.f32.mxu0 0.0
        %1093 = vmatmul.mubr.f32.gmra.mrb[0].mxu0 %v866
        %v1094 = vpop.f32.mrb[0].mxu0
        %v1095 = vadd.f32 %v739, %v1094
        %v1096 = vpop.f32.mrb[0].mxu0
        %1097 = vmatprep.mubr.f32.mxu0 0.0
        %1098 = vmatmul.mubr.f32.gmra.mrb[0].mxu0 %v869
        %v1099 = vpop.f32.mrb[0].mxu0
        %v1100 = vadd.f32 %v744, %v1099
        %v1101 = vpop.f32.mrb[0].mxu0
        %1102 = vmatprep.mubr.f32.mxu0 0.0
        %1103 = vmatmul.mubr.f32.gmra.mrb[0].mxu0 %v872
        %v1104 = vpop.f32.mrb[0].mxu0
        %v1105 = vadd.f32 %v749, %v1104
        %v1106 = vpop.f32.mrb[0].mxu0
        %1107 = vmatprep.mubr.f32.mxu0 0.0
        %1108 = vmatmul.mubr.f32.gmra.mrb[0].mxu0 %v875
        %v1109 = vpop.f32.mrb[0].mxu0
        %v1110 = vadd.f32 %v754, %v1109
        %v1111 = vpop.f32.mrb[0].mxu0
        %1112 = vmatprep.mubr.f32.mxu0 0.0
        %1113 = vmatmul.mubr.f32.gmra.mrb[0].mxu0 %v878
        %v1114 = vpop.f32.mrb[0].mxu0
        %v1115 = vadd.f32 %v759, %v1114
        %v1116 = vpop.f32.mrb[0].mxu0
        %1117 = vmatprep.mubr.f32.mxu0 0.0
        %1118 = vmatmul.mubr.f32.gmra.mrb[0].mxu0 %v881
        %v1119 = vpop.f32.mrb[0].mxu0
        %v1120 = vadd.f32 %v764, %v1119
        %v1121 = vpop.f32.mrb[0].mxu0
        %1122 = vmatprep.mubr.f32.mxu0 0.0
        %1123 = vmatmul.mubr.f32.gmra.mrb[0].mxu0 %v884
        %v1124 = vpop.f32.mrb[0].mxu0
        %v1125 = vadd.f32 %v769, %v1124
        %v1126 = vpop.f32.mrb[0].mxu0
        %1127 = vmatprep.mubr.f32.mxu0 0.0
        %1128 = vmatmul.mubr.f32.gmra.mrb[0].mxu0 %v887
        %v1129 = vpop.f32.mrb[0].mxu0
        %v1130 = vadd.f32 %v774, %v1129
        %v1131 = vpop.f32.mrb[0].mxu0
        %1132 = vmatprep.mubr.f32.mxu0 0.0
        %1133 = vmatmul.mubr.f32.gmra.mrb[0].mxu0 %v890
        %v1134 = vpop.f32.mrb[0].mxu0
        %v1135 = vadd.f32 %v779, %v1134
        %v1136 = vpop.f32.mrb[0].mxu0
        %1137 = vmatprep.mubr.f32.mxu0 0.0
        %1138 = vmatmul.mubr.f32.gmra.mrb[0].mxu0 %v893
        %v1139 = vpop.f32.mrb[0].mxu0
        %v1140 = vadd.f32 %v784, %v1139
        %v1141 = vpop.f32.mrb[0].mxu0
        %1142 = vdwg.mxu0
        %v1143 = vld [vmem:[%s329 + $0x2] sm:$0xff]
        %v1144 = vld [vmem:[%s329 + $0xa] sm:$0xff]
        %v1145 = vld [vmem:[%s329 + $0x12] sm:$0xff]
        %v1146 = vld [vmem:[%s329 + $0x1a] sm:$0xff]
        %v1147 = vld [vmem:[%s329 + $0x22] sm:$0xff]
        %v1148 = vld [vmem:[%s329 + $0x2a] sm:$0xff]
        %v1149 = vld [vmem:[%s329 + $0x32] sm:$0xff]
        %v1150 = vld [vmem:[%s329 + $0x3a] sm:$0xff]
        %v1151 = vld [vmem:[%s329 + $0x42] sm:$0xff]
        %v1152 = vld [vmem:[%s329 + $0x4a] sm:$0xff]
        %v1153 = vld [vmem:[%s329 + $0x52] sm:$0xff]
        %v1154 = vld [vmem:[%s329 + $0x5a] sm:$0xff]
        %v1155 = vld [vmem:[%s329 + $0x62] sm:$0xff]
        %v1156 = vld [vmem:[%s329 + $0x6a] sm:$0xff]
        %v1157 = vld [vmem:[%s329 + $0x72] sm:$0xff]
        %v1158 = vld [vmem:[%s329 + $0x7a] sm:$0xff]
        %v1159 = vld [vmem:[%s329 + $0x82] sm:$0xff]
        %v1160 = vld [vmem:[%s329 + $0x8a] sm:$0xff]
        %v1161 = vld [vmem:[%s329 + $0x92] sm:$0xff]
        %v1162 = vld [vmem:[%s329 + $0x9a] sm:$0xff]
        %v1163 = vld [vmem:[%s329 + $0xa2] sm:$0xff]
        %v1164 = vld [vmem:[%s329 + $0xaa] sm:$0xff]
        %v1165 = vld [vmem:[%s329 + $0xb2] sm:$0xff]
        %v1166 = vld [vmem:[%s329 + $0xba] sm:$0xff]
        %v1167 = vld [vmem:[%s329 + $0xc2] sm:$0xff]
        %v1168 = vld [vmem:[%s329 + $0xca] sm:$0xff]
        %v1169 = vld [vmem:[%s329 + $0xd2] sm:$0xff]
        %v1170 = vld [vmem:[%s329 + $0xda] sm:$0xff]
        %v1171 = vld [vmem:[%s329 + $0xe2] sm:$0xff]
        %v1172 = vld [vmem:[%s329 + $0xea] sm:$0xff]
        %v1173 = vld [vmem:[%s329 + $0xf2] sm:$0xff]
        %v1174 = vld [vmem:[%s329 + $0xfa] sm:$0xff]
        %v1175 = vld [vmem:[%s329 + $0x102] sm:$0xff]
        %v1176 = vld [vmem:[%s329 + $0x10a] sm:$0xff]
        %v1177 = vld [vmem:[%s329 + $0x112] sm:$0xff]
        %v1178 = vld [vmem:[%s329 + $0x11a] sm:$0xff]
        %v1180 = vsel %vm429, %v1143, 0
        %v1183 = vsel %vm429, %v1144, 0
        %v1186 = vsel %vm429, %v1145, 0
        %v1189 = vsel %vm429, %v1146, 0
        %v1192 = vsel %vm429, %v1147, 0
        %v1195 = vsel %vm429, %v1148, 0
        %v1198 = vsel %vm429, %v1149, 0
        %v1201 = vsel %vm429, %v1150, 0
        %v1204 = vsel %vm429, %v1151, 0
        %v1207 = vsel %vm429, %v1152, 0
        %v1210 = vsel %vm429, %v1153, 0
        %v1213 = vsel %vm429, %v1154, 0
        %v1216 = vsel %vm429, %v1155, 0
        %v1219 = vsel %vm429, %v1156, 0
        %v1222 = vsel %vm429, %v1157, 0
        %v1225 = vsel %vm429, %v1158, 0
        %v1228 = vsel %vm429, %v1159, 0
        %v1231 = vsel %vm429, %v1160, 0
        %v1234 = vsel %vm429, %v1161, 0
        %v1237 = vsel %vm429, %v1162, 0
        %v1240 = vsel %vm429, %v1163, 0
        %v1243 = vsel %vm429, %v1164, 0
        %v1246 = vsel %vm429, %v1165, 0
        %v1249 = vsel %vm429, %v1166, 0
        %v1252 = vsel %vm429, %v1167, 0
        %v1255 = vsel %vm429, %v1168, 0
        %v1258 = vsel %vm429, %v1169, 0
        %v1261 = vsel %vm429, %v1170, 0
        %v1264 = vsel %vm429, %v1171, 0
        %v1267 = vsel %vm429, %v1172, 0
        %v1270 = vsel %vm429, %v1173, 0
        %v1273 = vsel %vm429, %v1174, 0
        %v1276 = vsel %vm429, %v1175, 0
        %v1279 = vsel %vm429, %v1176, 0
        %v1282 = vsel %vm429, %v1177, 0
        %v1285 = vsel %vm429, %v1178, 0
        %v1288 = vsel %vm538, %v332, 0
        %1290 = vmatprep.subr.mxu0 0.0
        %1291 = vmatpush1.msra.mxu0 %v1288
        %1292 = vmatprep.subr.mxu0 0.0
        %1293 = vmatpush1.msra.mxu0 0.0
        %1294 = vmatprep.subr.mxu0 0.0
        %1295 = vmatpush1.msra.mxu0 0.0
        %1296 = vmatprep.subr.mxu0 0.0
        %1297 = vmatpush1.msra.mxu0 0.0
        %1298 = vmatprep.subr.mxu0 0.0
        %1299 = vmatpush1.msra.mxu0 0.0
        %1300 = vmatprep.subr.mxu0 0.0
        %1301 = vmatpush1.msra.mxu0 0.0
        %1302 = vmatprep.subr.mxu0 0.0
        %1303 = vmatpush1.msra.mxu0 0.0
        %1304 = vmatprep.subr.mxu0 0.0
        %1305 = vmatpush1.msra.mxu0 0.0
        %1306 = vmatprep.subr.mxu0 0.0
        %1307 = vmatpush1.msra.mxu0 0.0
        %1308 = vmatprep.subr.mxu0 0.0
        %1309 = vmatpush1.msra.mxu0 0.0
        %1310 = vmatprep.subr.mxu0 0.0
        %1311 = vmatpush1.msra.mxu0 0.0
        %1312 = vmatprep.subr.mxu0 0.0
        %1313 = vmatpush1.msra.mxu0 0.0
        %1314 = vmatprep.subr.mxu0 0.0
        %1315 = vmatpush1.msra.mxu0 0.0
        %1316 = vmatprep.subr.mxu0 0.0
        %1317 = vmatpush1.msra.mxu0 0.0
        %1318 = vmatprep.subr.mxu0 0.0
        %1319 = vmatpush1.msra.mxu0 0.0
        %1320 = vmatprep.subr.mxu0 0.0
        %1321 = vmatpush1.msra.mxu0 0.0
        %1322 = vmatprep.subr.mxu0 0.0
        %1323 = vmatpush1.msra.mxu0 0.0
        %1324 = vmatprep.subr.mxu0 0.0
        %1325 = vmatpush1.msra.mxu0 0.0
        %1326 = vmatprep.subr.mxu0 0.0
        %1327 = vmatpush1.msra.mxu0 0.0
        %1328 = vmatprep.subr.mxu0 0.0
        %1329 = vmatpush1.msra.mxu0 0.0
        %1330 = vmatprep.subr.mxu0 0.0
        %1331 = vmatpush1.msra.mxu0 0.0
        %1332 = vmatprep.subr.mxu0 0.0
        %1333 = vmatpush1.msra.mxu0 0.0
        %1334 = vmatprep.subr.mxu0 0.0
        %1335 = vmatpush1.msra.mxu0 0.0
        %1336 = vmatprep.subr.mxu0 0.0
        %1337 = vmatpush1.msra.mxu0 0.0
        %1338 = vmatprep.subr.mxu0 0.0
        %1339 = vmatpush1.msra.mxu0 0.0
        %1340 = vmatprep.subr.mxu0 0.0
        %1341 = vmatpush1.msra.mxu0 0.0
        %1342 = vmatprep.subr.mxu0 0.0
        %1343 = vmatpush1.msra.mxu0 0.0
        %1344 = vmatprep.subr.mxu0 0.0
        %1345 = vmatpush1.msra.mxu0 0.0
        %1346 = vmatprep.subr.mxu0 0.0
        %1347 = vmatpush1.msra.mxu0 0.0
        %1348 = vmatprep.subr.mxu0 0.0
        %1349 = vmatpush1.msra.mxu0 0.0
        %1350 = vmatprep.subr.mxu0 0.0
        %1351 = vmatpush1.msra.mxu0 0.0
        %1352 = vmatprep.subr.mxu0 0.0
        %1353 = vmatpush1.msra.mxu0 0.0
        %1354 = vmatprep.mubr.f32.mxu0 0.0
        %1355 = vmatmul.mubr.f32.gmra.mrb[0].mxu0 %v1180
        %v1356 = vpop.f32.mrb[0].mxu0
        %v1357 = vadd.f32 0.0, %v1356
        %v1358 = vpop.f32.mrb[0].mxu0
        %1359 = vmatprep.mubr.f32.mxu0 0.0
        %1360 = vmatmul.mubr.f32.gmra.mrb[0].mxu0 %v1183
        %v1361 = vpop.f32.mrb[0].mxu0
        %v1362 = vadd.f32 0.0, %v1361
        %v1363 = vpop.f32.mrb[0].mxu0
        %1364 = vmatprep.mubr.f32.mxu0 0.0
        %1365 = vmatmul.mubr.f32.gmra.mrb[0].mxu0 %v1186
        %v1366 = vpop.f32.mrb[0].mxu0
        %v1367 = vadd.f32 0.0, %v1366
        %v1368 = vpop.f32.mrb[0].mxu0
        %1369 = vmatprep.mubr.f32.mxu0 0.0
        %1370 = vmatmul.mubr.f32.gmra.mrb[0].mxu0 %v1189
        %v1371 = vpop.f32.mrb[0].mxu0
        %v1372 = vadd.f32 0.0, %v1371
        %v1373 = vpop.f32.mrb[0].mxu0
        %1374 = vmatprep.mubr.f32.mxu0 0.0
        %1375 = vmatmul.mubr.f32.gmra.mrb[0].mxu0 %v1192
        %v1376 = vpop.f32.mrb[0].mxu0
        %v1377 = vadd.f32 0.0, %v1376
        %v1378 = vpop.f32.mrb[0].mxu0
        %1379 = vmatprep.mubr.f32.mxu0 0.0
        %1380 = vmatmul.mubr.f32.gmra.mrb[0].mxu0 %v1195
        %v1381 = vpop.f32.mrb[0].mxu0
        %v1382 = vadd.f32 0.0, %v1381
        %v1383 = vpop.f32.mrb[0].mxu0
        %1384 = vmatprep.mubr.f32.mxu0 0.0
        %1385 = vmatmul.mubr.f32.gmra.mrb[0].mxu0 %v1198
        %v1386 = vpop.f32.mrb[0].mxu0
        %v1387 = vadd.f32 0.0, %v1386
        %v1388 = vpop.f32.mrb[0].mxu0
        %1389 = vmatprep.mubr.f32.mxu0 0.0
        %1390 = vmatmul.mubr.f32.gmra.mrb[0].mxu0 %v1201
        %v1391 = vpop.f32.mrb[0].mxu0
        %v1392 = vadd.f32 0.0, %v1391
        %v1393 = vpop.f32.mrb[0].mxu0
        %1394 = vmatprep.mubr.f32.mxu0 0.0
        %1395 = vmatmul.mubr.f32.gmra.mrb[0].mxu0 %v1204
        %v1396 = vpop.f32.mrb[0].mxu0
        %v1397 = vadd.f32 0.0, %v1396
        %v1398 = vpop.f32.mrb[0].mxu0
        %1399 = vmatprep.mubr.f32.mxu0 0.0
        %1400 = vmatmul.mubr.f32.gmra.mrb[0].mxu0 %v1207
        %v1401 = vpop.f32.mrb[0].mxu0
        %v1402 = vadd.f32 0.0, %v1401
        %v1403 = vpop.f32.mrb[0].mxu0
        %1404 = vmatprep.mubr.f32.mxu0 0.0
        %1405 = vmatmul.mubr.f32.gmra.mrb[0].mxu0 %v1210
        %v1406 = vpop.f32.mrb[0].mxu0
        %v1407 = vadd.f32 0.0, %v1406
        %v1408 = vpop.f32.mrb[0].mxu0
        %1409 = vmatprep.mubr.f32.mxu0 0.0
        %1410 = vmatmul.mubr.f32.gmra.mrb[0].mxu0 %v1213
        %v1411 = vpop.f32.mrb[0].mxu0
        %v1412 = vadd.f32 0.0, %v1411
        %v1413 = vpop.f32.mrb[0].mxu0
        %1414 = vmatprep.mubr.f32.mxu0 0.0
        %1415 = vmatmul.mubr.f32.gmra.mrb[0].mxu0 %v1216
        %v1416 = vpop.f32.mrb[0].mxu0
        %v1417 = vadd.f32 0.0, %v1416
        %v1418 = vpop.f32.mrb[0].mxu0
        %1419 = vmatprep.mubr.f32.mxu0 0.0
        %1420 = vmatmul.mubr.f32.gmra.mrb[0].mxu0 %v1219
        %v1421 = vpop.f32.mrb[0].mxu0
        %v1422 = vadd.f32 0.0, %v1421
        %v1423 = vpop.f32.mrb[0].mxu0
        %1424 = vmatprep.mubr.f32.mxu0 0.0
        %1425 = vmatmul.mubr.f32.gmra.mrb[0].mxu0 %v1222
        %v1426 = vpop.f32.mrb[0].mxu0
        %v1427 = vadd.f32 0.0, %v1426
        %v1428 = vpop.f32.mrb[0].mxu0
        %1429 = vmatprep.mubr.f32.mxu0 0.0
        %1430 = vmatmul.mubr.f32.gmra.mrb[0].mxu0 %v1225
        %v1431 = vpop.f32.mrb[0].mxu0
        %v1432 = vadd.f32 0.0, %v1431
        %v1433 = vpop.f32.mrb[0].mxu0
        %1434 = vmatprep.mubr.f32.mxu0 0.0
        %1435 = vmatmul.mubr.f32.gmra.mrb[0].mxu0 %v1228
        %v1436 = vpop.f32.mrb[0].mxu0
        %v1437 = vadd.f32 0.0, %v1436
        %v1438 = vpop.f32.mrb[0].mxu0
        %1439 = vmatprep.mubr.f32.mxu0 0.0
        %1440 = vmatmul.mubr.f32.gmra.mrb[0].mxu0 %v1231
        %v1441 = vpop.f32.mrb[0].mxu0
        %v1442 = vadd.f32 0.0, %v1441
        %v1443 = vpop.f32.mrb[0].mxu0
        %1444 = vmatprep.mubr.f32.mxu0 0.0
        %1445 = vmatmul.mubr.f32.gmra.mrb[0].mxu0 %v1234
        %v1446 = vpop.f32.mrb[0].mxu0
        %v1447 = vadd.f32 0.0, %v1446
        %v1448 = vpop.f32.mrb[0].mxu0
        %1449 = vmatprep.mubr.f32.mxu0 0.0
        %1450 = vmatmul.mubr.f32.gmra.mrb[0].mxu0 %v1237
        %v1451 = vpop.f32.mrb[0].mxu0
        %v1452 = vadd.f32 0.0, %v1451
        %v1453 = vpop.f32.mrb[0].mxu0
        %1454 = vmatprep.mubr.f32.mxu0 0.0
        %1455 = vmatmul.mubr.f32.gmra.mrb[0].mxu0 %v1240
        %v1456 = vpop.f32.mrb[0].mxu0
        %v1457 = vadd.f32 0.0, %v1456
        %v1458 = vpop.f32.mrb[0].mxu0
        %1459 = vmatprep.mubr.f32.mxu0 0.0
        %1460 = vmatmul.mubr.f32.gmra.mrb[0].mxu0 %v1243
        %v1461 = vpop.f32.mrb[0].mxu0
        %v1462 = vadd.f32 0.0, %v1461
        %v1463 = vpop.f32.mrb[0].mxu0
        %1464 = vmatprep.mubr.f32.mxu0 0.0
        %1465 = vmatmul.mubr.f32.gmra.mrb[0].mxu0 %v1246
        %v1466 = vpop.f32.mrb[0].mxu0
        %v1467 = vadd.f32 0.0, %v1466
        %v1468 = vpop.f32.mrb[0].mxu0
        %1469 = vmatprep.mubr.f32.mxu0 0.0
        %1470 = vmatmul.mubr.f32.gmra.mrb[0].mxu0 %v1249
        %v1471 = vpop.f32.mrb[0].mxu0
        %v1472 = vadd.f32 0.0, %v1471
        %v1473 = vpop.f32.mrb[0].mxu0
        %1474 = vmatprep.mubr.f32.mxu0 0.0
        %1475 = vmatmul.mubr.f32.gmra.mrb[0].mxu0 %v1252
        %v1476 = vpop.f32.mrb[0].mxu0
        %v1477 = vadd.f32 0.0, %v1476
        %v1478 = vpop.f32.mrb[0].mxu0
        %1479 = vmatprep.mubr.f32.mxu0 0.0
        %1480 = vmatmul.mubr.f32.gmra.mrb[0].mxu0 %v1255
        %v1481 = vpop.f32.mrb[0].mxu0
        %v1482 = vadd.f32 0.0, %v1481
        %v1483 = vpop.f32.mrb[0].mxu0
        %1484 = vmatprep.mubr.f32.mxu0 0.0
        %1485 = vmatmul.mubr.f32.gmra.mrb[0].mxu0 %v1258
        %v1486 = vpop.f32.mrb[0].mxu0
        %v1487 = vadd.f32 0.0, %v1486
        %v1488 = vpop.f32.mrb[0].mxu0
        %1489 = vmatprep.mubr.f32.mxu0 0.0
        %1490 = vmatmul.mubr.f32.gmra.mrb[0].mxu0 %v1261
        %v1491 = vpop.f32.mrb[0].mxu0
        %v1492 = vadd.f32 0.0, %v1491
        %v1493 = vpop.f32.mrb[0].mxu0
        %1494 = vmatprep.mubr.f32.mxu0 0.0
        %1495 = vmatmul.mubr.f32.gmra.mrb[0].mxu0 %v1264
        %v1496 = vpop.f32.mrb[0].mxu0
        %v1497 = vadd.f32 0.0, %v1496
        %v1498 = vpop.f32.mrb[0].mxu0
        %1499 = vmatprep.mubr.f32.mxu0 0.0
        %1500 = vmatmul.mubr.f32.gmra.mrb[0].mxu0 %v1267
        %v1501 = vpop.f32.mrb[0].mxu0
        %v1502 = vadd.f32 0.0, %v1501
        %v1503 = vpop.f32.mrb[0].mxu0
        %1504 = vmatprep.mubr.f32.mxu0 0.0
        %1505 = vmatmul.mubr.f32.gmra.mrb[0].mxu0 %v1270
        %v1506 = vpop.f32.mrb[0].mxu0
        %v1507 = vadd.f32 0.0, %v1506
        %v1508 = vpop.f32.mrb[0].mxu0
        %1509 = vmatprep.mubr.f32.mxu0 0.0
        %1510 = vmatmul.mubr.f32.gmra.mrb[0].mxu0 %v1273
        %v1511 = vpop.f32.mrb[0].mxu0
        %v1512 = vadd.f32 0.0, %v1511
        %v1513 = vpop.f32.mrb[0].mxu0
        %1514 = vmatprep.mubr.f32.mxu0 0.0
        %1515 = vmatmul.mubr.f32.gmra.mrb[0].mxu0 %v1276
        %v1516 = vpop.f32.mrb[0].mxu0
        %v1517 = vadd.f32 0.0, %v1516
        %v1518 = vpop.f32.mrb[0].mxu0
        %1519 = vmatprep.mubr.f32.mxu0 0.0
        %1520 = vmatmul.mubr.f32.gmra.mrb[0].mxu0 %v1279
        %v1521 = vpop.f32.mrb[0].mxu0
        %v1522 = vadd.f32 0.0, %v1521
        %v1523 = vpop.f32.mrb[0].mxu0
        %1524 = vmatprep.mubr.f32.mxu0 0.0
        %1525 = vmatmul.mubr.f32.gmra.mrb[0].mxu0 %v1282
        %v1526 = vpop.f32.mrb[0].mxu0
        %v1527 = vadd.f32 0.0, %v1526
        %v1528 = vpop.f32.mrb[0].mxu0
        %1529 = vmatprep.mubr.f32.mxu0 0.0
        %1530 = vmatmul.mubr.f32.gmra.mrb[0].mxu0 %v1285
        %v1531 = vpop.f32.mrb[0].mxu0
        %v1532 = vadd.f32 0.0, %v1531
        %v1533 = vpop.f32.mrb[0].mxu0
        %1534 = vdwg.mxu0
        %v1535 = vadd.f32 %v965, %v1357
        %v1536 = vadd.f32 %v970, %v1362
        %v1537 = vadd.f32 %v975, %v1367
        %v1538 = vadd.f32 %v980, %v1372
        %v1539 = vadd.f32 %v985, %v1377
        %v1540 = vadd.f32 %v990, %v1382
        %v1541 = vadd.f32 %v995, %v1387
        %v1542 = vadd.f32 %v1000, %v1392
        %v1543 = vadd.f32 %v1005, %v1397
        %v1544 = vadd.f32 %v1010, %v1402
        %v1545 = vadd.f32 %v1015, %v1407
        %v1546 = vadd.f32 %v1020, %v1412
        %v1547 = vadd.f32 %v1025, %v1417
        %v1548 = vadd.f32 %v1030, %v1422
        %v1549 = vadd.f32 %v1035, %v1427
        %v1550 = vadd.f32 %v1040, %v1432
        %v1551 = vadd.f32 %v1045, %v1437
        %v1552 = vadd.f32 %v1050, %v1442
        %v1553 = vadd.f32 %v1055, %v1447
        %v1554 = vadd.f32 %v1060, %v1452
        %v1555 = vadd.f32 %v1065, %v1457
        %v1556 = vadd.f32 %v1070, %v1462
        %v1557 = vadd.f32 %v1075, %v1467
        %v1558 = vadd.f32 %v1080, %v1472
        %v1559 = vadd.f32 %v1085, %v1477
        %v1560 = vadd.f32 %v1090, %v1482
        %v1561 = vadd.f32 %v1095, %v1487
        %v1562 = vadd.f32 %v1100, %v1492
        %v1563 = vadd.f32 %v1105, %v1497
        %v1564 = vadd.f32 %v1110, %v1502
        %v1565 = vadd.f32 %v1115, %v1507
        %v1566 = vadd.f32 %v1120, %v1512
        %v1567 = vadd.f32 %v1125, %v1517
        %v1568 = vadd.f32 %v1130, %v1522
        %v1569 = vadd.f32 %v1135, %v1527
        %v1570 = vadd.f32 %v1140, %v1532
        %v1571 = vld [vmem:[%s329 + $0x12] sm:$0xff]
        %v1572 = vld [vmem:[%s329 + $0x1a] sm:$0xff]
        %v1573 = vld [vmem:[%s329 + $0x22] sm:$0xff]
        %v1574 = vld [vmem:[%s329 + $0x2a] sm:$0xff]
        %v1575 = vld [vmem:[%s329 + $0x32] sm:$0xff]
        %v1576 = vld [vmem:[%s329 + $0x3a] sm:$0xff]
        %v1577 = vld [vmem:[%s329 + $0x42] sm:$0xff]
        %v1578 = vld [vmem:[%s329 + $0x4a] sm:$0xff]
        %v1579 = vld [vmem:[%s329 + $0x52] sm:$0xff]
        %v1580 = vld [vmem:[%s329 + $0x5a] sm:$0xff]
        %v1581 = vld [vmem:[%s329 + $0x62] sm:$0xff]
        %v1582 = vld [vmem:[%s329 + $0x6a] sm:$0xff]
        %v1583 = vld [vmem:[%s329 + $0x72] sm:$0xff]
        %v1584 = vld [vmem:[%s329 + $0x7a] sm:$0xff]
        %v1585 = vld [vmem:[%s329 + $0x82] sm:$0xff]
        %v1586 = vld [vmem:[%s329 + $0x8a] sm:$0xff]
        %v1587 = vld [vmem:[%s329 + $0x92] sm:$0xff]
        %v1588 = vld [vmem:[%s329 + $0x9a] sm:$0xff]
        %v1589 = vld [vmem:[%s329 + $0xa2] sm:$0xff]
        %v1590 = vld [vmem:[%s329 + $0xaa] sm:$0xff]
        %v1591 = vld [vmem:[%s329 + $0xb2] sm:$0xff]
        %v1592 = vld [vmem:[%s329 + $0xba] sm:$0xff]
        %v1593 = vld [vmem:[%s329 + $0xc2] sm:$0xff]
        %v1594 = vld [vmem:[%s329 + $0xca] sm:$0xff]
        %v1595 = vld [vmem:[%s329 + $0xd2] sm:$0xff]
        %v1596 = vld [vmem:[%s329 + $0xda] sm:$0xff]
        %v1597 = vld [vmem:[%s329 + $0xe2] sm:$0xff]
        %v1598 = vld [vmem:[%s329 + $0xea] sm:$0xff]
        %v1599 = vld [vmem:[%s329 + $0xf2] sm:$0xff]
        %v1600 = vld [vmem:[%s329 + $0xfa] sm:$0xff]
        %v1601 = vld [vmem:[%s329 + $0x102] sm:$0xff]
        %v1602 = vld [vmem:[%s329 + $0x10a] sm:$0xff]
        %v1603 = vld [vmem:[%s329 + $0x112] sm:$0xff]
        %v1604 = vld [vmem:[%s329 + $0x11a] sm:$0xff]
        %v1605 = vld [vmem:[%s329 + $0x122] sm:$0xff]
        %v1606 = vld [vmem:[%s329 + $0x12a] sm:$0xff]
        %v1608 = vsel %vm429, %v1571, 0
        %v1611 = vsel %vm429, %v1572, 0
        %v1614 = vsel %vm429, %v1573, 0
        %v1617 = vsel %vm429, %v1574, 0
        %v1620 = vsel %vm429, %v1575, 0
        %v1623 = vsel %vm429, %v1576, 0
        %v1626 = vsel %vm429, %v1577, 0
        %v1629 = vsel %vm429, %v1578, 0
        %v1632 = vsel %vm429, %v1579, 0
        %v1635 = vsel %vm429, %v1580, 0
        %v1638 = vsel %vm429, %v1581, 0
        %v1641 = vsel %vm429, %v1582, 0
        %v1644 = vsel %vm429, %v1583, 0
        %v1647 = vsel %vm429, %v1584, 0
        %v1650 = vsel %vm429, %v1585, 0
        %v1653 = vsel %vm429, %v1586, 0
        %v1656 = vsel %vm429, %v1587, 0
        %v1659 = vsel %vm429, %v1588, 0
        %v1662 = vsel %vm429, %v1589, 0
        %v1665 = vsel %vm429, %v1590, 0
        %v1668 = vsel %vm429, %v1591, 0
        %v1671 = vsel %vm429, %v1592, 0
        %v1674 = vsel %vm429, %v1593, 0
        %v1677 = vsel %vm429, %v1594, 0
        %v1680 = vsel %vm429, %v1595, 0
        %v1683 = vsel %vm429, %v1596, 0
        %v1686 = vsel %vm429, %v1597, 0
        %v1689 = vsel %vm429, %v1598, 0
        %v1692 = vsel %vm429, %v1599, 0
        %v1695 = vsel %vm429, %v1600, 0
        %v1698 = vsel %vm429, %v1601, 0
        %v1701 = vsel %vm429, %v1602, 0
        %v1704 = vsel %vm429, %v1603, 0
        %v1707 = vsel %vm429, %v1604, 0
        %v1710 = vsel %vm429, %v1605, 0
        %v1713 = vsel %vm429, %v1606, 0
        %v1716 = vsel %vm538, %v333, 0
        %1718 = vmatprep.subr.mxu0 0.0
        %1719 = vmatpush1.msra.mxu0 %v1716
        %1720 = vmatprep.subr.mxu0 0.0
        %1721 = vmatpush1.msra.mxu0 0.0
        %1722 = vmatprep.subr.mxu0 0.0
        %1723 = vmatpush1.msra.mxu0 0.0
        %1724 = vmatprep.subr.mxu0 0.0
        %1725 = vmatpush1.msra.mxu0 0.0
        %1726 = vmatprep.subr.mxu0 0.0
        %1727 = vmatpush1.msra.mxu0 0.0
        %1728 = vmatprep.subr.mxu0 0.0
        %1729 = vmatpush1.msra.mxu0 0.0
        %1730 = vmatprep.subr.mxu0 0.0
        %1731 = vmatpush1.msra.mxu0 0.0
        %1732 = vmatprep.subr.mxu0 0.0
        %1733 = vmatpush1.msra.mxu0 0.0
        %1734 = vmatprep.subr.mxu0 0.0
        %1735 = vmatpush1.msra.mxu0 0.0
        %1736 = vmatprep.subr.mxu0 0.0
        %1737 = vmatpush1.msra.mxu0 0.0
        %1738 = vmatprep.subr.mxu0 0.0
        %1739 = vmatpush1.msra.mxu0 0.0
        %1740 = vmatprep.subr.mxu0 0.0
        %1741 = vmatpush1.msra.mxu0 0.0
        %1742 = vmatprep.subr.mxu0 0.0
        %1743 = vmatpush1.msra.mxu0 0.0
        %1744 = vmatprep.subr.mxu0 0.0
        %1745 = vmatpush1.msra.mxu0 0.0
        %1746 = vmatprep.subr.mxu0 0.0
        %1747 = vmatpush1.msra.mxu0 0.0
        %1748 = vmatprep.subr.mxu0 0.0
        %1749 = vmatpush1.msra.mxu0 0.0
        %1750 = vmatprep.subr.mxu0 0.0
        %1751 = vmatpush1.msra.mxu0 0.0
        %1752 = vmatprep.subr.mxu0 0.0
        %1753 = vmatpush1.msra.mxu0 0.0
        %1754 = vmatprep.subr.mxu0 0.0
        %1755 = vmatpush1.msra.mxu0 0.0
        %1756 = vmatprep.subr.mxu0 0.0
        %1757 = vmatpush1.msra.mxu0 0.0
        %1758 = vmatprep.subr.mxu0 0.0
        %1759 = vmatpush1.msra.mxu0 0.0
        %1760 = vmatprep.subr.mxu0 0.0
        %1761 = vmatpush1.msra.mxu0 0.0
        %1762 = vmatprep.subr.mxu0 0.0
        %1763 = vmatpush1.msra.mxu0 0.0
        %1764 = vmatprep.subr.mxu0 0.0
        %1765 = vmatpush1.msra.mxu0 0.0
        %1766 = vmatprep.subr.mxu0 0.0
        %1767 = vmatpush1.msra.mxu0 0.0
        %1768 = vmatprep.subr.mxu0 0.0
        %1769 = vmatpush1.msra.mxu0 0.0
        %1770 = vmatprep.subr.mxu0 0.0
        %1771 = vmatpush1.msra.mxu0 0.0
        %1772 = vmatprep.subr.mxu0 0.0
        %1773 = vmatpush1.msra.mxu0 0.0
        %1774 = vmatprep.subr.mxu0 0.0
        %1775 = vmatpush1.msra.mxu0 0.0
        %1776 = vmatprep.subr.mxu0 0.0
        %1777 = vmatpush1.msra.mxu0 0.0
        %1778 = vmatprep.subr.mxu0 0.0
        %1779 = vmatpush1.msra.mxu0 0.0
        %1780 = vmatprep.subr.mxu0 0.0
        %1781 = vmatpush1.msra.mxu0 0.0
        %1782 = vmatprep.mubr.f32.mxu0 0.0
        %1783 = vmatmul.mubr.f32.gmra.mrb[0].mxu0 %v1608
        %v1784 = vpop.f32.mrb[0].mxu0
        %v1785 = vadd.f32 0.0, %v1784
        %v1786 = vpop.f32.mrb[0].mxu0
        %1787 = vmatprep.mubr.f32.mxu0 0.0
        %1788 = vmatmul.mubr.f32.gmra.mrb[0].mxu0 %v1611
        %v1789 = vpop.f32.mrb[0].mxu0
        %v1790 = vadd.f32 0.0, %v1789
        %v1791 = vpop.f32.mrb[0].mxu0
        %1792 = vmatprep.mubr.f32.mxu0 0.0
        %1793 = vmatmul.mubr.f32.gmra.mrb[0].mxu0 %v1614
        %v1794 = vpop.f32.mrb[0].mxu0
        %v1795 = vadd.f32 0.0, %v1794
        %v1796 = vpop.f32.mrb[0].mxu0
        %1797 = vmatprep.mubr.f32.mxu0 0.0
        %1798 = vmatmul.mubr.f32.gmra.mrb[0].mxu0 %v1617
        %v1799 = vpop.f32.mrb[0].mxu0
        %v1800 = vadd.f32 0.0, %v1799
        %v1801 = vpop.f32.mrb[0].mxu0
        %1802 = vmatprep.mubr.f32.mxu0 0.0
        %1803 = vmatmul.mubr.f32.gmra.mrb[0].mxu0 %v1620
        %v1804 = vpop.f32.mrb[0].mxu0
        %v1805 = vadd.f32 0.0, %v1804
        %v1806 = vpop.f32.mrb[0].mxu0
        %1807 = vmatprep.mubr.f32.mxu0 0.0
        %1808 = vmatmul.mubr.f32.gmra.mrb[0].mxu0 %v1623
        %v1809 = vpop.f32.mrb[0].mxu0
        %v1810 = vadd.f32 0.0, %v1809
        %v1811 = vpop.f32.mrb[0].mxu0
        %1812 = vmatprep.mubr.f32.mxu0 0.0
        %1813 = vmatmul.mubr.f32.gmra.mrb[0].mxu0 %v1626
        %v1814 = vpop.f32.mrb[0].mxu0
        %v1815 = vadd.f32 0.0, %v1814
        %v1816 = vpop.f32.mrb[0].mxu0
        %1817 = vmatprep.mubr.f32.mxu0 0.0
        %1818 = vmatmul.mubr.f32.gmra.mrb[0].mxu0 %v1629
        %v1819 = vpop.f32.mrb[0].mxu0
        %v1820 = vadd.f32 0.0, %v1819
        %v1821 = vpop.f32.mrb[0].mxu0
        %1822 = vmatprep.mubr.f32.mxu0 0.0
        %1823 = vmatmul.mubr.f32.gmra.mrb[0].mxu0 %v1632
        %v1824 = vpop.f32.mrb[0].mxu0
        %v1825 = vadd.f32 0.0, %v1824
        %v1826 = vpop.f32.mrb[0].mxu0
        %1827 = vmatprep.mubr.f32.mxu0 0.0
        %1828 = vmatmul.mubr.f32.gmra.mrb[0].mxu0 %v1635
        %v1829 = vpop.f32.mrb[0].mxu0
        %v1830 = vadd.f32 0.0, %v1829
        %v1831 = vpop.f32.mrb[0].mxu0
        %1832 = vmatprep.mubr.f32.mxu0 0.0
        %1833 = vmatmul.mubr.f32.gmra.mrb[0].mxu0 %v1638
        %v1834 = vpop.f32.mrb[0].mxu0
        %v1835 = vadd.f32 0.0, %v1834
        %v1836 = vpop.f32.mrb[0].mxu0
        %1837 = vmatprep.mubr.f32.mxu0 0.0
        %1838 = vmatmul.mubr.f32.gmra.mrb[0].mxu0 %v1641
        %v1839 = vpop.f32.mrb[0].mxu0
        %v1840 = vadd.f32 0.0, %v1839
        %v1841 = vpop.f32.mrb[0].mxu0
        %1842 = vmatprep.mubr.f32.mxu0 0.0
        %1843 = vmatmul.mubr.f32.gmra.mrb[0].mxu0 %v1644
        %v1844 = vpop.f32.mrb[0].mxu0
        %v1845 = vadd.f32 0.0, %v1844
        %v1846 = vpop.f32.mrb[0].mxu0
        %1847 = vmatprep.mubr.f32.mxu0 0.0
        %1848 = vmatmul.mubr.f32.gmra.mrb[0].mxu0 %v1647
        %v1849 = vpop.f32.mrb[0].mxu0
        %v1850 = vadd.f32 0.0, %v1849
        %v1851 = vpop.f32.mrb[0].mxu0
        %1852 = vmatprep.mubr.f32.mxu0 0.0
        %1853 = vmatmul.mubr.f32.gmra.mrb[0].mxu0 %v1650
        %v1854 = vpop.f32.mrb[0].mxu0
        %v1855 = vadd.f32 0.0, %v1854
        %v1856 = vpop.f32.mrb[0].mxu0
        %1857 = vmatprep.mubr.f32.mxu0 0.0
        %1858 = vmatmul.mubr.f32.gmra.mrb[0].mxu0 %v1653
        %v1859 = vpop.f32.mrb[0].mxu0
        %v1860 = vadd.f32 0.0, %v1859
        %v1861 = vpop.f32.mrb[0].mxu0
        %1862 = vmatprep.mubr.f32.mxu0 0.0
        %1863 = vmatmul.mubr.f32.gmra.mrb[0].mxu0 %v1656
        %v1864 = vpop.f32.mrb[0].mxu0
        %v1865 = vadd.f32 0.0, %v1864
        %v1866 = vpop.f32.mrb[0].mxu0
        %1867 = vmatprep.mubr.f32.mxu0 0.0
        %1868 = vmatmul.mubr.f32.gmra.mrb[0].mxu0 %v1659
        %v1869 = vpop.f32.mrb[0].mxu0
        %v1870 = vadd.f32 0.0, %v1869
        %v1871 = vpop.f32.mrb[0].mxu0
        %1872 = vmatprep.mubr.f32.mxu0 0.0
        %1873 = vmatmul.mubr.f32.gmra.mrb[0].mxu0 %v1662
        %v1874 = vpop.f32.mrb[0].mxu0
        %v1875 = vadd.f32 0.0, %v1874
        %v1876 = vpop.f32.mrb[0].mxu0
        %1877 = vmatprep.mubr.f32.mxu0 0.0
        %1878 = vmatmul.mubr.f32.gmra.mrb[0].mxu0 %v1665
        %v1879 = vpop.f32.mrb[0].mxu0
        %v1880 = vadd.f32 0.0, %v1879
        %v1881 = vpop.f32.mrb[0].mxu0
        %1882 = vmatprep.mubr.f32.mxu0 0.0
        %1883 = vmatmul.mubr.f32.gmra.mrb[0].mxu0 %v1668
        %v1884 = vpop.f32.mrb[0].mxu0
        %v1885 = vadd.f32 0.0, %v1884
        %v1886 = vpop.f32.mrb[0].mxu0
        %1887 = vmatprep.mubr.f32.mxu0 0.0
        %1888 = vmatmul.mubr.f32.gmra.mrb[0].mxu0 %v1671
        %v1889 = vpop.f32.mrb[0].mxu0
        %v1890 = vadd.f32 0.0, %v1889
        %v1891 = vpop.f32.mrb[0].mxu0
        %1892 = vmatprep.mubr.f32.mxu0 0.0
        %1893 = vmatmul.mubr.f32.gmra.mrb[0].mxu0 %v1674
        %v1894 = vpop.f32.mrb[0].mxu0
        %v1895 = vadd.f32 0.0, %v1894
        %v1896 = vpop.f32.mrb[0].mxu0
        %1897 = vmatprep.mubr.f32.mxu0 0.0
        %1898 = vmatmul.mubr.f32.gmra.mrb[0].mxu0 %v1677
        %v1899 = vpop.f32.mrb[0].mxu0
        %v1900 = vadd.f32 0.0, %v1899
        %v1901 = vpop.f32.mrb[0].mxu0
        %1902 = vmatprep.mubr.f32.mxu0 0.0
        %1903 = vmatmul.mubr.f32.gmra.mrb[0].mxu0 %v1680
        %v1904 = vpop.f32.mrb[0].mxu0
        %v1905 = vadd.f32 0.0, %v1904
        %v1906 = vpop.f32.mrb[0].mxu0
        %1907 = vmatprep.mubr.f32.mxu0 0.0
        %1908 = vmatmul.mubr.f32.gmra.mrb[0].mxu0 %v1683
        %v1909 = vpop.f32.mrb[0].mxu0
        %v1910 = vadd.f32 0.0, %v1909
        %v1911 = vpop.f32.mrb[0].mxu0
        %1912 = vmatprep.mubr.f32.mxu0 0.0
        %1913 = vmatmul.mubr.f32.gmra.mrb[0].mxu0 %v1686
        %v1914 = vpop.f32.mrb[0].mxu0
        %v1915 = vadd.f32 0.0, %v1914
        %v1916 = vpop.f32.mrb[0].mxu0
        %1917 = vmatprep.mubr.f32.mxu0 0.0
        %1918 = vmatmul.mubr.f32.gmra.mrb[0].mxu0 %v1689
        %v1919 = vpop.f32.mrb[0].mxu0
        %v1920 = vadd.f32 0.0, %v1919
        %v1921 = vpop.f32.mrb[0].mxu0
        %1922 = vmatprep.mubr.f32.mxu0 0.0
        %1923 = vmatmul.mubr.f32.gmra.mrb[0].mxu0 %v1692
        %v1924 = vpop.f32.mrb[0].mxu0
        %v1925 = vadd.f32 0.0, %v1924
        %v1926 = vpop.f32.mrb[0].mxu0
        %1927 = vmatprep.mubr.f32.mxu0 0.0
        %1928 = vmatmul.mubr.f32.gmra.mrb[0].mxu0 %v1695
        %v1929 = vpop.f32.mrb[0].mxu0
        %v1930 = vadd.f32 0.0, %v1929
        %v1931 = vpop.f32.mrb[0].mxu0
        %1932 = vmatprep.mubr.f32.mxu0 0.0
        %1933 = vmatmul.mubr.f32.gmra.mrb[0].mxu0 %v1698
        %v1934 = vpop.f32.mrb[0].mxu0
        %v1935 = vadd.f32 0.0, %v1934
        %v1936 = vpop.f32.mrb[0].mxu0
        %1937 = vmatprep.mubr.f32.mxu0 0.0
        %1938 = vmatmul.mubr.f32.gmra.mrb[0].mxu0 %v1701
        %v1939 = vpop.f32.mrb[0].mxu0
        %v1940 = vadd.f32 0.0, %v1939
        %v1941 = vpop.f32.mrb[0].mxu0
        %1942 = vmatprep.mubr.f32.mxu0 0.0
        %1943 = vmatmul.mubr.f32.gmra.mrb[0].mxu0 %v1704
        %v1944 = vpop.f32.mrb[0].mxu0
        %v1945 = vadd.f32 0.0, %v1944
        %v1946 = vpop.f32.mrb[0].mxu0
        %1947 = vmatprep.mubr.f32.mxu0 0.0
        %1948 = vmatmul.mubr.f32.gmra.mrb[0].mxu0 %v1707
        %v1949 = vpop.f32.mrb[0].mxu0
        %v1950 = vadd.f32 0.0, %v1949
        %v1951 = vpop.f32.mrb[0].mxu0
        %1952 = vmatprep.mubr.f32.mxu0 0.0
        %1953 = vmatmul.mubr.f32.gmra.mrb[0].mxu0 %v1710
        %v1954 = vpop.f32.mrb[0].mxu0
        %v1955 = vadd.f32 0.0, %v1954
        %v1956 = vpop.f32.mrb[0].mxu0
        %1957 = vmatprep.mubr.f32.mxu0 0.0
        %1958 = vmatmul.mubr.f32.gmra.mrb[0].mxu0 %v1713
        %v1959 = vpop.f32.mrb[0].mxu0
        %v1960 = vadd.f32 0.0, %v1959
        %v1961 = vpop.f32.mrb[0].mxu0
        %1962 = vdwg.mxu0
        %v1963 = vadd.f32 %v1535, %v1785
        %v1964 = vadd.f32 %v1536, %v1790
        %v1965 = vadd.f32 %v1537, %v1795
        %v1966 = vadd.f32 %v1538, %v1800
        %v1967 = vadd.f32 %v1539, %v1805
        %v1968 = vadd.f32 %v1540, %v1810
        %v1969 = vadd.f32 %v1541, %v1815
        %v1970 = vadd.f32 %v1542, %v1820
        %v1971 = vadd.f32 %v1543, %v1825
        %v1972 = vadd.f32 %v1544, %v1830
        %v1973 = vadd.f32 %v1545, %v1835
        %v1974 = vadd.f32 %v1546, %v1840
        %v1975 = vadd.f32 %v1547, %v1845
        %v1976 = vadd.f32 %v1548, %v1850
        %v1977 = vadd.f32 %v1549, %v1855
        %v1978 = vadd.f32 %v1550, %v1860
        %v1979 = vadd.f32 %v1551, %v1865
        %v1980 = vadd.f32 %v1552, %v1870
        %v1981 = vadd.f32 %v1553, %v1875
        %v1982 = vadd.f32 %v1554, %v1880
        %v1983 = vadd.f32 %v1555, %v1885
        %v1984 = vadd.f32 %v1556, %v1890
        %v1985 = vadd.f32 %v1557, %v1895
        %v1986 = vadd.f32 %v1558, %v1900
        %v1987 = vadd.f32 %v1559, %v1905
        %v1988 = vadd.f32 %v1560, %v1910
        %v1989 = vadd.f32 %v1561, %v1915
        %v1990 = vadd.f32 %v1562, %v1920
        %v1991 = vadd.f32 %v1563, %v1925
        %v1992 = vadd.f32 %v1564, %v1930
        %v1993 = vadd.f32 %v1565, %v1935
        %v1994 = vadd.f32 %v1566, %v1940
        %v1995 = vadd.f32 %v1567, %v1945
        %v1996 = vadd.f32 %v1568, %v1950
        %v1997 = vadd.f32 %v1569, %v1955
        %v1998 = vadd.f32 %v1570, %v1960
        %v1999 = vld [vmem:[%s329 + $0x13] sm:$0xff]
        %v2000 = vld [vmem:[%s329 + $0x1b] sm:$0xff]
        %v2001 = vld [vmem:[%s329 + $0x23] sm:$0xff]
        %v2002 = vld [vmem:[%s329 + $0x2b] sm:$0xff]
        %v2003 = vld [vmem:[%s329 + $0x33] sm:$0xff]
        %v2004 = vld [vmem:[%s329 + $0x3b] sm:$0xff]
        %v2005 = vld [vmem:[%s329 + $0x43] sm:$0xff]
        %v2006 = vld [vmem:[%s329 + $0x4b] sm:$0xff]
        %v2007 = vld [vmem:[%s329 + $0x53] sm:$0xff]
        %v2008 = vld [vmem:[%s329 + $0x5b] sm:$0xff]
        %v2009 = vld [vmem:[%s329 + $0x63] sm:$0xff]
        %v2010 = vld [vmem:[%s329 + $0x6b] sm:$0xff]
        %v2011 = vld [vmem:[%s329 + $0x73] sm:$0xff]
        %v2012 = vld [vmem:[%s329 + $0x7b] sm:$0xff]
        %v2013 = vld [vmem:[%s329 + $0x83] sm:$0xff]
        %v2014 = vld [vmem:[%s329 + $0x8b] sm:$0xff]
        %v2015 = vld [vmem:[%s329 + $0x93] sm:$0xff]
        %v2016 = vld [vmem:[%s329 + $0x9b] sm:$0xff]
        %v2017 = vld [vmem:[%s329 + $0xa3] sm:$0xff]
        %v2018 = vld [vmem:[%s329 + $0xab] sm:$0xff]
        %v2019 = vld [vmem:[%s329 + $0xb3] sm:$0xff]
        %v2020 = vld [vmem:[%s329 + $0xbb] sm:$0xff]
        %v2021 = vld [vmem:[%s329 + $0xc3] sm:$0xff]
        %v2022 = vld [vmem:[%s329 + $0xcb] sm:$0xff]
        %v2023 = vld [vmem:[%s329 + $0xd3] sm:$0xff]
        %v2024 = vld [vmem:[%s329 + $0xdb] sm:$0xff]
        %v2025 = vld [vmem:[%s329 + $0xe3] sm:$0xff]
        %v2026 = vld [vmem:[%s329 + $0xeb] sm:$0xff]
        %v2027 = vld [vmem:[%s329 + $0xf3] sm:$0xff]
        %v2028 = vld [vmem:[%s329 + $0xfb] sm:$0xff]
        %v2029 = vld [vmem:[%s329 + $0x103] sm:$0xff]
        %v2030 = vld [vmem:[%s329 + $0x10b] sm:$0xff]
        %v2031 = vld [vmem:[%s329 + $0x113] sm:$0xff]
        %v2032 = vld [vmem:[%s329 + $0x11b] sm:$0xff]
        %v2033 = vld [vmem:[%s329 + $0x123] sm:$0xff]
        %v2034 = vld [vmem:[%s329 + $0x12b] sm:$0xff]
        %v2036 = vsel %vm429, %v1999, 0
        %v2039 = vsel %vm429, %v2000, 0
        %v2042 = vsel %vm429, %v2001, 0
        %v2045 = vsel %vm429, %v2002, 0
        %v2048 = vsel %vm429, %v2003, 0
        %v2051 = vsel %vm429, %v2004, 0
        %v2054 = vsel %vm429, %v2005, 0
        %v2057 = vsel %vm429, %v2006, 0
        %v2060 = vsel %vm429, %v2007, 0
        %v2063 = vsel %vm429, %v2008, 0
        %v2066 = vsel %vm429, %v2009, 0
        %v2069 = vsel %vm429, %v2010, 0
        %v2072 = vsel %vm429, %v2011, 0
        %v2075 = vsel %vm429, %v2012, 0
        %v2078 = vsel %vm429, %v2013, 0
        %v2081 = vsel %vm429, %v2014, 0
        %v2084 = vsel %vm429, %v2015, 0
        %v2087 = vsel %vm429, %v2016, 0
        %v2090 = vsel %vm429, %v2017, 0
        %v2093 = vsel %vm429, %v2018, 0
        %v2096 = vsel %vm429, %v2019, 0
        %v2099 = vsel %vm429, %v2020, 0
        %v2102 = vsel %vm429, %v2021, 0
        %v2105 = vsel %vm429, %v2022, 0
        %v2108 = vsel %vm429, %v2023, 0
        %v2111 = vsel %vm429, %v2024, 0
        %v2114 = vsel %vm429, %v2025, 0
        %v2117 = vsel %vm429, %v2026, 0
        %v2120 = vsel %vm429, %v2027, 0
        %v2123 = vsel %vm429, %v2028, 0
        %v2126 = vsel %vm429, %v2029, 0
        %v2129 = vsel %vm429, %v2030, 0
        %v2132 = vsel %vm429, %v2031, 0
        %v2135 = vsel %vm429, %v2032, 0
        %v2138 = vsel %vm429, %v2033, 0
        %v2141 = vsel %vm429, %v2034, 0
        %v2144 = vsel %vm538, %v334, 0
        %2146 = vmatprep.subr.mxu0 0.0
        %2147 = vmatpush1.msra.mxu0 %v2144
        %2148 = vmatprep.subr.mxu0 0.0
        %2149 = vmatpush1.msra.mxu0 0.0
        %2150 = vmatprep.subr.mxu0 0.0
        %2151 = vmatpush1.msra.mxu0 0.0
        %2152 = vmatprep.subr.mxu0 0.0
        %2153 = vmatpush1.msra.mxu0 0.0
        %2154 = vmatprep.subr.mxu0 0.0
        %2155 = vmatpush1.msra.mxu0 0.0
        %2156 = vmatprep.subr.mxu0 0.0
        %2157 = vmatpush1.msra.mxu0 0.0
        %2158 = vmatprep.subr.mxu0 0.0
        %2159 = vmatpush1.msra.mxu0 0.0
        %2160 = vmatprep.subr.mxu0 0.0
        %2161 = vmatpush1.msra.mxu0 0.0
        %2162 = vmatprep.subr.mxu0 0.0
        %2163 = vmatpush1.msra.mxu0 0.0
        %2164 = vmatprep.subr.mxu0 0.0
        %2165 = vmatpush1.msra.mxu0 0.0
        %2166 = vmatprep.subr.mxu0 0.0
        %2167 = vmatpush1.msra.mxu0 0.0
        %2168 = vmatprep.subr.mxu0 0.0
        %2169 = vmatpush1.msra.mxu0 0.0
        %2170 = vmatprep.subr.mxu0 0.0
        %2171 = vmatpush1.msra.mxu0 0.0
        %2172 = vmatprep.subr.mxu0 0.0
        %2173 = vmatpush1.msra.mxu0 0.0
        %2174 = vmatprep.subr.mxu0 0.0
        %2175 = vmatpush1.msra.mxu0 0.0
        %2176 = vmatprep.subr.mxu0 0.0
        %2177 = vmatpush1.msra.mxu0 0.0
        %2178 = vmatprep.subr.mxu0 0.0
        %2179 = vmatpush1.msra.mxu0 0.0
        %2180 = vmatprep.subr.mxu0 0.0
        %2181 = vmatpush1.msra.mxu0 0.0
        %2182 = vmatprep.subr.mxu0 0.0
        %2183 = vmatpush1.msra.mxu0 0.0
        %2184 = vmatprep.subr.mxu0 0.0
        %2185 = vmatpush1.msra.mxu0 0.0
        %2186 = vmatprep.subr.mxu0 0.0
        %2187 = vmatpush1.msra.mxu0 0.0
        %2188 = vmatprep.subr.mxu0 0.0
        %2189 = vmatpush1.msra.mxu0 0.0
        %2190 = vmatprep.subr.mxu0 0.0
        %2191 = vmatpush1.msra.mxu0 0.0
        %2192 = vmatprep.subr.mxu0 0.0
        %2193 = vmatpush1.msra.mxu0 0.0
        %2194 = vmatprep.subr.mxu0 0.0
        %2195 = vmatpush1.msra.mxu0 0.0
        %2196 = vmatprep.subr.mxu0 0.0
        %2197 = vmatpush1.msra.mxu0 0.0
        %2198 = vmatprep.subr.mxu0 0.0
        %2199 = vmatpush1.msra.mxu0 0.0
        %2200 = vmatprep.subr.mxu0 0.0
        %2201 = vmatpush1.msra.mxu0 0.0
        %2202 = vmatprep.subr.mxu0 0.0
        %2203 = vmatpush1.msra.mxu0 0.0
        %2204 = vmatprep.subr.mxu0 0.0
        %2205 = vmatpush1.msra.mxu0 0.0
        %2206 = vmatprep.subr.mxu0 0.0
        %2207 = vmatpush1.msra.mxu0 0.0
        %2208 = vmatprep.subr.mxu0 0.0
        %2209 = vmatpush1.msra.mxu0 0.0
        %2210 = vmatprep.mubr.f32.mxu0 0.0
        %2211 = vmatmul.mubr.f32.gmra.mrb[0].mxu0 %v2036
        %v2212 = vpop.f32.mrb[0].mxu0
        %v2213 = vadd.f32 0.0, %v2212
        %v2214 = vpop.f32.mrb[0].mxu0
        %2215 = vmatprep.mubr.f32.mxu0 0.0
        %2216 = vmatmul.mubr.f32.gmra.mrb[0].mxu0 %v2039
        %v2217 = vpop.f32.mrb[0].mxu0
        %v2218 = vadd.f32 0.0, %v2217
        %v2219 = vpop.f32.mrb[0].mxu0
        %2220 = vmatprep.mubr.f32.mxu0 0.0
        %2221 = vmatmul.mubr.f32.gmra.mrb[0].mxu0 %v2042
        %v2222 = vpop.f32.mrb[0].mxu0
        %v2223 = vadd.f32 0.0, %v2222
        %v2224 = vpop.f32.mrb[0].mxu0
        %2225 = vmatprep.mubr.f32.mxu0 0.0
        %2226 = vmatmul.mubr.f32.gmra.mrb[0].mxu0 %v2045
        %v2227 = vpop.f32.mrb[0].mxu0
        %v2228 = vadd.f32 0.0, %v2227
        %v2229 = vpop.f32.mrb[0].mxu0
        %2230 = vmatprep.mubr.f32.mxu0 0.0
        %2231 = vmatmul.mubr.f32.gmra.mrb[0].mxu0 %v2048
        %v2232 = vpop.f32.mrb[0].mxu0
        %v2233 = vadd.f32 0.0, %v2232
        %v2234 = vpop.f32.mrb[0].mxu0
        %2235 = vmatprep.mubr.f32.mxu0 0.0
        %2236 = vmatmul.mubr.f32.gmra.mrb[0].mxu0 %v2051
        %v2237 = vpop.f32.mrb[0].mxu0
        %v2238 = vadd.f32 0.0, %v2237
        %v2239 = vpop.f32.mrb[0].mxu0
        %2240 = vmatprep.mubr.f32.mxu0 0.0
        %2241 = vmatmul.mubr.f32.gmra.mrb[0].mxu0 %v2054
        %v2242 = vpop.f32.mrb[0].mxu0
        %v2243 = vadd.f32 0.0, %v2242
        %v2244 = vpop.f32.mrb[0].mxu0
        %2245 = vmatprep.mubr.f32.mxu0 0.0
        %2246 = vmatmul.mubr.f32.gmra.mrb[0].mxu0 %v2057
        %v2247 = vpop.f32.mrb[0].mxu0
        %v2248 = vadd.f32 0.0, %v2247
        %v2249 = vpop.f32.mrb[0].mxu0
        %2250 = vmatprep.mubr.f32.mxu0 0.0
        %2251 = vmatmul.mubr.f32.gmra.mrb[0].mxu0 %v2060
        %v2252 = vpop.f32.mrb[0].mxu0
        %v2253 = vadd.f32 0.0, %v2252
        %v2254 = vpop.f32.mrb[0].mxu0
        %2255 = vmatprep.mubr.f32.mxu0 0.0
        %2256 = vmatmul.mubr.f32.gmra.mrb[0].mxu0 %v2063
        %v2257 = vpop.f32.mrb[0].mxu0
        %v2258 = vadd.f32 0.0, %v2257
        %v2259 = vpop.f32.mrb[0].mxu0
        %2260 = vmatprep.mubr.f32.mxu0 0.0
        %2261 = vmatmul.mubr.f32.gmra.mrb[0].mxu0 %v2066
        %v2262 = vpop.f32.mrb[0].mxu0
        %v2263 = vadd.f32 0.0, %v2262
        %v2264 = vpop.f32.mrb[0].mxu0
        %2265 = vmatprep.mubr.f32.mxu0 0.0
        %2266 = vmatmul.mubr.f32.gmra.mrb[0].mxu0 %v2069
        %v2267 = vpop.f32.mrb[0].mxu0
        %v2268 = vadd.f32 0.0, %v2267
        %v2269 = vpop.f32.mrb[0].mxu0
        %2270 = vmatprep.mubr.f32.mxu0 0.0
        %2271 = vmatmul.mubr.f32.gmra.mrb[0].mxu0 %v2072
        %v2272 = vpop.f32.mrb[0].mxu0
        %v2273 = vadd.f32 0.0, %v2272
        %v2274 = vpop.f32.mrb[0].mxu0
        %2275 = vmatprep.mubr.f32.mxu0 0.0
        %2276 = vmatmul.mubr.f32.gmra.mrb[0].mxu0 %v2075
        %v2277 = vpop.f32.mrb[0].mxu0
        %v2278 = vadd.f32 0.0, %v2277
        %v2279 = vpop.f32.mrb[0].mxu0
        %2280 = vmatprep.mubr.f32.mxu0 0.0
        %2281 = vmatmul.mubr.f32.gmra.mrb[0].mxu0 %v2078
        %v2282 = vpop.f32.mrb[0].mxu0
        %v2283 = vadd.f32 0.0, %v2282
        %v2284 = vpop.f32.mrb[0].mxu0
        %2285 = vmatprep.mubr.f32.mxu0 0.0
        %2286 = vmatmul.mubr.f32.gmra.mrb[0].mxu0 %v2081
        %v2287 = vpop.f32.mrb[0].mxu0
        %v2288 = vadd.f32 0.0, %v2287
        %v2289 = vpop.f32.mrb[0].mxu0
        %2290 = vmatprep.mubr.f32.mxu0 0.0
        %2291 = vmatmul.mubr.f32.gmra.mrb[0].mxu0 %v2084
        %v2292 = vpop.f32.mrb[0].mxu0
        %v2293 = vadd.f32 0.0, %v2292
        %v2294 = vpop.f32.mrb[0].mxu0
        %2295 = vmatprep.mubr.f32.mxu0 0.0
        %2296 = vmatmul.mubr.f32.gmra.mrb[0].mxu0 %v2087
        %v2297 = vpop.f32.mrb[0].mxu0
        %v2298 = vadd.f32 0.0, %v2297
        %v2299 = vpop.f32.mrb[0].mxu0
        %2300 = vmatprep.mubr.f32.mxu0 0.0
        %2301 = vmatmul.mubr.f32.gmra.mrb[0].mxu0 %v2090
        %v2302 = vpop.f32.mrb[0].mxu0
        %v2303 = vadd.f32 0.0, %v2302
        %v2304 = vpop.f32.mrb[0].mxu0
        %2305 = vmatprep.mubr.f32.mxu0 0.0
        %2306 = vmatmul.mubr.f32.gmra.mrb[0].mxu0 %v2093
        %v2307 = vpop.f32.mrb[0].mxu0
        %v2308 = vadd.f32 0.0, %v2307
        %v2309 = vpop.f32.mrb[0].mxu0
        %2310 = vmatprep.mubr.f32.mxu0 0.0
        %2311 = vmatmul.mubr.f32.gmra.mrb[0].mxu0 %v2096
        %v2312 = vpop.f32.mrb[0].mxu0
        %v2313 = vadd.f32 0.0, %v2312
        %v2314 = vpop.f32.mrb[0].mxu0
        %2315 = vmatprep.mubr.f32.mxu0 0.0
        %2316 = vmatmul.mubr.f32.gmra.mrb[0].mxu0 %v2099
        %v2317 = vpop.f32.mrb[0].mxu0
        %v2318 = vadd.f32 0.0, %v2317
        %v2319 = vpop.f32.mrb[0].mxu0
        %2320 = vmatprep.mubr.f32.mxu0 0.0
        %2321 = vmatmul.mubr.f32.gmra.mrb[0].mxu0 %v2102
        %v2322 = vpop.f32.mrb[0].mxu0
        %v2323 = vadd.f32 0.0, %v2322
        %v2324 = vpop.f32.mrb[0].mxu0
        %2325 = vmatprep.mubr.f32.mxu0 0.0
        %2326 = vmatmul.mubr.f32.gmra.mrb[0].mxu0 %v2105
        %v2327 = vpop.f32.mrb[0].mxu0
        %v2328 = vadd.f32 0.0, %v2327
        %v2329 = vpop.f32.mrb[0].mxu0
        %2330 = vmatprep.mubr.f32.mxu0 0.0
        %2331 = vmatmul.mubr.f32.gmra.mrb[0].mxu0 %v2108
        %v2332 = vpop.f32.mrb[0].mxu0
        %v2333 = vadd.f32 0.0, %v2332
        %v2334 = vpop.f32.mrb[0].mxu0
        %2335 = vmatprep.mubr.f32.mxu0 0.0
        %2336 = vmatmul.mubr.f32.gmra.mrb[0].mxu0 %v2111
        %v2337 = vpop.f32.mrb[0].mxu0
        %v2338 = vadd.f32 0.0, %v2337
        %v2339 = vpop.f32.mrb[0].mxu0
        %2340 = vmatprep.mubr.f32.mxu0 0.0
        %2341 = vmatmul.mubr.f32.gmra.mrb[0].mxu0 %v2114
        %v2342 = vpop.f32.mrb[0].mxu0
        %v2343 = vadd.f32 0.0, %v2342
        %v2344 = vpop.f32.mrb[0].mxu0
        %2345 = vmatprep.mubr.f32.mxu0 0.0
        %2346 = vmatmul.mubr.f32.gmra.mrb[0].mxu0 %v2117
        %v2347 = vpop.f32.mrb[0].mxu0
        %v2348 = vadd.f32 0.0, %v2347
        %v2349 = vpop.f32.mrb[0].mxu0
        %2350 = vmatprep.mubr.f32.mxu0 0.0
        %2351 = vmatmul.mubr.f32.gmra.mrb[0].mxu0 %v2120
        %v2352 = vpop.f32.mrb[0].mxu0
        %v2353 = vadd.f32 0.0, %v2352
        %v2354 = vpop.f32.mrb[0].mxu0
        %2355 = vmatprep.mubr.f32.mxu0 0.0
        %2356 = vmatmul.mubr.f32.gmra.mrb[0].mxu0 %v2123
        %v2357 = vpop.f32.mrb[0].mxu0
        %v2358 = vadd.f32 0.0, %v2357
        %v2359 = vpop.f32.mrb[0].mxu0
        %2360 = vmatprep.mubr.f32.mxu0 0.0
        %2361 = vmatmul.mubr.f32.gmra.mrb[0].mxu0 %v2126
        %v2362 = vpop.f32.mrb[0].mxu0
        %v2363 = vadd.f32 0.0, %v2362
        %v2364 = vpop.f32.mrb[0].mxu0
        %2365 = vmatprep.mubr.f32.mxu0 0.0
        %2366 = vmatmul.mubr.f32.gmra.mrb[0].mxu0 %v2129
        %v2367 = vpop.f32.mrb[0].mxu0
        %v2368 = vadd.f32 0.0, %v2367
        %v2369 = vpop.f32.mrb[0].mxu0
        %2370 = vmatprep.mubr.f32.mxu0 0.0
        %2371 = vmatmul.mubr.f32.gmra.mrb[0].mxu0 %v2132
        %v2372 = vpop.f32.mrb[0].mxu0
        %v2373 = vadd.f32 0.0, %v2372
        %v2374 = vpop.f32.mrb[0].mxu0
        %2375 = vmatprep.mubr.f32.mxu0 0.0
        %2376 = vmatmul.mubr.f32.gmra.mrb[0].mxu0 %v2135
        %v2377 = vpop.f32.mrb[0].mxu0
        %v2378 = vadd.f32 0.0, %v2377
        %v2379 = vpop.f32.mrb[0].mxu0
        %2380 = vmatprep.mubr.f32.mxu0 0.0
        %2381 = vmatmul.mubr.f32.gmra.mrb[0].mxu0 %v2138
        %v2382 = vpop.f32.mrb[0].mxu0
        %v2383 = vadd.f32 0.0, %v2382
        %v2384 = vpop.f32.mrb[0].mxu0
        %2385 = vmatprep.mubr.f32.mxu0 0.0
        %2386 = vmatmul.mubr.f32.gmra.mrb[0].mxu0 %v2141
        %v2387 = vpop.f32.mrb[0].mxu0
        %v2388 = vadd.f32 0.0, %v2387
        %v2389 = vpop.f32.mrb[0].mxu0
        %2390 = vdwg.mxu0
        %v2391 = vadd.f32 %v1963, %v2213
        %v2392 = vadd.f32 %v1964, %v2218
        %v2393 = vadd.f32 %v1965, %v2223
        %v2394 = vadd.f32 %v1966, %v2228
        %v2395 = vadd.f32 %v1967, %v2233
        %v2396 = vadd.f32 %v1968, %v2238
        %v2397 = vadd.f32 %v1969, %v2243
        %v2398 = vadd.f32 %v1970, %v2248
        %v2399 = vadd.f32 %v1971, %v2253
        %v2400 = vadd.f32 %v1972, %v2258
        %v2401 = vadd.f32 %v1973, %v2263
        %v2402 = vadd.f32 %v1974, %v2268
        %v2403 = vadd.f32 %v1975, %v2273
        %v2404 = vadd.f32 %v1976, %v2278
        %v2405 = vadd.f32 %v1977, %v2283
        %v2406 = vadd.f32 %v1978, %v2288
        %v2407 = vadd.f32 %v1979, %v2293
        %v2408 = vadd.f32 %v1980, %v2298
        %v2409 = vadd.f32 %v1981, %v2303
        %v2410 = vadd.f32 %v1982, %v2308
        %v2411 = vadd.f32 %v1983, %v2313
        %v2412 = vadd.f32 %v1984, %v2318
        %v2413 = vadd.f32 %v1985, %v2323
        %v2414 = vadd.f32 %v1986, %v2328
        %v2415 = vadd.f32 %v1987, %v2333
        %v2416 = vadd.f32 %v1988, %v2338
        %v2417 = vadd.f32 %v1989, %v2343
        %v2418 = vadd.f32 %v1990, %v2348
        %v2419 = vadd.f32 %v1991, %v2353
        %v2420 = vadd.f32 %v1992, %v2358
        %v2421 = vadd.f32 %v1993, %v2363
        %v2422 = vadd.f32 %v1994, %v2368
        %v2423 = vadd.f32 %v1995, %v2373
        %v2424 = vadd.f32 %v1996, %v2378
        %v2425 = vadd.f32 %v1997, %v2383
        %v2426 = vadd.f32 %v1998, %v2388
        %v2427 = vld [vmem:[%s329 + $0x14] sm:$0xff]
        %v2428 = vld [vmem:[%s329 + $0x1c] sm:$0xff]
        %v2429 = vld [vmem:[%s329 + $0x24] sm:$0xff]
        %v2430 = vld [vmem:[%s329 + $0x2c] sm:$0xff]
        %v2431 = vld [vmem:[%s329 + $0x34] sm:$0xff]
        %v2432 = vld [vmem:[%s329 + $0x3c] sm:$0xff]
        %v2433 = vld [vmem:[%s329 + $0x44] sm:$0xff]
        %v2434 = vld [vmem:[%s329 + $0x4c] sm:$0xff]
        %v2435 = vld [vmem:[%s329 + $0x54] sm:$0xff]
        %v2436 = vld [vmem:[%s329 + $0x5c] sm:$0xff]
        %v2437 = vld [vmem:[%s329 + $0x64] sm:$0xff]
        %v2438 = vld [vmem:[%s329 + $0x6c] sm:$0xff]
        %v2439 = vld [vmem:[%s329 + $0x74] sm:$0xff]
        %v2440 = vld [vmem:[%s329 + $0x7c] sm:$0xff]
        %v2441 = vld [vmem:[%s329 + $0x84] sm:$0xff]
        %v2442 = vld [vmem:[%s329 + $0x8c] sm:$0xff]
        %v2443 = vld [vmem:[%s329 + $0x94] sm:$0xff]
        %v2444 = vld [vmem:[%s329 + $0x9c] sm:$0xff]
        %v2445 = vld [vmem:[%s329 + $0xa4] sm:$0xff]
        %v2446 = vld [vmem:[%s329 + $0xac] sm:$0xff]
        %v2447 = vld [vmem:[%s329 + $0xb4] sm:$0xff]
        %v2448 = vld [vmem:[%s329 + $0xbc] sm:$0xff]
        %v2449 = vld [vmem:[%s329 + $0xc4] sm:$0xff]
        %v2450 = vld [vmem:[%s329 + $0xcc] sm:$0xff]
        %v2451 = vld [vmem:[%s329 + $0xd4] sm:$0xff]
        %v2452 = vld [vmem:[%s329 + $0xdc] sm:$0xff]
        %v2453 = vld [vmem:[%s329 + $0xe4] sm:$0xff]
        %v2454 = vld [vmem:[%s329 + $0xec] sm:$0xff]
        %v2455 = vld [vmem:[%s329 + $0xf4] sm:$0xff]
        %v2456 = vld [vmem:[%s329 + $0xfc] sm:$0xff]
        %v2457 = vld [vmem:[%s329 + $0x104] sm:$0xff]
        %v2458 = vld [vmem:[%s329 + $0x10c] sm:$0xff]
        %v2459 = vld [vmem:[%s329 + $0x114] sm:$0xff]
        %v2460 = vld [vmem:[%s329 + $0x11c] sm:$0xff]
        %v2461 = vld [vmem:[%s329 + $0x124] sm:$0xff]
        %v2462 = vld [vmem:[%s329 + $0x12c] sm:$0xff]
        %v2464 = vsel %vm429, %v2427, 0
        %v2467 = vsel %vm429, %v2428, 0
        %v2470 = vsel %vm429, %v2429, 0
        %v2473 = vsel %vm429, %v2430, 0
        %v2476 = vsel %vm429, %v2431, 0
        %v2479 = vsel %vm429, %v2432, 0
        %v2482 = vsel %vm429, %v2433, 0
        %v2485 = vsel %vm429, %v2434, 0
        %v2488 = vsel %vm429, %v2435, 0
        %v2491 = vsel %vm429, %v2436, 0
        %v2494 = vsel %vm429, %v2437, 0
        %v2497 = vsel %vm429, %v2438, 0
        %v2500 = vsel %vm429, %v2439, 0
        %v2503 = vsel %vm429, %v2440, 0
        %v2506 = vsel %vm429, %v2441, 0
        %v2509 = vsel %vm429, %v2442, 0
        %v2512 = vsel %vm429, %v2443, 0
        %v2515 = vsel %vm429, %v2444, 0
        %v2518 = vsel %vm429, %v2445, 0
        %v2521 = vsel %vm429, %v2446, 0
        %v2524 = vsel %vm429, %v2447, 0
        %v2527 = vsel %vm429, %v2448, 0
        %v2530 = vsel %vm429, %v2449, 0
        %v2533 = vsel %vm429, %v2450, 0
        %v2536 = vsel %vm429, %v2451, 0
        %v2539 = vsel %vm429, %v2452, 0
        %v2542 = vsel %vm429, %v2453, 0
        %v2545 = vsel %vm429, %v2454, 0
        %v2548 = vsel %vm429, %v2455, 0
        %v2551 = vsel %vm429, %v2456, 0
        %v2554 = vsel %vm429, %v2457, 0
        %v2557 = vsel %vm429, %v2458, 0
        %v2560 = vsel %vm429, %v2459, 0
        %v2563 = vsel %vm429, %v2460, 0
        %v2566 = vsel %vm429, %v2461, 0
        %v2569 = vsel %vm429, %v2462, 0
        %v2572 = vsel %vm538, %v335, 0
        %2574 = vmatprep.subr.mxu0 0.0
        %2575 = vmatpush1.msra.mxu0 %v2572
        %2576 = vmatprep.subr.mxu0 0.0
        %2577 = vmatpush1.msra.mxu0 0.0
        %2578 = vmatprep.subr.mxu0 0.0
        %2579 = vmatpush1.msra.mxu0 0.0
        %2580 = vmatprep.subr.mxu0 0.0
        %2581 = vmatpush1.msra.mxu0 0.0
        %2582 = vmatprep.subr.mxu0 0.0
        %2583 = vmatpush1.msra.mxu0 0.0
        %2584 = vmatprep.subr.mxu0 0.0
        %2585 = vmatpush1.msra.mxu0 0.0
        %2586 = vmatprep.subr.mxu0 0.0
        %2587 = vmatpush1.msra.mxu0 0.0
        %2588 = vmatprep.subr.mxu0 0.0
        %2589 = vmatpush1.msra.mxu0 0.0
        %2590 = vmatprep.subr.mxu0 0.0
        %2591 = vmatpush1.msra.mxu0 0.0
        %2592 = vmatprep.subr.mxu0 0.0
        %2593 = vmatpush1.msra.mxu0 0.0
        %2594 = vmatprep.subr.mxu0 0.0
        %2595 = vmatpush1.msra.mxu0 0.0
        %2596 = vmatprep.subr.mxu0 0.0
        %2597 = vmatpush1.msra.mxu0 0.0
        %2598 = vmatprep.subr.mxu0 0.0
        %2599 = vmatpush1.msra.mxu0 0.0
        %2600 = vmatprep.subr.mxu0 0.0
        %2601 = vmatpush1.msra.mxu0 0.0
        %2602 = vmatprep.subr.mxu0 0.0
        %2603 = vmatpush1.msra.mxu0 0.0
        %2604 = vmatprep.subr.mxu0 0.0
        %2605 = vmatpush1.msra.mxu0 0.0
        %2606 = vmatprep.subr.mxu0 0.0
        %2607 = vmatpush1.msra.mxu0 0.0
        %2608 = vmatprep.subr.mxu0 0.0
        %2609 = vmatpush1.msra.mxu0 0.0
        %2610 = vmatprep.subr.mxu0 0.0
        %2611 = vmatpush1.msra.mxu0 0.0
        %2612 = vmatprep.subr.mxu0 0.0
        %2613 = vmatpush1.msra.mxu0 0.0
        %2614 = vmatprep.subr.mxu0 0.0
        %2615 = vmatpush1.msra.mxu0 0.0
        %2616 = vmatprep.subr.mxu0 0.0
        %2617 = vmatpush1.msra.mxu0 0.0
        %2618 = vmatprep.subr.mxu0 0.0
        %2619 = vmatpush1.msra.mxu0 0.0
        %2620 = vmatprep.subr.mxu0 0.0
        %2621 = vmatpush1.msra.mxu0 0.0
        %2622 = vmatprep.subr.mxu0 0.0
        %2623 = vmatpush1.msra.mxu0 0.0
        %2624 = vmatprep.subr.mxu0 0.0
        %2625 = vmatpush1.msra.mxu0 0.0
        %2626 = vmatprep.subr.mxu0 0.0
        %2627 = vmatpush1.msra.mxu0 0.0
        %2628 = vmatprep.subr.mxu0 0.0
        %2629 = vmatpush1.msra.mxu0 0.0
        %2630 = vmatprep.subr.mxu0 0.0
        %2631 = vmatpush1.msra.mxu0 0.0
        %2632 = vmatprep.subr.mxu0 0.0
        %2633 = vmatpush1.msra.mxu0 0.0
        %2634 = vmatprep.subr.mxu0 0.0
        %2635 = vmatpush1.msra.mxu0 0.0
        %2636 = vmatprep.subr.mxu0 0.0
        %2637 = vmatpush1.msra.mxu0 0.0
        %2638 = vmatprep.mubr.f32.mxu0 0.0
        %2639 = vmatmul.mubr.f32.gmra.mrb[0].mxu0 %v2464
        %v2640 = vpop.f32.mrb[0].mxu0
        %v2641 = vadd.f32 0.0, %v2640
        %v2642 = vpop.f32.mrb[0].mxu0
        %2643 = vmatprep.mubr.f32.mxu0 0.0
        %2644 = vmatmul.mubr.f32.gmra.mrb[0].mxu0 %v2467
        %v2645 = vpop.f32.mrb[0].mxu0
        %v2646 = vadd.f32 0.0, %v2645
        %v2647 = vpop.f32.mrb[0].mxu0
        %2648 = vmatprep.mubr.f32.mxu0 0.0
        %2649 = vmatmul.mubr.f32.gmra.mrb[0].mxu0 %v2470
        %v2650 = vpop.f32.mrb[0].mxu0
        %v2651 = vadd.f32 0.0, %v2650
        %v2652 = vpop.f32.mrb[0].mxu0
        %2653 = vmatprep.mubr.f32.mxu0 0.0
        %2654 = vmatmul.mubr.f32.gmra.mrb[0].mxu0 %v2473
        %v2655 = vpop.f32.mrb[0].mxu0
        %v2656 = vadd.f32 0.0, %v2655
        %v2657 = vpop.f32.mrb[0].mxu0
        %2658 = vmatprep.mubr.f32.mxu0 0.0
        %2659 = vmatmul.mubr.f32.gmra.mrb[0].mxu0 %v2476
        %v2660 = vpop.f32.mrb[0].mxu0
        %v2661 = vadd.f32 0.0, %v2660
        %v2662 = vpop.f32.mrb[0].mxu0
        %2663 = vmatprep.mubr.f32.mxu0 0.0
        %2664 = vmatmul.mubr.f32.gmra.mrb[0].mxu0 %v2479
        %v2665 = vpop.f32.mrb[0].mxu0
        %v2666 = vadd.f32 0.0, %v2665
        %v2667 = vpop.f32.mrb[0].mxu0
        %2668 = vmatprep.mubr.f32.mxu0 0.0
        %2669 = vmatmul.mubr.f32.gmra.mrb[0].mxu0 %v2482
        %v2670 = vpop.f32.mrb[0].mxu0
        %v2671 = vadd.f32 0.0, %v2670
        %v2672 = vpop.f32.mrb[0].mxu0
        %2673 = vmatprep.mubr.f32.mxu0 0.0
        %2674 = vmatmul.mubr.f32.gmra.mrb[0].mxu0 %v2485
        %v2675 = vpop.f32.mrb[0].mxu0
        %v2676 = vadd.f32 0.0, %v2675
        %v2677 = vpop.f32.mrb[0].mxu0
        %2678 = vmatprep.mubr.f32.mxu0 0.0
        %2679 = vmatmul.mubr.f32.gmra.mrb[0].mxu0 %v2488
        %v2680 = vpop.f32.mrb[0].mxu0
        %v2681 = vadd.f32 0.0, %v2680
        %v2682 = vpop.f32.mrb[0].mxu0
        %2683 = vmatprep.mubr.f32.mxu0 0.0
        %2684 = vmatmul.mubr.f32.gmra.mrb[0].mxu0 %v2491
        %v2685 = vpop.f32.mrb[0].mxu0
        %v2686 = vadd.f32 0.0, %v2685
        %v2687 = vpop.f32.mrb[0].mxu0
        %2688 = vmatprep.mubr.f32.mxu0 0.0
        %2689 = vmatmul.mubr.f32.gmra.mrb[0].mxu0 %v2494
        %v2690 = vpop.f32.mrb[0].mxu0
        %v2691 = vadd.f32 0.0, %v2690
        %v2692 = vpop.f32.mrb[0].mxu0
        %2693 = vmatprep.mubr.f32.mxu0 0.0
        %2694 = vmatmul.mubr.f32.gmra.mrb[0].mxu0 %v2497
        %v2695 = vpop.f32.mrb[0].mxu0
        %v2696 = vadd.f32 0.0, %v2695
        %v2697 = vpop.f32.mrb[0].mxu0
        %2698 = vmatprep.mubr.f32.mxu0 0.0
        %2699 = vmatmul.mubr.f32.gmra.mrb[0].mxu0 %v2500
        %v2700 = vpop.f32.mrb[0].mxu0
        %v2701 = vadd.f32 0.0, %v2700
        %v2702 = vpop.f32.mrb[0].mxu0
        %2703 = vmatprep.mubr.f32.mxu0 0.0
        %2704 = vmatmul.mubr.f32.gmra.mrb[0].mxu0 %v2503
        %v2705 = vpop.f32.mrb[0].mxu0
        %v2706 = vadd.f32 0.0, %v2705
        %v2707 = vpop.f32.mrb[0].mxu0
        %2708 = vmatprep.mubr.f32.mxu0 0.0
        %2709 = vmatmul.mubr.f32.gmra.mrb[0].mxu0 %v2506
        %v2710 = vpop.f32.mrb[0].mxu0
        %v2711 = vadd.f32 0.0, %v2710
        %v2712 = vpop.f32.mrb[0].mxu0
        %2713 = vmatprep.mubr.f32.mxu0 0.0
        %2714 = vmatmul.mubr.f32.gmra.mrb[0].mxu0 %v2509
        %v2715 = vpop.f32.mrb[0].mxu0
        %v2716 = vadd.f32 0.0, %v2715
        %v2717 = vpop.f32.mrb[0].mxu0
        %2718 = vmatprep.mubr.f32.mxu0 0.0
        %2719 = vmatmul.mubr.f32.gmra.mrb[0].mxu0 %v2512
        %v2720 = vpop.f32.mrb[0].mxu0
        %v2721 = vadd.f32 0.0, %v2720
        %v2722 = vpop.f32.mrb[0].mxu0
        %2723 = vmatprep.mubr.f32.mxu0 0.0
        %2724 = vmatmul.mubr.f32.gmra.mrb[0].mxu0 %v2515
        %v2725 = vpop.f32.mrb[0].mxu0
        %v2726 = vadd.f32 0.0, %v2725
        %v2727 = vpop.f32.mrb[0].mxu0
        %2728 = vmatprep.mubr.f32.mxu0 0.0
        %2729 = vmatmul.mubr.f32.gmra.mrb[0].mxu0 %v2518
        %v2730 = vpop.f32.mrb[0].mxu0
        %v2731 = vadd.f32 0.0, %v2730
        %v2732 = vpop.f32.mrb[0].mxu0
        %2733 = vmatprep.mubr.f32.mxu0 0.0
        %2734 = vmatmul.mubr.f32.gmra.mrb[0].mxu0 %v2521
        %v2735 = vpop.f32.mrb[0].mxu0
        %v2736 = vadd.f32 0.0, %v2735
        %v2737 = vpop.f32.mrb[0].mxu0
        %2738 = vmatprep.mubr.f32.mxu0 0.0
        %2739 = vmatmul.mubr.f32.gmra.mrb[0].mxu0 %v2524
        %v2740 = vpop.f32.mrb[0].mxu0
        %v2741 = vadd.f32 0.0, %v2740
        %v2742 = vpop.f32.mrb[0].mxu0
        %2743 = vmatprep.mubr.f32.mxu0 0.0
        %2744 = vmatmul.mubr.f32.gmra.mrb[0].mxu0 %v2527
        %v2745 = vpop.f32.mrb[0].mxu0
        %v2746 = vadd.f32 0.0, %v2745
        %v2747 = vpop.f32.mrb[0].mxu0
        %2748 = vmatprep.mubr.f32.mxu0 0.0
        %2749 = vmatmul.mubr.f32.gmra.mrb[0].mxu0 %v2530
        %v2750 = vpop.f32.mrb[0].mxu0
        %v2751 = vadd.f32 0.0, %v2750
        %v2752 = vpop.f32.mrb[0].mxu0
        %2753 = vmatprep.mubr.f32.mxu0 0.0
        %2754 = vmatmul.mubr.f32.gmra.mrb[0].mxu0 %v2533
        %v2755 = vpop.f32.mrb[0].mxu0
        %v2756 = vadd.f32 0.0, %v2755
        %v2757 = vpop.f32.mrb[0].mxu0
        %2758 = vmatprep.mubr.f32.mxu0 0.0
        %2759 = vmatmul.mubr.f32.gmra.mrb[0].mxu0 %v2536
        %v2760 = vpop.f32.mrb[0].mxu0
        %v2761 = vadd.f32 0.0, %v2760
        %v2762 = vpop.f32.mrb[0].mxu0
        %2763 = vmatprep.mubr.f32.mxu0 0.0
        %2764 = vmatmul.mubr.f32.gmra.mrb[0].mxu0 %v2539
        %v2765 = vpop.f32.mrb[0].mxu0
        %v2766 = vadd.f32 0.0, %v2765
        %v2767 = vpop.f32.mrb[0].mxu0
        %2768 = vmatprep.mubr.f32.mxu0 0.0
        %2769 = vmatmul.mubr.f32.gmra.mrb[0].mxu0 %v2542
        %v2770 = vpop.f32.mrb[0].mxu0
        %v2771 = vadd.f32 0.0, %v2770
        %v2772 = vpop.f32.mrb[0].mxu0
        %2773 = vmatprep.mubr.f32.mxu0 0.0
        %2774 = vmatmul.mubr.f32.gmra.mrb[0].mxu0 %v2545
        %v2775 = vpop.f32.mrb[0].mxu0
        %v2776 = vadd.f32 0.0, %v2775
        %v2777 = vpop.f32.mrb[0].mxu0
        %2778 = vmatprep.mubr.f32.mxu0 0.0
        %2779 = vmatmul.mubr.f32.gmra.mrb[0].mxu0 %v2548
        %v2780 = vpop.f32.mrb[0].mxu0
        %v2781 = vadd.f32 0.0, %v2780
        %v2782 = vpop.f32.mrb[0].mxu0
        %2783 = vmatprep.mubr.f32.mxu0 0.0
        %2784 = vmatmul.mubr.f32.gmra.mrb[0].mxu0 %v2551
        %v2785 = vpop.f32.mrb[0].mxu0
        %v2786 = vadd.f32 0.0, %v2785
        %v2787 = vpop.f32.mrb[0].mxu0
        %2788 = vmatprep.mubr.f32.mxu0 0.0
        %2789 = vmatmul.mubr.f32.gmra.mrb[0].mxu0 %v2554
        %v2790 = vpop.f32.mrb[0].mxu0
        %v2791 = vadd.f32 0.0, %v2790
        %v2792 = vpop.f32.mrb[0].mxu0
        %2793 = vmatprep.mubr.f32.mxu0 0.0
        %2794 = vmatmul.mubr.f32.gmra.mrb[0].mxu0 %v2557
        %v2795 = vpop.f32.mrb[0].mxu0
        %v2796 = vadd.f32 0.0, %v2795
        %v2797 = vpop.f32.mrb[0].mxu0
        %2798 = vmatprep.mubr.f32.mxu0 0.0
        %2799 = vmatmul.mubr.f32.gmra.mrb[0].mxu0 %v2560
        %v2800 = vpop.f32.mrb[0].mxu0
        %v2801 = vadd.f32 0.0, %v2800
        %v2802 = vpop.f32.mrb[0].mxu0
        %2803 = vmatprep.mubr.f32.mxu0 0.0
        %2804 = vmatmul.mubr.f32.gmra.mrb[0].mxu0 %v2563
        %v2805 = vpop.f32.mrb[0].mxu0
        %v2806 = vadd.f32 0.0, %v2805
        %v2807 = vpop.f32.mrb[0].mxu0
        %2808 = vmatprep.mubr.f32.mxu0 0.0
        %2809 = vmatmul.mubr.f32.gmra.mrb[0].mxu0 %v2566
        %v2810 = vpop.f32.mrb[0].mxu0
        %v2811 = vadd.f32 0.0, %v2810
        %v2812 = vpop.f32.mrb[0].mxu0
        %2813 = vmatprep.mubr.f32.mxu0 0.0
        %2814 = vmatmul.mubr.f32.gmra.mrb[0].mxu0 %v2569
        %v2815 = vpop.f32.mrb[0].mxu0
        %v2816 = vadd.f32 0.0, %v2815
        %v2817 = vpop.f32.mrb[0].mxu0
        %2818 = vdwg.mxu0
        %v2819 = vadd.f32 %v2391, %v2641
        %v2820 = vadd.f32 %v2392, %v2646
        %v2821 = vadd.f32 %v2393, %v2651
        %v2822 = vadd.f32 %v2394, %v2656
        %v2823 = vadd.f32 %v2395, %v2661
        %v2824 = vadd.f32 %v2396, %v2666
        %v2825 = vadd.f32 %v2397, %v2671
        %v2826 = vadd.f32 %v2398, %v2676
        %v2827 = vadd.f32 %v2399, %v2681
        %v2828 = vadd.f32 %v2400, %v2686
        %v2829 = vadd.f32 %v2401, %v2691
        %v2830 = vadd.f32 %v2402, %v2696
        %v2831 = vadd.f32 %v2403, %v2701
        %v2832 = vadd.f32 %v2404, %v2706
        %v2833 = vadd.f32 %v2405, %v2711
        %v2834 = vadd.f32 %v2406, %v2716
        %v2835 = vadd.f32 %v2407, %v2721
        %v2836 = vadd.f32 %v2408, %v2726
        %v2837 = vadd.f32 %v2409, %v2731
        %v2838 = vadd.f32 %v2410, %v2736
        %v2839 = vadd.f32 %v2411, %v2741
        %v2840 = vadd.f32 %v2412, %v2746
        %v2841 = vadd.f32 %v2413, %v2751
        %v2842 = vadd.f32 %v2414, %v2756
        %v2843 = vadd.f32 %v2415, %v2761
        %v2844 = vadd.f32 %v2416, %v2766
        %v2845 = vadd.f32 %v2417, %v2771
        %v2846 = vadd.f32 %v2418, %v2776
        %v2847 = vadd.f32 %v2419, %v2781
        %v2848 = vadd.f32 %v2420, %v2786
        %v2849 = vadd.f32 %v2421, %v2791
        %v2850 = vadd.f32 %v2422, %v2796
        %v2851 = vadd.f32 %v2423, %v2801
        %v2852 = vadd.f32 %v2424, %v2806
        %v2853 = vadd.f32 %v2425, %v2811
        %v2854 = vadd.f32 %v2426, %v2816
        %v2855 = vld [vmem:[%s329 + $0x24] sm:$0xff]
        %v2856 = vld [vmem:[%s329 + $0x2c] sm:$0xff]
        %v2857 = vld [vmem:[%s329 + $0x34] sm:$0xff]
        %v2858 = vld [vmem:[%s329 + $0x3c] sm:$0xff]
        %v2859 = vld [vmem:[%s329 + $0x44] sm:$0xff]
        %v2860 = vld [vmem:[%s329 + $0x4c] sm:$0xff]
        %v2861 = vld [vmem:[%s329 + $0x54] sm:$0xff]
        %v2862 = vld [vmem:[%s329 + $0x5c] sm:$0xff]
        %v2863 = vld [vmem:[%s329 + $0x64] sm:$0xff]
        %v2864 = vld [vmem:[%s329 + $0x6c] sm:$0xff]
        %v2865 = vld [vmem:[%s329 + $0x74] sm:$0xff]
        %v2866 = vld [vmem:[%s329 + $0x7c] sm:$0xff]
        %v2867 = vld [vmem:[%s329 + $0x84] sm:$0xff]
        %v2868 = vld [vmem:[%s329 + $0x8c] sm:$0xff]
        %v2869 = vld [vmem:[%s329 + $0x94] sm:$0xff]
        %v2870 = vld [vmem:[%s329 + $0x9c] sm:$0xff]
        %v2871 = vld [vmem:[%s329 + $0xa4] sm:$0xff]
        %v2872 = vld [vmem:[%s329 + $0xac] sm:$0xff]
        %v2873 = vld [vmem:[%s329 + $0xb4] sm:$0xff]
        %v2874 = vld [vmem:[%s329 + $0xbc] sm:$0xff]
        %v2875 = vld [vmem:[%s329 + $0xc4] sm:$0xff]
        %v2876 = vld [vmem:[%s329 + $0xcc] sm:$0xff]
        %v2877 = vld [vmem:[%s329 + $0xd4] sm:$0xff]
        %v2878 = vld [vmem:[%s329 + $0xdc] sm:$0xff]
        %v2879 = vld [vmem:[%s329 + $0xe4] sm:$0xff]
        %v2880 = vld [vmem:[%s329 + $0xec] sm:$0xff]
        %v2881 = vld [vmem:[%s329 + $0xf4] sm:$0xff]
        %v2882 = vld [vmem:[%s329 + $0xfc] sm:$0xff]
        %v2883 = vld [vmem:[%s329 + $0x104] sm:$0xff]
        %v2884 = vld [vmem:[%s329 + $0x10c] sm:$0xff]
        %v2885 = vld [vmem:[%s329 + $0x114] sm:$0xff]
        %v2886 = vld [vmem:[%s329 + $0x11c] sm:$0xff]
        %v2887 = vld [vmem:[%s329 + $0x124] sm:$0xff]
        %v2888 = vld [vmem:[%s329 + $0x12c] sm:$0xff]
        %v2889 = vld [vmem:[%s329 + $0x134] sm:$0xff]
        %v2890 = vld [vmem:[%s329 + $0x13c] sm:$0xff]
        %v2892 = vsel %vm429, %v2855, 0
        %v2895 = vsel %vm429, %v2856, 0
        %v2898 = vsel %vm429, %v2857, 0
        %v2901 = vsel %vm429, %v2858, 0
        %v2904 = vsel %vm429, %v2859, 0
        %v2907 = vsel %vm429, %v2860, 0
        %v2910 = vsel %vm429, %v2861, 0
        %v2913 = vsel %vm429, %v2862, 0
        %v2916 = vsel %vm429, %v2863, 0
        %v2919 = vsel %vm429, %v2864, 0
        %v2922 = vsel %vm429, %v2865, 0
        %v2925 = vsel %vm429, %v2866, 0
        %v2928 = vsel %vm429, %v2867, 0
        %v2931 = vsel %vm429, %v2868, 0
        %v2934 = vsel %vm429, %v2869, 0
        %v2937 = vsel %vm429, %v2870, 0
        %v2940 = vsel %vm429, %v2871, 0
        %v2943 = vsel %vm429, %v2872, 0
        %v2946 = vsel %vm429, %v2873, 0
        %v2949 = vsel %vm429, %v2874, 0
        %v2952 = vsel %vm429, %v2875, 0
        %v2955 = vsel %vm429, %v2876, 0
        %v2958 = vsel %vm429, %v2877, 0
        %v2961 = vsel %vm429, %v2878, 0
        %v2964 = vsel %vm429, %v2879, 0
        %v2967 = vsel %vm429, %v2880, 0
        %v2970 = vsel %vm429, %v2881, 0
        %v2973 = vsel %vm429, %v2882, 0
        %v2976 = vsel %vm429, %v2883, 0
        %v2979 = vsel %vm429, %v2884, 0
        %v2982 = vsel %vm429, %v2885, 0
        %v2985 = vsel %vm429, %v2886, 0
        %v2988 = vsel %vm429, %v2887, 0
        %v2991 = vsel %vm429, %v2888, 0
        %v2994 = vsel %vm429, %v2889, 0
        %v2997 = vsel %vm429, %v2890, 0
        %v3000 = vsel %vm538, %v336, 0
        %3002 = vmatprep.subr.mxu0 0.0
        %3003 = vmatpush1.msra.mxu0 %v3000
        %3004 = vmatprep.subr.mxu0 0.0
        %3005 = vmatpush1.msra.mxu0 0.0
        %3006 = vmatprep.subr.mxu0 0.0
        %3007 = vmatpush1.msra.mxu0 0.0
        %3008 = vmatprep.subr.mxu0 0.0
        %3009 = vmatpush1.msra.mxu0 0.0
        %3010 = vmatprep.subr.mxu0 0.0
        %3011 = vmatpush1.msra.mxu0 0.0
        %3012 = vmatprep.subr.mxu0 0.0
        %3013 = vmatpush1.msra.mxu0 0.0
        %3014 = vmatprep.subr.mxu0 0.0
        %3015 = vmatpush1.msra.mxu0 0.0
        %3016 = vmatprep.subr.mxu0 0.0
        %3017 = vmatpush1.msra.mxu0 0.0
        %3018 = vmatprep.subr.mxu0 0.0
        %3019 = vmatpush1.msra.mxu0 0.0
        %3020 = vmatprep.subr.mxu0 0.0
        %3021 = vmatpush1.msra.mxu0 0.0
        %3022 = vmatprep.subr.mxu0 0.0
        %3023 = vmatpush1.msra.mxu0 0.0
        %3024 = vmatprep.subr.mxu0 0.0
        %3025 = vmatpush1.msra.mxu0 0.0
        %3026 = vmatprep.subr.mxu0 0.0
        %3027 = vmatpush1.msra.mxu0 0.0
        %3028 = vmatprep.subr.mxu0 0.0
        %3029 = vmatpush1.msra.mxu0 0.0
        %3030 = vmatprep.subr.mxu0 0.0
        %3031 = vmatpush1.msra.mxu0 0.0
        %3032 = vmatprep.subr.mxu0 0.0
        %3033 = vmatpush1.msra.mxu0 0.0
        %3034 = vmatprep.subr.mxu0 0.0
        %3035 = vmatpush1.msra.mxu0 0.0
        %3036 = vmatprep.subr.mxu0 0.0
        %3037 = vmatpush1.msra.mxu0 0.0
        %3038 = vmatprep.subr.mxu0 0.0
        %3039 = vmatpush1.msra.mxu0 0.0
        %3040 = vmatprep.subr.mxu0 0.0
        %3041 = vmatpush1.msra.mxu0 0.0
        %3042 = vmatprep.subr.mxu0 0.0
        %3043 = vmatpush1.msra.mxu0 0.0
        %3044 = vmatprep.subr.mxu0 0.0
        %3045 = vmatpush1.msra.mxu0 0.0
        %3046 = vmatprep.subr.mxu0 0.0
        %3047 = vmatpush1.msra.mxu0 0.0
        %3048 = vmatprep.subr.mxu0 0.0
        %3049 = vmatpush1.msra.mxu0 0.0
        %3050 = vmatprep.subr.mxu0 0.0
        %3051 = vmatpush1.msra.mxu0 0.0
        %3052 = vmatprep.subr.mxu0 0.0
        %3053 = vmatpush1.msra.mxu0 0.0
        %3054 = vmatprep.subr.mxu0 0.0
        %3055 = vmatpush1.msra.mxu0 0.0
        %3056 = vmatprep.subr.mxu0 0.0
        %3057 = vmatpush1.msra.mxu0 0.0
        %3058 = vmatprep.subr.mxu0 0.0
        %3059 = vmatpush1.msra.mxu0 0.0
        %3060 = vmatprep.subr.mxu0 0.0
        %3061 = vmatpush1.msra.mxu0 0.0
        %3062 = vmatprep.subr.mxu0 0.0
        %3063 = vmatpush1.msra.mxu0 0.0
        %3064 = vmatprep.subr.mxu0 0.0
        %3065 = vmatpush1.msra.mxu0 0.0
        %3066 = vmatprep.mubr.f32.mxu0 0.0
        %3067 = vmatmul.mubr.f32.gmra.mrb[0].mxu0 %v2892
        %v3068 = vpop.f32.mrb[0].mxu0
        %v3069 = vadd.f32 0.0, %v3068
        %v3070 = vpop.f32.mrb[0].mxu0
        %3071 = vmatprep.mubr.f32.mxu0 0.0
        %3072 = vmatmul.mubr.f32.gmra.mrb[0].mxu0 %v2895
        %v3073 = vpop.f32.mrb[0].mxu0
        %v3074 = vadd.f32 0.0, %v3073
        %v3075 = vpop.f32.mrb[0].mxu0
        %3076 = vmatprep.mubr.f32.mxu0 0.0
        %3077 = vmatmul.mubr.f32.gmra.mrb[0].mxu0 %v2898
        %v3078 = vpop.f32.mrb[0].mxu0
        %v3079 = vadd.f32 0.0, %v3078
        %v3080 = vpop.f32.mrb[0].mxu0
        %3081 = vmatprep.mubr.f32.mxu0 0.0
        %3082 = vmatmul.mubr.f32.gmra.mrb[0].mxu0 %v2901
        %v3083 = vpop.f32.mrb[0].mxu0
        %v3084 = vadd.f32 0.0, %v3083
        %v3085 = vpop.f32.mrb[0].mxu0
        %3086 = vmatprep.mubr.f32.mxu0 0.0
        %3087 = vmatmul.mubr.f32.gmra.mrb[0].mxu0 %v2904
        %v3088 = vpop.f32.mrb[0].mxu0
        %v3089 = vadd.f32 0.0, %v3088
        %v3090 = vpop.f32.mrb[0].mxu0
        %3091 = vmatprep.mubr.f32.mxu0 0.0
        %3092 = vmatmul.mubr.f32.gmra.mrb[0].mxu0 %v2907
        %v3093 = vpop.f32.mrb[0].mxu0
        %v3094 = vadd.f32 0.0, %v3093
        %v3095 = vpop.f32.mrb[0].mxu0
        %3096 = vmatprep.mubr.f32.mxu0 0.0
        %3097 = vmatmul.mubr.f32.gmra.mrb[0].mxu0 %v2910
        %v3098 = vpop.f32.mrb[0].mxu0
        %v3099 = vadd.f32 0.0, %v3098
        %v3100 = vpop.f32.mrb[0].mxu0
        %3101 = vmatprep.mubr.f32.mxu0 0.0
        %3102 = vmatmul.mubr.f32.gmra.mrb[0].mxu0 %v2913
        %v3103 = vpop.f32.mrb[0].mxu0
        %v3104 = vadd.f32 0.0, %v3103
        %v3105 = vpop.f32.mrb[0].mxu0
        %3106 = vmatprep.mubr.f32.mxu0 0.0
        %3107 = vmatmul.mubr.f32.gmra.mrb[0].mxu0 %v2916
        %v3108 = vpop.f32.mrb[0].mxu0
        %v3109 = vadd.f32 0.0, %v3108
        %v3110 = vpop.f32.mrb[0].mxu0
        %3111 = vmatprep.mubr.f32.mxu0 0.0
        %3112 = vmatmul.mubr.f32.gmra.mrb[0].mxu0 %v2919
        %v3113 = vpop.f32.mrb[0].mxu0
        %v3114 = vadd.f32 0.0, %v3113
        %v3115 = vpop.f32.mrb[0].mxu0
        %3116 = vmatprep.mubr.f32.mxu0 0.0
        %3117 = vmatmul.mubr.f32.gmra.mrb[0].mxu0 %v2922
        %v3118 = vpop.f32.mrb[0].mxu0
        %v3119 = vadd.f32 0.0, %v3118
        %v3120 = vpop.f32.mrb[0].mxu0
        %3121 = vmatprep.mubr.f32.mxu0 0.0
        %3122 = vmatmul.mubr.f32.gmra.mrb[0].mxu0 %v2925
        %v3123 = vpop.f32.mrb[0].mxu0
        %v3124 = vadd.f32 0.0, %v3123
        %v3125 = vpop.f32.mrb[0].mxu0
        %3126 = vmatprep.mubr.f32.mxu0 0.0
        %3127 = vmatmul.mubr.f32.gmra.mrb[0].mxu0 %v2928
        %v3128 = vpop.f32.mrb[0].mxu0
        %v3129 = vadd.f32 0.0, %v3128
        %v3130 = vpop.f32.mrb[0].mxu0
        %3131 = vmatprep.mubr.f32.mxu0 0.0
        %3132 = vmatmul.mubr.f32.gmra.mrb[0].mxu0 %v2931
        %v3133 = vpop.f32.mrb[0].mxu0
        %v3134 = vadd.f32 0.0, %v3133
        %v3135 = vpop.f32.mrb[0].mxu0
        %3136 = vmatprep.mubr.f32.mxu0 0.0
        %3137 = vmatmul.mubr.f32.gmra.mrb[0].mxu0 %v2934
        %v3138 = vpop.f32.mrb[0].mxu0
        %v3139 = vadd.f32 0.0, %v3138
        %v3140 = vpop.f32.mrb[0].mxu0
        %3141 = vmatprep.mubr.f32.mxu0 0.0
        %3142 = vmatmul.mubr.f32.gmra.mrb[0].mxu0 %v2937
        %v3143 = vpop.f32.mrb[0].mxu0
        %v3144 = vadd.f32 0.0, %v3143
        %v3145 = vpop.f32.mrb[0].mxu0
        %3146 = vmatprep.mubr.f32.mxu0 0.0
        %3147 = vmatmul.mubr.f32.gmra.mrb[0].mxu0 %v2940
        %v3148 = vpop.f32.mrb[0].mxu0
        %v3149 = vadd.f32 0.0, %v3148
        %v3150 = vpop.f32.mrb[0].mxu0
        %3151 = vmatprep.mubr.f32.mxu0 0.0
        %3152 = vmatmul.mubr.f32.gmra.mrb[0].mxu0 %v2943
        %v3153 = vpop.f32.mrb[0].mxu0
        %v3154 = vadd.f32 0.0, %v3153
        %v3155 = vpop.f32.mrb[0].mxu0
        %3156 = vmatprep.mubr.f32.mxu0 0.0
        %3157 = vmatmul.mubr.f32.gmra.mrb[0].mxu0 %v2946
        %v3158 = vpop.f32.mrb[0].mxu0
        %v3159 = vadd.f32 0.0, %v3158
        %v3160 = vpop.f32.mrb[0].mxu0
        %3161 = vmatprep.mubr.f32.mxu0 0.0
        %3162 = vmatmul.mubr.f32.gmra.mrb[0].mxu0 %v2949
        %v3163 = vpop.f32.mrb[0].mxu0
        %v3164 = vadd.f32 0.0, %v3163
        %v3165 = vpop.f32.mrb[0].mxu0
        %3166 = vmatprep.mubr.f32.mxu0 0.0
        %3167 = vmatmul.mubr.f32.gmra.mrb[0].mxu0 %v2952
        %v3168 = vpop.f32.mrb[0].mxu0
        %v3169 = vadd.f32 0.0, %v3168
        %v3170 = vpop.f32.mrb[0].mxu0
        %3171 = vmatprep.mubr.f32.mxu0 0.0
        %3172 = vmatmul.mubr.f32.gmra.mrb[0].mxu0 %v2955
        %v3173 = vpop.f32.mrb[0].mxu0
        %v3174 = vadd.f32 0.0, %v3173
        %v3175 = vpop.f32.mrb[0].mxu0
        %3176 = vmatprep.mubr.f32.mxu0 0.0
        %3177 = vmatmul.mubr.f32.gmra.mrb[0].mxu0 %v2958
        %v3178 = vpop.f32.mrb[0].mxu0
        %v3179 = vadd.f32 0.0, %v3178
        %v3180 = vpop.f32.mrb[0].mxu0
        %3181 = vmatprep.mubr.f32.mxu0 0.0
        %3182 = vmatmul.mubr.f32.gmra.mrb[0].mxu0 %v2961
        %v3183 = vpop.f32.mrb[0].mxu0
        %v3184 = vadd.f32 0.0, %v3183
        %v3185 = vpop.f32.mrb[0].mxu0
        %3186 = vmatprep.mubr.f32.mxu0 0.0
        %3187 = vmatmul.mubr.f32.gmra.mrb[0].mxu0 %v2964
        %v3188 = vpop.f32.mrb[0].mxu0
        %v3189 = vadd.f32 0.0, %v3188
        %v3190 = vpop.f32.mrb[0].mxu0
        %3191 = vmatprep.mubr.f32.mxu0 0.0
        %3192 = vmatmul.mubr.f32.gmra.mrb[0].mxu0 %v2967
        %v3193 = vpop.f32.mrb[0].mxu0
        %v3194 = vadd.f32 0.0, %v3193
        %v3195 = vpop.f32.mrb[0].mxu0
        %3196 = vmatprep.mubr.f32.mxu0 0.0
        %3197 = vmatmul.mubr.f32.gmra.mrb[0].mxu0 %v2970
        %v3198 = vpop.f32.mrb[0].mxu0
        %v3199 = vadd.f32 0.0, %v3198
        %v3200 = vpop.f32.mrb[0].mxu0
        %3201 = vmatprep.mubr.f32.mxu0 0.0
        %3202 = vmatmul.mubr.f32.gmra.mrb[0].mxu0 %v2973
        %v3203 = vpop.f32.mrb[0].mxu0
        %v3204 = vadd.f32 0.0, %v3203
        %v3205 = vpop.f32.mrb[0].mxu0
        %3206 = vmatprep.mubr.f32.mxu0 0.0
        %3207 = vmatmul.mubr.f32.gmra.mrb[0].mxu0 %v2976
        %v3208 = vpop.f32.mrb[0].mxu0
        %v3209 = vadd.f32 0.0, %v3208
        %v3210 = vpop.f32.mrb[0].mxu0
        %3211 = vmatprep.mubr.f32.mxu0 0.0
        %3212 = vmatmul.mubr.f32.gmra.mrb[0].mxu0 %v2979
        %v3213 = vpop.f32.mrb[0].mxu0
        %v3214 = vadd.f32 0.0, %v3213
        %v3215 = vpop.f32.mrb[0].mxu0
        %3216 = vmatprep.mubr.f32.mxu0 0.0
        %3217 = vmatmul.mubr.f32.gmra.mrb[0].mxu0 %v2982
        %v3218 = vpop.f32.mrb[0].mxu0
        %v3219 = vadd.f32 0.0, %v3218
        %v3220 = vpop.f32.mrb[0].mxu0
        %3221 = vmatprep.mubr.f32.mxu0 0.0
        %3222 = vmatmul.mubr.f32.gmra.mrb[0].mxu0 %v2985
        %v3223 = vpop.f32.mrb[0].mxu0
        %v3224 = vadd.f32 0.0, %v3223
        %v3225 = vpop.f32.mrb[0].mxu0
        %3226 = vmatprep.mubr.f32.mxu0 0.0
        %3227 = vmatmul.mubr.f32.gmra.mrb[0].mxu0 %v2988
        %v3228 = vpop.f32.mrb[0].mxu0
        %v3229 = vadd.f32 0.0, %v3228
        %v3230 = vpop.f32.mrb[0].mxu0
        %3231 = vmatprep.mubr.f32.mxu0 0.0
        %3232 = vmatmul.mubr.f32.gmra.mrb[0].mxu0 %v2991
        %v3233 = vpop.f32.mrb[0].mxu0
        %v3234 = vadd.f32 0.0, %v3233
        %v3235 = vpop.f32.mrb[0].mxu0
        %3236 = vmatprep.mubr.f32.mxu0 0.0
        %3237 = vmatmul.mubr.f32.gmra.mrb[0].mxu0 %v2994
        %v3238 = vpop.f32.mrb[0].mxu0
        %v3239 = vadd.f32 0.0, %v3238
        %v3240 = vpop.f32.mrb[0].mxu0
        %3241 = vmatprep.mubr.f32.mxu0 0.0
        %3242 = vmatmul.mubr.f32.gmra.mrb[0].mxu0 %v2997
        %v3243 = vpop.f32.mrb[0].mxu0
        %v3244 = vadd.f32 0.0, %v3243
        %v3245 = vpop.f32.mrb[0].mxu0
        %3246 = vdwg.mxu0
        %v3247 = vadd.f32 %v2819, %v3069
        %v3248 = vadd.f32 %v2820, %v3074
        %v3249 = vadd.f32 %v2821, %v3079
        %v3250 = vadd.f32 %v2822, %v3084
        %v3251 = vadd.f32 %v2823, %v3089
        %v3252 = vadd.f32 %v2824, %v3094
        %v3253 = vadd.f32 %v2825, %v3099
        %v3254 = vadd.f32 %v2826, %v3104
        %v3255 = vadd.f32 %v2827, %v3109
        %v3256 = vadd.f32 %v2828, %v3114
        %v3257 = vadd.f32 %v2829, %v3119
        %v3258 = vadd.f32 %v2830, %v3124
        %v3259 = vadd.f32 %v2831, %v3129
        %v3260 = vadd.f32 %v2832, %v3134
        %v3261 = vadd.f32 %v2833, %v3139
        %v3262 = vadd.f32 %v2834, %v3144
        %v3263 = vadd.f32 %v2835, %v3149
        %v3264 = vadd.f32 %v2836, %v3154
        %v3265 = vadd.f32 %v2837, %v3159
        %v3266 = vadd.f32 %v2838, %v3164
        %v3267 = vadd.f32 %v2839, %v3169
        %v3268 = vadd.f32 %v2840, %v3174
        %v3269 = vadd.f32 %v2841, %v3179
        %v3270 = vadd.f32 %v2842, %v3184
        %v3271 = vadd.f32 %v2843, %v3189
        %v3272 = vadd.f32 %v2844, %v3194
        %v3273 = vadd.f32 %v2845, %v3199
        %v3274 = vadd.f32 %v2846, %v3204
        %v3275 = vadd.f32 %v2847, %v3209
        %v3276 = vadd.f32 %v2848, %v3214
        %v3277 = vadd.f32 %v2849, %v3219
        %v3278 = vadd.f32 %v2850, %v3224
        %v3279 = vadd.f32 %v2851, %v3229
        %v3280 = vadd.f32 %v2852, %v3234
        %v3281 = vadd.f32 %v2853, %v3239
        %v3282 = vadd.f32 %v2854, %v3244
        %v3283 = vld [vmem:[%s329 + $0x25] sm:$0xff]
        %v3284 = vld [vmem:[%s329 + $0x2d] sm:$0xff]
        %v3285 = vld [vmem:[%s329 + $0x35] sm:$0xff]
        %v3286 = vld [vmem:[%s329 + $0x3d] sm:$0xff]
        %v3287 = vld [vmem:[%s329 + $0x45] sm:$0xff]
        %v3288 = vld [vmem:[%s329 + $0x4d] sm:$0xff]
        %v3289 = vld [vmem:[%s329 + $0x55] sm:$0xff]
        %v3290 = vld [vmem:[%s329 + $0x5d] sm:$0xff]
        %v3291 = vld [vmem:[%s329 + $0x65] sm:$0xff]
        %v3292 = vld [vmem:[%s329 + $0x6d] sm:$0xff]
        %v3293 = vld [vmem:[%s329 + $0x75] sm:$0xff]
        %v3294 = vld [vmem:[%s329 + $0x7d] sm:$0xff]
        %v3295 = vld [vmem:[%s329 + $0x85] sm:$0xff]
        %v3296 = vld [vmem:[%s329 + $0x8d] sm:$0xff]
        %v3297 = vld [vmem:[%s329 + $0x95] sm:$0xff]
        %v3298 = vld [vmem:[%s329 + $0x9d] sm:$0xff]
        %v3299 = vld [vmem:[%s329 + $0xa5] sm:$0xff]
        %v3300 = vld [vmem:[%s329 + $0xad] sm:$0xff]
        %v3301 = vld [vmem:[%s329 + $0xb5] sm:$0xff]
        %v3302 = vld [vmem:[%s329 + $0xbd] sm:$0xff]
        %v3303 = vld [vmem:[%s329 + $0xc5] sm:$0xff]
        %v3304 = vld [vmem:[%s329 + $0xcd] sm:$0xff]
        %v3305 = vld [vmem:[%s329 + $0xd5] sm:$0xff]
        %v3306 = vld [vmem:[%s329 + $0xdd] sm:$0xff]
        %v3307 = vld [vmem:[%s329 + $0xe5] sm:$0xff]
        %v3308 = vld [vmem:[%s329 + $0xed] sm:$0xff]
        %v3309 = vld [vmem:[%s329 + $0xf5] sm:$0xff]
        %v3310 = vld [vmem:[%s329 + $0xfd] sm:$0xff]
        %v3311 = vld [vmem:[%s329 + $0x105] sm:$0xff]
        %v3312 = vld [vmem:[%s329 + $0x10d] sm:$0xff]
        %v3313 = vld [vmem:[%s329 + $0x115] sm:$0xff]
        %v3314 = vld [vmem:[%s329 + $0x11d] sm:$0xff]
        %v3315 = vld [vmem:[%s329 + $0x125] sm:$0xff]
        %v3316 = vld [vmem:[%s329 + $0x12d] sm:$0xff]
        %v3317 = vld [vmem:[%s329 + $0x135] sm:$0xff]
        %v3318 = vld [vmem:[%s329 + $0x13d] sm:$0xff]
        %v3320 = vsel %vm429, %v3283, 0
        %v3323 = vsel %vm429, %v3284, 0
        %v3326 = vsel %vm429, %v3285, 0
        %v3329 = vsel %vm429, %v3286, 0
        %v3332 = vsel %vm429, %v3287, 0
        %v3335 = vsel %vm429, %v3288, 0
        %v3338 = vsel %vm429, %v3289, 0
        %v3341 = vsel %vm429, %v3290, 0
        %v3344 = vsel %vm429, %v3291, 0
        %v3347 = vsel %vm429, %v3292, 0
        %v3350 = vsel %vm429, %v3293, 0
        %v3353 = vsel %vm429, %v3294, 0
        %v3356 = vsel %vm429, %v3295, 0
        %v3359 = vsel %vm429, %v3296, 0
        %v3362 = vsel %vm429, %v3297, 0
        %v3365 = vsel %vm429, %v3298, 0
        %v3368 = vsel %vm429, %v3299, 0
        %v3371 = vsel %vm429, %v3300, 0
        %v3374 = vsel %vm429, %v3301, 0
        %v3377 = vsel %vm429, %v3302, 0
        %v3380 = vsel %vm429, %v3303, 0
        %v3383 = vsel %vm429, %v3304, 0
        %v3386 = vsel %vm429, %v3305, 0
        %v3389 = vsel %vm429, %v3306, 0
        %v3392 = vsel %vm429, %v3307, 0
        %v3395 = vsel %vm429, %v3308, 0
        %v3398 = vsel %vm429, %v3309, 0
        %v3401 = vsel %vm429, %v3310, 0
        %v3404 = vsel %vm429, %v3311, 0
        %v3407 = vsel %vm429, %v3312, 0
        %v3410 = vsel %vm429, %v3313, 0
        %v3413 = vsel %vm429, %v3314, 0
        %v3416 = vsel %vm429, %v3315, 0
        %v3419 = vsel %vm429, %v3316, 0
        %v3422 = vsel %vm429, %v3317, 0
        %v3425 = vsel %vm429, %v3318, 0
        %v3428 = vsel %vm538, %v337, 0
        %3430 = vmatprep.subr.mxu0 0.0
        %3431 = vmatpush1.msra.mxu0 %v3428
        %3432 = vmatprep.subr.mxu0 0.0
        %3433 = vmatpush1.msra.mxu0 0.0
        %3434 = vmatprep.subr.mxu0 0.0
        %3435 = vmatpush1.msra.mxu0 0.0
        %3436 = vmatprep.subr.mxu0 0.0
        %3437 = vmatpush1.msra.mxu0 0.0
        %3438 = vmatprep.subr.mxu0 0.0
        %3439 = vmatpush1.msra.mxu0 0.0
        %3440 = vmatprep.subr.mxu0 0.0
        %3441 = vmatpush1.msra.mxu0 0.0
        %3442 = vmatprep.subr.mxu0 0.0
        %3443 = vmatpush1.msra.mxu0 0.0
        %3444 = vmatprep.subr.mxu0 0.0
        %3445 = vmatpush1.msra.mxu0 0.0
        %3446 = vmatprep.subr.mxu0 0.0
        %3447 = vmatpush1.msra.mxu0 0.0
        %3448 = vmatprep.subr.mxu0 0.0
        %3449 = vmatpush1.msra.mxu0 0.0
        %3450 = vmatprep.subr.mxu0 0.0
        %3451 = vmatpush1.msra.mxu0 0.0
        %3452 = vmatprep.subr.mxu0 0.0
        %3453 = vmatpush1.msra.mxu0 0.0
        %3454 = vmatprep.subr.mxu0 0.0
        %3455 = vmatpush1.msra.mxu0 0.0
        %3456 = vmatprep.subr.mxu0 0.0
        %3457 = vmatpush1.msra.mxu0 0.0
        %3458 = vmatprep.subr.mxu0 0.0
        %3459 = vmatpush1.msra.mxu0 0.0
        %3460 = vmatprep.subr.mxu0 0.0
        %3461 = vmatpush1.msra.mxu0 0.0
        %3462 = vmatprep.subr.mxu0 0.0
        %3463 = vmatpush1.msra.mxu0 0.0
        %3464 = vmatprep.subr.mxu0 0.0
        %3465 = vmatpush1.msra.mxu0 0.0
        %3466 = vmatprep.subr.mxu0 0.0
        %3467 = vmatpush1.msra.mxu0 0.0
        %3468 = vmatprep.subr.mxu0 0.0
        %3469 = vmatpush1.msra.mxu0 0.0
        %3470 = vmatprep.subr.mxu0 0.0
        %3471 = vmatpush1.msra.mxu0 0.0
        %3472 = vmatprep.subr.mxu0 0.0
        %3473 = vmatpush1.msra.mxu0 0.0
        %3474 = vmatprep.subr.mxu0 0.0
        %3475 = vmatpush1.msra.mxu0 0.0
        %3476 = vmatprep.subr.mxu0 0.0
        %3477 = vmatpush1.msra.mxu0 0.0
        %3478 = vmatprep.subr.mxu0 0.0
        %3479 = vmatpush1.msra.mxu0 0.0
        %3480 = vmatprep.subr.mxu0 0.0
        %3481 = vmatpush1.msra.mxu0 0.0
        %3482 = vmatprep.subr.mxu0 0.0
        %3483 = vmatpush1.msra.mxu0 0.0
        %3484 = vmatprep.subr.mxu0 0.0
        %3485 = vmatpush1.msra.mxu0 0.0
        %3486 = vmatprep.subr.mxu0 0.0
        %3487 = vmatpush1.msra.mxu0 0.0
        %3488 = vmatprep.subr.mxu0 0.0
        %3489 = vmatpush1.msra.mxu0 0.0
        %3490 = vmatprep.subr.mxu0 0.0
        %3491 = vmatpush1.msra.mxu0 0.0
        %3492 = vmatprep.subr.mxu0 0.0
        %3493 = vmatpush1.msra.mxu0 0.0
        %3494 = vmatprep.mubr.f32.mxu0 0.0
        %3495 = vmatmul.mubr.f32.gmra.mrb[0].mxu0 %v3320
        %v3496 = vpop.f32.mrb[0].mxu0
        %v3497 = vadd.f32 0.0, %v3496
        %v3498 = vpop.f32.mrb[0].mxu0
        %3499 = vmatprep.mubr.f32.mxu0 0.0
        %3500 = vmatmul.mubr.f32.gmra.mrb[0].mxu0 %v3323
        %v3501 = vpop.f32.mrb[0].mxu0
        %v3502 = vadd.f32 0.0, %v3501
        %v3503 = vpop.f32.mrb[0].mxu0
        %3504 = vmatprep.mubr.f32.mxu0 0.0
        %3505 = vmatmul.mubr.f32.gmra.mrb[0].mxu0 %v3326
        %v3506 = vpop.f32.mrb[0].mxu0
        %v3507 = vadd.f32 0.0, %v3506
        %v3508 = vpop.f32.mrb[0].mxu0
        %3509 = vmatprep.mubr.f32.mxu0 0.0
        %3510 = vmatmul.mubr.f32.gmra.mrb[0].mxu0 %v3329
        %v3511 = vpop.f32.mrb[0].mxu0
        %v3512 = vadd.f32 0.0, %v3511
        %v3513 = vpop.f32.mrb[0].mxu0
        %3514 = vmatprep.mubr.f32.mxu0 0.0
        %3515 = vmatmul.mubr.f32.gmra.mrb[0].mxu0 %v3332
        %v3516 = vpop.f32.mrb[0].mxu0
        %v3517 = vadd.f32 0.0, %v3516
        %v3518 = vpop.f32.mrb[0].mxu0
        %3519 = vmatprep.mubr.f32.mxu0 0.0
        %3520 = vmatmul.mubr.f32.gmra.mrb[0].mxu0 %v3335
        %v3521 = vpop.f32.mrb[0].mxu0
        %v3522 = vadd.f32 0.0, %v3521
        %v3523 = vpop.f32.mrb[0].mxu0
        %3524 = vmatprep.mubr.f32.mxu0 0.0
        %3525 = vmatmul.mubr.f32.gmra.mrb[0].mxu0 %v3338
        %v3526 = vpop.f32.mrb[0].mxu0
        %v3527 = vadd.f32 0.0, %v3526
        %v3528 = vpop.f32.mrb[0].mxu0
        %3529 = vmatprep.mubr.f32.mxu0 0.0
        %3530 = vmatmul.mubr.f32.gmra.mrb[0].mxu0 %v3341
        %v3531 = vpop.f32.mrb[0].mxu0
        %v3532 = vadd.f32 0.0, %v3531
        %v3533 = vpop.f32.mrb[0].mxu0
        %3534 = vmatprep.mubr.f32.mxu0 0.0
        %3535 = vmatmul.mubr.f32.gmra.mrb[0].mxu0 %v3344
        %v3536 = vpop.f32.mrb[0].mxu0
        %v3537 = vadd.f32 0.0, %v3536
        %v3538 = vpop.f32.mrb[0].mxu0
        %3539 = vmatprep.mubr.f32.mxu0 0.0
        %3540 = vmatmul.mubr.f32.gmra.mrb[0].mxu0 %v3347
        %v3541 = vpop.f32.mrb[0].mxu0
        %v3542 = vadd.f32 0.0, %v3541
        %v3543 = vpop.f32.mrb[0].mxu0
        %3544 = vmatprep.mubr.f32.mxu0 0.0
        %3545 = vmatmul.mubr.f32.gmra.mrb[0].mxu0 %v3350
        %v3546 = vpop.f32.mrb[0].mxu0
        %v3547 = vadd.f32 0.0, %v3546
        %v3548 = vpop.f32.mrb[0].mxu0
        %3549 = vmatprep.mubr.f32.mxu0 0.0
        %3550 = vmatmul.mubr.f32.gmra.mrb[0].mxu0 %v3353
        %v3551 = vpop.f32.mrb[0].mxu0
        %v3552 = vadd.f32 0.0, %v3551
        %v3553 = vpop.f32.mrb[0].mxu0
        %3554 = vmatprep.mubr.f32.mxu0 0.0
        %3555 = vmatmul.mubr.f32.gmra.mrb[0].mxu0 %v3356
        %v3556 = vpop.f32.mrb[0].mxu0
        %v3557 = vadd.f32 0.0, %v3556
        %v3558 = vpop.f32.mrb[0].mxu0
        %3559 = vmatprep.mubr.f32.mxu0 0.0
        %3560 = vmatmul.mubr.f32.gmra.mrb[0].mxu0 %v3359
        %v3561 = vpop.f32.mrb[0].mxu0
        %v3562 = vadd.f32 0.0, %v3561
        %v3563 = vpop.f32.mrb[0].mxu0
        %3564 = vmatprep.mubr.f32.mxu0 0.0
        %3565 = vmatmul.mubr.f32.gmra.mrb[0].mxu0 %v3362
        %v3566 = vpop.f32.mrb[0].mxu0
        %v3567 = vadd.f32 0.0, %v3566
        %v3568 = vpop.f32.mrb[0].mxu0
        %3569 = vmatprep.mubr.f32.mxu0 0.0
        %3570 = vmatmul.mubr.f32.gmra.mrb[0].mxu0 %v3365
        %v3571 = vpop.f32.mrb[0].mxu0
        %v3572 = vadd.f32 0.0, %v3571
        %v3573 = vpop.f32.mrb[0].mxu0
        %3574 = vmatprep.mubr.f32.mxu0 0.0
        %3575 = vmatmul.mubr.f32.gmra.mrb[0].mxu0 %v3368
        %v3576 = vpop.f32.mrb[0].mxu0
        %v3577 = vadd.f32 0.0, %v3576
        %v3578 = vpop.f32.mrb[0].mxu0
        %3579 = vmatprep.mubr.f32.mxu0 0.0
        %3580 = vmatmul.mubr.f32.gmra.mrb[0].mxu0 %v3371
        %v3581 = vpop.f32.mrb[0].mxu0
        %v3582 = vadd.f32 0.0, %v3581
        %v3583 = vpop.f32.mrb[0].mxu0
        %3584 = vmatprep.mubr.f32.mxu0 0.0
        %3585 = vmatmul.mubr.f32.gmra.mrb[0].mxu0 %v3374
        %v3586 = vpop.f32.mrb[0].mxu0
        %v3587 = vadd.f32 0.0, %v3586
        %v3588 = vpop.f32.mrb[0].mxu0
        %3589 = vmatprep.mubr.f32.mxu0 0.0
        %3590 = vmatmul.mubr.f32.gmra.mrb[0].mxu0 %v3377
        %v3591 = vpop.f32.mrb[0].mxu0
        %v3592 = vadd.f32 0.0, %v3591
        %v3593 = vpop.f32.mrb[0].mxu0
        %3594 = vmatprep.mubr.f32.mxu0 0.0
        %3595 = vmatmul.mubr.f32.gmra.mrb[0].mxu0 %v3380
        %v3596 = vpop.f32.mrb[0].mxu0
        %v3597 = vadd.f32 0.0, %v3596
        %v3598 = vpop.f32.mrb[0].mxu0
        %3599 = vmatprep.mubr.f32.mxu0 0.0
        %3600 = vmatmul.mubr.f32.gmra.mrb[0].mxu0 %v3383
        %v3601 = vpop.f32.mrb[0].mxu0
        %v3602 = vadd.f32 0.0, %v3601
        %v3603 = vpop.f32.mrb[0].mxu0
        %3604 = vmatprep.mubr.f32.mxu0 0.0
        %3605 = vmatmul.mubr.f32.gmra.mrb[0].mxu0 %v3386
        %v3606 = vpop.f32.mrb[0].mxu0
        %v3607 = vadd.f32 0.0, %v3606
        %v3608 = vpop.f32.mrb[0].mxu0
        %3609 = vmatprep.mubr.f32.mxu0 0.0
        %3610 = vmatmul.mubr.f32.gmra.mrb[0].mxu0 %v3389
        %v3611 = vpop.f32.mrb[0].mxu0
        %v3612 = vadd.f32 0.0, %v3611
        %v3613 = vpop.f32.mrb[0].mxu0
        %3614 = vmatprep.mubr.f32.mxu0 0.0
        %3615 = vmatmul.mubr.f32.gmra.mrb[0].mxu0 %v3392
        %v3616 = vpop.f32.mrb[0].mxu0
        %v3617 = vadd.f32 0.0, %v3616
        %v3618 = vpop.f32.mrb[0].mxu0
        %3619 = vmatprep.mubr.f32.mxu0 0.0
        %3620 = vmatmul.mubr.f32.gmra.mrb[0].mxu0 %v3395
        %v3621 = vpop.f32.mrb[0].mxu0
        %v3622 = vadd.f32 0.0, %v3621
        %v3623 = vpop.f32.mrb[0].mxu0
        %3624 = vmatprep.mubr.f32.mxu0 0.0
        %3625 = vmatmul.mubr.f32.gmra.mrb[0].mxu0 %v3398
        %v3626 = vpop.f32.mrb[0].mxu0
        %v3627 = vadd.f32 0.0, %v3626
        %v3628 = vpop.f32.mrb[0].mxu0
        %3629 = vmatprep.mubr.f32.mxu0 0.0
        %3630 = vmatmul.mubr.f32.gmra.mrb[0].mxu0 %v3401
        %v3631 = vpop.f32.mrb[0].mxu0
        %v3632 = vadd.f32 0.0, %v3631
        %v3633 = vpop.f32.mrb[0].mxu0
        %3634 = vmatprep.mubr.f32.mxu0 0.0
        %3635 = vmatmul.mubr.f32.gmra.mrb[0].mxu0 %v3404
        %v3636 = vpop.f32.mrb[0].mxu0
        %v3637 = vadd.f32 0.0, %v3636
        %v3638 = vpop.f32.mrb[0].mxu0
        %3639 = vmatprep.mubr.f32.mxu0 0.0
        %3640 = vmatmul.mubr.f32.gmra.mrb[0].mxu0 %v3407
        %v3641 = vpop.f32.mrb[0].mxu0
        %v3642 = vadd.f32 0.0, %v3641
        %v3643 = vpop.f32.mrb[0].mxu0
        %3644 = vmatprep.mubr.f32.mxu0 0.0
        %3645 = vmatmul.mubr.f32.gmra.mrb[0].mxu0 %v3410
        %v3646 = vpop.f32.mrb[0].mxu0
        %v3647 = vadd.f32 0.0, %v3646
        %v3648 = vpop.f32.mrb[0].mxu0
        %3649 = vmatprep.mubr.f32.mxu0 0.0
        %3650 = vmatmul.mubr.f32.gmra.mrb[0].mxu0 %v3413
        %v3651 = vpop.f32.mrb[0].mxu0
        %v3652 = vadd.f32 0.0, %v3651
        %v3653 = vpop.f32.mrb[0].mxu0
        %3654 = vmatprep.mubr.f32.mxu0 0.0
        %3655 = vmatmul.mubr.f32.gmra.mrb[0].mxu0 %v3416
        %v3656 = vpop.f32.mrb[0].mxu0
        %v3657 = vadd.f32 0.0, %v3656
        %v3658 = vpop.f32.mrb[0].mxu0
        %3659 = vmatprep.mubr.f32.mxu0 0.0
        %3660 = vmatmul.mubr.f32.gmra.mrb[0].mxu0 %v3419
        %v3661 = vpop.f32.mrb[0].mxu0
        %v3662 = vadd.f32 0.0, %v3661
        %v3663 = vpop.f32.mrb[0].mxu0
        %3664 = vmatprep.mubr.f32.mxu0 0.0
        %3665 = vmatmul.mubr.f32.gmra.mrb[0].mxu0 %v3422
        %v3666 = vpop.f32.mrb[0].mxu0
        %v3667 = vadd.f32 0.0, %v3666
        %v3668 = vpop.f32.mrb[0].mxu0
        %3669 = vmatprep.mubr.f32.mxu0 0.0
        %3670 = vmatmul.mubr.f32.gmra.mrb[0].mxu0 %v3425
        %v3671 = vpop.f32.mrb[0].mxu0
        %v3672 = vadd.f32 0.0, %v3671
        %v3673 = vpop.f32.mrb[0].mxu0
        %3674 = vdwg.mxu0
        %v3675 = vadd.f32 %v3247, %v3497
        %v3676 = vadd.f32 %v3248, %v3502
        %v3677 = vadd.f32 %v3249, %v3507
        %v3678 = vadd.f32 %v3250, %v3512
        %v3679 = vadd.f32 %v3251, %v3517
        %v3680 = vadd.f32 %v3252, %v3522
        %v3681 = vadd.f32 %v3253, %v3527
        %v3682 = vadd.f32 %v3254, %v3532
        %v3683 = vadd.f32 %v3255, %v3537
        %v3684 = vadd.f32 %v3256, %v3542
        %v3685 = vadd.f32 %v3257, %v3547
        %v3686 = vadd.f32 %v3258, %v3552
        %v3687 = vadd.f32 %v3259, %v3557
        %v3688 = vadd.f32 %v3260, %v3562
        %v3689 = vadd.f32 %v3261, %v3567
        %v3690 = vadd.f32 %v3262, %v3572
        %v3691 = vadd.f32 %v3263, %v3577
        %v3692 = vadd.f32 %v3264, %v3582
        %v3693 = vadd.f32 %v3265, %v3587
        %v3694 = vadd.f32 %v3266, %v3592
        %v3695 = vadd.f32 %v3267, %v3597
        %v3696 = vadd.f32 %v3268, %v3602
        %v3697 = vadd.f32 %v3269, %v3607
        %v3698 = vadd.f32 %v3270, %v3612
        %v3699 = vadd.f32 %v3271, %v3617
        %v3700 = vadd.f32 %v3272, %v3622
        %v3701 = vadd.f32 %v3273, %v3627
        %v3702 = vadd.f32 %v3274, %v3632
        %v3703 = vadd.f32 %v3275, %v3637
        %v3704 = vadd.f32 %v3276, %v3642
        %v3705 = vadd.f32 %v3277, %v3647
        %v3706 = vadd.f32 %v3278, %v3652
        %v3707 = vadd.f32 %v3279, %v3657
        %v3708 = vadd.f32 %v3280, %v3662
        %v3709 = vadd.f32 %v3281, %v3667
        %v3710 = vadd.f32 %v3282, %v3672
        %v3711 = vld [vmem:[%s329 + $0x26] sm:$0xff]
        %v3712 = vld [vmem:[%s329 + $0x2e] sm:$0xff]
        %v3713 = vld [vmem:[%s329 + $0x36] sm:$0xff]
        %v3714 = vld [vmem:[%s329 + $0x3e] sm:$0xff]
        %v3715 = vld [vmem:[%s329 + $0x46] sm:$0xff]
        %v3716 = vld [vmem:[%s329 + $0x4e] sm:$0xff]
        %v3717 = vld [vmem:[%s329 + $0x56] sm:$0xff]
        %v3718 = vld [vmem:[%s329 + $0x5e] sm:$0xff]
        %v3719 = vld [vmem:[%s329 + $0x66] sm:$0xff]
        %v3720 = vld [vmem:[%s329 + $0x6e] sm:$0xff]
        %v3721 = vld [vmem:[%s329 + $0x76] sm:$0xff]
        %v3722 = vld [vmem:[%s329 + $0x7e] sm:$0xff]
        %v3723 = vld [vmem:[%s329 + $0x86] sm:$0xff]
        %v3724 = vld [vmem:[%s329 + $0x8e] sm:$0xff]
        %v3725 = vld [vmem:[%s329 + $0x96] sm:$0xff]
        %v3726 = vld [vmem:[%s329 + $0x9e] sm:$0xff]
        %v3727 = vld [vmem:[%s329 + $0xa6] sm:$0xff]
        %v3728 = vld [vmem:[%s329 + $0xae] sm:$0xff]
        %v3729 = vld [vmem:[%s329 + $0xb6] sm:$0xff]
        %v3730 = vld [vmem:[%s329 + $0xbe] sm:$0xff]
        %v3731 = vld [vmem:[%s329 + $0xc6] sm:$0xff]
        %v3732 = vld [vmem:[%s329 + $0xce] sm:$0xff]
        %v3733 = vld [vmem:[%s329 + $0xd6] sm:$0xff]
        %v3734 = vld [vmem:[%s329 + $0xde] sm:$0xff]
        %v3735 = vld [vmem:[%s329 + $0xe6] sm:$0xff]
        %v3736 = vld [vmem:[%s329 + $0xee] sm:$0xff]
        %v3737 = vld [vmem:[%s329 + $0xf6] sm:$0xff]
        %v3738 = vld [vmem:[%s329 + $0xfe] sm:$0xff]
        %v3739 = vld [vmem:[%s329 + $0x106] sm:$0xff]
        %v3740 = vld [vmem:[%s329 + $0x10e] sm:$0xff]
        %v3741 = vld [vmem:[%s329 + $0x116] sm:$0xff]
        %v3742 = vld [vmem:[%s329 + $0x11e] sm:$0xff]
        %v3743 = vld [vmem:[%s329 + $0x126] sm:$0xff]
        %v3744 = vld [vmem:[%s329 + $0x12e] sm:$0xff]
        %v3745 = vld [vmem:[%s329 + $0x136] sm:$0xff]
        %v3746 = vld [vmem:[%s329 + $0x13e] sm:$0xff]
        %v3748 = vsel %vm429, %v3711, 0
        %v3751 = vsel %vm429, %v3712, 0
        %v3754 = vsel %vm429, %v3713, 0
        %v3757 = vsel %vm429, %v3714, 0
        %v3760 = vsel %vm429, %v3715, 0
        %v3763 = vsel %vm429, %v3716, 0
        %v3766 = vsel %vm429, %v3717, 0
        %v3769 = vsel %vm429, %v3718, 0
        %v3772 = vsel %vm429, %v3719, 0
        %v3775 = vsel %vm429, %v3720, 0
        %v3778 = vsel %vm429, %v3721, 0
        %v3781 = vsel %vm429, %v3722, 0
        %v3784 = vsel %vm429, %v3723, 0
        %v3787 = vsel %vm429, %v3724, 0
        %v3790 = vsel %vm429, %v3725, 0
        %v3793 = vsel %vm429, %v3726, 0
        %v3796 = vsel %vm429, %v3727, 0
        %v3799 = vsel %vm429, %v3728, 0
        %v3802 = vsel %vm429, %v3729, 0
        %v3805 = vsel %vm429, %v3730, 0
        %v3808 = vsel %vm429, %v3731, 0
        %v3811 = vsel %vm429, %v3732, 0
        %v3814 = vsel %vm429, %v3733, 0
        %v3817 = vsel %vm429, %v3734, 0
        %v3820 = vsel %vm429, %v3735, 0
        %v3823 = vsel %vm429, %v3736, 0
        %v3826 = vsel %vm429, %v3737, 0
        %v3829 = vsel %vm429, %v3738, 0
        %v3832 = vsel %vm429, %v3739, 0
        %v3835 = vsel %vm429, %v3740, 0
        %v3838 = vsel %vm429, %v3741, 0
        %v3841 = vsel %vm429, %v3742, 0
        %v3844 = vsel %vm429, %v3743, 0
        %v3847 = vsel %vm429, %v3744, 0
        %v3850 = vsel %vm429, %v3745, 0
        %v3853 = vsel %vm429, %v3746, 0
        %v3856 = vsel %vm538, %v338, 0
        %3858 = vmatprep.subr.mxu0 0.0
        %3859 = vmatpush1.msra.mxu0 %v3856
        %3860 = vmatprep.subr.mxu0 0.0
        %3861 = vmatpush1.msra.mxu0 0.0
        %3862 = vmatprep.subr.mxu0 0.0
        %3863 = vmatpush1.msra.mxu0 0.0
        %3864 = vmatprep.subr.mxu0 0.0
        %3865 = vmatpush1.msra.mxu0 0.0
        %3866 = vmatprep.subr.mxu0 0.0
        %3867 = vmatpush1.msra.mxu0 0.0
        %3868 = vmatprep.subr.mxu0 0.0
        %3869 = vmatpush1.msra.mxu0 0.0
        %3870 = vmatprep.subr.mxu0 0.0
        %3871 = vmatpush1.msra.mxu0 0.0
        %3872 = vmatprep.subr.mxu0 0.0
        %3873 = vmatpush1.msra.mxu0 0.0
        %3874 = vmatprep.subr.mxu0 0.0
        %3875 = vmatpush1.msra.mxu0 0.0
        %3876 = vmatprep.subr.mxu0 0.0
        %3877 = vmatpush1.msra.mxu0 0.0
        %3878 = vmatprep.subr.mxu0 0.0
        %3879 = vmatpush1.msra.mxu0 0.0
        %3880 = vmatprep.subr.mxu0 0.0
        %3881 = vmatpush1.msra.mxu0 0.0
        %3882 = vmatprep.subr.mxu0 0.0
        %3883 = vmatpush1.msra.mxu0 0.0
        %3884 = vmatprep.subr.mxu0 0.0
        %3885 = vmatpush1.msra.mxu0 0.0
        %3886 = vmatprep.subr.mxu0 0.0
        %3887 = vmatpush1.msra.mxu0 0.0
        %3888 = vmatprep.subr.mxu0 0.0
        %3889 = vmatpush1.msra.mxu0 0.0
        %3890 = vmatprep.subr.mxu0 0.0
        %3891 = vmatpush1.msra.mxu0 0.0
        %3892 = vmatprep.subr.mxu0 0.0
        %3893 = vmatpush1.msra.mxu0 0.0
        %3894 = vmatprep.subr.mxu0 0.0
        %3895 = vmatpush1.msra.mxu0 0.0
        %3896 = vmatprep.subr.mxu0 0.0
        %3897 = vmatpush1.msra.mxu0 0.0
        %3898 = vmatprep.subr.mxu0 0.0
        %3899 = vmatpush1.msra.mxu0 0.0
        %3900 = vmatprep.subr.mxu0 0.0
        %3901 = vmatpush1.msra.mxu0 0.0
        %3902 = vmatprep.subr.mxu0 0.0
        %3903 = vmatpush1.msra.mxu0 0.0
        %3904 = vmatprep.subr.mxu0 0.0
        %3905 = vmatpush1.msra.mxu0 0.0
        %3906 = vmatprep.subr.mxu0 0.0
        %3907 = vmatpush1.msra.mxu0 0.0
        %3908 = vmatprep.subr.mxu0 0.0
        %3909 = vmatpush1.msra.mxu0 0.0
        %3910 = vmatprep.subr.mxu0 0.0
        %3911 = vmatpush1.msra.mxu0 0.0
        %3912 = vmatprep.subr.mxu0 0.0
        %3913 = vmatpush1.msra.mxu0 0.0
        %3914 = vmatprep.subr.mxu0 0.0
        %3915 = vmatpush1.msra.mxu0 0.0
        %3916 = vmatprep.subr.mxu0 0.0
        %3917 = vmatpush1.msra.mxu0 0.0
        %3918 = vmatprep.subr.mxu0 0.0
        %3919 = vmatpush1.msra.mxu0 0.0
        %3920 = vmatprep.subr.mxu0 0.0
        %3921 = vmatpush1.msra.mxu0 0.0
        %3922 = vmatprep.mubr.f32.mxu0 0.0
        %3923 = vmatmul.mubr.f32.gmra.mrb[0].mxu0 %v3748
        %v3924 = vpop.f32.mrb[0].mxu0
        %v3925 = vadd.f32 0.0, %v3924
        %v3926 = vpop.f32.mrb[0].mxu0
        %3927 = vmatprep.mubr.f32.mxu0 0.0
        %3928 = vmatmul.mubr.f32.gmra.mrb[0].mxu0 %v3751
        %v3929 = vpop.f32.mrb[0].mxu0
        %v3930 = vadd.f32 0.0, %v3929
        %v3931 = vpop.f32.mrb[0].mxu0
        %3932 = vmatprep.mubr.f32.mxu0 0.0
        %3933 = vmatmul.mubr.f32.gmra.mrb[0].mxu0 %v3754
        %v3934 = vpop.f32.mrb[0].mxu0
        %v3935 = vadd.f32 0.0, %v3934
        %v3936 = vpop.f32.mrb[0].mxu0
        %3937 = vmatprep.mubr.f32.mxu0 0.0
        %3938 = vmatmul.mubr.f32.gmra.mrb[0].mxu0 %v3757
        %v3939 = vpop.f32.mrb[0].mxu0
        %v3940 = vadd.f32 0.0, %v3939
        %v3941 = vpop.f32.mrb[0].mxu0
        %3942 = vmatprep.mubr.f32.mxu0 0.0
        %3943 = vmatmul.mubr.f32.gmra.mrb[0].mxu0 %v3760
        %v3944 = vpop.f32.mrb[0].mxu0
        %v3945 = vadd.f32 0.0, %v3944
        %v3946 = vpop.f32.mrb[0].mxu0
        %3947 = vmatprep.mubr.f32.mxu0 0.0
        %3948 = vmatmul.mubr.f32.gmra.mrb[0].mxu0 %v3763
        %v3949 = vpop.f32.mrb[0].mxu0
        %v3950 = vadd.f32 0.0, %v3949
        %v3951 = vpop.f32.mrb[0].mxu0
        %3952 = vmatprep.mubr.f32.mxu0 0.0
        %3953 = vmatmul.mubr.f32.gmra.mrb[0].mxu0 %v3766
        %v3954 = vpop.f32.mrb[0].mxu0
        %v3955 = vadd.f32 0.0, %v3954
        %v3956 = vpop.f32.mrb[0].mxu0
        %3957 = vmatprep.mubr.f32.mxu0 0.0
        %3958 = vmatmul.mubr.f32.gmra.mrb[0].mxu0 %v3769
        %v3959 = vpop.f32.mrb[0].mxu0
        %v3960 = vadd.f32 0.0, %v3959
        %v3961 = vpop.f32.mrb[0].mxu0
        %3962 = vmatprep.mubr.f32.mxu0 0.0
        %3963 = vmatmul.mubr.f32.gmra.mrb[0].mxu0 %v3772
        %v3964 = vpop.f32.mrb[0].mxu0
        %v3965 = vadd.f32 0.0, %v3964
        %v3966 = vpop.f32.mrb[0].mxu0
        %3967 = vmatprep.mubr.f32.mxu0 0.0
        %3968 = vmatmul.mubr.f32.gmra.mrb[0].mxu0 %v3775
        %v3969 = vpop.f32.mrb[0].mxu0
        %v3970 = vadd.f32 0.0, %v3969
        %v3971 = vpop.f32.mrb[0].mxu0
        %3972 = vmatprep.mubr.f32.mxu0 0.0
        %3973 = vmatmul.mubr.f32.gmra.mrb[0].mxu0 %v3778
        %v3974 = vpop.f32.mrb[0].mxu0
        %v3975 = vadd.f32 0.0, %v3974
        %v3976 = vpop.f32.mrb[0].mxu0
        %3977 = vmatprep.mubr.f32.mxu0 0.0
        %3978 = vmatmul.mubr.f32.gmra.mrb[0].mxu0 %v3781
        %v3979 = vpop.f32.mrb[0].mxu0
        %v3980 = vadd.f32 0.0, %v3979
        %v3981 = vpop.f32.mrb[0].mxu0
        %3982 = vmatprep.mubr.f32.mxu0 0.0
        %3983 = vmatmul.mubr.f32.gmra.mrb[0].mxu0 %v3784
        %v3984 = vpop.f32.mrb[0].mxu0
        %v3985 = vadd.f32 0.0, %v3984
        %v3986 = vpop.f32.mrb[0].mxu0
        %3987 = vmatprep.mubr.f32.mxu0 0.0
        %3988 = vmatmul.mubr.f32.gmra.mrb[0].mxu0 %v3787
        %v3989 = vpop.f32.mrb[0].mxu0
        %v3990 = vadd.f32 0.0, %v3989
        %v3991 = vpop.f32.mrb[0].mxu0
        %3992 = vmatprep.mubr.f32.mxu0 0.0
        %3993 = vmatmul.mubr.f32.gmra.mrb[0].mxu0 %v3790
        %v3994 = vpop.f32.mrb[0].mxu0
        %v3995 = vadd.f32 0.0, %v3994
        %v3996 = vpop.f32.mrb[0].mxu0
        %3997 = vmatprep.mubr.f32.mxu0 0.0
        %3998 = vmatmul.mubr.f32.gmra.mrb[0].mxu0 %v3793
        %v3999 = vpop.f32.mrb[0].mxu0
        %v4000 = vadd.f32 0.0, %v3999
        %v4001 = vpop.f32.mrb[0].mxu0
        %4002 = vmatprep.mubr.f32.mxu0 0.0
        %4003 = vmatmul.mubr.f32.gmra.mrb[0].mxu0 %v3796
        %v4004 = vpop.f32.mrb[0].mxu0
        %v4005 = vadd.f32 0.0, %v4004
        %v4006 = vpop.f32.mrb[0].mxu0
        %4007 = vmatprep.mubr.f32.mxu0 0.0
        %4008 = vmatmul.mubr.f32.gmra.mrb[0].mxu0 %v3799
        %v4009 = vpop.f32.mrb[0].mxu0
        %v4010 = vadd.f32 0.0, %v4009
        %v4011 = vpop.f32.mrb[0].mxu0
        %4012 = vmatprep.mubr.f32.mxu0 0.0
        %4013 = vmatmul.mubr.f32.gmra.mrb[0].mxu0 %v3802
        %v4014 = vpop.f32.mrb[0].mxu0
        %v4015 = vadd.f32 0.0, %v4014
        %v4016 = vpop.f32.mrb[0].mxu0
        %4017 = vmatprep.mubr.f32.mxu0 0.0
        %4018 = vmatmul.mubr.f32.gmra.mrb[0].mxu0 %v3805
        %v4019 = vpop.f32.mrb[0].mxu0
        %v4020 = vadd.f32 0.0, %v4019
        %v4021 = vpop.f32.mrb[0].mxu0
        %4022 = vmatprep.mubr.f32.mxu0 0.0
        %4023 = vmatmul.mubr.f32.gmra.mrb[0].mxu0 %v3808
        %v4024 = vpop.f32.mrb[0].mxu0
        %v4025 = vadd.f32 0.0, %v4024
        %v4026 = vpop.f32.mrb[0].mxu0
        %4027 = vmatprep.mubr.f32.mxu0 0.0
        %4028 = vmatmul.mubr.f32.gmra.mrb[0].mxu0 %v3811
        %v4029 = vpop.f32.mrb[0].mxu0
        %v4030 = vadd.f32 0.0, %v4029
        %v4031 = vpop.f32.mrb[0].mxu0
        %4032 = vmatprep.mubr.f32.mxu0 0.0
        %4033 = vmatmul.mubr.f32.gmra.mrb[0].mxu0 %v3814
        %v4034 = vpop.f32.mrb[0].mxu0
        %v4035 = vadd.f32 0.0, %v4034
        %v4036 = vpop.f32.mrb[0].mxu0
        %4037 = vmatprep.mubr.f32.mxu0 0.0
        %4038 = vmatmul.mubr.f32.gmra.mrb[0].mxu0 %v3817
        %v4039 = vpop.f32.mrb[0].mxu0
        %v4040 = vadd.f32 0.0, %v4039
        %v4041 = vpop.f32.mrb[0].mxu0
        %4042 = vmatprep.mubr.f32.mxu0 0.0
        %4043 = vmatmul.mubr.f32.gmra.mrb[0].mxu0 %v3820
        %v4044 = vpop.f32.mrb[0].mxu0
        %v4045 = vadd.f32 0.0, %v4044
        %v4046 = vpop.f32.mrb[0].mxu0
        %4047 = vmatprep.mubr.f32.mxu0 0.0
        %4048 = vmatmul.mubr.f32.gmra.mrb[0].mxu0 %v3823
        %v4049 = vpop.f32.mrb[0].mxu0
        %v4050 = vadd.f32 0.0, %v4049
        %v4051 = vpop.f32.mrb[0].mxu0
        %4052 = vmatprep.mubr.f32.mxu0 0.0
        %4053 = vmatmul.mubr.f32.gmra.mrb[0].mxu0 %v3826
        %v4054 = vpop.f32.mrb[0].mxu0
        %v4055 = vadd.f32 0.0, %v4054
        %v4056 = vpop.f32.mrb[0].mxu0
        %4057 = vmatprep.mubr.f32.mxu0 0.0
        %4058 = vmatmul.mubr.f32.gmra.mrb[0].mxu0 %v3829
        %v4059 = vpop.f32.mrb[0].mxu0
        %v4060 = vadd.f32 0.0, %v4059
        %v4061 = vpop.f32.mrb[0].mxu0
        %4062 = vmatprep.mubr.f32.mxu0 0.0
        %4063 = vmatmul.mubr.f32.gmra.mrb[0].mxu0 %v3832
        %v4064 = vpop.f32.mrb[0].mxu0
        %v4065 = vadd.f32 0.0, %v4064
        %v4066 = vpop.f32.mrb[0].mxu0
        %4067 = vmatprep.mubr.f32.mxu0 0.0
        %4068 = vmatmul.mubr.f32.gmra.mrb[0].mxu0 %v3835
        %v4069 = vpop.f32.mrb[0].mxu0
        %v4070 = vadd.f32 0.0, %v4069
        %v4071 = vpop.f32.mrb[0].mxu0
        %4072 = vmatprep.mubr.f32.mxu0 0.0
        %4073 = vmatmul.mubr.f32.gmra.mrb[0].mxu0 %v3838
        %v4074 = vpop.f32.mrb[0].mxu0
        %v4075 = vadd.f32 0.0, %v4074
        %v4076 = vpop.f32.mrb[0].mxu0
        %4077 = vmatprep.mubr.f32.mxu0 0.0
        %4078 = vmatmul.mubr.f32.gmra.mrb[0].mxu0 %v3841
        %v4079 = vpop.f32.mrb[0].mxu0
        %v4080 = vadd.f32 0.0, %v4079
        %v4081 = vpop.f32.mrb[0].mxu0
        %4082 = vmatprep.mubr.f32.mxu0 0.0
        %4083 = vmatmul.mubr.f32.gmra.mrb[0].mxu0 %v3844
        %v4084 = vpop.f32.mrb[0].mxu0
        %v4085 = vadd.f32 0.0, %v4084
        %v4086 = vpop.f32.mrb[0].mxu0
        %4087 = vmatprep.mubr.f32.mxu0 0.0
        %4088 = vmatmul.mubr.f32.gmra.mrb[0].mxu0 %v3847
        %v4089 = vpop.f32.mrb[0].mxu0
        %v4090 = vadd.f32 0.0, %v4089
        %v4091 = vpop.f32.mrb[0].mxu0
        %4092 = vmatprep.mubr.f32.mxu0 0.0
        %4093 = vmatmul.mubr.f32.gmra.mrb[0].mxu0 %v3850
        %v4094 = vpop.f32.mrb[0].mxu0
        %v4095 = vadd.f32 0.0, %v4094
        %v4096 = vpop.f32.mrb[0].mxu0
        %4097 = vmatprep.mubr.f32.mxu0 0.0
        %4098 = vmatmul.mubr.f32.gmra.mrb[0].mxu0 %v3853
        %v4099 = vpop.f32.mrb[0].mxu0
        %v4100 = vadd.f32 0.0, %v4099
        %v4101 = vpop.f32.mrb[0].mxu0
        %4102 = vdwg.mxu0
        %v4103 = vadd.f32 %v3675, %v3925
        %v4104 = vadd.f32 %v3676, %v3930
        %v4105 = vadd.f32 %v3677, %v3935
        %v4106 = vadd.f32 %v3678, %v3940
        %v4107 = vadd.f32 %v3679, %v3945
        %v4108 = vadd.f32 %v3680, %v3950
        %v4109 = vadd.f32 %v3681, %v3955
        %v4110 = vadd.f32 %v3682, %v3960
        %v4111 = vadd.f32 %v3683, %v3965
        %v4112 = vadd.f32 %v3684, %v3970
        %v4113 = vadd.f32 %v3685, %v3975
        %v4114 = vadd.f32 %v3686, %v3980
        %v4115 = vadd.f32 %v3687, %v3985
        %v4116 = vadd.f32 %v3688, %v3990
        %v4117 = vadd.f32 %v3689, %v3995
        %v4118 = vadd.f32 %v3690, %v4000
        %v4119 = vadd.f32 %v3691, %v4005
        %v4120 = vadd.f32 %v3692, %v4010
        %v4121 = vadd.f32 %v3693, %v4015
        %v4122 = vadd.f32 %v3694, %v4020
        %v4123 = vadd.f32 %v3695, %v4025
        %v4124 = vadd.f32 %v3696, %v4030
        %v4125 = vadd.f32 %v3697, %v4035
        %v4126 = vadd.f32 %v3698, %v4040
        %v4127 = vadd.f32 %v3699, %v4045
        %v4128 = vadd.f32 %v3700, %v4050
        %v4129 = vadd.f32 %v3701, %v4055
        %v4130 = vadd.f32 %v3702, %v4060
        %v4131 = vadd.f32 %v3703, %v4065
        %v4132 = vadd.f32 %v3704, %v4070
        %v4133 = vadd.f32 %v3705, %v4075
        %v4134 = vadd.f32 %v3706, %v4080
        %v4135 = vadd.f32 %v3707, %v4085
        %v4136 = vadd.f32 %v3708, %v4090
        %v4137 = vadd.f32 %v3709, %v4095
        %v4138 = vadd.f32 %v3710, %v4100
        %v4139 = vld [vmem:[%s2] sm:$0x1]
        %v4141 = vlaneseq
        %v4142 = vshrl.u32 %v4141, 7
        %v4143 = vsub.s32 0, %v4142
        %v4144 = vrot.slane %v4139, %v4143
        %v4146 = vadd.f32 %v4103, %v4144
        %v4147 = vadd.f32 %v4104, %v4144
        %v4148 = vadd.f32 %v4105, %v4144
        %v4149 = vadd.f32 %v4106, %v4144
        %v4150 = vadd.f32 %v4107, %v4144
        %v4151 = vadd.f32 %v4108, %v4144
        %v4152 = vadd.f32 %v4109, %v4144
        %v4153 = vadd.f32 %v4110, %v4144
        %v4154 = vadd.f32 %v4111, %v4144
        %v4155 = vadd.f32 %v4112, %v4144
        %v4156 = vadd.f32 %v4113, %v4144
        %v4157 = vadd.f32 %v4114, %v4144
        %v4158 = vadd.f32 %v4115, %v4144
        %v4159 = vadd.f32 %v4116, %v4144
        %v4160 = vadd.f32 %v4117, %v4144
        %v4161 = vadd.f32 %v4118, %v4144
        %v4162 = vadd.f32 %v4119, %v4144
        %v4163 = vadd.f32 %v4120, %v4144
        %v4164 = vadd.f32 %v4121, %v4144
        %v4165 = vadd.f32 %v4122, %v4144
        %v4166 = vadd.f32 %v4123, %v4144
        %v4167 = vadd.f32 %v4124, %v4144
        %v4168 = vadd.f32 %v4125, %v4144
        %v4169 = vadd.f32 %v4126, %v4144
        %v4170 = vadd.f32 %v4127, %v4144
        %v4171 = vadd.f32 %v4128, %v4144
        %v4172 = vadd.f32 %v4129, %v4144
        %v4173 = vadd.f32 %v4130, %v4144
        %v4174 = vadd.f32 %v4131, %v4144
        %v4175 = vadd.f32 %v4132, %v4144
        %v4176 = vadd.f32 %v4133, %v4144
        %v4177 = vadd.f32 %v4134, %v4144
        %v4178 = vadd.f32 %v4135, %v4144
        %v4179 = vadd.f32 %v4136, %v4144
        %v4180 = vadd.f32 %v4137, %v4144
        %v4181 = vadd.f32 %v4138, %v4144
        %v4182 = vmax.f32 %v4146, 0.0
        %v4183 = vmax.f32 %v4147, 0.0
        %v4184 = vmax.f32 %v4148, 0.0
        %v4185 = vmax.f32 %v4149, 0.0
        %v4186 = vmax.f32 %v4150, 0.0
        %v4187 = vmax.f32 %v4151, 0.0
        %v4188 = vmax.f32 %v4152, 0.0
        %v4189 = vmax.f32 %v4153, 0.0
        %v4190 = vmax.f32 %v4154, 0.0
        %v4191 = vmax.f32 %v4155, 0.0
        %v4192 = vmax.f32 %v4156, 0.0
        %v4193 = vmax.f32 %v4157, 0.0
        %v4194 = vmax.f32 %v4158, 0.0
        %v4195 = vmax.f32 %v4159, 0.0
        %v4196 = vmax.f32 %v4160, 0.0
        %v4197 = vmax.f32 %v4161, 0.0
        %v4198 = vmax.f32 %v4162, 0.0
        %v4199 = vmax.f32 %v4163, 0.0
        %v4200 = vmax.f32 %v4164, 0.0
        %v4201 = vmax.f32 %v4165, 0.0
        %v4202 = vmax.f32 %v4166, 0.0
        %v4203 = vmax.f32 %v4167, 0.0
        %v4204 = vmax.f32 %v4168, 0.0
        %v4205 = vmax.f32 %v4169, 0.0
        %v4206 = vmax.f32 %v4170, 0.0
        %v4207 = vmax.f32 %v4171, 0.0
        %v4208 = vmax.f32 %v4172, 0.0
        %v4209 = vmax.f32 %v4173, 0.0
        %v4210 = vmax.f32 %v4174, 0.0
        %v4211 = vmax.f32 %v4175, 0.0
        %v4212 = vmax.f32 %v4176, 0.0
        %v4213 = vmax.f32 %v4177, 0.0
        %v4214 = vmax.f32 %v4178, 0.0
        %v4215 = vmax.f32 %v4179, 0.0
        %v4216 = vmax.f32 %v4180, 0.0
        %v4217 = vmax.f32 %v4181, 0.0
        %v4218 = vld [vmem:[%s7] sm:$0xff]
        %v4219 = vld [vmem:[%s7 + $0x8] sm:$0xff]
        %v4220 = vld [vmem:[%s7 + $0x10] sm:$0xff]
        %v4221 = vld [vmem:[%s7 + $0x18] sm:$0xff]
        %v4222 = vld [vmem:[%s7 + $0x20] sm:$0xff]
        %v4223 = vld [vmem:[%s7 + $0x28] sm:$0xff]
        %v4224 = vld [vmem:[%s7 + $0x30] sm:$0xff]
        %v4225 = vld [vmem:[%s7 + $0x38] sm:$0xff]
        %v4226 = vld [vmem:[%s7 + $0x40] sm:$0xff]
        %v4227 = vld [vmem:[%s7 + $0x48] sm:$0xff]
        %v4228 = vld [vmem:[%s7 + $0x50] sm:$0xff]
        %v4229 = vld [vmem:[%s7 + $0x58] sm:$0xff]
        %v4230 = vld [vmem:[%s7 + $0x60] sm:$0xff]
        %v4231 = vld [vmem:[%s7 + $0x68] sm:$0xff]
        %v4232 = vld [vmem:[%s7 + $0x70] sm:$0xff]
        %v4233 = vld [vmem:[%s7 + $0x78] sm:$0xff]
        %v4234 = vld [vmem:[%s7 + $0x80] sm:$0xff]
        %v4235 = vld [vmem:[%s7 + $0x88] sm:$0xff]
        %v4236 = vld [vmem:[%s7 + $0x90] sm:$0xff]
        %v4237 = vld [vmem:[%s7 + $0x98] sm:$0xff]
        %v4238 = vld [vmem:[%s7 + $0xa0] sm:$0xff]
        %v4239 = vld [vmem:[%s7 + $0xa8] sm:$0xff]
        %v4240 = vld [vmem:[%s7 + $0xb0] sm:$0xff]
        %v4241 = vld [vmem:[%s7 + $0xb8] sm:$0xff]
        %v4242 = vld [vmem:[%s7 + $0xc0] sm:$0xff]
        %v4243 = vld [vmem:[%s7 + $0xc8] sm:$0xff]
        %v4244 = vld [vmem:[%s7 + $0xd0] sm:$0xff]
        %v4245 = vld [vmem:[%s7 + $0xd8] sm:$0xff]
        %v4246 = vld [vmem:[%s7 + $0xe0] sm:$0xff]
        %v4247 = vld [vmem:[%s7 + $0xe8] sm:$0xff]
        %v4248 = vld [vmem:[%s7 + $0xf0] sm:$0xff]
        %v4249 = vld [vmem:[%s7 + $0xf8] sm:$0xff]
        %v4250 = vld [vmem:[%s7 + $0x100] sm:$0xff]
        %v4251 = vld [vmem:[%s7 + $0x108] sm:$0xff]
        %v4252 = vld [vmem:[%s7 + $0x110] sm:$0xff]
        %v4253 = vld [vmem:[%s7 + $0x118] sm:$0xff]
        %4255 = vset.pattern.permute.xlu0 0
        %4256 = vperm.xlu0 %4255, %v4218
        %v4257 = vpop.permute.xlu0 %4256
        %4260 = vset.pattern.permute.xlu0 0
        %4261 = vperm.xlu0 %4260, %v4219
        %v4262 = vpop.permute.xlu0 %4261
        %4265 = vset.pattern.permute.xlu0 0
        %4266 = vperm.xlu0 %4265, %v4220
        %v4267 = vpop.permute.xlu0 %4266
        %4270 = vset.pattern.permute.xlu0 0
        %4271 = vperm.xlu0 %4270, %v4221
        %v4272 = vpop.permute.xlu0 %4271
        %4275 = vset.pattern.permute.xlu0 0
        %4276 = vperm.xlu0 %4275, %v4222
        %v4277 = vpop.permute.xlu0 %4276
        %4280 = vset.pattern.permute.xlu0 0
        %4281 = vperm.xlu0 %4280, %v4223
        %v4282 = vpop.permute.xlu0 %4281
        %4285 = vset.pattern.permute.xlu0 0
        %4286 = vperm.xlu0 %4285, %v4224
        %v4287 = vpop.permute.xlu0 %4286
        %4290 = vset.pattern.permute.xlu0 0
        %4291 = vperm.xlu0 %4290, %v4225
        %v4292 = vpop.permute.xlu0 %4291
        %4295 = vset.pattern.permute.xlu0 0
        %4296 = vperm.xlu0 %4295, %v4226
        %v4297 = vpop.permute.xlu0 %4296
        %4300 = vset.pattern.permute.xlu0 0
        %4301 = vperm.xlu0 %4300, %v4227
        %v4302 = vpop.permute.xlu0 %4301
        %4305 = vset.pattern.permute.xlu0 0
        %4306 = vperm.xlu0 %4305, %v4228
        %v4307 = vpop.permute.xlu0 %4306
        %4310 = vset.pattern.permute.xlu0 0
        %4311 = vperm.xlu0 %4310, %v4229
        %v4312 = vpop.permute.xlu0 %4311
        %4315 = vset.pattern.permute.xlu0 0
        %4316 = vperm.xlu0 %4315, %v4230
        %v4317 = vpop.permute.xlu0 %4316
        %4320 = vset.pattern.permute.xlu0 0
        %4321 = vperm.xlu0 %4320, %v4231
        %v4322 = vpop.permute.xlu0 %4321
        %4325 = vset.pattern.permute.xlu0 0
        %4326 = vperm.xlu0 %4325, %v4232
        %v4327 = vpop.permute.xlu0 %4326
        %4330 = vset.pattern.permute.xlu0 0
        %4331 = vperm.xlu0 %4330, %v4233
        %v4332 = vpop.permute.xlu0 %4331
        %4335 = vset.pattern.permute.xlu0 0
        %4336 = vperm.xlu0 %4335, %v4234
        %v4337 = vpop.permute.xlu0 %4336
        %4340 = vset.pattern.permute.xlu0 0
        %4341 = vperm.xlu0 %4340, %v4235
        %v4342 = vpop.permute.xlu0 %4341
        %4345 = vset.pattern.permute.xlu0 0
        %4346 = vperm.xlu0 %4345, %v4236
        %v4347 = vpop.permute.xlu0 %4346
        %4350 = vset.pattern.permute.xlu0 0
        %4351 = vperm.xlu0 %4350, %v4237
        %v4352 = vpop.permute.xlu0 %4351
        %4355 = vset.pattern.permute.xlu0 0
        %4356 = vperm.xlu0 %4355, %v4238
        %v4357 = vpop.permute.xlu0 %4356
        %4360 = vset.pattern.permute.xlu0 0
        %4361 = vperm.xlu0 %4360, %v4239
        %v4362 = vpop.permute.xlu0 %4361
        %4365 = vset.pattern.permute.xlu0 0
        %4366 = vperm.xlu0 %4365, %v4240
        %v4367 = vpop.permute.xlu0 %4366
        %4370 = vset.pattern.permute.xlu0 0
        %4371 = vperm.xlu0 %4370, %v4241
        %v4372 = vpop.permute.xlu0 %4371
        %4375 = vset.pattern.permute.xlu0 0
        %4376 = vperm.xlu0 %4375, %v4242
        %v4377 = vpop.permute.xlu0 %4376
        %4380 = vset.pattern.permute.xlu0 0
        %4381 = vperm.xlu0 %4380, %v4243
        %v4382 = vpop.permute.xlu0 %4381
        %4385 = vset.pattern.permute.xlu0 0
        %4386 = vperm.xlu0 %4385, %v4244
        %v4387 = vpop.permute.xlu0 %4386
        %4390 = vset.pattern.permute.xlu0 0
        %4391 = vperm.xlu0 %4390, %v4245
        %v4392 = vpop.permute.xlu0 %4391
        %4395 = vset.pattern.permute.xlu0 0
        %4396 = vperm.xlu0 %4395, %v4246
        %v4397 = vpop.permute.xlu0 %4396
        %4400 = vset.pattern.permute.xlu0 0
        %4401 = vperm.xlu0 %4400, %v4247
        %v4402 = vpop.permute.xlu0 %4401
        %4405 = vset.pattern.permute.xlu0 0
        %4406 = vperm.xlu0 %4405, %v4248
        %v4407 = vpop.permute.xlu0 %4406
        %4410 = vset.pattern.permute.xlu0 0
        %4411 = vperm.xlu0 %4410, %v4249
        %v4412 = vpop.permute.xlu0 %4411
        %4415 = vset.pattern.permute.xlu0 0
        %4416 = vperm.xlu0 %4415, %v4250
        %v4417 = vpop.permute.xlu0 %4416
        %4420 = vset.pattern.permute.xlu0 0
        %4421 = vperm.xlu0 %4420, %v4251
        %v4422 = vpop.permute.xlu0 %4421
        %4425 = vset.pattern.permute.xlu0 0
        %4426 = vperm.xlu0 %4425, %v4252
        %v4427 = vpop.permute.xlu0 %4426
        %4430 = vset.pattern.permute.xlu0 0
        %4431 = vperm.xlu0 %4430, %v4253
        %v4432 = vpop.permute.xlu0 %4431
        %v4434 = vmul.f32 %v4182, %v4257
        %v4435 = vmul.f32 %v4183, %v4262
        %v4436 = vmul.f32 %v4184, %v4267
        %v4437 = vmul.f32 %v4185, %v4272
        %v4438 = vmul.f32 %v4186, %v4277
        %v4439 = vmul.f32 %v4187, %v4282
        %v4440 = vmul.f32 %v4188, %v4287
        %v4441 = vmul.f32 %v4189, %v4292
        %v4442 = vmul.f32 %v4190, %v4297
        %v4443 = vmul.f32 %v4191, %v4302
        %v4444 = vmul.f32 %v4192, %v4307
        %v4445 = vmul.f32 %v4193, %v4312
        %v4446 = vmul.f32 %v4194, %v4317
        %v4447 = vmul.f32 %v4195, %v4322
        %v4448 = vmul.f32 %v4196, %v4327
        %v4449 = vmul.f32 %v4197, %v4332
        %v4450 = vmul.f32 %v4198, %v4337
        %v4451 = vmul.f32 %v4199, %v4342
        %v4452 = vmul.f32 %v4200, %v4347
        %v4453 = vmul.f32 %v4201, %v4352
        %v4454 = vmul.f32 %v4202, %v4357
        %v4455 = vmul.f32 %v4203, %v4362
        %v4456 = vmul.f32 %v4204, %v4367
        %v4457 = vmul.f32 %v4205, %v4372
        %v4458 = vmul.f32 %v4206, %v4377
        %v4459 = vmul.f32 %v4207, %v4382
        %v4460 = vmul.f32 %v4208, %v4387
        %v4461 = vmul.f32 %v4209, %v4392
        %v4462 = vmul.f32 %v4210, %v4397
        %v4463 = vmul.f32 %v4211, %v4402
        %v4464 = vmul.f32 %v4212, %v4407
        %v4465 = vmul.f32 %v4213, %v4412
        %v4466 = vmul.f32 %v4214, %v4417
        %v4467 = vmul.f32 %v4215, %v4422
        %v4468 = vmul.f32 %v4216, %v4427
        %v4469 = vmul.f32 %v4217, %v4432
        %vm4470 = vcmask 130048
        %4471 = vst.msk [vmem:[#allocation2] sm:$0xff] %vm4470, 0.0
        %4472 = vst.msk [vmem:[#allocation2 + $0x8] sm:$0xff] %vm4470, 0.0
        %4473 = vst.msk [vmem:[#allocation2 + $0x10] sm:$0xff] %vm4470, 0.0
        %4474 = vst.msk [vmem:[#allocation2 + $0x18] sm:$0xff] %vm4470, 0.0
        %4475 = vst.msk [vmem:[#allocation2 + $0x20] sm:$0xff] %vm4470, 0.0
        %4476 = vst.msk [vmem:[#allocation2 + $0x28] sm:$0xff] %vm4470, 0.0
        %4477 = vst.msk [vmem:[#allocation2 + $0x30] sm:$0xff] %vm4470, 0.0
        %4478 = vst.msk [vmem:[#allocation2 + $0x38] sm:$0xff] %vm4470, 0.0
        %4479 = vst.msk [vmem:[#allocation2 + $0x40] sm:$0xff] %vm4470, 0.0
        %4480 = vst.msk [vmem:[#allocation2 + $0x48] sm:$0xff] %vm4470, 0.0
        %4481 = vst.msk [vmem:[#allocation2 + $0x50] sm:$0xff] %vm4470, 0.0
        %4482 = vst.msk [vmem:[#allocation2 + $0x58] sm:$0xff] %vm4470, 0.0
        %4483 = vst.msk [vmem:[#allocation2 + $0x60] sm:$0xff] %vm4470, 0.0
        %4484 = vst.msk [vmem:[#allocation2 + $0x68] sm:$0xff] %vm4470, 0.0
        %4485 = vst.msk [vmem:[#allocation2 + $0x70] sm:$0xff] %vm4470, 0.0
        %4486 = vst.msk [vmem:[#allocation2 + $0x78] sm:$0xff] %vm4470, 0.0
        %4487 = vst.msk [vmem:[#allocation2 + $0x80] sm:$0xff] %vm4470, 0.0
        %4488 = vst.msk [vmem:[#allocation2 + $0x88] sm:$0xff] %vm4470, 0.0
        %4489 = vst.msk [vmem:[#allocation2 + $0x90] sm:$0xff] %vm4470, 0.0
        %4490 = vst.msk [vmem:[#allocation2 + $0x98] sm:$0xff] %vm4470, 0.0
        %4491 = vst.msk [vmem:[#allocation2 + $0xa0] sm:$0xff] %vm4470, 0.0
        %4492 = vst.msk [vmem:[#allocation2 + $0xa8] sm:$0xff] %vm4470, 0.0
        %4493 = vst.msk [vmem:[#allocation2 + $0xb0] sm:$0xff] %vm4470, 0.0
        %4494 = vst.msk [vmem:[#allocation2 + $0xb8] sm:$0xff] %vm4470, 0.0
        %4495 = vst.msk [vmem:[#allocation2 + $0xc0] sm:$0xff] %vm4470, 0.0
        %4496 = vst.msk [vmem:[#allocation2 + $0xc8] sm:$0xff] %vm4470, 0.0
        %4497 = vst.msk [vmem:[#allocation2 + $0xd0] sm:$0xff] %vm4470, 0.0
        %4498 = vst.msk [vmem:[#allocation2 + $0xd8] sm:$0xff] %vm4470, 0.0
        %4499 = vst.msk [vmem:[#allocation2 + $0xe0] sm:$0xff] %vm4470, 0.0
        %4500 = vst.msk [vmem:[#allocation2 + $0xe8] sm:$0xff] %vm4470, 0.0
        %4501 = vst.msk [vmem:[#allocation2 + $0xf0] sm:$0xff] %vm4470, 0.0
        %4502 = vst.msk [vmem:[#allocation2 + $0xf8] sm:$0xff] %vm4470, 0.0
        %4503 = vst.msk [vmem:[#allocation2 + $0x100] sm:$0xff] %vm4470, 0.0
        %4504 = vst.msk [vmem:[#allocation2 + $0x108] sm:$0xff] %vm4470, 0.0
        %4505 = vst.msk [vmem:[#allocation2 + $0x110] sm:$0xff] %vm4470, 0.0
        %4506 = vst.msk [vmem:[#allocation2 + $0x118] sm:$0xff] %vm4470, 0.0
        %4507 = vst.msk [vmem:[#allocation2 + $0x120] sm:$0xff] %vm4470, 0.0
        %4508 = vst.msk [vmem:[#allocation2 + $0x128] sm:$0xff] %vm4470, 0.0
        %4509 = vst.msk [vmem:[#allocation2 + $0x130] sm:$0xff] %vm4470, 0.0
        %4510 = vst.msk [vmem:[#allocation2 + $0x138] sm:$0xff] %vm4470, 0.0
        %4511 = vst.msk [vmem:[#allocation2 + $0x140] sm:$0xff] %vm4470, 0.0
        %4512 = vst.msk [vmem:[#allocation2 + $0x13] sm:$0xff] %vm4470, %v4434
        %4513 = vst.msk [vmem:[#allocation2 + $0x1b] sm:$0xff] %vm4470, %v4435
        %4514 = vst.msk [vmem:[#allocation2 + $0x23] sm:$0xff] %vm4470, %v4436
        %4515 = vst.msk [vmem:[#allocation2 + $0x2b] sm:$0xff] %vm4470, %v4437
        %4516 = vst.msk [vmem:[#allocation2 + $0x33] sm:$0xff] %vm4470, %v4438
        %4517 = vst.msk [vmem:[#allocation2 + $0x3b] sm:$0xff] %vm4470, %v4439
        %4518 = vst.msk [vmem:[#allocation2 + $0x43] sm:$0xff] %vm4470, %v4440
        %4519 = vst.msk [vmem:[#allocation2 + $0x4b] sm:$0xff] %vm4470, %v4441
        %4520 = vst.msk [vmem:[#allocation2 + $0x53] sm:$0xff] %vm4470, %v4442
        %4521 = vst.msk [vmem:[#allocation2 + $0x5b] sm:$0xff] %vm4470, %v4443
        %4522 = vst.msk [vmem:[#allocation2 + $0x63] sm:$0xff] %vm4470, %v4444
        %4523 = vst.msk [vmem:[#allocation2 + $0x6b] sm:$0xff] %vm4470, %v4445
        %4524 = vst.msk [vmem:[#allocation2 + $0x73] sm:$0xff] %vm4470, %v4446
        %4525 = vst.msk [vmem:[#allocation2 + $0x7b] sm:$0xff] %vm4470, %v4447
        %4526 = vst.msk [vmem:[#allocation2 + $0x83] sm:$0xff] %vm4470, %v4448
        %4527 = vst.msk [vmem:[#allocation2 + $0x8b] sm:$0xff] %vm4470, %v4449
        %4528 = vst.msk [vmem:[#allocation2 + $0x93] sm:$0xff] %vm4470, %v4450
        %4529 = vst.msk [vmem:[#allocation2 + $0x9b] sm:$0xff] %vm4470, %v4451
        %4530 = vst.msk [vmem:[#allocation2 + $0xa3] sm:$0xff] %vm4470, %v4452
        %4531 = vst.msk [vmem:[#allocation2 + $0xab] sm:$0xff] %vm4470, %v4453
        %4532 = vst.msk [vmem:[#allocation2 + $0xb3] sm:$0xff] %vm4470, %v4454
        %4533 = vst.msk [vmem:[#allocation2 + $0xbb] sm:$0xff] %vm4470, %v4455
        %4534 = vst.msk [vmem:[#allocation2 + $0xc3] sm:$0xff] %vm4470, %v4456
        %4535 = vst.msk [vmem:[#allocation2 + $0xcb] sm:$0xff] %vm4470, %v4457
        %4536 = vst.msk [vmem:[#allocation2 + $0xd3] sm:$0xff] %vm4470, %v4458
        %4537 = vst.msk [vmem:[#allocation2 + $0xdb] sm:$0xff] %vm4470, %v4459
        %4538 = vst.msk [vmem:[#allocation2 + $0xe3] sm:$0xff] %vm4470, %v4460
        %4539 = vst.msk [vmem:[#allocation2 + $0xeb] sm:$0xff] %vm4470, %v4461
        %4540 = vst.msk [vmem:[#allocation2 + $0xf3] sm:$0xff] %vm4470, %v4462
        %4541 = vst.msk [vmem:[#allocation2 + $0xfb] sm:$0xff] %vm4470, %v4463
        %4542 = vst.msk [vmem:[#allocation2 + $0x103] sm:$0xff] %vm4470, %v4464
        %4543 = vst.msk [vmem:[#allocation2 + $0x10b] sm:$0xff] %vm4470, %v4465
        %4544 = vst.msk [vmem:[#allocation2 + $0x113] sm:$0xff] %vm4470, %v4466
        %4545 = vst.msk [vmem:[#allocation2 + $0x11b] sm:$0xff] %vm4470, %v4467
        %4546 = vst.msk [vmem:[#allocation2 + $0x123] sm:$0xff] %vm4470, %v4468
        %4547 = vst.msk [vmem:[#allocation2 + $0x12b] sm:$0xff] %vm4470, %v4469
        %v4548 = vld [vmem:[#allocation2] sm:$0xff]
        %v4549 = vld [vmem:[#allocation2 + $0x8] sm:$0xff]
        %v4550 = vld [vmem:[#allocation2 + $0x10] sm:$0xff]
        %v4551 = vld [vmem:[#allocation2 + $0x18] sm:$0xff]
        %v4552 = vld [vmem:[#allocation2 + $0x20] sm:$0xff]
        %v4553 = vld [vmem:[#allocation2 + $0x28] sm:$0xff]
        %v4554 = vld [vmem:[#allocation2 + $0x30] sm:$0xff]
        %v4555 = vld [vmem:[#allocation2 + $0x38] sm:$0xff]
        %v4556 = vld [vmem:[#allocation2 + $0x40] sm:$0xff]
        %v4557 = vld [vmem:[#allocation2 + $0x48] sm:$0xff]
        %v4558 = vld [vmem:[#allocation2 + $0x50] sm:$0xff]
        %v4559 = vld [vmem:[#allocation2 + $0x58] sm:$0xff]
        %v4560 = vld [vmem:[#allocation2 + $0x60] sm:$0xff]
        %v4561 = vld [vmem:[#allocation2 + $0x68] sm:$0xff]
        %v4562 = vld [vmem:[#allocation2 + $0x70] sm:$0xff]
        %v4563 = vld [vmem:[#allocation2 + $0x78] sm:$0xff]
        %v4564 = vld [vmem:[#allocation2 + $0x80] sm:$0xff]
        %v4565 = vld [vmem:[#allocation2 + $0x88] sm:$0xff]
        %v4566 = vld [vmem:[#allocation2 + $0x90] sm:$0xff]
        %v4567 = vld [vmem:[#allocation2 + $0x98] sm:$0xff]
        %v4568 = vld [vmem:[#allocation2 + $0xa0] sm:$0xff]
        %v4569 = vld [vmem:[#allocation2 + $0xa8] sm:$0xff]
        %v4570 = vld [vmem:[#allocation2 + $0xb0] sm:$0xff]
        %v4571 = vld [vmem:[#allocation2 + $0xb8] sm:$0xff]
        %v4572 = vld [vmem:[#allocation2 + $0xc0] sm:$0xff]
        %v4573 = vld [vmem:[#allocation2 + $0xc8] sm:$0xff]
        %v4574 = vld [vmem:[#allocation2 + $0xd0] sm:$0xff]
        %v4575 = vld [vmem:[#allocation2 + $0xd8] sm:$0xff]
        %v4576 = vld [vmem:[#allocation2 + $0xe0] sm:$0xff]
        %v4577 = vld [vmem:[#allocation2 + $0xe8] sm:$0xff]
        %v4578 = vld [vmem:[#allocation2 + $0xf0] sm:$0xff]
        %v4579 = vld [vmem:[#allocation2 + $0xf8] sm:$0xff]
        %v4580 = vld [vmem:[#allocation2 + $0x100] sm:$0xff]
        %v4581 = vld [vmem:[#allocation2 + $0x108] sm:$0xff]
        %v4582 = vld [vmem:[#allocation2 + $0x110] sm:$0xff]
        %v4583 = vld [vmem:[#allocation2 + $0x118] sm:$0xff]
        %v4584 = vld [vmem:[#allocation2 + $0x1] sm:$0xff]
        %v4585 = vld [vmem:[#allocation2 + $0x9] sm:$0xff]
        %v4586 = vld [vmem:[#allocation2 + $0x11] sm:$0xff]
        %v4587 = vld [vmem:[#allocation2 + $0x19] sm:$0xff]
        %v4588 = vld [vmem:[#allocation2 + $0x21] sm:$0xff]
        %v4589 = vld [vmem:[#allocation2 + $0x29] sm:$0xff]
        %v4590 = vld [vmem:[#allocation2 + $0x31] sm:$0xff]
        %v4591 = vld [vmem:[#allocation2 + $0x39] sm:$0xff]
        %v4592 = vld [vmem:[#allocation2 + $0x41] sm:$0xff]
        %v4593 = vld [vmem:[#allocation2 + $0x49] sm:$0xff]
        %v4594 = vld [vmem:[#allocation2 + $0x51] sm:$0xff]
        %v4595 = vld [vmem:[#allocation2 + $0x59] sm:$0xff]
        %v4596 = vld [vmem:[#allocation2 + $0x61] sm:$0xff]
        %v4597 = vld [vmem:[#allocation2 + $0x69] sm:$0xff]
        %v4598 = vld [vmem:[#allocation2 + $0x71] sm:$0xff]
        %v4599 = vld [vmem:[#allocation2 + $0x79] sm:$0xff]
        %v4600 = vld [vmem:[#allocation2 + $0x81] sm:$0xff]
        %v4601 = vld [vmem:[#allocation2 + $0x89] sm:$0xff]
        %v4602 = vld [vmem:[#allocation2 + $0x91] sm:$0xff]
        %v4603 = vld [vmem:[#allocation2 + $0x99] sm:$0xff]
        %v4604 = vld [vmem:[#allocation2 + $0xa1] sm:$0xff]
        %v4605 = vld [vmem:[#allocation2 + $0xa9] sm:$0xff]
        %v4606 = vld [vmem:[#allocation2 + $0xb1] sm:$0xff]
        %v4607 = vld [vmem:[#allocation2 + $0xb9] sm:$0xff]
        %v4608 = vld [vmem:[#allocation2 + $0xc1] sm:$0xff]
        %v4609 = vld [vmem:[#allocation2 + $0xc9] sm:$0xff]
        %v4610 = vld [vmem:[#allocation2 + $0xd1] sm:$0xff]
        %v4611 = vld [vmem:[#allocation2 + $0xd9] sm:$0xff]
        %v4612 = vld [vmem:[#allocation2 + $0xe1] sm:$0xff]
        %v4613 = vld [vmem:[#allocation2 + $0xe9] sm:$0xff]
        %v4614 = vld [vmem:[#allocation2 + $0xf1] sm:$0xff]
        %v4615 = vld [vmem:[#allocation2 + $0xf9] sm:$0xff]
        %v4616 = vld [vmem:[#allocation2 + $0x101] sm:$0xff]
        %v4617 = vld [vmem:[#allocation2 + $0x109] sm:$0xff]
        %v4618 = vld [vmem:[#allocation2 + $0x111] sm:$0xff]
        %v4619 = vld [vmem:[#allocation2 + $0x119] sm:$0xff]
        %v4621 = vsel %vm4470, %v4584, 0
        %v4624 = vsel %vm4470, %v4585, 0
        %v4627 = vsel %vm4470, %v4586, 0
        %v4630 = vsel %vm4470, %v4587, 0
        %v4633 = vsel %vm4470, %v4588, 0
        %v4636 = vsel %vm4470, %v4589, 0
        %v4639 = vsel %vm4470, %v4590, 0
        %v4642 = vsel %vm4470, %v4591, 0
        %v4645 = vsel %vm4470, %v4592, 0
        %v4648 = vsel %vm4470, %v4593, 0
        %v4651 = vsel %vm4470, %v4594, 0
        %v4654 = vsel %vm4470, %v4595, 0
        %v4657 = vsel %vm4470, %v4596, 0
        %v4660 = vsel %vm4470, %v4597, 0
        %v4663 = vsel %vm4470, %v4598, 0
        %v4666 = vsel %vm4470, %v4599, 0
        %v4669 = vsel %vm4470, %v4600, 0
        %v4672 = vsel %vm4470, %v4601, 0
        %v4675 = vsel %vm4470, %v4602, 0
        %v4678 = vsel %vm4470, %v4603, 0
        %v4681 = vsel %vm4470, %v4604, 0
        %v4684 = vsel %vm4470, %v4605, 0
        %v4687 = vsel %vm4470, %v4606, 0
        %v4690 = vsel %vm4470, %v4607, 0
        %v4693 = vsel %vm4470, %v4608, 0
        %v4696 = vsel %vm4470, %v4609, 0
        %v4699 = vsel %vm4470, %v4610, 0
        %v4702 = vsel %vm4470, %v4611, 0
        %v4705 = vsel %vm4470, %v4612, 0
        %v4708 = vsel %vm4470, %v4613, 0
        %v4711 = vsel %vm4470, %v4614, 0
        %v4714 = vsel %vm4470, %v4615, 0
        %v4717 = vsel %vm4470, %v4616, 0
        %v4720 = vsel %vm4470, %v4617, 0
        %v4723 = vsel %vm4470, %v4618, 0
        %v4726 = vsel %vm4470, %v4619, 0
        %4728 = vmatprep.subr.mxu0 0.0
        %4729 = vmatpush1.msra.mxu0 %v341
        %4730 = vmatprep.subr.mxu0 0.0
        %4731 = vmatpush1.msra.mxu0 %v342
        %4732 = vmatprep.subr.mxu0 0.0
        %4733 = vmatpush1.msra.mxu0 0.0
        %4734 = vmatprep.subr.mxu0 0.0
        %4735 = vmatpush1.msra.mxu0 0.0
        %4736 = vmatprep.subr.mxu0 0.0
        %4737 = vmatpush1.msra.mxu0 0.0
        %4738 = vmatprep.subr.mxu0 0.0
        %4739 = vmatpush1.msra.mxu0 0.0
        %4740 = vmatprep.subr.mxu0 0.0
        %4741 = vmatpush1.msra.mxu0 0.0
        %4742 = vmatprep.subr.mxu0 0.0
        %4743 = vmatpush1.msra.mxu0 0.0
        %4744 = vmatprep.subr.mxu0 0.0
        %4745 = vmatpush1.msra.mxu0 0.0
        %4746 = vmatprep.subr.mxu0 0.0
        %4747 = vmatpush1.msra.mxu0 0.0
        %4748 = vmatprep.subr.mxu0 0.0
        %4749 = vmatpush1.msra.mxu0 0.0
        %4750 = vmatprep.subr.mxu0 0.0
        %4751 = vmatpush1.msra.mxu0 0.0
        %4752 = vmatprep.subr.mxu0 0.0
        %4753 = vmatpush1.msra.mxu0 0.0
        %4754 = vmatprep.subr.mxu0 0.0
        %4755 = vmatpush1.msra.mxu0 0.0
        %4756 = vmatprep.subr.mxu0 0.0
        %4757 = vmatpush1.msra.mxu0 0.0
        %4758 = vmatprep.subr.mxu0 0.0
        %4759 = vmatpush1.msra.mxu0 0.0
        %4760 = vmatprep.subr.mxu0 0.0
        %4761 = vmatpush1.msra.mxu0 0.0
        %4762 = vmatprep.subr.mxu0 0.0
        %4763 = vmatpush1.msra.mxu0 0.0
        %4764 = vmatprep.subr.mxu0 0.0
        %4765 = vmatpush1.msra.mxu0 0.0
        %4766 = vmatprep.subr.mxu0 0.0
        %4767 = vmatpush1.msra.mxu0 0.0
        %4768 = vmatprep.subr.mxu0 0.0
        %4769 = vmatpush1.msra.mxu0 0.0
        %4770 = vmatprep.subr.mxu0 0.0
        %4771 = vmatpush1.msra.mxu0 0.0
        %4772 = vmatprep.subr.mxu0 0.0
        %4773 = vmatpush1.msra.mxu0 0.0
        %4774 = vmatprep.subr.mxu0 0.0
        %4775 = vmatpush1.msra.mxu0 0.0
        %4776 = vmatprep.subr.mxu0 0.0
        %4777 = vmatpush1.msra.mxu0 0.0
        %4778 = vmatprep.subr.mxu0 0.0
        %4779 = vmatpush1.msra.mxu0 0.0
        %4780 = vmatprep.subr.mxu0 0.0
        %4781 = vmatpush1.msra.mxu0 0.0
        %4782 = vmatprep.subr.mxu0 0.0
        %4783 = vmatpush1.msra.mxu0 0.0
        %4784 = vmatprep.subr.mxu0 0.0
        %4785 = vmatpush1.msra.mxu0 0.0
        %4786 = vmatprep.subr.mxu0 0.0
        %4787 = vmatpush1.msra.mxu0 0.0
        %4788 = vmatprep.subr.mxu0 0.0
        %4789 = vmatpush1.msra.mxu0 0.0
        %4790 = vmatprep.subr.mxu0 0.0
        %4791 = vmatpush1.msra.mxu0 0.0
        %4792 = vmatprep.mubr.f32.mxu0 0.0
        %4793 = vmatmul.mubr.f32.gmra.mrb[0].mxu0 %v4621
        %v4794 = vpop.f32.mrb[0].mxu0
        %v4795 = vadd.f32 0.0, %v4794
        %v4796 = vpop.f32.mrb[0].mxu0
        %4797 = vmatprep.mubr.f32.mxu0 0.0
        %4798 = vmatmul.mubr.f32.gmra.mrb[0].mxu0 %v4624
        %v4799 = vpop.f32.mrb[0].mxu0
        %v4800 = vadd.f32 0.0, %v4799
        %v4801 = vpop.f32.mrb[0].mxu0
        %4802 = vmatprep.mubr.f32.mxu0 0.0
        %4803 = vmatmul.mubr.f32.gmra.mrb[0].mxu0 %v4627
        %v4804 = vpop.f32.mrb[0].mxu0
        %v4805 = vadd.f32 0.0, %v4804
        %v4806 = vpop.f32.mrb[0].mxu0
        %4807 = vmatprep.mubr.f32.mxu0 0.0
        %4808 = vmatmul.mubr.f32.gmra.mrb[0].mxu0 %v4630
        %v4809 = vpop.f32.mrb[0].mxu0
        %v4810 = vadd.f32 0.0, %v4809
        %v4811 = vpop.f32.mrb[0].mxu0
        %4812 = vmatprep.mubr.f32.mxu0 0.0
        %4813 = vmatmul.mubr.f32.gmra.mrb[0].mxu0 %v4633
        %v4814 = vpop.f32.mrb[0].mxu0
        %v4815 = vadd.f32 0.0, %v4814
        %v4816 = vpop.f32.mrb[0].mxu0
        %4817 = vmatprep.mubr.f32.mxu0 0.0
        %4818 = vmatmul.mubr.f32.gmra.mrb[0].mxu0 %v4636
        %v4819 = vpop.f32.mrb[0].mxu0
        %v4820 = vadd.f32 0.0, %v4819
        %v4821 = vpop.f32.mrb[0].mxu0
        %4822 = vmatprep.mubr.f32.mxu0 0.0
        %4823 = vmatmul.mubr.f32.gmra.mrb[0].mxu0 %v4639
        %v4824 = vpop.f32.mrb[0].mxu0
        %v4825 = vadd.f32 0.0, %v4824
        %v4826 = vpop.f32.mrb[0].mxu0
        %4827 = vmatprep.mubr.f32.mxu0 0.0
        %4828 = vmatmul.mubr.f32.gmra.mrb[0].mxu0 %v4642
        %v4829 = vpop.f32.mrb[0].mxu0
        %v4830 = vadd.f32 0.0, %v4829
        %v4831 = vpop.f32.mrb[0].mxu0
        %4832 = vmatprep.mubr.f32.mxu0 0.0
        %4833 = vmatmul.mubr.f32.gmra.mrb[0].mxu0 %v4645
        %v4834 = vpop.f32.mrb[0].mxu0
        %v4835 = vadd.f32 0.0, %v4834
        %v4836 = vpop.f32.mrb[0].mxu0
        %4837 = vmatprep.mubr.f32.mxu0 0.0
        %4838 = vmatmul.mubr.f32.gmra.mrb[0].mxu0 %v4648
        %v4839 = vpop.f32.mrb[0].mxu0
        %v4840 = vadd.f32 0.0, %v4839
        %v4841 = vpop.f32.mrb[0].mxu0
        %4842 = vmatprep.mubr.f32.mxu0 0.0
        %4843 = vmatmul.mubr.f32.gmra.mrb[0].mxu0 %v4651
        %v4844 = vpop.f32.mrb[0].mxu0
        %v4845 = vadd.f32 0.0, %v4844
        %v4846 = vpop.f32.mrb[0].mxu0
        %4847 = vmatprep.mubr.f32.mxu0 0.0
        %4848 = vmatmul.mubr.f32.gmra.mrb[0].mxu0 %v4654
        %v4849 = vpop.f32.mrb[0].mxu0
        %v4850 = vadd.f32 0.0, %v4849
        %v4851 = vpop.f32.mrb[0].mxu0
        %4852 = vmatprep.mubr.f32.mxu0 0.0
        %4853 = vmatmul.mubr.f32.gmra.mrb[0].mxu0 %v4657
        %v4854 = vpop.f32.mrb[0].mxu0
        %v4855 = vadd.f32 0.0, %v4854
        %v4856 = vpop.f32.mrb[0].mxu0
        %4857 = vmatprep.mubr.f32.mxu0 0.0
        %4858 = vmatmul.mubr.f32.gmra.mrb[0].mxu0 %v4660
        %v4859 = vpop.f32.mrb[0].mxu0
        %v4860 = vadd.f32 0.0, %v4859
        %v4861 = vpop.f32.mrb[0].mxu0
        %4862 = vmatprep.mubr.f32.mxu0 0.0
        %4863 = vmatmul.mubr.f32.gmra.mrb[0].mxu0 %v4663
        %v4864 = vpop.f32.mrb[0].mxu0
        %v4865 = vadd.f32 0.0, %v4864
        %v4866 = vpop.f32.mrb[0].mxu0
        %4867 = vmatprep.mubr.f32.mxu0 0.0
        %4868 = vmatmul.mubr.f32.gmra.mrb[0].mxu0 %v4666
        %v4869 = vpop.f32.mrb[0].mxu0
        %v4870 = vadd.f32 0.0, %v4869
        %v4871 = vpop.f32.mrb[0].mxu0
        %4872 = vmatprep.mubr.f32.mxu0 0.0
        %4873 = vmatmul.mubr.f32.gmra.mrb[0].mxu0 %v4669
        %v4874 = vpop.f32.mrb[0].mxu0
        %v4875 = vadd.f32 0.0, %v4874
        %v4876 = vpop.f32.mrb[0].mxu0
        %4877 = vmatprep.mubr.f32.mxu0 0.0
        %4878 = vmatmul.mubr.f32.gmra.mrb[0].mxu0 %v4672
        %v4879 = vpop.f32.mrb[0].mxu0
        %v4880 = vadd.f32 0.0, %v4879
        %v4881 = vpop.f32.mrb[0].mxu0
        %4882 = vmatprep.mubr.f32.mxu0 0.0
        %4883 = vmatmul.mubr.f32.gmra.mrb[0].mxu0 %v4675
        %v4884 = vpop.f32.mrb[0].mxu0
        %v4885 = vadd.f32 0.0, %v4884
        %v4886 = vpop.f32.mrb[0].mxu0
        %4887 = vmatprep.mubr.f32.mxu0 0.0
        %4888 = vmatmul.mubr.f32.gmra.mrb[0].mxu0 %v4678
        %v4889 = vpop.f32.mrb[0].mxu0
        %v4890 = vadd.f32 0.0, %v4889
        %v4891 = vpop.f32.mrb[0].mxu0
        %4892 = vmatprep.mubr.f32.mxu0 0.0
        %4893 = vmatmul.mubr.f32.gmra.mrb[0].mxu0 %v4681
        %v4894 = vpop.f32.mrb[0].mxu0
        %v4895 = vadd.f32 0.0, %v4894
        %v4896 = vpop.f32.mrb[0].mxu0
        %4897 = vmatprep.mubr.f32.mxu0 0.0
        %4898 = vmatmul.mubr.f32.gmra.mrb[0].mxu0 %v4684
        %v4899 = vpop.f32.mrb[0].mxu0
        %v4900 = vadd.f32 0.0, %v4899
        %v4901 = vpop.f32.mrb[0].mxu0
        %4902 = vmatprep.mubr.f32.mxu0 0.0
        %4903 = vmatmul.mubr.f32.gmra.mrb[0].mxu0 %v4687
        %v4904 = vpop.f32.mrb[0].mxu0
        %v4905 = vadd.f32 0.0, %v4904
        %v4906 = vpop.f32.mrb[0].mxu0
        %4907 = vmatprep.mubr.f32.mxu0 0.0
        %4908 = vmatmul.mubr.f32.gmra.mrb[0].mxu0 %v4690
        %v4909 = vpop.f32.mrb[0].mxu0
        %v4910 = vadd.f32 0.0, %v4909
        %v4911 = vpop.f32.mrb[0].mxu0
        %4912 = vmatprep.mubr.f32.mxu0 0.0
        %4913 = vmatmul.mubr.f32.gmra.mrb[0].mxu0 %v4693
        %v4914 = vpop.f32.mrb[0].mxu0
        %v4915 = vadd.f32 0.0, %v4914
        %v4916 = vpop.f32.mrb[0].mxu0
        %4917 = vmatprep.mubr.f32.mxu0 0.0
        %4918 = vmatmul.mubr.f32.gmra.mrb[0].mxu0 %v4696
        %v4919 = vpop.f32.mrb[0].mxu0
        %v4920 = vadd.f32 0.0, %v4919
        %v4921 = vpop.f32.mrb[0].mxu0
        %4922 = vmatprep.mubr.f32.mxu0 0.0
        %4923 = vmatmul.mubr.f32.gmra.mrb[0].mxu0 %v4699
        %v4924 = vpop.f32.mrb[0].mxu0
        %v4925 = vadd.f32 0.0, %v4924
        %v4926 = vpop.f32.mrb[0].mxu0
        %4927 = vmatprep.mubr.f32.mxu0 0.0
        %4928 = vmatmul.mubr.f32.gmra.mrb[0].mxu0 %v4702
        %v4929 = vpop.f32.mrb[0].mxu0
        %v4930 = vadd.f32 0.0, %v4929
        %v4931 = vpop.f32.mrb[0].mxu0
        %4932 = vmatprep.mubr.f32.mxu0 0.0
        %4933 = vmatmul.mubr.f32.gmra.mrb[0].mxu0 %v4705
        %v4934 = vpop.f32.mrb[0].mxu0
        %v4935 = vadd.f32 0.0, %v4934
        %v4936 = vpop.f32.mrb[0].mxu0
        %4937 = vmatprep.mubr.f32.mxu0 0.0
        %4938 = vmatmul.mubr.f32.gmra.mrb[0].mxu0 %v4708
        %v4939 = vpop.f32.mrb[0].mxu0
        %v4940 = vadd.f32 0.0, %v4939
        %v4941 = vpop.f32.mrb[0].mxu0
        %4942 = vmatprep.mubr.f32.mxu0 0.0
        %4943 = vmatmul.mubr.f32.gmra.mrb[0].mxu0 %v4711
        %v4944 = vpop.f32.mrb[0].mxu0
        %v4945 = vadd.f32 0.0, %v4944
        %v4946 = vpop.f32.mrb[0].mxu0
        %4947 = vmatprep.mubr.f32.mxu0 0.0
        %4948 = vmatmul.mubr.f32.gmra.mrb[0].mxu0 %v4714
        %v4949 = vpop.f32.mrb[0].mxu0
        %v4950 = vadd.f32 0.0, %v4949
        %v4951 = vpop.f32.mrb[0].mxu0
        %4952 = vmatprep.mubr.f32.mxu0 0.0
        %4953 = vmatmul.mubr.f32.gmra.mrb[0].mxu0 %v4717
        %v4954 = vpop.f32.mrb[0].mxu0
        %v4955 = vadd.f32 0.0, %v4954
        %v4956 = vpop.f32.mrb[0].mxu0
        %4957 = vmatprep.mubr.f32.mxu0 0.0
        %4958 = vmatmul.mubr.f32.gmra.mrb[0].mxu0 %v4720
        %v4959 = vpop.f32.mrb[0].mxu0
        %v4960 = vadd.f32 0.0, %v4959
        %v4961 = vpop.f32.mrb[0].mxu0
        %4962 = vmatprep.mubr.f32.mxu0 0.0
        %4963 = vmatmul.mubr.f32.gmra.mrb[0].mxu0 %v4723
        %v4964 = vpop.f32.mrb[0].mxu0
        %v4965 = vadd.f32 0.0, %v4964
        %v4966 = vpop.f32.mrb[0].mxu0
        %4967 = vmatprep.mubr.f32.mxu0 0.0
        %4968 = vmatmul.mubr.f32.gmra.mrb[0].mxu0 %v4726
        %v4969 = vpop.f32.mrb[0].mxu0
        %v4970 = vadd.f32 0.0, %v4969
        %v4971 = vpop.f32.mrb[0].mxu0
        %4972 = vdwg.mxu0
        %v4974 = vsel %vm4470, %v4548, 0
        %v4977 = vsel %vm4470, %v4549, 0
        %v4980 = vsel %vm4470, %v4550, 0
        %v4983 = vsel %vm4470, %v4551, 0
        %v4986 = vsel %vm4470, %v4552, 0
        %v4989 = vsel %vm4470, %v4553, 0
        %v4992 = vsel %vm4470, %v4554, 0
        %v4995 = vsel %vm4470, %v4555, 0
        %v4998 = vsel %vm4470, %v4556, 0
        %v5001 = vsel %vm4470, %v4557, 0
        %v5004 = vsel %vm4470, %v4558, 0
        %v5007 = vsel %vm4470, %v4559, 0
        %v5010 = vsel %vm4470, %v4560, 0
        %v5013 = vsel %vm4470, %v4561, 0
        %v5016 = vsel %vm4470, %v4562, 0
        %v5019 = vsel %vm4470, %v4563, 0
        %v5022 = vsel %vm4470, %v4564, 0
        %v5025 = vsel %vm4470, %v4565, 0
        %v5028 = vsel %vm4470, %v4566, 0
        %v5031 = vsel %vm4470, %v4567, 0
        %v5034 = vsel %vm4470, %v4568, 0
        %v5037 = vsel %vm4470, %v4569, 0
        %v5040 = vsel %vm4470, %v4570, 0
        %v5043 = vsel %vm4470, %v4571, 0
        %v5046 = vsel %vm4470, %v4572, 0
        %v5049 = vsel %vm4470, %v4573, 0
        %v5052 = vsel %vm4470, %v4574, 0
        %v5055 = vsel %vm4470, %v4575, 0
        %v5058 = vsel %vm4470, %v4576, 0
        %v5061 = vsel %vm4470, %v4577, 0
        %v5064 = vsel %vm4470, %v4578, 0
        %v5067 = vsel %vm4470, %v4579, 0
        %v5070 = vsel %vm4470, %v4580, 0
        %v5073 = vsel %vm4470, %v4581, 0
        %v5076 = vsel %vm4470, %v4582, 0
        %v5079 = vsel %vm4470, %v4583, 0
        %5081 = vmatprep.subr.mxu0 0.0
        %5082 = vmatpush1.msra.mxu0 %v339
        %5083 = vmatprep.subr.mxu0 0.0
        %5084 = vmatpush1.msra.mxu0 %v340
        %5085 = vmatprep.subr.mxu0 0.0
        %5086 = vmatpush1.msra.mxu0 0.0
        %5087 = vmatprep.subr.mxu0 0.0
        %5088 = vmatpush1.msra.mxu0 0.0
        %5089 = vmatprep.subr.mxu0 0.0
        %5090 = vmatpush1.msra.mxu0 0.0
        %5091 = vmatprep.subr.mxu0 0.0
        %5092 = vmatpush1.msra.mxu0 0.0
        %5093 = vmatprep.subr.mxu0 0.0
        %5094 = vmatpush1.msra.mxu0 0.0
        %5095 = vmatprep.subr.mxu0 0.0
        %5096 = vmatpush1.msra.mxu0 0.0
        %5097 = vmatprep.subr.mxu0 0.0
        %5098 = vmatpush1.msra.mxu0 0.0
        %5099 = vmatprep.subr.mxu0 0.0
        %5100 = vmatpush1.msra.mxu0 0.0
        %5101 = vmatprep.subr.mxu0 0.0
        %5102 = vmatpush1.msra.mxu0 0.0
        %5103 = vmatprep.subr.mxu0 0.0
        %5104 = vmatpush1.msra.mxu0 0.0
        %5105 = vmatprep.subr.mxu0 0.0
        %5106 = vmatpush1.msra.mxu0 0.0
        %5107 = vmatprep.subr.mxu0 0.0
        %5108 = vmatpush1.msra.mxu0 0.0
        %5109 = vmatprep.subr.mxu0 0.0
        %5110 = vmatpush1.msra.mxu0 0.0
        %5111 = vmatprep.subr.mxu0 0.0
        %5112 = vmatpush1.msra.mxu0 0.0
        %5113 = vmatprep.subr.mxu0 0.0
        %5114 = vmatpush1.msra.mxu0 0.0
        %5115 = vmatprep.subr.mxu0 0.0
        %5116 = vmatpush1.msra.mxu0 0.0
        %5117 = vmatprep.subr.mxu0 0.0
        %5118 = vmatpush1.msra.mxu0 0.0
        %5119 = vmatprep.subr.mxu0 0.0
        %5120 = vmatpush1.msra.mxu0 0.0
        %5121 = vmatprep.subr.mxu0 0.0
        %5122 = vmatpush1.msra.mxu0 0.0
        %5123 = vmatprep.subr.mxu0 0.0
        %5124 = vmatpush1.msra.mxu0 0.0
        %5125 = vmatprep.subr.mxu0 0.0
        %5126 = vmatpush1.msra.mxu0 0.0
        %5127 = vmatprep.subr.mxu0 0.0
        %5128 = vmatpush1.msra.mxu0 0.0
        %5129 = vmatprep.subr.mxu0 0.0
        %5130 = vmatpush1.msra.mxu0 0.0
        %5131 = vmatprep.subr.mxu0 0.0
        %5132 = vmatpush1.msra.mxu0 0.0
        %5133 = vmatprep.subr.mxu0 0.0
        %5134 = vmatpush1.msra.mxu0 0.0
        %5135 = vmatprep.subr.mxu0 0.0
        %5136 = vmatpush1.msra.mxu0 0.0
        %5137 = vmatprep.subr.mxu0 0.0
        %5138 = vmatpush1.msra.mxu0 0.0
        %5139 = vmatprep.subr.mxu0 0.0
        %5140 = vmatpush1.msra.mxu0 0.0
        %5141 = vmatprep.subr.mxu0 0.0
        %5142 = vmatpush1.msra.mxu0 0.0
        %5143 = vmatprep.subr.mxu0 0.0
        %5144 = vmatpush1.msra.mxu0 0.0
        %5145 = vmatprep.mubr.f32.mxu0 0.0
        %5146 = vmatmul.mubr.f32.gmra.mrb[0].mxu0 %v4974
        %v5147 = vpop.f32.mrb[0].mxu0
        %v5148 = vadd.f32 %v4795, %v5147
        %v5149 = vpop.f32.mrb[0].mxu0
        %5150 = vmatprep.mubr.f32.mxu0 0.0
        %5151 = vmatmul.mubr.f32.gmra.mrb[0].mxu0 %v4977
        %v5152 = vpop.f32.mrb[0].mxu0
        %v5153 = vadd.f32 %v4800, %v5152
        %v5154 = vpop.f32.mrb[0].mxu0
        %5155 = vmatprep.mubr.f32.mxu0 0.0
        %5156 = vmatmul.mubr.f32.gmra.mrb[0].mxu0 %v4980
        %v5157 = vpop.f32.mrb[0].mxu0
        %v5158 = vadd.f32 %v4805, %v5157
        %v5159 = vpop.f32.mrb[0].mxu0
        %5160 = vmatprep.mubr.f32.mxu0 0.0
        %5161 = vmatmul.mubr.f32.gmra.mrb[0].mxu0 %v4983
        %v5162 = vpop.f32.mrb[0].mxu0
        %v5163 = vadd.f32 %v4810, %v5162
        %v5164 = vpop.f32.mrb[0].mxu0
        %5165 = vmatprep.mubr.f32.mxu0 0.0
        %5166 = vmatmul.mubr.f32.gmra.mrb[0].mxu0 %v4986
        %v5167 = vpop.f32.mrb[0].mxu0
        %v5168 = vadd.f32 %v4815, %v5167
        %v5169 = vpop.f32.mrb[0].mxu0
        %5170 = vmatprep.mubr.f32.mxu0 0.0
        %5171 = vmatmul.mubr.f32.gmra.mrb[0].mxu0 %v4989
        %v5172 = vpop.f32.mrb[0].mxu0
        %v5173 = vadd.f32 %v4820, %v5172
        %v5174 = vpop.f32.mrb[0].mxu0
        %5175 = vmatprep.mubr.f32.mxu0 0.0
        %5176 = vmatmul.mubr.f32.gmra.mrb[0].mxu0 %v4992
        %v5177 = vpop.f32.mrb[0].mxu0
        %v5178 = vadd.f32 %v4825, %v5177
        %v5179 = vpop.f32.mrb[0].mxu0
        %5180 = vmatprep.mubr.f32.mxu0 0.0
        %5181 = vmatmul.mubr.f32.gmra.mrb[0].mxu0 %v4995
        %v5182 = vpop.f32.mrb[0].mxu0
        %v5183 = vadd.f32 %v4830, %v5182
        %v5184 = vpop.f32.mrb[0].mxu0
        %5185 = vmatprep.mubr.f32.mxu0 0.0
        %5186 = vmatmul.mubr.f32.gmra.mrb[0].mxu0 %v4998
        %v5187 = vpop.f32.mrb[0].mxu0
        %v5188 = vadd.f32 %v4835, %v5187
        %v5189 = vpop.f32.mrb[0].mxu0
        %5190 = vmatprep.mubr.f32.mxu0 0.0
        %5191 = vmatmul.mubr.f32.gmra.mrb[0].mxu0 %v5001
        %v5192 = vpop.f32.mrb[0].mxu0
        %v5193 = vadd.f32 %v4840, %v5192
        %v5194 = vpop.f32.mrb[0].mxu0
        %5195 = vmatprep.mubr.f32.mxu0 0.0
        %5196 = vmatmul.mubr.f32.gmra.mrb[0].mxu0 %v5004
        %v5197 = vpop.f32.mrb[0].mxu0
        %v5198 = vadd.f32 %v4845, %v5197
        %v5199 = vpop.f32.mrb[0].mxu0
        %5200 = vmatprep.mubr.f32.mxu0 0.0
        %5201 = vmatmul.mubr.f32.gmra.mrb[0].mxu0 %v5007
        %v5202 = vpop.f32.mrb[0].mxu0
        %v5203 = vadd.f32 %v4850, %v5202
        %v5204 = vpop.f32.mrb[0].mxu0
        %5205 = vmatprep.mubr.f32.mxu0 0.0
        %5206 = vmatmul.mubr.f32.gmra.mrb[0].mxu0 %v5010
        %v5207 = vpop.f32.mrb[0].mxu0
        %v5208 = vadd.f32 %v4855, %v5207
        %v5209 = vpop.f32.mrb[0].mxu0
        %5210 = vmatprep.mubr.f32.mxu0 0.0
        %5211 = vmatmul.mubr.f32.gmra.mrb[0].mxu0 %v5013
        %v5212 = vpop.f32.mrb[0].mxu0
        %v5213 = vadd.f32 %v4860, %v5212
        %v5214 = vpop.f32.mrb[0].mxu0
        %5215 = vmatprep.mubr.f32.mxu0 0.0
        %5216 = vmatmul.mubr.f32.gmra.mrb[0].mxu0 %v5016
        %v5217 = vpop.f32.mrb[0].mxu0
        %v5218 = vadd.f32 %v4865, %v5217
        %v5219 = vpop.f32.mrb[0].mxu0
        %5220 = vmatprep.mubr.f32.mxu0 0.0
        %5221 = vmatmul.mubr.f32.gmra.mrb[0].mxu0 %v5019
        %v5222 = vpop.f32.mrb[0].mxu0
        %v5223 = vadd.f32 %v4870, %v5222
        %v5224 = vpop.f32.mrb[0].mxu0
        %5225 = vmatprep.mubr.f32.mxu0 0.0
        %5226 = vmatmul.mubr.f32.gmra.mrb[0].mxu0 %v5022
        %v5227 = vpop.f32.mrb[0].mxu0
        %v5228 = vadd.f32 %v4875, %v5227
        %v5229 = vpop.f32.mrb[0].mxu0
        %5230 = vmatprep.mubr.f32.mxu0 0.0
        %5231 = vmatmul.mubr.f32.gmra.mrb[0].mxu0 %v5025
        %v5232 = vpop.f32.mrb[0].mxu0
        %v5233 = vadd.f32 %v4880, %v5232
        %v5234 = vpop.f32.mrb[0].mxu0
        %5235 = vmatprep.mubr.f32.mxu0 0.0
        %5236 = vmatmul.mubr.f32.gmra.mrb[0].mxu0 %v5028
        %v5237 = vpop.f32.mrb[0].mxu0
        %v5238 = vadd.f32 %v4885, %v5237
        %v5239 = vpop.f32.mrb[0].mxu0
        %5240 = vmatprep.mubr.f32.mxu0 0.0
        %5241 = vmatmul.mubr.f32.gmra.mrb[0].mxu0 %v5031
        %v5242 = vpop.f32.mrb[0].mxu0
        %v5243 = vadd.f32 %v4890, %v5242
        %v5244 = vpop.f32.mrb[0].mxu0
        %5245 = vmatprep.mubr.f32.mxu0 0.0
        %5246 = vmatmul.mubr.f32.gmra.mrb[0].mxu0 %v5034
        %v5247 = vpop.f32.mrb[0].mxu0
        %v5248 = vadd.f32 %v4895, %v5247
        %v5249 = vpop.f32.mrb[0].mxu0
        %5250 = vmatprep.mubr.f32.mxu0 0.0
        %5251 = vmatmul.mubr.f32.gmra.mrb[0].mxu0 %v5037
        %v5252 = vpop.f32.mrb[0].mxu0
        %v5253 = vadd.f32 %v4900, %v5252
        %v5254 = vpop.f32.mrb[0].mxu0
        %5255 = vmatprep.mubr.f32.mxu0 0.0
        %5256 = vmatmul.mubr.f32.gmra.mrb[0].mxu0 %v5040
        %v5257 = vpop.f32.mrb[0].mxu0
        %v5258 = vadd.f32 %v4905, %v5257
        %v5259 = vpop.f32.mrb[0].mxu0
        %5260 = vmatprep.mubr.f32.mxu0 0.0
        %5261 = vmatmul.mubr.f32.gmra.mrb[0].mxu0 %v5043
        %v5262 = vpop.f32.mrb[0].mxu0
        %v5263 = vadd.f32 %v4910, %v5262
        %v5264 = vpop.f32.mrb[0].mxu0
        %5265 = vmatprep.mubr.f32.mxu0 0.0
        %5266 = vmatmul.mubr.f32.gmra.mrb[0].mxu0 %v5046
        %v5267 = vpop.f32.mrb[0].mxu0
        %v5268 = vadd.f32 %v4915, %v5267
        %v5269 = vpop.f32.mrb[0].mxu0
        %5270 = vmatprep.mubr.f32.mxu0 0.0
        %5271 = vmatmul.mubr.f32.gmra.mrb[0].mxu0 %v5049
        %v5272 = vpop.f32.mrb[0].mxu0
        %v5273 = vadd.f32 %v4920, %v5272
        %v5274 = vpop.f32.mrb[0].mxu0
        %5275 = vmatprep.mubr.f32.mxu0 0.0
        %5276 = vmatmul.mubr.f32.gmra.mrb[0].mxu0 %v5052
        %v5277 = vpop.f32.mrb[0].mxu0
        %v5278 = vadd.f32 %v4925, %v5277
        %v5279 = vpop.f32.mrb[0].mxu0
        %5280 = vmatprep.mubr.f32.mxu0 0.0
        %5281 = vmatmul.mubr.f32.gmra.mrb[0].mxu0 %v5055
        %v5282 = vpop.f32.mrb[0].mxu0
        %v5283 = vadd.f32 %v4930, %v5282
        %v5284 = vpop.f32.mrb[0].mxu0
        %5285 = vmatprep.mubr.f32.mxu0 0.0
        %5286 = vmatmul.mubr.f32.gmra.mrb[0].mxu0 %v5058
        %v5287 = vpop.f32.mrb[0].mxu0
        %v5288 = vadd.f32 %v4935, %v5287
        %v5289 = vpop.f32.mrb[0].mxu0
        %5290 = vmatprep.mubr.f32.mxu0 0.0
        %5291 = vmatmul.mubr.f32.gmra.mrb[0].mxu0 %v5061
        %v5292 = vpop.f32.mrb[0].mxu0
        %v5293 = vadd.f32 %v4940, %v5292
        %v5294 = vpop.f32.mrb[0].mxu0
        %5295 = vmatprep.mubr.f32.mxu0 0.0
        %5296 = vmatmul.mubr.f32.gmra.mrb[0].mxu0 %v5064
        %v5297 = vpop.f32.mrb[0].mxu0
        %v5298 = vadd.f32 %v4945, %v5297
        %v5299 = vpop.f32.mrb[0].mxu0
        %5300 = vmatprep.mubr.f32.mxu0 0.0
        %5301 = vmatmul.mubr.f32.gmra.mrb[0].mxu0 %v5067
        %v5302 = vpop.f32.mrb[0].mxu0
        %v5303 = vadd.f32 %v4950, %v5302
        %v5304 = vpop.f32.mrb[0].mxu0
        %5305 = vmatprep.mubr.f32.mxu0 0.0
        %5306 = vmatmul.mubr.f32.gmra.mrb[0].mxu0 %v5070
        %v5307 = vpop.f32.mrb[0].mxu0
        %v5308 = vadd.f32 %v4955, %v5307
        %v5309 = vpop.f32.mrb[0].mxu0
        %5310 = vmatprep.mubr.f32.mxu0 0.0
        %5311 = vmatmul.mubr.f32.gmra.mrb[0].mxu0 %v5073
        %v5312 = vpop.f32.mrb[0].mxu0
        %v5313 = vadd.f32 %v4960, %v5312
        %v5314 = vpop.f32.mrb[0].mxu0
        %5315 = vmatprep.mubr.f32.mxu0 0.0
        %5316 = vmatmul.mubr.f32.gmra.mrb[0].mxu0 %v5076
        %v5317 = vpop.f32.mrb[0].mxu0
        %v5318 = vadd.f32 %v4965, %v5317
        %v5319 = vpop.f32.mrb[0].mxu0
        %5320 = vmatprep.mubr.f32.mxu0 0.0
        %5321 = vmatmul.mubr.f32.gmra.mrb[0].mxu0 %v5079
        %v5322 = vpop.f32.mrb[0].mxu0
        %v5323 = vadd.f32 %v4970, %v5322
        %v5324 = vpop.f32.mrb[0].mxu0
        %5325 = vdwg.mxu0
        %v5326 = vld [vmem:[#allocation2 + $0x2] sm:$0xff]
        %v5327 = vld [vmem:[#allocation2 + $0xa] sm:$0xff]
        %v5328 = vld [vmem:[#allocation2 + $0x12] sm:$0xff]
        %v5329 = vld [vmem:[#allocation2 + $0x1a] sm:$0xff]
        %v5330 = vld [vmem:[#allocation2 + $0x22] sm:$0xff]
        %v5331 = vld [vmem:[#allocation2 + $0x2a] sm:$0xff]
        %v5332 = vld [vmem:[#allocation2 + $0x32] sm:$0xff]
        %v5333 = vld [vmem:[#allocation2 + $0x3a] sm:$0xff]
        %v5334 = vld [vmem:[#allocation2 + $0x42] sm:$0xff]
        %v5335 = vld [vmem:[#allocation2 + $0x4a] sm:$0xff]
        %v5336 = vld [vmem:[#allocation2 + $0x52] sm:$0xff]
        %v5337 = vld [vmem:[#allocation2 + $0x5a] sm:$0xff]
        %v5338 = vld [vmem:[#allocation2 + $0x62] sm:$0xff]
        %v5339 = vld [vmem:[#allocation2 + $0x6a] sm:$0xff]
        %v5340 = vld [vmem:[#allocation2 + $0x72] sm:$0xff]
        %v5341 = vld [vmem:[#allocation2 + $0x7a] sm:$0xff]
        %v5342 = vld [vmem:[#allocation2 + $0x82] sm:$0xff]
        %v5343 = vld [vmem:[#allocation2 + $0x8a] sm:$0xff]
        %v5344 = vld [vmem:[#allocation2 + $0x92] sm:$0xff]
        %v5345 = vld [vmem:[#allocation2 + $0x9a] sm:$0xff]
        %v5346 = vld [vmem:[#allocation2 + $0xa2] sm:$0xff]
        %v5347 = vld [vmem:[#allocation2 + $0xaa] sm:$0xff]
        %v5348 = vld [vmem:[#allocation2 + $0xb2] sm:$0xff]
        %v5349 = vld [vmem:[#allocation2 + $0xba] sm:$0xff]
        %v5350 = vld [vmem:[#allocation2 + $0xc2] sm:$0xff]
        %v5351 = vld [vmem:[#allocation2 + $0xca] sm:$0xff]
        %v5352 = vld [vmem:[#allocation2 + $0xd2] sm:$0xff]
        %v5353 = vld [vmem:[#allocation2 + $0xda] sm:$0xff]
        %v5354 = vld [vmem:[#allocation2 + $0xe2] sm:$0xff]
        %v5355 = vld [vmem:[#allocation2 + $0xea] sm:$0xff]
        %v5356 = vld [vmem:[#allocation2 + $0xf2] sm:$0xff]
        %v5357 = vld [vmem:[#allocation2 + $0xfa] sm:$0xff]
        %v5358 = vld [vmem:[#allocation2 + $0x102] sm:$0xff]
        %v5359 = vld [vmem:[#allocation2 + $0x10a] sm:$0xff]
        %v5360 = vld [vmem:[#allocation2 + $0x112] sm:$0xff]
        %v5361 = vld [vmem:[#allocation2 + $0x11a] sm:$0xff]
        %v5363 = vsel %vm4470, %v5326, 0
        %v5366 = vsel %vm4470, %v5327, 0
        %v5369 = vsel %vm4470, %v5328, 0
        %v5372 = vsel %vm4470, %v5329, 0
        %v5375 = vsel %vm4470, %v5330, 0
        %v5378 = vsel %vm4470, %v5331, 0
        %v5381 = vsel %vm4470, %v5332, 0
        %v5384 = vsel %vm4470, %v5333, 0
        %v5387 = vsel %vm4470, %v5334, 0
        %v5390 = vsel %vm4470, %v5335, 0
        %v5393 = vsel %vm4470, %v5336, 0
        %v5396 = vsel %vm4470, %v5337, 0
        %v5399 = vsel %vm4470, %v5338, 0
        %v5402 = vsel %vm4470, %v5339, 0
        %v5405 = vsel %vm4470, %v5340, 0
        %v5408 = vsel %vm4470, %v5341, 0
        %v5411 = vsel %vm4470, %v5342, 0
        %v5414 = vsel %vm4470, %v5343, 0
        %v5417 = vsel %vm4470, %v5344, 0
        %v5420 = vsel %vm4470, %v5345, 0
        %v5423 = vsel %vm4470, %v5346, 0
        %v5426 = vsel %vm4470, %v5347, 0
        %v5429 = vsel %vm4470, %v5348, 0
        %v5432 = vsel %vm4470, %v5349, 0
        %v5435 = vsel %vm4470, %v5350, 0
        %v5438 = vsel %vm4470, %v5351, 0
        %v5441 = vsel %vm4470, %v5352, 0
        %v5444 = vsel %vm4470, %v5353, 0
        %v5447 = vsel %vm4470, %v5354, 0
        %v5450 = vsel %vm4470, %v5355, 0
        %v5453 = vsel %vm4470, %v5356, 0
        %v5456 = vsel %vm4470, %v5357, 0
        %v5459 = vsel %vm4470, %v5358, 0
        %v5462 = vsel %vm4470, %v5359, 0
        %v5465 = vsel %vm4470, %v5360, 0
        %v5468 = vsel %vm4470, %v5361, 0
        %5470 = vmatprep.subr.mxu0 0.0
        %5471 = vmatpush1.msra.mxu0 %v343
        %5472 = vmatprep.subr.mxu0 0.0
        %5473 = vmatpush1.msra.mxu0 %v344
        %5474 = vmatprep.subr.mxu0 0.0
        %5475 = vmatpush1.msra.mxu0 0.0
        %5476 = vmatprep.subr.mxu0 0.0
        %5477 = vmatpush1.msra.mxu0 0.0
        %5478 = vmatprep.subr.mxu0 0.0
        %5479 = vmatpush1.msra.mxu0 0.0
        %5480 = vmatprep.subr.mxu0 0.0
        %5481 = vmatpush1.msra.mxu0 0.0
        %5482 = vmatprep.subr.mxu0 0.0
        %5483 = vmatpush1.msra.mxu0 0.0
        %5484 = vmatprep.subr.mxu0 0.0
        %5485 = vmatpush1.msra.mxu0 0.0
        %5486 = vmatprep.subr.mxu0 0.0
        %5487 = vmatpush1.msra.mxu0 0.0
        %5488 = vmatprep.subr.mxu0 0.0
        %5489 = vmatpush1.msra.mxu0 0.0
        %5490 = vmatprep.subr.mxu0 0.0
        %5491 = vmatpush1.msra.mxu0 0.0
        %5492 = vmatprep.subr.mxu0 0.0
        %5493 = vmatpush1.msra.mxu0 0.0
        %5494 = vmatprep.subr.mxu0 0.0
        %5495 = vmatpush1.msra.mxu0 0.0
        %5496 = vmatprep.subr.mxu0 0.0
        %5497 = vmatpush1.msra.mxu0 0.0
        %5498 = vmatprep.subr.mxu0 0.0
        %5499 = vmatpush1.msra.mxu0 0.0
        %5500 = vmatprep.subr.mxu0 0.0
        %5501 = vmatpush1.msra.mxu0 0.0
        %5502 = vmatprep.subr.mxu0 0.0
        %5503 = vmatpush1.msra.mxu0 0.0
        %5504 = vmatprep.subr.mxu0 0.0
        %5505 = vmatpush1.msra.mxu0 0.0
        %5506 = vmatprep.subr.mxu0 0.0
        %5507 = vmatpush1.msra.mxu0 0.0
        %5508 = vmatprep.subr.mxu0 0.0
        %5509 = vmatpush1.msra.mxu0 0.0
        %5510 = vmatprep.subr.mxu0 0.0
        %5511 = vmatpush1.msra.mxu0 0.0
        %5512 = vmatprep.subr.mxu0 0.0
        %5513 = vmatpush1.msra.mxu0 0.0
        %5514 = vmatprep.subr.mxu0 0.0
        %5515 = vmatpush1.msra.mxu0 0.0
        %5516 = vmatprep.subr.mxu0 0.0
        %5517 = vmatpush1.msra.mxu0 0.0
        %5518 = vmatprep.subr.mxu0 0.0
        %5519 = vmatpush1.msra.mxu0 0.0
        %5520 = vmatprep.subr.mxu0 0.0
        %5521 = vmatpush1.msra.mxu0 0.0
        %5522 = vmatprep.subr.mxu0 0.0
        %5523 = vmatpush1.msra.mxu0 0.0
        %5524 = vmatprep.subr.mxu0 0.0
        %5525 = vmatpush1.msra.mxu0 0.0
        %5526 = vmatprep.subr.mxu0 0.0
        %5527 = vmatpush1.msra.mxu0 0.0
        %5528 = vmatprep.subr.mxu0 0.0
        %5529 = vmatpush1.msra.mxu0 0.0
        %5530 = vmatprep.subr.mxu0 0.0
        %5531 = vmatpush1.msra.mxu0 0.0
        %5532 = vmatprep.subr.mxu0 0.0
        %5533 = vmatpush1.msra.mxu0 0.0
        %5534 = vmatprep.mubr.f32.mxu0 0.0
        %5535 = vmatmul.mubr.f32.gmra.mrb[0].mxu0 %v5363
        %v5536 = vpop.f32.mrb[0].mxu0
        %v5537 = vadd.f32 0.0, %v5536
        %v5538 = vpop.f32.mrb[0].mxu0
        %5539 = vmatprep.mubr.f32.mxu0 0.0
        %5540 = vmatmul.mubr.f32.gmra.mrb[0].mxu0 %v5366
        %v5541 = vpop.f32.mrb[0].mxu0
        %v5542 = vadd.f32 0.0, %v5541
        %v5543 = vpop.f32.mrb[0].mxu0
        %5544 = vmatprep.mubr.f32.mxu0 0.0
        %5545 = vmatmul.mubr.f32.gmra.mrb[0].mxu0 %v5369
        %v5546 = vpop.f32.mrb[0].mxu0
        %v5547 = vadd.f32 0.0, %v5546
        %v5548 = vpop.f32.mrb[0].mxu0
        %5549 = vmatprep.mubr.f32.mxu0 0.0
        %5550 = vmatmul.mubr.f32.gmra.mrb[0].mxu0 %v5372
        %v5551 = vpop.f32.mrb[0].mxu0
        %v5552 = vadd.f32 0.0, %v5551
        %v5553 = vpop.f32.mrb[0].mxu0
        %5554 = vmatprep.mubr.f32.mxu0 0.0
        %5555 = vmatmul.mubr.f32.gmra.mrb[0].mxu0 %v5375
        %v5556 = vpop.f32.mrb[0].mxu0
        %v5557 = vadd.f32 0.0, %v5556
        %v5558 = vpop.f32.mrb[0].mxu0
        %5559 = vmatprep.mubr.f32.mxu0 0.0
        %5560 = vmatmul.mubr.f32.gmra.mrb[0].mxu0 %v5378
        %v5561 = vpop.f32.mrb[0].mxu0
        %v5562 = vadd.f32 0.0, %v5561
        %v5563 = vpop.f32.mrb[0].mxu0
        %5564 = vmatprep.mubr.f32.mxu0 0.0
        %5565 = vmatmul.mubr.f32.gmra.mrb[0].mxu0 %v5381
        %v5566 = vpop.f32.mrb[0].mxu0
        %v5567 = vadd.f32 0.0, %v5566
        %v5568 = vpop.f32.mrb[0].mxu0
        %5569 = vmatprep.mubr.f32.mxu0 0.0
        %5570 = vmatmul.mubr.f32.gmra.mrb[0].mxu0 %v5384
        %v5571 = vpop.f32.mrb[0].mxu0
        %v5572 = vadd.f32 0.0, %v5571
        %v5573 = vpop.f32.mrb[0].mxu0
        %5574 = vmatprep.mubr.f32.mxu0 0.0
        %5575 = vmatmul.mubr.f32.gmra.mrb[0].mxu0 %v5387
        %v5576 = vpop.f32.mrb[0].mxu0
        %v5577 = vadd.f32 0.0, %v5576
        %v5578 = vpop.f32.mrb[0].mxu0
        %5579 = vmatprep.mubr.f32.mxu0 0.0
        %5580 = vmatmul.mubr.f32.gmra.mrb[0].mxu0 %v5390
        %v5581 = vpop.f32.mrb[0].mxu0
        %v5582 = vadd.f32 0.0, %v5581
        %v5583 = vpop.f32.mrb[0].mxu0
        %5584 = vmatprep.mubr.f32.mxu0 0.0
        %5585 = vmatmul.mubr.f32.gmra.mrb[0].mxu0 %v5393
        %v5586 = vpop.f32.mrb[0].mxu0
        %v5587 = vadd.f32 0.0, %v5586
        %v5588 = vpop.f32.mrb[0].mxu0
        %5589 = vmatprep.mubr.f32.mxu0 0.0
        %5590 = vmatmul.mubr.f32.gmra.mrb[0].mxu0 %v5396
        %v5591 = vpop.f32.mrb[0].mxu0
        %v5592 = vadd.f32 0.0, %v5591
        %v5593 = vpop.f32.mrb[0].mxu0
        %5594 = vmatprep.mubr.f32.mxu0 0.0
        %5595 = vmatmul.mubr.f32.gmra.mrb[0].mxu0 %v5399
        %v5596 = vpop.f32.mrb[0].mxu0
        %v5597 = vadd.f32 0.0, %v5596
        %v5598 = vpop.f32.mrb[0].mxu0
        %5599 = vmatprep.mubr.f32.mxu0 0.0
        %5600 = vmatmul.mubr.f32.gmra.mrb[0].mxu0 %v5402
        %v5601 = vpop.f32.mrb[0].mxu0
        %v5602 = vadd.f32 0.0, %v5601
        %v5603 = vpop.f32.mrb[0].mxu0
        %5604 = vmatprep.mubr.f32.mxu0 0.0
        %5605 = vmatmul.mubr.f32.gmra.mrb[0].mxu0 %v5405
        %v5606 = vpop.f32.mrb[0].mxu0
        %v5607 = vadd.f32 0.0, %v5606
        %v5608 = vpop.f32.mrb[0].mxu0
        %5609 = vmatprep.mubr.f32.mxu0 0.0
        %5610 = vmatmul.mubr.f32.gmra.mrb[0].mxu0 %v5408
        %v5611 = vpop.f32.mrb[0].mxu0
        %v5612 = vadd.f32 0.0, %v5611
        %v5613 = vpop.f32.mrb[0].mxu0
        %5614 = vmatprep.mubr.f32.mxu0 0.0
        %5615 = vmatmul.mubr.f32.gmra.mrb[0].mxu0 %v5411
        %v5616 = vpop.f32.mrb[0].mxu0
        %v5617 = vadd.f32 0.0, %v5616
        %v5618 = vpop.f32.mrb[0].mxu0
        %5619 = vmatprep.mubr.f32.mxu0 0.0
        %5620 = vmatmul.mubr.f32.gmra.mrb[0].mxu0 %v5414
        %v5621 = vpop.f32.mrb[0].mxu0
        %v5622 = vadd.f32 0.0, %v5621
        %v5623 = vpop.f32.mrb[0].mxu0
        %5624 = vmatprep.mubr.f32.mxu0 0.0
        %5625 = vmatmul.mubr.f32.gmra.mrb[0].mxu0 %v5417
        %v5626 = vpop.f32.mrb[0].mxu0
        %v5627 = vadd.f32 0.0, %v5626
        %v5628 = vpop.f32.mrb[0].mxu0
        %5629 = vmatprep.mubr.f32.mxu0 0.0
        %5630 = vmatmul.mubr.f32.gmra.mrb[0].mxu0 %v5420
        %v5631 = vpop.f32.mrb[0].mxu0
        %v5632 = vadd.f32 0.0, %v5631
        %v5633 = vpop.f32.mrb[0].mxu0
        %5634 = vmatprep.mubr.f32.mxu0 0.0
        %5635 = vmatmul.mubr.f32.gmra.mrb[0].mxu0 %v5423
        %v5636 = vpop.f32.mrb[0].mxu0
        %v5637 = vadd.f32 0.0, %v5636
        %v5638 = vpop.f32.mrb[0].mxu0
        %5639 = vmatprep.mubr.f32.mxu0 0.0
        %5640 = vmatmul.mubr.f32.gmra.mrb[0].mxu0 %v5426
        %v5641 = vpop.f32.mrb[0].mxu0
        %v5642 = vadd.f32 0.0, %v5641
        %v5643 = vpop.f32.mrb[0].mxu0
        %5644 = vmatprep.mubr.f32.mxu0 0.0
        %5645 = vmatmul.mubr.f32.gmra.mrb[0].mxu0 %v5429
        %v5646 = vpop.f32.mrb[0].mxu0
        %v5647 = vadd.f32 0.0, %v5646
        %v5648 = vpop.f32.mrb[0].mxu0
        %5649 = vmatprep.mubr.f32.mxu0 0.0
        %5650 = vmatmul.mubr.f32.gmra.mrb[0].mxu0 %v5432
        %v5651 = vpop.f32.mrb[0].mxu0
        %v5652 = vadd.f32 0.0, %v5651
        %v5653 = vpop.f32.mrb[0].mxu0
        %5654 = vmatprep.mubr.f32.mxu0 0.0
        %5655 = vmatmul.mubr.f32.gmra.mrb[0].mxu0 %v5435
        %v5656 = vpop.f32.mrb[0].mxu0
        %v5657 = vadd.f32 0.0, %v5656
        %v5658 = vpop.f32.mrb[0].mxu0
        %5659 = vmatprep.mubr.f32.mxu0 0.0
        %5660 = vmatmul.mubr.f32.gmra.mrb[0].mxu0 %v5438
        %v5661 = vpop.f32.mrb[0].mxu0
        %v5662 = vadd.f32 0.0, %v5661
        %v5663 = vpop.f32.mrb[0].mxu0
        %5664 = vmatprep.mubr.f32.mxu0 0.0
        %5665 = vmatmul.mubr.f32.gmra.mrb[0].mxu0 %v5441
        %v5666 = vpop.f32.mrb[0].mxu0
        %v5667 = vadd.f32 0.0, %v5666
        %v5668 = vpop.f32.mrb[0].mxu0
        %5669 = vmatprep.mubr.f32.mxu0 0.0
        %5670 = vmatmul.mubr.f32.gmra.mrb[0].mxu0 %v5444
        %v5671 = vpop.f32.mrb[0].mxu0
        %v5672 = vadd.f32 0.0, %v5671
        %v5673 = vpop.f32.mrb[0].mxu0
        %5674 = vmatprep.mubr.f32.mxu0 0.0
        %5675 = vmatmul.mubr.f32.gmra.mrb[0].mxu0 %v5447
        %v5676 = vpop.f32.mrb[0].mxu0
        %v5677 = vadd.f32 0.0, %v5676
        %v5678 = vpop.f32.mrb[0].mxu0
        %5679 = vmatprep.mubr.f32.mxu0 0.0
        %5680 = vmatmul.mubr.f32.gmra.mrb[0].mxu0 %v5450
        %v5681 = vpop.f32.mrb[0].mxu0
        %v5682 = vadd.f32 0.0, %v5681
        %v5683 = vpop.f32.mrb[0].mxu0
        %5684 = vmatprep.mubr.f32.mxu0 0.0
        %5685 = vmatmul.mubr.f32.gmra.mrb[0].mxu0 %v5453
        %v5686 = vpop.f32.mrb[0].mxu0
        %v5687 = vadd.f32 0.0, %v5686
        %v5688 = vpop.f32.mrb[0].mxu0
        %5689 = vmatprep.mubr.f32.mxu0 0.0
        %5690 = vmatmul.mubr.f32.gmra.mrb[0].mxu0 %v5456
        %v5691 = vpop.f32.mrb[0].mxu0
        %v5692 = vadd.f32 0.0, %v5691
        %v5693 = vpop.f32.mrb[0].mxu0
        %5694 = vmatprep.mubr.f32.mxu0 0.0
        %5695 = vmatmul.mubr.f32.gmra.mrb[0].mxu0 %v5459
        %v5696 = vpop.f32.mrb[0].mxu0
        %v5697 = vadd.f32 0.0, %v5696
        %v5698 = vpop.f32.mrb[0].mxu0
        %5699 = vmatprep.mubr.f32.mxu0 0.0
        %5700 = vmatmul.mubr.f32.gmra.mrb[0].mxu0 %v5462
        %v5701 = vpop.f32.mrb[0].mxu0
        %v5702 = vadd.f32 0.0, %v5701
        %v5703 = vpop.f32.mrb[0].mxu0
        %5704 = vmatprep.mubr.f32.mxu0 0.0
        %5705 = vmatmul.mubr.f32.gmra.mrb[0].mxu0 %v5465
        %v5706 = vpop.f32.mrb[0].mxu0
        %v5707 = vadd.f32 0.0, %v5706
        %v5708 = vpop.f32.mrb[0].mxu0
        %5709 = vmatprep.mubr.f32.mxu0 0.0
        %5710 = vmatmul.mubr.f32.gmra.mrb[0].mxu0 %v5468
        %v5711 = vpop.f32.mrb[0].mxu0
        %v5712 = vadd.f32 0.0, %v5711
        %v5713 = vpop.f32.mrb[0].mxu0
        %5714 = vdwg.mxu0
        %v5715 = vadd.f32 %v5148, %v5537
        %v5716 = vadd.f32 %v5153, %v5542
        %v5717 = vadd.f32 %v5158, %v5547
        %v5718 = vadd.f32 %v5163, %v5552
        %v5719 = vadd.f32 %v5168, %v5557
        %v5720 = vadd.f32 %v5173, %v5562
        %v5721 = vadd.f32 %v5178, %v5567
        %v5722 = vadd.f32 %v5183, %v5572
        %v5723 = vadd.f32 %v5188, %v5577
        %v5724 = vadd.f32 %v5193, %v5582
        %v5725 = vadd.f32 %v5198, %v5587
        %v5726 = vadd.f32 %v5203, %v5592
        %v5727 = vadd.f32 %v5208, %v5597
        %v5728 = vadd.f32 %v5213, %v5602
        %v5729 = vadd.f32 %v5218, %v5607
        %v5730 = vadd.f32 %v5223, %v5612
        %v5731 = vadd.f32 %v5228, %v5617
        %v5732 = vadd.f32 %v5233, %v5622
        %v5733 = vadd.f32 %v5238, %v5627
        %v5734 = vadd.f32 %v5243, %v5632
        %v5735 = vadd.f32 %v5248, %v5637
        %v5736 = vadd.f32 %v5253, %v5642
        %v5737 = vadd.f32 %v5258, %v5647
        %v5738 = vadd.f32 %v5263, %v5652
        %v5739 = vadd.f32 %v5268, %v5657
        %v5740 = vadd.f32 %v5273, %v5662
        %v5741 = vadd.f32 %v5278, %v5667
        %v5742 = vadd.f32 %v5283, %v5672
        %v5743 = vadd.f32 %v5288, %v5677
        %v5744 = vadd.f32 %v5293, %v5682
        %v5745 = vadd.f32 %v5298, %v5687
        %v5746 = vadd.f32 %v5303, %v5692
        %v5747 = vadd.f32 %v5308, %v5697
        %v5748 = vadd.f32 %v5313, %v5702
        %v5749 = vadd.f32 %v5318, %v5707
        %v5750 = vadd.f32 %v5323, %v5712
        %v5751 = vld [vmem:[#allocation2 + $0x12] sm:$0xff]
        %v5752 = vld [vmem:[#allocation2 + $0x1a] sm:$0xff]
        %v5753 = vld [vmem:[#allocation2 + $0x22] sm:$0xff]
        %v5754 = vld [vmem:[#allocation2 + $0x2a] sm:$0xff]
        %v5755 = vld [vmem:[#allocation2 + $0x32] sm:$0xff]
        %v5756 = vld [vmem:[#allocation2 + $0x3a] sm:$0xff]
        %v5757 = vld [vmem:[#allocation2 + $0x42] sm:$0xff]
        %v5758 = vld [vmem:[#allocation2 + $0x4a] sm:$0xff]
        %v5759 = vld [vmem:[#allocation2 + $0x52] sm:$0xff]
        %v5760 = vld [vmem:[#allocation2 + $0x5a] sm:$0xff]
        %v5761 = vld [vmem:[#allocation2 + $0x62] sm:$0xff]
        %v5762 = vld [vmem:[#allocation2 + $0x6a] sm:$0xff]
        %v5763 = vld [vmem:[#allocation2 + $0x72] sm:$0xff]
        %v5764 = vld [vmem:[#allocation2 + $0x7a] sm:$0xff]
        %v5765 = vld [vmem:[#allocation2 + $0x82] sm:$0xff]
        %v5766 = vld [vmem:[#allocation2 + $0x8a] sm:$0xff]
        %v5767 = vld [vmem:[#allocation2 + $0x92] sm:$0xff]
        %v5768 = vld [vmem:[#allocation2 + $0x9a] sm:$0xff]
        %v5769 = vld [vmem:[#allocation2 + $0xa2] sm:$0xff]
        %v5770 = vld [vmem:[#allocation2 + $0xaa] sm:$0xff]
        %v5771 = vld [vmem:[#allocation2 + $0xb2] sm:$0xff]
        %v5772 = vld [vmem:[#allocation2 + $0xba] sm:$0xff]
        %v5773 = vld [vmem:[#allocation2 + $0xc2] sm:$0xff]
        %v5774 = vld [vmem:[#allocation2 + $0xca] sm:$0xff]
        %v5775 = vld [vmem:[#allocation2 + $0xd2] sm:$0xff]
        %v5776 = vld [vmem:[#allocation2 + $0xda] sm:$0xff]
        %v5777 = vld [vmem:[#allocation2 + $0xe2] sm:$0xff]
        %v5778 = vld [vmem:[#allocation2 + $0xea] sm:$0xff]
        %v5779 = vld [vmem:[#allocation2 + $0xf2] sm:$0xff]
        %v5780 = vld [vmem:[#allocation2 + $0xfa] sm:$0xff]
        %v5781 = vld [vmem:[#allocation2 + $0x102] sm:$0xff]
        %v5782 = vld [vmem:[#allocation2 + $0x10a] sm:$0xff]
        %v5783 = vld [vmem:[#allocation2 + $0x112] sm:$0xff]
        %v5784 = vld [vmem:[#allocation2 + $0x11a] sm:$0xff]
        %v5785 = vld [vmem:[#allocation2 + $0x122] sm:$0xff]
        %v5786 = vld [vmem:[#allocation2 + $0x12a] sm:$0xff]
        %v5788 = vsel %vm4470, %v5751, 0
        %v5791 = vsel %vm4470, %v5752, 0
        %v5794 = vsel %vm4470, %v5753, 0
        %v5797 = vsel %vm4470, %v5754, 0
        %v5800 = vsel %vm4470, %v5755, 0
        %v5803 = vsel %vm4470, %v5756, 0
        %v5806 = vsel %vm4470, %v5757, 0
        %v5809 = vsel %vm4470, %v5758, 0
        %v5812 = vsel %vm4470, %v5759, 0
        %v5815 = vsel %vm4470, %v5760, 0
        %v5818 = vsel %vm4470, %v5761, 0
        %v5821 = vsel %vm4470, %v5762, 0
        %v5824 = vsel %vm4470, %v5763, 0
        %v5827 = vsel %vm4470, %v5764, 0
        %v5830 = vsel %vm4470, %v5765, 0
        %v5833 = vsel %vm4470, %v5766, 0
        %v5836 = vsel %vm4470, %v5767, 0
        %v5839 = vsel %vm4470, %v5768, 0
        %v5842 = vsel %vm4470, %v5769, 0
        %v5845 = vsel %vm4470, %v5770, 0
        %v5848 = vsel %vm4470, %v5771, 0
        %v5851 = vsel %vm4470, %v5772, 0
        %v5854 = vsel %vm4470, %v5773, 0
        %v5857 = vsel %vm4470, %v5774, 0
        %v5860 = vsel %vm4470, %v5775, 0
        %v5863 = vsel %vm4470, %v5776, 0
        %v5866 = vsel %vm4470, %v5777, 0
        %v5869 = vsel %vm4470, %v5778, 0
        %v5872 = vsel %vm4470, %v5779, 0
        %v5875 = vsel %vm4470, %v5780, 0
        %v5878 = vsel %vm4470, %v5781, 0
        %v5881 = vsel %vm4470, %v5782, 0
        %v5884 = vsel %vm4470, %v5783, 0
        %v5887 = vsel %vm4470, %v5784, 0
        %v5890 = vsel %vm4470, %v5785, 0
        %v5893 = vsel %vm4470, %v5786, 0
        %5895 = vmatprep.subr.mxu0 0.0
        %5896 = vmatpush1.msra.mxu0 %v345
        %5897 = vmatprep.subr.mxu0 0.0
        %5898 = vmatpush1.msra.mxu0 %v346
        %5899 = vmatprep.subr.mxu0 0.0
        %5900 = vmatpush1.msra.mxu0 0.0
        %5901 = vmatprep.subr.mxu0 0.0
        %5902 = vmatpush1.msra.mxu0 0.0
        %5903 = vmatprep.subr.mxu0 0.0
        %5904 = vmatpush1.msra.mxu0 0.0
        %5905 = vmatprep.subr.mxu0 0.0
        %5906 = vmatpush1.msra.mxu0 0.0
        %5907 = vmatprep.subr.mxu0 0.0
        %5908 = vmatpush1.msra.mxu0 0.0
        %5909 = vmatprep.subr.mxu0 0.0
        %5910 = vmatpush1.msra.mxu0 0.0
        %5911 = vmatprep.subr.mxu0 0.0
        %5912 = vmatpush1.msra.mxu0 0.0
        %5913 = vmatprep.subr.mxu0 0.0
        %5914 = vmatpush1.msra.mxu0 0.0
        %5915 = vmatprep.subr.mxu0 0.0
        %5916 = vmatpush1.msra.mxu0 0.0
        %5917 = vmatprep.subr.mxu0 0.0
        %5918 = vmatpush1.msra.mxu0 0.0
        %5919 = vmatprep.subr.mxu0 0.0
        %5920 = vmatpush1.msra.mxu0 0.0
        %5921 = vmatprep.subr.mxu0 0.0
        %5922 = vmatpush1.msra.mxu0 0.0
        %5923 = vmatprep.subr.mxu0 0.0
        %5924 = vmatpush1.msra.mxu0 0.0
        %5925 = vmatprep.subr.mxu0 0.0
        %5926 = vmatpush1.msra.mxu0 0.0
        %5927 = vmatprep.subr.mxu0 0.0
        %5928 = vmatpush1.msra.mxu0 0.0
        %5929 = vmatprep.subr.mxu0 0.0
        %5930 = vmatpush1.msra.mxu0 0.0
        %5931 = vmatprep.subr.mxu0 0.0
        %5932 = vmatpush1.msra.mxu0 0.0
        %5933 = vmatprep.subr.mxu0 0.0
        %5934 = vmatpush1.msra.mxu0 0.0
        %5935 = vmatprep.subr.mxu0 0.0
        %5936 = vmatpush1.msra.mxu0 0.0
        %5937 = vmatprep.subr.mxu0 0.0
        %5938 = vmatpush1.msra.mxu0 0.0
        %5939 = vmatprep.subr.mxu0 0.0
        %5940 = vmatpush1.msra.mxu0 0.0
        %5941 = vmatprep.subr.mxu0 0.0
        %5942 = vmatpush1.msra.mxu0 0.0
        %5943 = vmatprep.subr.mxu0 0.0
        %5944 = vmatpush1.msra.mxu0 0.0
        %5945 = vmatprep.subr.mxu0 0.0
        %5946 = vmatpush1.msra.mxu0 0.0
        %5947 = vmatprep.subr.mxu0 0.0
        %5948 = vmatpush1.msra.mxu0 0.0
        %5949 = vmatprep.subr.mxu0 0.0
        %5950 = vmatpush1.msra.mxu0 0.0
        %5951 = vmatprep.subr.mxu0 0.0
        %5952 = vmatpush1.msra.mxu0 0.0
        %5953 = vmatprep.subr.mxu0 0.0
        %5954 = vmatpush1.msra.mxu0 0.0
        %5955 = vmatprep.subr.mxu0 0.0
        %5956 = vmatpush1.msra.mxu0 0.0
        %5957 = vmatprep.subr.mxu0 0.0
        %5958 = vmatpush1.msra.mxu0 0.0
        %5959 = vmatprep.mubr.f32.mxu0 0.0
        %5960 = vmatmul.mubr.f32.gmra.mrb[0].mxu0 %v5788
        %v5961 = vpop.f32.mrb[0].mxu0
        %v5962 = vadd.f32 0.0, %v5961
        %v5963 = vpop.f32.mrb[0].mxu0
        %5964 = vmatprep.mubr.f32.mxu0 0.0
        %5965 = vmatmul.mubr.f32.gmra.mrb[0].mxu0 %v5791
        %v5966 = vpop.f32.mrb[0].mxu0
        %v5967 = vadd.f32 0.0, %v5966
        %v5968 = vpop.f32.mrb[0].mxu0
        %5969 = vmatprep.mubr.f32.mxu0 0.0
        %5970 = vmatmul.mubr.f32.gmra.mrb[0].mxu0 %v5794
        %v5971 = vpop.f32.mrb[0].mxu0
        %v5972 = vadd.f32 0.0, %v5971
        %v5973 = vpop.f32.mrb[0].mxu0
        %5974 = vmatprep.mubr.f32.mxu0 0.0
        %5975 = vmatmul.mubr.f32.gmra.mrb[0].mxu0 %v5797
        %v5976 = vpop.f32.mrb[0].mxu0
        %v5977 = vadd.f32 0.0, %v5976
        %v5978 = vpop.f32.mrb[0].mxu0
        %5979 = vmatprep.mubr.f32.mxu0 0.0
        %5980 = vmatmul.mubr.f32.gmra.mrb[0].mxu0 %v5800
        %v5981 = vpop.f32.mrb[0].mxu0
        %v5982 = vadd.f32 0.0, %v5981
        %v5983 = vpop.f32.mrb[0].mxu0
        %5984 = vmatprep.mubr.f32.mxu0 0.0
        %5985 = vmatmul.mubr.f32.gmra.mrb[0].mxu0 %v5803
        %v5986 = vpop.f32.mrb[0].mxu0
        %v5987 = vadd.f32 0.0, %v5986
        %v5988 = vpop.f32.mrb[0].mxu0
        %5989 = vmatprep.mubr.f32.mxu0 0.0
        %5990 = vmatmul.mubr.f32.gmra.mrb[0].mxu0 %v5806
        %v5991 = vpop.f32.mrb[0].mxu0
        %v5992 = vadd.f32 0.0, %v5991
        %v5993 = vpop.f32.mrb[0].mxu0
        %5994 = vmatprep.mubr.f32.mxu0 0.0
        %5995 = vmatmul.mubr.f32.gmra.mrb[0].mxu0 %v5809
        %v5996 = vpop.f32.mrb[0].mxu0
        %v5997 = vadd.f32 0.0, %v5996
        %v5998 = vpop.f32.mrb[0].mxu0
        %5999 = vmatprep.mubr.f32.mxu0 0.0
        %6000 = vmatmul.mubr.f32.gmra.mrb[0].mxu0 %v5812
        %v6001 = vpop.f32.mrb[0].mxu0
        %v6002 = vadd.f32 0.0, %v6001
        %v6003 = vpop.f32.mrb[0].mxu0
        %6004 = vmatprep.mubr.f32.mxu0 0.0
        %6005 = vmatmul.mubr.f32.gmra.mrb[0].mxu0 %v5815
        %v6006 = vpop.f32.mrb[0].mxu0
        %v6007 = vadd.f32 0.0, %v6006
        %v6008 = vpop.f32.mrb[0].mxu0
        %6009 = vmatprep.mubr.f32.mxu0 0.0
        %6010 = vmatmul.mubr.f32.gmra.mrb[0].mxu0 %v5818
        %v6011 = vpop.f32.mrb[0].mxu0
        %v6012 = vadd.f32 0.0, %v6011
        %v6013 = vpop.f32.mrb[0].mxu0
        %6014 = vmatprep.mubr.f32.mxu0 0.0
        %6015 = vmatmul.mubr.f32.gmra.mrb[0].mxu0 %v5821
        %v6016 = vpop.f32.mrb[0].mxu0
        %v6017 = vadd.f32 0.0, %v6016
        %v6018 = vpop.f32.mrb[0].mxu0
        %6019 = vmatprep.mubr.f32.mxu0 0.0
        %6020 = vmatmul.mubr.f32.gmra.mrb[0].mxu0 %v5824
        %v6021 = vpop.f32.mrb[0].mxu0
        %v6022 = vadd.f32 0.0, %v6021
        %v6023 = vpop.f32.mrb[0].mxu0
        %6024 = vmatprep.mubr.f32.mxu0 0.0
        %6025 = vmatmul.mubr.f32.gmra.mrb[0].mxu0 %v5827
        %v6026 = vpop.f32.mrb[0].mxu0
        %v6027 = vadd.f32 0.0, %v6026
        %v6028 = vpop.f32.mrb[0].mxu0
        %6029 = vmatprep.mubr.f32.mxu0 0.0
        %6030 = vmatmul.mubr.f32.gmra.mrb[0].mxu0 %v5830
        %v6031 = vpop.f32.mrb[0].mxu0
        %v6032 = vadd.f32 0.0, %v6031
        %v6033 = vpop.f32.mrb[0].mxu0
        %6034 = vmatprep.mubr.f32.mxu0 0.0
        %6035 = vmatmul.mubr.f32.gmra.mrb[0].mxu0 %v5833
        %v6036 = vpop.f32.mrb[0].mxu0
        %v6037 = vadd.f32 0.0, %v6036
        %v6038 = vpop.f32.mrb[0].mxu0
        %6039 = vmatprep.mubr.f32.mxu0 0.0
        %6040 = vmatmul.mubr.f32.gmra.mrb[0].mxu0 %v5836
        %v6041 = vpop.f32.mrb[0].mxu0
        %v6042 = vadd.f32 0.0, %v6041
        %v6043 = vpop.f32.mrb[0].mxu0
        %6044 = vmatprep.mubr.f32.mxu0 0.0
        %6045 = vmatmul.mubr.f32.gmra.mrb[0].mxu0 %v5839
        %v6046 = vpop.f32.mrb[0].mxu0
        %v6047 = vadd.f32 0.0, %v6046
        %v6048 = vpop.f32.mrb[0].mxu0
        %6049 = vmatprep.mubr.f32.mxu0 0.0
        %6050 = vmatmul.mubr.f32.gmra.mrb[0].mxu0 %v5842
        %v6051 = vpop.f32.mrb[0].mxu0
        %v6052 = vadd.f32 0.0, %v6051
        %v6053 = vpop.f32.mrb[0].mxu0
        %6054 = vmatprep.mubr.f32.mxu0 0.0
        %6055 = vmatmul.mubr.f32.gmra.mrb[0].mxu0 %v5845
        %v6056 = vpop.f32.mrb[0].mxu0
        %v6057 = vadd.f32 0.0, %v6056
        %v6058 = vpop.f32.mrb[0].mxu0
        %6059 = vmatprep.mubr.f32.mxu0 0.0
        %6060 = vmatmul.mubr.f32.gmra.mrb[0].mxu0 %v5848
        %v6061 = vpop.f32.mrb[0].mxu0
        %v6062 = vadd.f32 0.0, %v6061
        %v6063 = vpop.f32.mrb[0].mxu0
        %6064 = vmatprep.mubr.f32.mxu0 0.0
        %6065 = vmatmul.mubr.f32.gmra.mrb[0].mxu0 %v5851
        %v6066 = vpop.f32.mrb[0].mxu0
        %v6067 = vadd.f32 0.0, %v6066
        %v6068 = vpop.f32.mrb[0].mxu0
        %6069 = vmatprep.mubr.f32.mxu0 0.0
        %6070 = vmatmul.mubr.f32.gmra.mrb[0].mxu0 %v5854
        %v6071 = vpop.f32.mrb[0].mxu0
        %v6072 = vadd.f32 0.0, %v6071
        %v6073 = vpop.f32.mrb[0].mxu0
        %6074 = vmatprep.mubr.f32.mxu0 0.0
        %6075 = vmatmul.mubr.f32.gmra.mrb[0].mxu0 %v5857
        %v6076 = vpop.f32.mrb[0].mxu0
        %v6077 = vadd.f32 0.0, %v6076
        %v6078 = vpop.f32.mrb[0].mxu0
        %6079 = vmatprep.mubr.f32.mxu0 0.0
        %6080 = vmatmul.mubr.f32.gmra.mrb[0].mxu0 %v5860
        %v6081 = vpop.f32.mrb[0].mxu0
        %v6082 = vadd.f32 0.0, %v6081
        %v6083 = vpop.f32.mrb[0].mxu0
        %6084 = vmatprep.mubr.f32.mxu0 0.0
        %6085 = vmatmul.mubr.f32.gmra.mrb[0].mxu0 %v5863
        %v6086 = vpop.f32.mrb[0].mxu0
        %v6087 = vadd.f32 0.0, %v6086
        %v6088 = vpop.f32.mrb[0].mxu0
        %6089 = vmatprep.mubr.f32.mxu0 0.0
        %6090 = vmatmul.mubr.f32.gmra.mrb[0].mxu0 %v5866
        %v6091 = vpop.f32.mrb[0].mxu0
        %v6092 = vadd.f32 0.0, %v6091
        %v6093 = vpop.f32.mrb[0].mxu0
        %6094 = vmatprep.mubr.f32.mxu0 0.0
        %6095 = vmatmul.mubr.f32.gmra.mrb[0].mxu0 %v5869
        %v6096 = vpop.f32.mrb[0].mxu0
        %v6097 = vadd.f32 0.0, %v6096
        %v6098 = vpop.f32.mrb[0].mxu0
        %6099 = vmatprep.mubr.f32.mxu0 0.0
        %6100 = vmatmul.mubr.f32.gmra.mrb[0].mxu0 %v5872
        %v6101 = vpop.f32.mrb[0].mxu0
        %v6102 = vadd.f32 0.0, %v6101
        %v6103 = vpop.f32.mrb[0].mxu0
        %6104 = vmatprep.mubr.f32.mxu0 0.0
        %6105 = vmatmul.mubr.f32.gmra.mrb[0].mxu0 %v5875
        %v6106 = vpop.f32.mrb[0].mxu0
        %v6107 = vadd.f32 0.0, %v6106
        %v6108 = vpop.f32.mrb[0].mxu0
        %6109 = vmatprep.mubr.f32.mxu0 0.0
        %6110 = vmatmul.mubr.f32.gmra.mrb[0].mxu0 %v5878
        %v6111 = vpop.f32.mrb[0].mxu0
        %v6112 = vadd.f32 0.0, %v6111
        %v6113 = vpop.f32.mrb[0].mxu0
        %6114 = vmatprep.mubr.f32.mxu0 0.0
        %6115 = vmatmul.mubr.f32.gmra.mrb[0].mxu0 %v5881
        %v6116 = vpop.f32.mrb[0].mxu0
        %v6117 = vadd.f32 0.0, %v6116
        %v6118 = vpop.f32.mrb[0].mxu0
        %6119 = vmatprep.mubr.f32.mxu0 0.0
        %6120 = vmatmul.mubr.f32.gmra.mrb[0].mxu0 %v5884
        %v6121 = vpop.f32.mrb[0].mxu0
        %v6122 = vadd.f32 0.0, %v6121
        %v6123 = vpop.f32.mrb[0].mxu0
        %6124 = vmatprep.mubr.f32.mxu0 0.0
        %6125 = vmatmul.mubr.f32.gmra.mrb[0].mxu0 %v5887
        %v6126 = vpop.f32.mrb[0].mxu0
        %v6127 = vadd.f32 0.0, %v6126
        %v6128 = vpop.f32.mrb[0].mxu0
        %6129 = vmatprep.mubr.f32.mxu0 0.0
        %6130 = vmatmul.mubr.f32.gmra.mrb[0].mxu0 %v5890
        %v6131 = vpop.f32.mrb[0].mxu0
        %v6132 = vadd.f32 0.0, %v6131
        %v6133 = vpop.f32.mrb[0].mxu0
        %6134 = vmatprep.mubr.f32.mxu0 0.0
        %6135 = vmatmul.mubr.f32.gmra.mrb[0].mxu0 %v5893
        %v6136 = vpop.f32.mrb[0].mxu0
        %v6137 = vadd.f32 0.0, %v6136
        %v6138 = vpop.f32.mrb[0].mxu0
        %6139 = vdwg.mxu0
        %v6140 = vadd.f32 %v5715, %v5962
        %v6141 = vadd.f32 %v5716, %v5967
        %v6142 = vadd.f32 %v5717, %v5972
        %v6143 = vadd.f32 %v5718, %v5977
        %v6144 = vadd.f32 %v5719, %v5982
        %v6145 = vadd.f32 %v5720, %v5987
        %v6146 = vadd.f32 %v5721, %v5992
        %v6147 = vadd.f32 %v5722, %v5997
        %v6148 = vadd.f32 %v5723, %v6002
        %v6149 = vadd.f32 %v5724, %v6007
        %v6150 = vadd.f32 %v5725, %v6012
        %v6151 = vadd.f32 %v5726, %v6017
        %v6152 = vadd.f32 %v5727, %v6022
        %v6153 = vadd.f32 %v5728, %v6027
        %v6154 = vadd.f32 %v5729, %v6032
        %v6155 = vadd.f32 %v5730, %v6037
        %v6156 = vadd.f32 %v5731, %v6042
        %v6157 = vadd.f32 %v5732, %v6047
        %v6158 = vadd.f32 %v5733, %v6052
        %v6159 = vadd.f32 %v5734, %v6057
        %v6160 = vadd.f32 %v5735, %v6062
        %v6161 = vadd.f32 %v5736, %v6067
        %v6162 = vadd.f32 %v5737, %v6072
        %v6163 = vadd.f32 %v5738, %v6077
        %v6164 = vadd.f32 %v5739, %v6082
        %v6165 = vadd.f32 %v5740, %v6087
        %v6166 = vadd.f32 %v5741, %v6092
        %v6167 = vadd.f32 %v5742, %v6097
        %v6168 = vadd.f32 %v5743, %v6102
        %v6169 = vadd.f32 %v5744, %v6107
        %v6170 = vadd.f32 %v5745, %v6112
        %v6171 = vadd.f32 %v5746, %v6117
        %v6172 = vadd.f32 %v5747, %v6122
        %v6173 = vadd.f32 %v5748, %v6127
        %v6174 = vadd.f32 %v5749, %v6132
        %v6175 = vadd.f32 %v5750, %v6137
        %v6176 = vld [vmem:[#allocation2 + $0x13] sm:$0xff]
        %v6177 = vld [vmem:[#allocation2 + $0x1b] sm:$0xff]
        %v6178 = vld [vmem:[#allocation2 + $0x23] sm:$0xff]
        %v6179 = vld [vmem:[#allocation2 + $0x2b] sm:$0xff]
        %v6180 = vld [vmem:[#allocation2 + $0x33] sm:$0xff]
        %v6181 = vld [vmem:[#allocation2 + $0x3b] sm:$0xff]
        %v6182 = vld [vmem:[#allocation2 + $0x43] sm:$0xff]
        %v6183 = vld [vmem:[#allocation2 + $0x4b] sm:$0xff]
        %v6184 = vld [vmem:[#allocation2 + $0x53] sm:$0xff]
        %v6185 = vld [vmem:[#allocation2 + $0x5b] sm:$0xff]
        %v6186 = vld [vmem:[#allocation2 + $0x63] sm:$0xff]
        %v6187 = vld [vmem:[#allocation2 + $0x6b] sm:$0xff]
        %v6188 = vld [vmem:[#allocation2 + $0x73] sm:$0xff]
        %v6189 = vld [vmem:[#allocation2 + $0x7b] sm:$0xff]
        %v6190 = vld [vmem:[#allocation2 + $0x83] sm:$0xff]
        %v6191 = vld [vmem:[#allocation2 + $0x8b] sm:$0xff]
        %v6192 = vld [vmem:[#allocation2 + $0x93] sm:$0xff]
        %v6193 = vld [vmem:[#allocation2 + $0x9b] sm:$0xff]
        %v6194 = vld [vmem:[#allocation2 + $0xa3] sm:$0xff]
        %v6195 = vld [vmem:[#allocation2 + $0xab] sm:$0xff]
        %v6196 = vld [vmem:[#allocation2 + $0xb3] sm:$0xff]
        %v6197 = vld [vmem:[#allocation2 + $0xbb] sm:$0xff]
        %v6198 = vld [vmem:[#allocation2 + $0xc3] sm:$0xff]
        %v6199 = vld [vmem:[#allocation2 + $0xcb] sm:$0xff]
        %v6200 = vld [vmem:[#allocation2 + $0xd3] sm:$0xff]
        %v6201 = vld [vmem:[#allocation2 + $0xdb] sm:$0xff]
        %v6202 = vld [vmem:[#allocation2 + $0xe3] sm:$0xff]
        %v6203 = vld [vmem:[#allocation2 + $0xeb] sm:$0xff]
        %v6204 = vld [vmem:[#allocation2 + $0xf3] sm:$0xff]
        %v6205 = vld [vmem:[#allocation2 + $0xfb] sm:$0xff]
        %v6206 = vld [vmem:[#allocation2 + $0x103] sm:$0xff]
        %v6207 = vld [vmem:[#allocation2 + $0x10b] sm:$0xff]
        %v6208 = vld [vmem:[#allocation2 + $0x113] sm:$0xff]
        %v6209 = vld [vmem:[#allocation2 + $0x11b] sm:$0xff]
        %v6210 = vld [vmem:[#allocation2 + $0x123] sm:$0xff]
        %v6211 = vld [vmem:[#allocation2 + $0x12b] sm:$0xff]
        %v6213 = vsel %vm4470, %v6176, 0
        %v6216 = vsel %vm4470, %v6177, 0
        %v6219 = vsel %vm4470, %v6178, 0
        %v6222 = vsel %vm4470, %v6179, 0
        %v6225 = vsel %vm4470, %v6180, 0
        %v6228 = vsel %vm4470, %v6181, 0
        %v6231 = vsel %vm4470, %v6182, 0
        %v6234 = vsel %vm4470, %v6183, 0
        %v6237 = vsel %vm4470, %v6184, 0
        %v6240 = vsel %vm4470, %v6185, 0
        %v6243 = vsel %vm4470, %v6186, 0
        %v6246 = vsel %vm4470, %v6187, 0
        %v6249 = vsel %vm4470, %v6188, 0
        %v6252 = vsel %vm4470, %v6189, 0
        %v6255 = vsel %vm4470, %v6190, 0
        %v6258 = vsel %vm4470, %v6191, 0
        %v6261 = vsel %vm4470, %v6192, 0
        %v6264 = vsel %vm4470, %v6193, 0
        %v6267 = vsel %vm4470, %v6194, 0
        %v6270 = vsel %vm4470, %v6195, 0
        %v6273 = vsel %vm4470, %v6196, 0
        %v6276 = vsel %vm4470, %v6197, 0
        %v6279 = vsel %vm4470, %v6198, 0
        %v6282 = vsel %vm4470, %v6199, 0
        %v6285 = vsel %vm4470, %v6200, 0
        %v6288 = vsel %vm4470, %v6201, 0
        %v6291 = vsel %vm4470, %v6202, 0
        %v6294 = vsel %vm4470, %v6203, 0
        %v6297 = vsel %vm4470, %v6204, 0
        %v6300 = vsel %vm4470, %v6205, 0
        %v6303 = vsel %vm4470, %v6206, 0
        %v6306 = vsel %vm4470, %v6207, 0
        %v6309 = vsel %vm4470, %v6208, 0
        %v6312 = vsel %vm4470, %v6209, 0
        %v6315 = vsel %vm4470, %v6210, 0
        %v6318 = vsel %vm4470, %v6211, 0
        %6320 = vmatprep.subr.mxu0 0.0
        %6321 = vmatpush1.msra.mxu0 %v347
        %6322 = vmatprep.subr.mxu0 0.0
        %6323 = vmatpush1.msra.mxu0 %v348
        %6324 = vmatprep.subr.mxu0 0.0
        %6325 = vmatpush1.msra.mxu0 0.0
        %6326 = vmatprep.subr.mxu0 0.0
        %6327 = vmatpush1.msra.mxu0 0.0
        %6328 = vmatprep.subr.mxu0 0.0
        %6329 = vmatpush1.msra.mxu0 0.0
        %6330 = vmatprep.subr.mxu0 0.0
        %6331 = vmatpush1.msra.mxu0 0.0
        %6332 = vmatprep.subr.mxu0 0.0
        %6333 = vmatpush1.msra.mxu0 0.0
        %6334 = vmatprep.subr.mxu0 0.0
        %6335 = vmatpush1.msra.mxu0 0.0
        %6336 = vmatprep.subr.mxu0 0.0
        %6337 = vmatpush1.msra.mxu0 0.0
        %6338 = vmatprep.subr.mxu0 0.0
        %6339 = vmatpush1.msra.mxu0 0.0
        %6340 = vmatprep.subr.mxu0 0.0
        %6341 = vmatpush1.msra.mxu0 0.0
        %6342 = vmatprep.subr.mxu0 0.0
        %6343 = vmatpush1.msra.mxu0 0.0
        %6344 = vmatprep.subr.mxu0 0.0
        %6345 = vmatpush1.msra.mxu0 0.0
        %6346 = vmatprep.subr.mxu0 0.0
        %6347 = vmatpush1.msra.mxu0 0.0
        %6348 = vmatprep.subr.mxu0 0.0
        %6349 = vmatpush1.msra.mxu0 0.0
        %6350 = vmatprep.subr.mxu0 0.0
        %6351 = vmatpush1.msra.mxu0 0.0
        %6352 = vmatprep.subr.mxu0 0.0
        %6353 = vmatpush1.msra.mxu0 0.0
        %6354 = vmatprep.subr.mxu0 0.0
        %6355 = vmatpush1.msra.mxu0 0.0
        %6356 = vmatprep.subr.mxu0 0.0
        %6357 = vmatpush1.msra.mxu0 0.0
        %6358 = vmatprep.subr.mxu0 0.0
        %6359 = vmatpush1.msra.mxu0 0.0
        %6360 = vmatprep.subr.mxu0 0.0
        %6361 = vmatpush1.msra.mxu0 0.0
        %6362 = vmatprep.subr.mxu0 0.0
        %6363 = vmatpush1.msra.mxu0 0.0
        %6364 = vmatprep.subr.mxu0 0.0
        %6365 = vmatpush1.msra.mxu0 0.0
        %6366 = vmatprep.subr.mxu0 0.0
        %6367 = vmatpush1.msra.mxu0 0.0
        %6368 = vmatprep.subr.mxu0 0.0
        %6369 = vmatpush1.msra.mxu0 0.0
        %6370 = vmatprep.subr.mxu0 0.0
        %6371 = vmatpush1.msra.mxu0 0.0
        %6372 = vmatprep.subr.mxu0 0.0
        %6373 = vmatpush1.msra.mxu0 0.0
        %6374 = vmatprep.subr.mxu0 0.0
        %6375 = vmatpush1.msra.mxu0 0.0
        %6376 = vmatprep.subr.mxu0 0.0
        %6377 = vmatpush1.msra.mxu0 0.0
        %6378 = vmatprep.subr.mxu0 0.0
        %6379 = vmatpush1.msra.mxu0 0.0
        %6380 = vmatprep.subr.mxu0 0.0
        %6381 = vmatpush1.msra.mxu0 0.0
        %6382 = vmatprep.subr.mxu0 0.0
        %6383 = vmatpush1.msra.mxu0 0.0
        %6384 = vmatprep.mubr.f32.mxu0 0.0
        %6385 = vmatmul.mubr.f32.gmra.mrb[0].mxu0 %v6213
        %v6386 = vpop.f32.mrb[0].mxu0
        %v6387 = vadd.f32 0.0, %v6386
        %v6388 = vpop.f32.mrb[0].mxu0
        %6389 = vmatprep.mubr.f32.mxu0 0.0
        %6390 = vmatmul.mubr.f32.gmra.mrb[0].mxu0 %v6216
        %v6391 = vpop.f32.mrb[0].mxu0
        %v6392 = vadd.f32 0.0, %v6391
        %v6393 = vpop.f32.mrb[0].mxu0
        %6394 = vmatprep.mubr.f32.mxu0 0.0
        %6395 = vmatmul.mubr.f32.gmra.mrb[0].mxu0 %v6219
        %v6396 = vpop.f32.mrb[0].mxu0
        %v6397 = vadd.f32 0.0, %v6396
        %v6398 = vpop.f32.mrb[0].mxu0
        %6399 = vmatprep.mubr.f32.mxu0 0.0
        %6400 = vmatmul.mubr.f32.gmra.mrb[0].mxu0 %v6222
        %v6401 = vpop.f32.mrb[0].mxu0
        %v6402 = vadd.f32 0.0, %v6401
        %v6403 = vpop.f32.mrb[0].mxu0
        %6404 = vmatprep.mubr.f32.mxu0 0.0
        %6405 = vmatmul.mubr.f32.gmra.mrb[0].mxu0 %v6225
        %v6406 = vpop.f32.mrb[0].mxu0
        %v6407 = vadd.f32 0.0, %v6406
        %v6408 = vpop.f32.mrb[0].mxu0
        %6409 = vmatprep.mubr.f32.mxu0 0.0
        %6410 = vmatmul.mubr.f32.gmra.mrb[0].mxu0 %v6228
        %v6411 = vpop.f32.mrb[0].mxu0
        %v6412 = vadd.f32 0.0, %v6411
        %v6413 = vpop.f32.mrb[0].mxu0
        %6414 = vmatprep.mubr.f32.mxu0 0.0
        %6415 = vmatmul.mubr.f32.gmra.mrb[0].mxu0 %v6231
        %v6416 = vpop.f32.mrb[0].mxu0
        %v6417 = vadd.f32 0.0, %v6416
        %v6418 = vpop.f32.mrb[0].mxu0
        %6419 = vmatprep.mubr.f32.mxu0 0.0
        %6420 = vmatmul.mubr.f32.gmra.mrb[0].mxu0 %v6234
        %v6421 = vpop.f32.mrb[0].mxu0
        %v6422 = vadd.f32 0.0, %v6421
        %v6423 = vpop.f32.mrb[0].mxu0
        %6424 = vmatprep.mubr.f32.mxu0 0.0
        %6425 = vmatmul.mubr.f32.gmra.mrb[0].mxu0 %v6237
        %v6426 = vpop.f32.mrb[0].mxu0
        %v6427 = vadd.f32 0.0, %v6426
        %v6428 = vpop.f32.mrb[0].mxu0
        %6429 = vmatprep.mubr.f32.mxu0 0.0
        %6430 = vmatmul.mubr.f32.gmra.mrb[0].mxu0 %v6240
        %v6431 = vpop.f32.mrb[0].mxu0
        %v6432 = vadd.f32 0.0, %v6431
        %v6433 = vpop.f32.mrb[0].mxu0
        %6434 = vmatprep.mubr.f32.mxu0 0.0
        %6435 = vmatmul.mubr.f32.gmra.mrb[0].mxu0 %v6243
        %v6436 = vpop.f32.mrb[0].mxu0
        %v6437 = vadd.f32 0.0, %v6436
        %v6438 = vpop.f32.mrb[0].mxu0
        %6439 = vmatprep.mubr.f32.mxu0 0.0
        %6440 = vmatmul.mubr.f32.gmra.mrb[0].mxu0 %v6246
        %v6441 = vpop.f32.mrb[0].mxu0
        %v6442 = vadd.f32 0.0, %v6441
        %v6443 = vpop.f32.mrb[0].mxu0
        %6444 = vmatprep.mubr.f32.mxu0 0.0
        %6445 = vmatmul.mubr.f32.gmra.mrb[0].mxu0 %v6249
        %v6446 = vpop.f32.mrb[0].mxu0
        %v6447 = vadd.f32 0.0, %v6446
        %v6448 = vpop.f32.mrb[0].mxu0
        %6449 = vmatprep.mubr.f32.mxu0 0.0
        %6450 = vmatmul.mubr.f32.gmra.mrb[0].mxu0 %v6252
        %v6451 = vpop.f32.mrb[0].mxu0
        %v6452 = vadd.f32 0.0, %v6451
        %v6453 = vpop.f32.mrb[0].mxu0
        %6454 = vmatprep.mubr.f32.mxu0 0.0
        %6455 = vmatmul.mubr.f32.gmra.mrb[0].mxu0 %v6255
        %v6456 = vpop.f32.mrb[0].mxu0
        %v6457 = vadd.f32 0.0, %v6456
        %v6458 = vpop.f32.mrb[0].mxu0
        %6459 = vmatprep.mubr.f32.mxu0 0.0
        %6460 = vmatmul.mubr.f32.gmra.mrb[0].mxu0 %v6258
        %v6461 = vpop.f32.mrb[0].mxu0
        %v6462 = vadd.f32 0.0, %v6461
        %v6463 = vpop.f32.mrb[0].mxu0
        %6464 = vmatprep.mubr.f32.mxu0 0.0
        %6465 = vmatmul.mubr.f32.gmra.mrb[0].mxu0 %v6261
        %v6466 = vpop.f32.mrb[0].mxu0
        %v6467 = vadd.f32 0.0, %v6466
        %v6468 = vpop.f32.mrb[0].mxu0
        %6469 = vmatprep.mubr.f32.mxu0 0.0
        %6470 = vmatmul.mubr.f32.gmra.mrb[0].mxu0 %v6264
        %v6471 = vpop.f32.mrb[0].mxu0
        %v6472 = vadd.f32 0.0, %v6471
        %v6473 = vpop.f32.mrb[0].mxu0
        %6474 = vmatprep.mubr.f32.mxu0 0.0
        %6475 = vmatmul.mubr.f32.gmra.mrb[0].mxu0 %v6267
        %v6476 = vpop.f32.mrb[0].mxu0
        %v6477 = vadd.f32 0.0, %v6476
        %v6478 = vpop.f32.mrb[0].mxu0
        %6479 = vmatprep.mubr.f32.mxu0 0.0
        %6480 = vmatmul.mubr.f32.gmra.mrb[0].mxu0 %v6270
        %v6481 = vpop.f32.mrb[0].mxu0
        %v6482 = vadd.f32 0.0, %v6481
        %v6483 = vpop.f32.mrb[0].mxu0
        %6484 = vmatprep.mubr.f32.mxu0 0.0
        %6485 = vmatmul.mubr.f32.gmra.mrb[0].mxu0 %v6273
        %v6486 = vpop.f32.mrb[0].mxu0
        %v6487 = vadd.f32 0.0, %v6486
        %v6488 = vpop.f32.mrb[0].mxu0
        %6489 = vmatprep.mubr.f32.mxu0 0.0
        %6490 = vmatmul.mubr.f32.gmra.mrb[0].mxu0 %v6276
        %v6491 = vpop.f32.mrb[0].mxu0
        %v6492 = vadd.f32 0.0, %v6491
        %v6493 = vpop.f32.mrb[0].mxu0
        %6494 = vmatprep.mubr.f32.mxu0 0.0
        %6495 = vmatmul.mubr.f32.gmra.mrb[0].mxu0 %v6279
        %v6496 = vpop.f32.mrb[0].mxu0
        %v6497 = vadd.f32 0.0, %v6496
        %v6498 = vpop.f32.mrb[0].mxu0
        %6499 = vmatprep.mubr.f32.mxu0 0.0
        %6500 = vmatmul.mubr.f32.gmra.mrb[0].mxu0 %v6282
        %v6501 = vpop.f32.mrb[0].mxu0
        %v6502 = vadd.f32 0.0, %v6501
        %v6503 = vpop.f32.mrb[0].mxu0
        %6504 = vmatprep.mubr.f32.mxu0 0.0
        %6505 = vmatmul.mubr.f32.gmra.mrb[0].mxu0 %v6285
        %v6506 = vpop.f32.mrb[0].mxu0
        %v6507 = vadd.f32 0.0, %v6506
        %v6508 = vpop.f32.mrb[0].mxu0
        %6509 = vmatprep.mubr.f32.mxu0 0.0
        %6510 = vmatmul.mubr.f32.gmra.mrb[0].mxu0 %v6288
        %v6511 = vpop.f32.mrb[0].mxu0
        %v6512 = vadd.f32 0.0, %v6511
        %v6513 = vpop.f32.mrb[0].mxu0
        %6514 = vmatprep.mubr.f32.mxu0 0.0
        %6515 = vmatmul.mubr.f32.gmra.mrb[0].mxu0 %v6291
        %v6516 = vpop.f32.mrb[0].mxu0
        %v6517 = vadd.f32 0.0, %v6516
        %v6518 = vpop.f32.mrb[0].mxu0
        %6519 = vmatprep.mubr.f32.mxu0 0.0
        %6520 = vmatmul.mubr.f32.gmra.mrb[0].mxu0 %v6294
        %v6521 = vpop.f32.mrb[0].mxu0
        %v6522 = vadd.f32 0.0, %v6521
        %v6523 = vpop.f32.mrb[0].mxu0
        %6524 = vmatprep.mubr.f32.mxu0 0.0
        %6525 = vmatmul.mubr.f32.gmra.mrb[0].mxu0 %v6297
        %v6526 = vpop.f32.mrb[0].mxu0
        %v6527 = vadd.f32 0.0, %v6526
        %v6528 = vpop.f32.mrb[0].mxu0
        %6529 = vmatprep.mubr.f32.mxu0 0.0
        %6530 = vmatmul.mubr.f32.gmra.mrb[0].mxu0 %v6300
        %v6531 = vpop.f32.mrb[0].mxu0
        %v6532 = vadd.f32 0.0, %v6531
        %v6533 = vpop.f32.mrb[0].mxu0
        %6534 = vmatprep.mubr.f32.mxu0 0.0
        %6535 = vmatmul.mubr.f32.gmra.mrb[0].mxu0 %v6303
        %v6536 = vpop.f32.mrb[0].mxu0
        %v6537 = vadd.f32 0.0, %v6536
        %v6538 = vpop.f32.mrb[0].mxu0
        %6539 = vmatprep.mubr.f32.mxu0 0.0
        %6540 = vmatmul.mubr.f32.gmra.mrb[0].mxu0 %v6306
        %v6541 = vpop.f32.mrb[0].mxu0
        %v6542 = vadd.f32 0.0, %v6541
        %v6543 = vpop.f32.mrb[0].mxu0
        %6544 = vmatprep.mubr.f32.mxu0 0.0
        %6545 = vmatmul.mubr.f32.gmra.mrb[0].mxu0 %v6309
        %v6546 = vpop.f32.mrb[0].mxu0
        %v6547 = vadd.f32 0.0, %v6546
        %v6548 = vpop.f32.mrb[0].mxu0
        %6549 = vmatprep.mubr.f32.mxu0 0.0
        %6550 = vmatmul.mubr.f32.gmra.mrb[0].mxu0 %v6312
        %v6551 = vpop.f32.mrb[0].mxu0
        %v6552 = vadd.f32 0.0, %v6551
        %v6553 = vpop.f32.mrb[0].mxu0
        %6554 = vmatprep.mubr.f32.mxu0 0.0
        %6555 = vmatmul.mubr.f32.gmra.mrb[0].mxu0 %v6315
        %v6556 = vpop.f32.mrb[0].mxu0
        %v6557 = vadd.f32 0.0, %v6556
        %v6558 = vpop.f32.mrb[0].mxu0
        %6559 = vmatprep.mubr.f32.mxu0 0.0
        %6560 = vmatmul.mubr.f32.gmra.mrb[0].mxu0 %v6318
        %v6561 = vpop.f32.mrb[0].mxu0
        %v6562 = vadd.f32 0.0, %v6561
        %v6563 = vpop.f32.mrb[0].mxu0
        %6564 = vdwg.mxu0
        %v6565 = vadd.f32 %v6140, %v6387
        %v6566 = vadd.f32 %v6141, %v6392
        %v6567 = vadd.f32 %v6142, %v6397
        %v6568 = vadd.f32 %v6143, %v6402
        %v6569 = vadd.f32 %v6144, %v6407
        %v6570 = vadd.f32 %v6145, %v6412
        %v6571 = vadd.f32 %v6146, %v6417
        %v6572 = vadd.f32 %v6147, %v6422
        %v6573 = vadd.f32 %v6148, %v6427
        %v6574 = vadd.f32 %v6149, %v6432
        %v6575 = vadd.f32 %v6150, %v6437
        %v6576 = vadd.f32 %v6151, %v6442
        %v6577 = vadd.f32 %v6152, %v6447
        %v6578 = vadd.f32 %v6153, %v6452
        %v6579 = vadd.f32 %v6154, %v6457
        %v6580 = vadd.f32 %v6155, %v6462
        %v6581 = vadd.f32 %v6156, %v6467
        %v6582 = vadd.f32 %v6157, %v6472
        %v6583 = vadd.f32 %v6158, %v6477
        %v6584 = vadd.f32 %v6159, %v6482
        %v6585 = vadd.f32 %v6160, %v6487
        %v6586 = vadd.f32 %v6161, %v6492
        %v6587 = vadd.f32 %v6162, %v6497
        %v6588 = vadd.f32 %v6163, %v6502
        %v6589 = vadd.f32 %v6164, %v6507
        %v6590 = vadd.f32 %v6165, %v6512
        %v6591 = vadd.f32 %v6166, %v6517
        %v6592 = vadd.f32 %v6167, %v6522
        %v6593 = vadd.f32 %v6168, %v6527
        %v6594 = vadd.f32 %v6169, %v6532
        %v6595 = vadd.f32 %v6170, %v6537
        %v6596 = vadd.f32 %v6171, %v6542
        %v6597 = vadd.f32 %v6172, %v6547
        %v6598 = vadd.f32 %v6173, %v6552
        %v6599 = vadd.f32 %v6174, %v6557
        %v6600 = vadd.f32 %v6175, %v6562
        %v6601 = vld [vmem:[#allocation2 + $0x14] sm:$0xff]
        %v6602 = vld [vmem:[#allocation2 + $0x1c] sm:$0xff]
        %v6603 = vld [vmem:[#allocation2 + $0x24] sm:$0xff]
        %v6604 = vld [vmem:[#allocation2 + $0x2c] sm:$0xff]
        %v6605 = vld [vmem:[#allocation2 + $0x34] sm:$0xff]
        %v6606 = vld [vmem:[#allocation2 + $0x3c] sm:$0xff]
        %v6607 = vld [vmem:[#allocation2 + $0x44] sm:$0xff]
        %v6608 = vld [vmem:[#allocation2 + $0x4c] sm:$0xff]
        %v6609 = vld [vmem:[#allocation2 + $0x54] sm:$0xff]
        %v6610 = vld [vmem:[#allocation2 + $0x5c] sm:$0xff]
        %v6611 = vld [vmem:[#allocation2 + $0x64] sm:$0xff]
        %v6612 = vld [vmem:[#allocation2 + $0x6c] sm:$0xff]
        %v6613 = vld [vmem:[#allocation2 + $0x74] sm:$0xff]
        %v6614 = vld [vmem:[#allocation2 + $0x7c] sm:$0xff]
        %v6615 = vld [vmem:[#allocation2 + $0x84] sm:$0xff]
        %v6616 = vld [vmem:[#allocation2 + $0x8c] sm:$0xff]
        %v6617 = vld [vmem:[#allocation2 + $0x94] sm:$0xff]
        %v6618 = vld [vmem:[#allocation2 + $0x9c] sm:$0xff]
        %v6619 = vld [vmem:[#allocation2 + $0xa4] sm:$0xff]
        %v6620 = vld [vmem:[#allocation2 + $0xac] sm:$0xff]
        %v6621 = vld [vmem:[#allocation2 + $0xb4] sm:$0xff]
        %v6622 = vld [vmem:[#allocation2 + $0xbc] sm:$0xff]
        %v6623 = vld [vmem:[#allocation2 + $0xc4] sm:$0xff]
        %v6624 = vld [vmem:[#allocation2 + $0xcc] sm:$0xff]
        %v6625 = vld [vmem:[#allocation2 + $0xd4] sm:$0xff]
        %v6626 = vld [vmem:[#allocation2 + $0xdc] sm:$0xff]
        %v6627 = vld [vmem:[#allocation2 + $0xe4] sm:$0xff]
        %v6628 = vld [vmem:[#allocation2 + $0xec] sm:$0xff]
        %v6629 = vld [vmem:[#allocation2 + $0xf4] sm:$0xff]
        %v6630 = vld [vmem:[#allocation2 + $0xfc] sm:$0xff]
        %v6631 = vld [vmem:[#allocation2 + $0x104] sm:$0xff]
        %v6632 = vld [vmem:[#allocation2 + $0x10c] sm:$0xff]
        %v6633 = vld [vmem:[#allocation2 + $0x114] sm:$0xff]
        %v6634 = vld [vmem:[#allocation2 + $0x11c] sm:$0xff]
        %v6635 = vld [vmem:[#allocation2 + $0x124] sm:$0xff]
        %v6636 = vld [vmem:[#allocation2 + $0x12c] sm:$0xff]
        %v6638 = vsel %vm4470, %v6601, 0
        %v6641 = vsel %vm4470, %v6602, 0
        %v6644 = vsel %vm4470, %v6603, 0
        %v6647 = vsel %vm4470, %v6604, 0
        %v6650 = vsel %vm4470, %v6605, 0
        %v6653 = vsel %vm4470, %v6606, 0
        %v6656 = vsel %vm4470, %v6607, 0
        %v6659 = vsel %vm4470, %v6608, 0
        %v6662 = vsel %vm4470, %v6609, 0
        %v6665 = vsel %vm4470, %v6610, 0
        %v6668 = vsel %vm4470, %v6611, 0
        %v6671 = vsel %vm4470, %v6612, 0
        %v6674 = vsel %vm4470, %v6613, 0
        %v6677 = vsel %vm4470, %v6614, 0
        %v6680 = vsel %vm4470, %v6615, 0
        %v6683 = vsel %vm4470, %v6616, 0
        %v6686 = vsel %vm4470, %v6617, 0
        %v6689 = vsel %vm4470, %v6618, 0
        %v6692 = vsel %vm4470, %v6619, 0
        %v6695 = vsel %vm4470, %v6620, 0
        %v6698 = vsel %vm4470, %v6621, 0
        %v6701 = vsel %vm4470, %v6622, 0
        %v6704 = vsel %vm4470, %v6623, 0
        %v6707 = vsel %vm4470, %v6624, 0
        %v6710 = vsel %vm4470, %v6625, 0
        %v6713 = vsel %vm4470, %v6626, 0
        %v6716 = vsel %vm4470, %v6627, 0
        %v6719 = vsel %vm4470, %v6628, 0
        %v6722 = vsel %vm4470, %v6629, 0
        %v6725 = vsel %vm4470, %v6630, 0
        %v6728 = vsel %vm4470, %v6631, 0
        %v6731 = vsel %vm4470, %v6632, 0
        %v6734 = vsel %vm4470, %v6633, 0
        %v6737 = vsel %vm4470, %v6634, 0
        %v6740 = vsel %vm4470, %v6635, 0
        %v6743 = vsel %vm4470, %v6636, 0
        %6745 = vmatprep.subr.mxu0 0.0
        %6746 = vmatpush1.msra.mxu0 %v349
        %6747 = vmatprep.subr.mxu0 0.0
        %6748 = vmatpush1.msra.mxu0 %v350
        %6749 = vmatprep.subr.mxu0 0.0
        %6750 = vmatpush1.msra.mxu0 0.0
        %6751 = vmatprep.subr.mxu0 0.0
        %6752 = vmatpush1.msra.mxu0 0.0
        %6753 = vmatprep.subr.mxu0 0.0
        %6754 = vmatpush1.msra.mxu0 0.0
        %6755 = vmatprep.subr.mxu0 0.0
        %6756 = vmatpush1.msra.mxu0 0.0
        %6757 = vmatprep.subr.mxu0 0.0
        %6758 = vmatpush1.msra.mxu0 0.0
        %6759 = vmatprep.subr.mxu0 0.0
        %6760 = vmatpush1.msra.mxu0 0.0
        %6761 = vmatprep.subr.mxu0 0.0
        %6762 = vmatpush1.msra.mxu0 0.0
        %6763 = vmatprep.subr.mxu0 0.0
        %6764 = vmatpush1.msra.mxu0 0.0
        %6765 = vmatprep.subr.mxu0 0.0
        %6766 = vmatpush1.msra.mxu0 0.0
        %6767 = vmatprep.subr.mxu0 0.0
        %6768 = vmatpush1.msra.mxu0 0.0
        %6769 = vmatprep.subr.mxu0 0.0
        %6770 = vmatpush1.msra.mxu0 0.0
        %6771 = vmatprep.subr.mxu0 0.0
        %6772 = vmatpush1.msra.mxu0 0.0
        %6773 = vmatprep.subr.mxu0 0.0
        %6774 = vmatpush1.msra.mxu0 0.0
        %6775 = vmatprep.subr.mxu0 0.0
        %6776 = vmatpush1.msra.mxu0 0.0
        %6777 = vmatprep.subr.mxu0 0.0
        %6778 = vmatpush1.msra.mxu0 0.0
        %6779 = vmatprep.subr.mxu0 0.0
        %6780 = vmatpush1.msra.mxu0 0.0
        %6781 = vmatprep.subr.mxu0 0.0
        %6782 = vmatpush1.msra.mxu0 0.0
        %6783 = vmatprep.subr.mxu0 0.0
        %6784 = vmatpush1.msra.mxu0 0.0
        %6785 = vmatprep.subr.mxu0 0.0
        %6786 = vmatpush1.msra.mxu0 0.0
        %6787 = vmatprep.subr.mxu0 0.0
        %6788 = vmatpush1.msra.mxu0 0.0
        %6789 = vmatprep.subr.mxu0 0.0
        %6790 = vmatpush1.msra.mxu0 0.0
        %6791 = vmatprep.subr.mxu0 0.0
        %6792 = vmatpush1.msra.mxu0 0.0
        %6793 = vmatprep.subr.mxu0 0.0
        %6794 = vmatpush1.msra.mxu0 0.0
        %6795 = vmatprep.subr.mxu0 0.0
        %6796 = vmatpush1.msra.mxu0 0.0
        %6797 = vmatprep.subr.mxu0 0.0
        %6798 = vmatpush1.msra.mxu0 0.0
        %6799 = vmatprep.subr.mxu0 0.0
        %6800 = vmatpush1.msra.mxu0 0.0
        %6801 = vmatprep.subr.mxu0 0.0
        %6802 = vmatpush1.msra.mxu0 0.0
        %6803 = vmatprep.subr.mxu0 0.0
        %6804 = vmatpush1.msra.mxu0 0.0
        %6805 = vmatprep.subr.mxu0 0.0
        %6806 = vmatpush1.msra.mxu0 0.0
        %6807 = vmatprep.subr.mxu0 0.0
        %6808 = vmatpush1.msra.mxu0 0.0
        %6809 = vmatprep.mubr.f32.mxu0 0.0
        %6810 = vmatmul.mubr.f32.gmra.mrb[0].mxu0 %v6638
        %v6811 = vpop.f32.mrb[0].mxu0
        %v6812 = vadd.f32 0.0, %v6811
        %v6813 = vpop.f32.mrb[0].mxu0
        %6814 = vmatprep.mubr.f32.mxu0 0.0
        %6815 = vmatmul.mubr.f32.gmra.mrb[0].mxu0 %v6641
        %v6816 = vpop.f32.mrb[0].mxu0
        %v6817 = vadd.f32 0.0, %v6816
        %v6818 = vpop.f32.mrb[0].mxu0
        %6819 = vmatprep.mubr.f32.mxu0 0.0
        %6820 = vmatmul.mubr.f32.gmra.mrb[0].mxu0 %v6644
        %v6821 = vpop.f32.mrb[0].mxu0
        %v6822 = vadd.f32 0.0, %v6821
        %v6823 = vpop.f32.mrb[0].mxu0
        %6824 = vmatprep.mubr.f32.mxu0 0.0
        %6825 = vmatmul.mubr.f32.gmra.mrb[0].mxu0 %v6647
        %v6826 = vpop.f32.mrb[0].mxu0
        %v6827 = vadd.f32 0.0, %v6826
        %v6828 = vpop.f32.mrb[0].mxu0
        %6829 = vmatprep.mubr.f32.mxu0 0.0
        %6830 = vmatmul.mubr.f32.gmra.mrb[0].mxu0 %v6650
        %v6831 = vpop.f32.mrb[0].mxu0
        %v6832 = vadd.f32 0.0, %v6831
        %v6833 = vpop.f32.mrb[0].mxu0
        %6834 = vmatprep.mubr.f32.mxu0 0.0
        %6835 = vmatmul.mubr.f32.gmra.mrb[0].mxu0 %v6653
        %v6836 = vpop.f32.mrb[0].mxu0
        %v6837 = vadd.f32 0.0, %v6836
        %v6838 = vpop.f32.mrb[0].mxu0
        %6839 = vmatprep.mubr.f32.mxu0 0.0
        %6840 = vmatmul.mubr.f32.gmra.mrb[0].mxu0 %v6656
        %v6841 = vpop.f32.mrb[0].mxu0
        %v6842 = vadd.f32 0.0, %v6841
        %v6843 = vpop.f32.mrb[0].mxu0
        %6844 = vmatprep.mubr.f32.mxu0 0.0
        %6845 = vmatmul.mubr.f32.gmra.mrb[0].mxu0 %v6659
        %v6846 = vpop.f32.mrb[0].mxu0
        %v6847 = vadd.f32 0.0, %v6846
        %v6848 = vpop.f32.mrb[0].mxu0
        %6849 = vmatprep.mubr.f32.mxu0 0.0
        %6850 = vmatmul.mubr.f32.gmra.mrb[0].mxu0 %v6662
        %v6851 = vpop.f32.mrb[0].mxu0
        %v6852 = vadd.f32 0.0, %v6851
        %v6853 = vpop.f32.mrb[0].mxu0
        %6854 = vmatprep.mubr.f32.mxu0 0.0
        %6855 = vmatmul.mubr.f32.gmra.mrb[0].mxu0 %v6665
        %v6856 = vpop.f32.mrb[0].mxu0
        %v6857 = vadd.f32 0.0, %v6856
        %v6858 = vpop.f32.mrb[0].mxu0
        %6859 = vmatprep.mubr.f32.mxu0 0.0
        %6860 = vmatmul.mubr.f32.gmra.mrb[0].mxu0 %v6668
        %v6861 = vpop.f32.mrb[0].mxu0
        %v6862 = vadd.f32 0.0, %v6861
        %v6863 = vpop.f32.mrb[0].mxu0
        %6864 = vmatprep.mubr.f32.mxu0 0.0
        %6865 = vmatmul.mubr.f32.gmra.mrb[0].mxu0 %v6671
        %v6866 = vpop.f32.mrb[0].mxu0
        %v6867 = vadd.f32 0.0, %v6866
        %v6868 = vpop.f32.mrb[0].mxu0
        %6869 = vmatprep.mubr.f32.mxu0 0.0
        %6870 = vmatmul.mubr.f32.gmra.mrb[0].mxu0 %v6674
        %v6871 = vpop.f32.mrb[0].mxu0
        %v6872 = vadd.f32 0.0, %v6871
        %v6873 = vpop.f32.mrb[0].mxu0
        %6874 = vmatprep.mubr.f32.mxu0 0.0
        %6875 = vmatmul.mubr.f32.gmra.mrb[0].mxu0 %v6677
        %v6876 = vpop.f32.mrb[0].mxu0
        %v6877 = vadd.f32 0.0, %v6876
        %v6878 = vpop.f32.mrb[0].mxu0
        %6879 = vmatprep.mubr.f32.mxu0 0.0
        %6880 = vmatmul.mubr.f32.gmra.mrb[0].mxu0 %v6680
        %v6881 = vpop.f32.mrb[0].mxu0
        %v6882 = vadd.f32 0.0, %v6881
        %v6883 = vpop.f32.mrb[0].mxu0
        %6884 = vmatprep.mubr.f32.mxu0 0.0
        %6885 = vmatmul.mubr.f32.gmra.mrb[0].mxu0 %v6683
        %v6886 = vpop.f32.mrb[0].mxu0
        %v6887 = vadd.f32 0.0, %v6886
        %v6888 = vpop.f32.mrb[0].mxu0
        %6889 = vmatprep.mubr.f32.mxu0 0.0
        %6890 = vmatmul.mubr.f32.gmra.mrb[0].mxu0 %v6686
        %v6891 = vpop.f32.mrb[0].mxu0
        %v6892 = vadd.f32 0.0, %v6891
        %v6893 = vpop.f32.mrb[0].mxu0
        %6894 = vmatprep.mubr.f32.mxu0 0.0
        %6895 = vmatmul.mubr.f32.gmra.mrb[0].mxu0 %v6689
        %v6896 = vpop.f32.mrb[0].mxu0
        %v6897 = vadd.f32 0.0, %v6896
        %v6898 = vpop.f32.mrb[0].mxu0
        %6899 = vmatprep.mubr.f32.mxu0 0.0
        %6900 = vmatmul.mubr.f32.gmra.mrb[0].mxu0 %v6692
        %v6901 = vpop.f32.mrb[0].mxu0
        %v6902 = vadd.f32 0.0, %v6901
        %v6903 = vpop.f32.mrb[0].mxu0
        %6904 = vmatprep.mubr.f32.mxu0 0.0
        %6905 = vmatmul.mubr.f32.gmra.mrb[0].mxu0 %v6695
        %v6906 = vpop.f32.mrb[0].mxu0
        %v6907 = vadd.f32 0.0, %v6906
        %v6908 = vpop.f32.mrb[0].mxu0
        %6909 = vmatprep.mubr.f32.mxu0 0.0
        %6910 = vmatmul.mubr.f32.gmra.mrb[0].mxu0 %v6698
        %v6911 = vpop.f32.mrb[0].mxu0
        %v6912 = vadd.f32 0.0, %v6911
        %v6913 = vpop.f32.mrb[0].mxu0
        %6914 = vmatprep.mubr.f32.mxu0 0.0
        %6915 = vmatmul.mubr.f32.gmra.mrb[0].mxu0 %v6701
        %v6916 = vpop.f32.mrb[0].mxu0
        %v6917 = vadd.f32 0.0, %v6916
        %v6918 = vpop.f32.mrb[0].mxu0
        %6919 = vmatprep.mubr.f32.mxu0 0.0
        %6920 = vmatmul.mubr.f32.gmra.mrb[0].mxu0 %v6704
        %v6921 = vpop.f32.mrb[0].mxu0
        %v6922 = vadd.f32 0.0, %v6921
        %v6923 = vpop.f32.mrb[0].mxu0
        %6924 = vmatprep.mubr.f32.mxu0 0.0
        %6925 = vmatmul.mubr.f32.gmra.mrb[0].mxu0 %v6707
        %v6926 = vpop.f32.mrb[0].mxu0
        %v6927 = vadd.f32 0.0, %v6926
        %v6928 = vpop.f32.mrb[0].mxu0
        %6929 = vmatprep.mubr.f32.mxu0 0.0
        %6930 = vmatmul.mubr.f32.gmra.mrb[0].mxu0 %v6710
        %v6931 = vpop.f32.mrb[0].mxu0
        %v6932 = vadd.f32 0.0, %v6931
        %v6933 = vpop.f32.mrb[0].mxu0
        %6934 = vmatprep.mubr.f32.mxu0 0.0
        %6935 = vmatmul.mubr.f32.gmra.mrb[0].mxu0 %v6713
        %v6936 = vpop.f32.mrb[0].mxu0
        %v6937 = vadd.f32 0.0, %v6936
        %v6938 = vpop.f32.mrb[0].mxu0
        %6939 = vmatprep.mubr.f32.mxu0 0.0
        %6940 = vmatmul.mubr.f32.gmra.mrb[0].mxu0 %v6716
        %v6941 = vpop.f32.mrb[0].mxu0
        %v6942 = vadd.f32 0.0, %v6941
        %v6943 = vpop.f32.mrb[0].mxu0
        %6944 = vmatprep.mubr.f32.mxu0 0.0
        %6945 = vmatmul.mubr.f32.gmra.mrb[0].mxu0 %v6719
        %v6946 = vpop.f32.mrb[0].mxu0
        %v6947 = vadd.f32 0.0, %v6946
        %v6948 = vpop.f32.mrb[0].mxu0
        %6949 = vmatprep.mubr.f32.mxu0 0.0
        %6950 = vmatmul.mubr.f32.gmra.mrb[0].mxu0 %v6722
        %v6951 = vpop.f32.mrb[0].mxu0
        %v6952 = vadd.f32 0.0, %v6951
        %v6953 = vpop.f32.mrb[0].mxu0
        %6954 = vmatprep.mubr.f32.mxu0 0.0
        %6955 = vmatmul.mubr.f32.gmra.mrb[0].mxu0 %v6725
        %v6956 = vpop.f32.mrb[0].mxu0
        %v6957 = vadd.f32 0.0, %v6956
        %v6958 = vpop.f32.mrb[0].mxu0
        %6959 = vmatprep.mubr.f32.mxu0 0.0
        %6960 = vmatmul.mubr.f32.gmra.mrb[0].mxu0 %v6728
        %v6961 = vpop.f32.mrb[0].mxu0
        %v6962 = vadd.f32 0.0, %v6961
        %v6963 = vpop.f32.mrb[0].mxu0
        %6964 = vmatprep.mubr.f32.mxu0 0.0
        %6965 = vmatmul.mubr.f32.gmra.mrb[0].mxu0 %v6731
        %v6966 = vpop.f32.mrb[0].mxu0
        %v6967 = vadd.f32 0.0, %v6966
        %v6968 = vpop.f32.mrb[0].mxu0
        %6969 = vmatprep.mubr.f32.mxu0 0.0
        %6970 = vmatmul.mubr.f32.gmra.mrb[0].mxu0 %v6734
        %v6971 = vpop.f32.mrb[0].mxu0
        %v6972 = vadd.f32 0.0, %v6971
        %v6973 = vpop.f32.mrb[0].mxu0
        %6974 = vmatprep.mubr.f32.mxu0 0.0
        %6975 = vmatmul.mubr.f32.gmra.mrb[0].mxu0 %v6737
        %v6976 = vpop.f32.mrb[0].mxu0
        %v6977 = vadd.f32 0.0, %v6976
        %v6978 = vpop.f32.mrb[0].mxu0
        %6979 = vmatprep.mubr.f32.mxu0 0.0
        %6980 = vmatmul.mubr.f32.gmra.mrb[0].mxu0 %v6740
        %v6981 = vpop.f32.mrb[0].mxu0
        %v6982 = vadd.f32 0.0, %v6981
        %v6983 = vpop.f32.mrb[0].mxu0
        %6984 = vmatprep.mubr.f32.mxu0 0.0
        %6985 = vmatmul.mubr.f32.gmra.mrb[0].mxu0 %v6743
        %v6986 = vpop.f32.mrb[0].mxu0
        %v6987 = vadd.f32 0.0, %v6986
        %v6988 = vpop.f32.mrb[0].mxu0
        %6989 = vdwg.mxu0
        %v6990 = vadd.f32 %v6565, %v6812
        %v6991 = vadd.f32 %v6566, %v6817
        %v6992 = vadd.f32 %v6567, %v6822
        %v6993 = vadd.f32 %v6568, %v6827
        %v6994 = vadd.f32 %v6569, %v6832
        %v6995 = vadd.f32 %v6570, %v6837
        %v6996 = vadd.f32 %v6571, %v6842
        %v6997 = vadd.f32 %v6572, %v6847
        %v6998 = vadd.f32 %v6573, %v6852
        %v6999 = vadd.f32 %v6574, %v6857
        %v7000 = vadd.f32 %v6575, %v6862
        %v7001 = vadd.f32 %v6576, %v6867
        %v7002 = vadd.f32 %v6577, %v6872
        %v7003 = vadd.f32 %v6578, %v6877
        %v7004 = vadd.f32 %v6579, %v6882
        %v7005 = vadd.f32 %v6580, %v6887
        %v7006 = vadd.f32 %v6581, %v6892
        %v7007 = vadd.f32 %v6582, %v6897
        %v7008 = vadd.f32 %v6583, %v6902
        %v7009 = vadd.f32 %v6584, %v6907
        %v7010 = vadd.f32 %v6585, %v6912
        %v7011 = vadd.f32 %v6586, %v6917
        %v7012 = vadd.f32 %v6587, %v6922
        %v7013 = vadd.f32 %v6588, %v6927
        %v7014 = vadd.f32 %v6589, %v6932
        %v7015 = vadd.f32 %v6590, %v6937
        %v7016 = vadd.f32 %v6591, %v6942
        %v7017 = vadd.f32 %v6592, %v6947
        %v7018 = vadd.f32 %v6593, %v6952
        %v7019 = vadd.f32 %v6594, %v6957
        %v7020 = vadd.f32 %v6595, %v6962
        %v7021 = vadd.f32 %v6596, %v6967
        %v7022 = vadd.f32 %v6597, %v6972
        %v7023 = vadd.f32 %v6598, %v6977
        %v7024 = vadd.f32 %v6599, %v6982
        %v7025 = vadd.f32 %v6600, %v6987
        %v7026 = vld [vmem:[#allocation2 + $0x24] sm:$0xff]
        %v7027 = vld [vmem:[#allocation2 + $0x2c] sm:$0xff]
        %v7028 = vld [vmem:[#allocation2 + $0x34] sm:$0xff]
        %v7029 = vld [vmem:[#allocation2 + $0x3c] sm:$0xff]
        %v7030 = vld [vmem:[#allocation2 + $0x44] sm:$0xff]
        %v7031 = vld [vmem:[#allocation2 + $0x4c] sm:$0xff]
        %v7032 = vld [vmem:[#allocation2 + $0x54] sm:$0xff]
        %v7033 = vld [vmem:[#allocation2 + $0x5c] sm:$0xff]
        %v7034 = vld [vmem:[#allocation2 + $0x64] sm:$0xff]
        %v7035 = vld [vmem:[#allocation2 + $0x6c] sm:$0xff]
        %v7036 = vld [vmem:[#allocation2 + $0x74] sm:$0xff]
        %v7037 = vld [vmem:[#allocation2 + $0x7c] sm:$0xff]
        %v7038 = vld [vmem:[#allocation2 + $0x84] sm:$0xff]
        %v7039 = vld [vmem:[#allocation2 + $0x8c] sm:$0xff]
        %v7040 = vld [vmem:[#allocation2 + $0x94] sm:$0xff]
        %v7041 = vld [vmem:[#allocation2 + $0x9c] sm:$0xff]
        %v7042 = vld [vmem:[#allocation2 + $0xa4] sm:$0xff]
        %v7043 = vld [vmem:[#allocation2 + $0xac] sm:$0xff]
        %v7044 = vld [vmem:[#allocation2 + $0xb4] sm:$0xff]
        %v7045 = vld [vmem:[#allocation2 + $0xbc] sm:$0xff]
        %v7046 = vld [vmem:[#allocation2 + $0xc4] sm:$0xff]
        %v7047 = vld [vmem:[#allocation2 + $0xcc] sm:$0xff]
        %v7048 = vld [vmem:[#allocation2 + $0xd4] sm:$0xff]
        %v7049 = vld [vmem:[#allocation2 + $0xdc] sm:$0xff]
        %v7050 = vld [vmem:[#allocation2 + $0xe4] sm:$0xff]
        %v7051 = vld [vmem:[#allocation2 + $0xec] sm:$0xff]
        %v7052 = vld [vmem:[#allocation2 + $0xf4] sm:$0xff]
        %v7053 = vld [vmem:[#allocation2 + $0xfc] sm:$0xff]
        %v7054 = vld [vmem:[#allocation2 + $0x104] sm:$0xff]
        %v7055 = vld [vmem:[#allocation2 + $0x10c] sm:$0xff]
        %v7056 = vld [vmem:[#allocation2 + $0x114] sm:$0xff]
        %v7057 = vld [vmem:[#allocation2 + $0x11c] sm:$0xff]
        %v7058 = vld [vmem:[#allocation2 + $0x124] sm:$0xff]
        %v7059 = vld [vmem:[#allocation2 + $0x12c] sm:$0xff]
        %v7060 = vld [vmem:[#allocation2 + $0x134] sm:$0xff]
        %v7061 = vld [vmem:[#allocation2 + $0x13c] sm:$0xff]
        %v7063 = vsel %vm4470, %v7026, 0
        %v7066 = vsel %vm4470, %v7027, 0
        %v7069 = vsel %vm4470, %v7028, 0
        %v7072 = vsel %vm4470, %v7029, 0
        %v7075 = vsel %vm4470, %v7030, 0
        %v7078 = vsel %vm4470, %v7031, 0
        %v7081 = vsel %vm4470, %v7032, 0
        %v7084 = vsel %vm4470, %v7033, 0
        %v7087 = vsel %vm4470, %v7034, 0
        %v7090 = vsel %vm4470, %v7035, 0
        %v7093 = vsel %vm4470, %v7036, 0
        %v7096 = vsel %vm4470, %v7037, 0
        %v7099 = vsel %vm4470, %v7038, 0
        %v7102 = vsel %vm4470, %v7039, 0
        %v7105 = vsel %vm4470, %v7040, 0
        %v7108 = vsel %vm4470, %v7041, 0
        %v7111 = vsel %vm4470, %v7042, 0
        %v7114 = vsel %vm4470, %v7043, 0
        %v7117 = vsel %vm4470, %v7044, 0
        %v7120 = vsel %vm4470, %v7045, 0
        %v7123 = vsel %vm4470, %v7046, 0
        %v7126 = vsel %vm4470, %v7047, 0
        %v7129 = vsel %vm4470, %v7048, 0
        %v7132 = vsel %vm4470, %v7049, 0
        %v7135 = vsel %vm4470, %v7050, 0
        %v7138 = vsel %vm4470, %v7051, 0
        %v7141 = vsel %vm4470, %v7052, 0
        %v7144 = vsel %vm4470, %v7053, 0
        %v7147 = vsel %vm4470, %v7054, 0
        %v7150 = vsel %vm4470, %v7055, 0
        %v7153 = vsel %vm4470, %v7056, 0
        %v7156 = vsel %vm4470, %v7057, 0
        %v7159 = vsel %vm4470, %v7058, 0
        %v7162 = vsel %vm4470, %v7059, 0
        %v7165 = vsel %vm4470, %v7060, 0
        %v7168 = vsel %vm4470, %v7061, 0
        %7170 = vmatprep.subr.mxu0 0.0
        %7171 = vmatpush1.msra.mxu0 %v351
        %7172 = vmatprep.subr.mxu0 0.0
        %7173 = vmatpush1.msra.mxu0 %v352
        %7174 = vmatprep.subr.mxu0 0.0
        %7175 = vmatpush1.msra.mxu0 0.0
        %7176 = vmatprep.subr.mxu0 0.0
        %7177 = vmatpush1.msra.mxu0 0.0
        %7178 = vmatprep.subr.mxu0 0.0
        %7179 = vmatpush1.msra.mxu0 0.0
        %7180 = vmatprep.subr.mxu0 0.0
        %7181 = vmatpush1.msra.mxu0 0.0
        %7182 = vmatprep.subr.mxu0 0.0
        %7183 = vmatpush1.msra.mxu0 0.0
        %7184 = vmatprep.subr.mxu0 0.0
        %7185 = vmatpush1.msra.mxu0 0.0
        %7186 = vmatprep.subr.mxu0 0.0
        %7187 = vmatpush1.msra.mxu0 0.0
        %7188 = vmatprep.subr.mxu0 0.0
        %7189 = vmatpush1.msra.mxu0 0.0
        %7190 = vmatprep.subr.mxu0 0.0
        %7191 = vmatpush1.msra.mxu0 0.0
        %7192 = vmatprep.subr.mxu0 0.0
        %7193 = vmatpush1.msra.mxu0 0.0
        %7194 = vmatprep.subr.mxu0 0.0
        %7195 = vmatpush1.msra.mxu0 0.0
        %7196 = vmatprep.subr.mxu0 0.0
        %7197 = vmatpush1.msra.mxu0 0.0
        %7198 = vmatprep.subr.mxu0 0.0
        %7199 = vmatpush1.msra.mxu0 0.0
        %7200 = vmatprep.subr.mxu0 0.0
        %7201 = vmatpush1.msra.mxu0 0.0
        %7202 = vmatprep.subr.mxu0 0.0
        %7203 = vmatpush1.msra.mxu0 0.0
        %7204 = vmatprep.subr.mxu0 0.0
        %7205 = vmatpush1.msra.mxu0 0.0
        %7206 = vmatprep.subr.mxu0 0.0
        %7207 = vmatpush1.msra.mxu0 0.0
        %7208 = vmatprep.subr.mxu0 0.0
        %7209 = vmatpush1.msra.mxu0 0.0
        %7210 = vmatprep.subr.mxu0 0.0
        %7211 = vmatpush1.msra.mxu0 0.0
        %7212 = vmatprep.subr.mxu0 0.0
        %7213 = vmatpush1.msra.mxu0 0.0
        %7214 = vmatprep.subr.mxu0 0.0
        %7215 = vmatpush1.msra.mxu0 0.0
        %7216 = vmatprep.subr.mxu0 0.0
        %7217 = vmatpush1.msra.mxu0 0.0
        %7218 = vmatprep.subr.mxu0 0.0
        %7219 = vmatpush1.msra.mxu0 0.0
        %7220 = vmatprep.subr.mxu0 0.0
        %7221 = vmatpush1.msra.mxu0 0.0
        %7222 = vmatprep.subr.mxu0 0.0
        %7223 = vmatpush1.msra.mxu0 0.0
        %7224 = vmatprep.subr.mxu0 0.0
        %7225 = vmatpush1.msra.mxu0 0.0
        %7226 = vmatprep.subr.mxu0 0.0
        %7227 = vmatpush1.msra.mxu0 0.0
        %7228 = vmatprep.subr.mxu0 0.0
        %7229 = vmatpush1.msra.mxu0 0.0
        %7230 = vmatprep.subr.mxu0 0.0
        %7231 = vmatpush1.msra.mxu0 0.0
        %7232 = vmatprep.subr.mxu0 0.0
        %7233 = vmatpush1.msra.mxu0 0.0
        %7234 = vmatprep.mubr.f32.mxu0 0.0
        %7235 = vmatmul.mubr.f32.gmra.mrb[0].mxu0 %v7063
        %v7236 = vpop.f32.mrb[0].mxu0
        %v7237 = vadd.f32 0.0, %v7236
        %v7238 = vpop.f32.mrb[0].mxu0
        %7239 = vmatprep.mubr.f32.mxu0 0.0
        %7240 = vmatmul.mubr.f32.gmra.mrb[0].mxu0 %v7066
        %v7241 = vpop.f32.mrb[0].mxu0
        %v7242 = vadd.f32 0.0, %v7241
        %v7243 = vpop.f32.mrb[0].mxu0
        %7244 = vmatprep.mubr.f32.mxu0 0.0
        %7245 = vmatmul.mubr.f32.gmra.mrb[0].mxu0 %v7069
        %v7246 = vpop.f32.mrb[0].mxu0
        %v7247 = vadd.f32 0.0, %v7246
        %v7248 = vpop.f32.mrb[0].mxu0
        %7249 = vmatprep.mubr.f32.mxu0 0.0
        %7250 = vmatmul.mubr.f32.gmra.mrb[0].mxu0 %v7072
        %v7251 = vpop.f32.mrb[0].mxu0
        %v7252 = vadd.f32 0.0, %v7251
        %v7253 = vpop.f32.mrb[0].mxu0
        %7254 = vmatprep.mubr.f32.mxu0 0.0
        %7255 = vmatmul.mubr.f32.gmra.mrb[0].mxu0 %v7075
        %v7256 = vpop.f32.mrb[0].mxu0
        %v7257 = vadd.f32 0.0, %v7256
        %v7258 = vpop.f32.mrb[0].mxu0
        %7259 = vmatprep.mubr.f32.mxu0 0.0
        %7260 = vmatmul.mubr.f32.gmra.mrb[0].mxu0 %v7078
        %v7261 = vpop.f32.mrb[0].mxu0
        %v7262 = vadd.f32 0.0, %v7261
        %v7263 = vpop.f32.mrb[0].mxu0
        %7264 = vmatprep.mubr.f32.mxu0 0.0
        %7265 = vmatmul.mubr.f32.gmra.mrb[0].mxu0 %v7081
        %v7266 = vpop.f32.mrb[0].mxu0
        %v7267 = vadd.f32 0.0, %v7266
        %v7268 = vpop.f32.mrb[0].mxu0
        %7269 = vmatprep.mubr.f32.mxu0 0.0
        %7270 = vmatmul.mubr.f32.gmra.mrb[0].mxu0 %v7084
        %v7271 = vpop.f32.mrb[0].mxu0
        %v7272 = vadd.f32 0.0, %v7271
        %v7273 = vpop.f32.mrb[0].mxu0
        %7274 = vmatprep.mubr.f32.mxu0 0.0
        %7275 = vmatmul.mubr.f32.gmra.mrb[0].mxu0 %v7087
        %v7276 = vpop.f32.mrb[0].mxu0
        %v7277 = vadd.f32 0.0, %v7276
        %v7278 = vpop.f32.mrb[0].mxu0
        %7279 = vmatprep.mubr.f32.mxu0 0.0
        %7280 = vmatmul.mubr.f32.gmra.mrb[0].mxu0 %v7090
        %v7281 = vpop.f32.mrb[0].mxu0
        %v7282 = vadd.f32 0.0, %v7281
        %v7283 = vpop.f32.mrb[0].mxu0
        %7284 = vmatprep.mubr.f32.mxu0 0.0
        %7285 = vmatmul.mubr.f32.gmra.mrb[0].mxu0 %v7093
        %v7286 = vpop.f32.mrb[0].mxu0
        %v7287 = vadd.f32 0.0, %v7286
        %v7288 = vpop.f32.mrb[0].mxu0
        %7289 = vmatprep.mubr.f32.mxu0 0.0
        %7290 = vmatmul.mubr.f32.gmra.mrb[0].mxu0 %v7096
        %v7291 = vpop.f32.mrb[0].mxu0
        %v7292 = vadd.f32 0.0, %v7291
        %v7293 = vpop.f32.mrb[0].mxu0
        %7294 = vmatprep.mubr.f32.mxu0 0.0
        %7295 = vmatmul.mubr.f32.gmra.mrb[0].mxu0 %v7099
        %v7296 = vpop.f32.mrb[0].mxu0
        %v7297 = vadd.f32 0.0, %v7296
        %v7298 = vpop.f32.mrb[0].mxu0
        %7299 = vmatprep.mubr.f32.mxu0 0.0
        %7300 = vmatmul.mubr.f32.gmra.mrb[0].mxu0 %v7102
        %v7301 = vpop.f32.mrb[0].mxu0
        %v7302 = vadd.f32 0.0, %v7301
        %v7303 = vpop.f32.mrb[0].mxu0
        %7304 = vmatprep.mubr.f32.mxu0 0.0
        %7305 = vmatmul.mubr.f32.gmra.mrb[0].mxu0 %v7105
        %v7306 = vpop.f32.mrb[0].mxu0
        %v7307 = vadd.f32 0.0, %v7306
        %v7308 = vpop.f32.mrb[0].mxu0
        %7309 = vmatprep.mubr.f32.mxu0 0.0
        %7310 = vmatmul.mubr.f32.gmra.mrb[0].mxu0 %v7108
        %v7311 = vpop.f32.mrb[0].mxu0
        %v7312 = vadd.f32 0.0, %v7311
        %v7313 = vpop.f32.mrb[0].mxu0
        %7314 = vmatprep.mubr.f32.mxu0 0.0
        %7315 = vmatmul.mubr.f32.gmra.mrb[0].mxu0 %v7111
        %v7316 = vpop.f32.mrb[0].mxu0
        %v7317 = vadd.f32 0.0, %v7316
        %v7318 = vpop.f32.mrb[0].mxu0
        %7319 = vmatprep.mubr.f32.mxu0 0.0
        %7320 = vmatmul.mubr.f32.gmra.mrb[0].mxu0 %v7114
        %v7321 = vpop.f32.mrb[0].mxu0
        %v7322 = vadd.f32 0.0, %v7321
        %v7323 = vpop.f32.mrb[0].mxu0
        %7324 = vmatprep.mubr.f32.mxu0 0.0
        %7325 = vmatmul.mubr.f32.gmra.mrb[0].mxu0 %v7117
        %v7326 = vpop.f32.mrb[0].mxu0
        %v7327 = vadd.f32 0.0, %v7326
        %v7328 = vpop.f32.mrb[0].mxu0
        %7329 = vmatprep.mubr.f32.mxu0 0.0
        %7330 = vmatmul.mubr.f32.gmra.mrb[0].mxu0 %v7120
        %v7331 = vpop.f32.mrb[0].mxu0
        %v7332 = vadd.f32 0.0, %v7331
        %v7333 = vpop.f32.mrb[0].mxu0
        %7334 = vmatprep.mubr.f32.mxu0 0.0
        %7335 = vmatmul.mubr.f32.gmra.mrb[0].mxu0 %v7123
        %v7336 = vpop.f32.mrb[0].mxu0
        %v7337 = vadd.f32 0.0, %v7336
        %v7338 = vpop.f32.mrb[0].mxu0
        %7339 = vmatprep.mubr.f32.mxu0 0.0
        %7340 = vmatmul.mubr.f32.gmra.mrb[0].mxu0 %v7126
        %v7341 = vpop.f32.mrb[0].mxu0
        %v7342 = vadd.f32 0.0, %v7341
        %v7343 = vpop.f32.mrb[0].mxu0
        %7344 = vmatprep.mubr.f32.mxu0 0.0
        %7345 = vmatmul.mubr.f32.gmra.mrb[0].mxu0 %v7129
        %v7346 = vpop.f32.mrb[0].mxu0
        %v7347 = vadd.f32 0.0, %v7346
        %v7348 = vpop.f32.mrb[0].mxu0
        %7349 = vmatprep.mubr.f32.mxu0 0.0
        %7350 = vmatmul.mubr.f32.gmra.mrb[0].mxu0 %v7132
        %v7351 = vpop.f32.mrb[0].mxu0
        %v7352 = vadd.f32 0.0, %v7351
        %v7353 = vpop.f32.mrb[0].mxu0
        %7354 = vmatprep.mubr.f32.mxu0 0.0
        %7355 = vmatmul.mubr.f32.gmra.mrb[0].mxu0 %v7135
        %v7356 = vpop.f32.mrb[0].mxu0
        %v7357 = vadd.f32 0.0, %v7356
        %v7358 = vpop.f32.mrb[0].mxu0
        %7359 = vmatprep.mubr.f32.mxu0 0.0
        %7360 = vmatmul.mubr.f32.gmra.mrb[0].mxu0 %v7138
        %v7361 = vpop.f32.mrb[0].mxu0
        %v7362 = vadd.f32 0.0, %v7361
        %v7363 = vpop.f32.mrb[0].mxu0
        %7364 = vmatprep.mubr.f32.mxu0 0.0
        %7365 = vmatmul.mubr.f32.gmra.mrb[0].mxu0 %v7141
        %v7366 = vpop.f32.mrb[0].mxu0
        %v7367 = vadd.f32 0.0, %v7366
        %v7368 = vpop.f32.mrb[0].mxu0
        %7369 = vmatprep.mubr.f32.mxu0 0.0
        %7370 = vmatmul.mubr.f32.gmra.mrb[0].mxu0 %v7144
        %v7371 = vpop.f32.mrb[0].mxu0
        %v7372 = vadd.f32 0.0, %v7371
        %v7373 = vpop.f32.mrb[0].mxu0
        %7374 = vmatprep.mubr.f32.mxu0 0.0
        %7375 = vmatmul.mubr.f32.gmra.mrb[0].mxu0 %v7147
        %v7376 = vpop.f32.mrb[0].mxu0
        %v7377 = vadd.f32 0.0, %v7376
        %v7378 = vpop.f32.mrb[0].mxu0
        %7379 = vmatprep.mubr.f32.mxu0 0.0
        %7380 = vmatmul.mubr.f32.gmra.mrb[0].mxu0 %v7150
        %v7381 = vpop.f32.mrb[0].mxu0
        %v7382 = vadd.f32 0.0, %v7381
        %v7383 = vpop.f32.mrb[0].mxu0
        %7384 = vmatprep.mubr.f32.mxu0 0.0
        %7385 = vmatmul.mubr.f32.gmra.mrb[0].mxu0 %v7153
        %v7386 = vpop.f32.mrb[0].mxu0
        %v7387 = vadd.f32 0.0, %v7386
        %v7388 = vpop.f32.mrb[0].mxu0
        %7389 = vmatprep.mubr.f32.mxu0 0.0
        %7390 = vmatmul.mubr.f32.gmra.mrb[0].mxu0 %v7156
        %v7391 = vpop.f32.mrb[0].mxu0
        %v7392 = vadd.f32 0.0, %v7391
        %v7393 = vpop.f32.mrb[0].mxu0
        %7394 = vmatprep.mubr.f32.mxu0 0.0
        %7395 = vmatmul.mubr.f32.gmra.mrb[0].mxu0 %v7159
        %v7396 = vpop.f32.mrb[0].mxu0
        %v7397 = vadd.f32 0.0, %v7396
        %v7398 = vpop.f32.mrb[0].mxu0
        %7399 = vmatprep.mubr.f32.mxu0 0.0
        %7400 = vmatmul.mubr.f32.gmra.mrb[0].mxu0 %v7162
        %v7401 = vpop.f32.mrb[0].mxu0
        %v7402 = vadd.f32 0.0, %v7401
        %v7403 = vpop.f32.mrb[0].mxu0
        %7404 = vmatprep.mubr.f32.mxu0 0.0
        %7405 = vmatmul.mubr.f32.gmra.mrb[0].mxu0 %v7165
        %v7406 = vpop.f32.mrb[0].mxu0
        %v7407 = vadd.f32 0.0, %v7406
        %v7408 = vpop.f32.mrb[0].mxu0
        %7409 = vmatprep.mubr.f32.mxu0 0.0
        %7410 = vmatmul.mubr.f32.gmra.mrb[0].mxu0 %v7168
        %v7411 = vpop.f32.mrb[0].mxu0
        %v7412 = vadd.f32 0.0, %v7411
        %v7413 = vpop.f32.mrb[0].mxu0
        %7414 = vdwg.mxu0
        %v7415 = vadd.f32 %v6990, %v7237
        %v7416 = vadd.f32 %v6991, %v7242
        %v7417 = vadd.f32 %v6992, %v7247
        %v7418 = vadd.f32 %v6993, %v7252
        %v7419 = vadd.f32 %v6994, %v7257
        %v7420 = vadd.f32 %v6995, %v7262
        %v7421 = vadd.f32 %v6996, %v7267
        %v7422 = vadd.f32 %v6997, %v7272
        %v7423 = vadd.f32 %v6998, %v7277
        %v7424 = vadd.f32 %v6999, %v7282
        %v7425 = vadd.f32 %v7000, %v7287
        %v7426 = vadd.f32 %v7001, %v7292
        %v7427 = vadd.f32 %v7002, %v7297
        %v7428 = vadd.f32 %v7003, %v7302
        %v7429 = vadd.f32 %v7004, %v7307
        %v7430 = vadd.f32 %v7005, %v7312
        %v7431 = vadd.f32 %v7006, %v7317
        %v7432 = vadd.f32 %v7007, %v7322
        %v7433 = vadd.f32 %v7008, %v7327
        %v7434 = vadd.f32 %v7009, %v7332
        %v7435 = vadd.f32 %v7010, %v7337
        %v7436 = vadd.f32 %v7011, %v7342
        %v7437 = vadd.f32 %v7012, %v7347
        %v7438 = vadd.f32 %v7013, %v7352
        %v7439 = vadd.f32 %v7014, %v7357
        %v7440 = vadd.f32 %v7015, %v7362
        %v7441 = vadd.f32 %v7016, %v7367
        %v7442 = vadd.f32 %v7017, %v7372
        %v7443 = vadd.f32 %v7018, %v7377
        %v7444 = vadd.f32 %v7019, %v7382
        %v7445 = vadd.f32 %v7020, %v7387
        %v7446 = vadd.f32 %v7021, %v7392
        %v7447 = vadd.f32 %v7022, %v7397
        %v7448 = vadd.f32 %v7023, %v7402
        %v7449 = vadd.f32 %v7024, %v7407
        %v7450 = vadd.f32 %v7025, %v7412
        %v7451 = vld [vmem:[#allocation2 + $0x25] sm:$0xff]
        %v7452 = vld [vmem:[#allocation2 + $0x2d] sm:$0xff]
        %v7453 = vld [vmem:[#allocation2 + $0x35] sm:$0xff]
        %v7454 = vld [vmem:[#allocation2 + $0x3d] sm:$0xff]
        %v7455 = vld [vmem:[#allocation2 + $0x45] sm:$0xff]
        %v7456 = vld [vmem:[#allocation2 + $0x4d] sm:$0xff]
        %v7457 = vld [vmem:[#allocation2 + $0x55] sm:$0xff]
        %v7458 = vld [vmem:[#allocation2 + $0x5d] sm:$0xff]
        %v7459 = vld [vmem:[#allocation2 + $0x65] sm:$0xff]
        %v7460 = vld [vmem:[#allocation2 + $0x6d] sm:$0xff]
        %v7461 = vld [vmem:[#allocation2 + $0x75] sm:$0xff]
        %v7462 = vld [vmem:[#allocation2 + $0x7d] sm:$0xff]
        %v7463 = vld [vmem:[#allocation2 + $0x85] sm:$0xff]
        %v7464 = vld [vmem:[#allocation2 + $0x8d] sm:$0xff]
        %v7465 = vld [vmem:[#allocation2 + $0x95] sm:$0xff]
        %v7466 = vld [vmem:[#allocation2 + $0x9d] sm:$0xff]
        %v7467 = vld [vmem:[#allocation2 + $0xa5] sm:$0xff]
        %v7468 = vld [vmem:[#allocation2 + $0xad] sm:$0xff]
        %v7469 = vld [vmem:[#allocation2 + $0xb5] sm:$0xff]
        %v7470 = vld [vmem:[#allocation2 + $0xbd] sm:$0xff]
        %v7471 = vld [vmem:[#allocation2 + $0xc5] sm:$0xff]
        %v7472 = vld [vmem:[#allocation2 + $0xcd] sm:$0xff]
        %v7473 = vld [vmem:[#allocation2 + $0xd5] sm:$0xff]
        %v7474 = vld [vmem:[#allocation2 + $0xdd] sm:$0xff]
        %v7475 = vld [vmem:[#allocation2 + $0xe5] sm:$0xff]
        %v7476 = vld [vmem:[#allocation2 + $0xed] sm:$0xff]
        %v7477 = vld [vmem:[#allocation2 + $0xf5] sm:$0xff]
        %v7478 = vld [vmem:[#allocation2 + $0xfd] sm:$0xff]
        %v7479 = vld [vmem:[#allocation2 + $0x105] sm:$0xff]
        %v7480 = vld [vmem:[#allocation2 + $0x10d] sm:$0xff]
        %v7481 = vld [vmem:[#allocation2 + $0x115] sm:$0xff]
        %v7482 = vld [vmem:[#allocation2 + $0x11d] sm:$0xff]
        %v7483 = vld [vmem:[#allocation2 + $0x125] sm:$0xff]
        %v7484 = vld [vmem:[#allocation2 + $0x12d] sm:$0xff]
        %v7485 = vld [vmem:[#allocation2 + $0x135] sm:$0xff]
        %v7486 = vld [vmem:[#allocation2 + $0x13d] sm:$0xff]
        %v7488 = vsel %vm4470, %v7451, 0
        %v7491 = vsel %vm4470, %v7452, 0
        %v7494 = vsel %vm4470, %v7453, 0
        %v7497 = vsel %vm4470, %v7454, 0
        %v7500 = vsel %vm4470, %v7455, 0
        %v7503 = vsel %vm4470, %v7456, 0
        %v7506 = vsel %vm4470, %v7457, 0
        %v7509 = vsel %vm4470, %v7458, 0
        %v7512 = vsel %vm4470, %v7459, 0
        %v7515 = vsel %vm4470, %v7460, 0
        %v7518 = vsel %vm4470, %v7461, 0
        %v7521 = vsel %vm4470, %v7462, 0
        %v7524 = vsel %vm4470, %v7463, 0
        %v7527 = vsel %vm4470, %v7464, 0
        %v7530 = vsel %vm4470, %v7465, 0
        %v7533 = vsel %vm4470, %v7466, 0
        %v7536 = vsel %vm4470, %v7467, 0
        %v7539 = vsel %vm4470, %v7468, 0
        %v7542 = vsel %vm4470, %v7469, 0
        %v7545 = vsel %vm4470, %v7470, 0
        %v7548 = vsel %vm4470, %v7471, 0
        %v7551 = vsel %vm4470, %v7472, 0
        %v7554 = vsel %vm4470, %v7473, 0
        %v7557 = vsel %vm4470, %v7474, 0
        %v7560 = vsel %vm4470, %v7475, 0
        %v7563 = vsel %vm4470, %v7476, 0
        %v7566 = vsel %vm4470, %v7477, 0
        %v7569 = vsel %vm4470, %v7478, 0
        %v7572 = vsel %vm4470, %v7479, 0
        %v7575 = vsel %vm4470, %v7480, 0
        %v7578 = vsel %vm4470, %v7481, 0
        %v7581 = vsel %vm4470, %v7482, 0
        %v7584 = vsel %vm4470, %v7483, 0
        %v7587 = vsel %vm4470, %v7484, 0
        %v7590 = vsel %vm4470, %v7485, 0
        %v7593 = vsel %vm4470, %v7486, 0
        %7595 = vmatprep.subr.mxu0 0.0
        %7596 = vmatpush1.msra.mxu0 %v353
        %7597 = vmatprep.subr.mxu0 0.0
        %7598 = vmatpush1.msra.mxu0 %v354
        %7599 = vmatprep.subr.mxu0 0.0
        %7600 = vmatpush1.msra.mxu0 0.0
        %7601 = vmatprep.subr.mxu0 0.0
        %7602 = vmatpush1.msra.mxu0 0.0
        %7603 = vmatprep.subr.mxu0 0.0
        %7604 = vmatpush1.msra.mxu0 0.0
        %7605 = vmatprep.subr.mxu0 0.0
        %7606 = vmatpush1.msra.mxu0 0.0
        %7607 = vmatprep.subr.mxu0 0.0
        %7608 = vmatpush1.msra.mxu0 0.0
        %7609 = vmatprep.subr.mxu0 0.0
        %7610 = vmatpush1.msra.mxu0 0.0
        %7611 = vmatprep.subr.mxu0 0.0
        %7612 = vmatpush1.msra.mxu0 0.0
        %7613 = vmatprep.subr.mxu0 0.0
        %7614 = vmatpush1.msra.mxu0 0.0
        %7615 = vmatprep.subr.mxu0 0.0
        %7616 = vmatpush1.msra.mxu0 0.0
        %7617 = vmatprep.subr.mxu0 0.0
        %7618 = vmatpush1.msra.mxu0 0.0
        %7619 = vmatprep.subr.mxu0 0.0
        %7620 = vmatpush1.msra.mxu0 0.0
        %7621 = vmatprep.subr.mxu0 0.0
        %7622 = vmatpush1.msra.mxu0 0.0
        %7623 = vmatprep.subr.mxu0 0.0
        %7624 = vmatpush1.msra.mxu0 0.0
        %7625 = vmatprep.subr.mxu0 0.0
        %7626 = vmatpush1.msra.mxu0 0.0
        %7627 = vmatprep.subr.mxu0 0.0
        %7628 = vmatpush1.msra.mxu0 0.0
        %7629 = vmatprep.subr.mxu0 0.0
        %7630 = vmatpush1.msra.mxu0 0.0
        %7631 = vmatprep.subr.mxu0 0.0
        %7632 = vmatpush1.msra.mxu0 0.0
        %7633 = vmatprep.subr.mxu0 0.0
        %7634 = vmatpush1.msra.mxu0 0.0
        %7635 = vmatprep.subr.mxu0 0.0
        %7636 = vmatpush1.msra.mxu0 0.0
        %7637 = vmatprep.subr.mxu0 0.0
        %7638 = vmatpush1.msra.mxu0 0.0
        %7639 = vmatprep.subr.mxu0 0.0
        %7640 = vmatpush1.msra.mxu0 0.0
        %7641 = vmatprep.subr.mxu0 0.0
        %7642 = vmatpush1.msra.mxu0 0.0
        %7643 = vmatprep.subr.mxu0 0.0
        %7644 = vmatpush1.msra.mxu0 0.0
        %7645 = vmatprep.subr.mxu0 0.0
        %7646 = vmatpush1.msra.mxu0 0.0
        %7647 = vmatprep.subr.mxu0 0.0
        %7648 = vmatpush1.msra.mxu0 0.0
        %7649 = vmatprep.subr.mxu0 0.0
        %7650 = vmatpush1.msra.mxu0 0.0
        %7651 = vmatprep.subr.mxu0 0.0
        %7652 = vmatpush1.msra.mxu0 0.0
        %7653 = vmatprep.subr.mxu0 0.0
        %7654 = vmatpush1.msra.mxu0 0.0
        %7655 = vmatprep.subr.mxu0 0.0
        %7656 = vmatpush1.msra.mxu0 0.0
        %7657 = vmatprep.subr.mxu0 0.0
        %7658 = vmatpush1.msra.mxu0 0.0
        %7659 = vmatprep.mubr.f32.mxu0 0.0
        %7660 = vmatmul.mubr.f32.gmra.mrb[0].mxu0 %v7488
        %v7661 = vpop.f32.mrb[0].mxu0
        %v7662 = vadd.f32 0.0, %v7661
        %v7663 = vpop.f32.mrb[0].mxu0
        %7664 = vmatprep.mubr.f32.mxu0 0.0
        %7665 = vmatmul.mubr.f32.gmra.mrb[0].mxu0 %v7491
        %v7666 = vpop.f32.mrb[0].mxu0
        %v7667 = vadd.f32 0.0, %v7666
        %v7668 = vpop.f32.mrb[0].mxu0
        %7669 = vmatprep.mubr.f32.mxu0 0.0
        %7670 = vmatmul.mubr.f32.gmra.mrb[0].mxu0 %v7494
        %v7671 = vpop.f32.mrb[0].mxu0
        %v7672 = vadd.f32 0.0, %v7671
        %v7673 = vpop.f32.mrb[0].mxu0
        %7674 = vmatprep.mubr.f32.mxu0 0.0
        %7675 = vmatmul.mubr.f32.gmra.mrb[0].mxu0 %v7497
        %v7676 = vpop.f32.mrb[0].mxu0
        %v7677 = vadd.f32 0.0, %v7676
        %v7678 = vpop.f32.mrb[0].mxu0
        %7679 = vmatprep.mubr.f32.mxu0 0.0
        %7680 = vmatmul.mubr.f32.gmra.mrb[0].mxu0 %v7500
        %v7681 = vpop.f32.mrb[0].mxu0
        %v7682 = vadd.f32 0.0, %v7681
        %v7683 = vpop.f32.mrb[0].mxu0
        %7684 = vmatprep.mubr.f32.mxu0 0.0
        %7685 = vmatmul.mubr.f32.gmra.mrb[0].mxu0 %v7503
        %v7686 = vpop.f32.mrb[0].mxu0
        %v7687 = vadd.f32 0.0, %v7686
        %v7688 = vpop.f32.mrb[0].mxu0
        %7689 = vmatprep.mubr.f32.mxu0 0.0
        %7690 = vmatmul.mubr.f32.gmra.mrb[0].mxu0 %v7506
        %v7691 = vpop.f32.mrb[0].mxu0
        %v7692 = vadd.f32 0.0, %v7691
        %v7693 = vpop.f32.mrb[0].mxu0
        %7694 = vmatprep.mubr.f32.mxu0 0.0
        %7695 = vmatmul.mubr.f32.gmra.mrb[0].mxu0 %v7509
        %v7696 = vpop.f32.mrb[0].mxu0
        %v7697 = vadd.f32 0.0, %v7696
        %v7698 = vpop.f32.mrb[0].mxu0
        %7699 = vmatprep.mubr.f32.mxu0 0.0
        %7700 = vmatmul.mubr.f32.gmra.mrb[0].mxu0 %v7512
        %v7701 = vpop.f32.mrb[0].mxu0
        %v7702 = vadd.f32 0.0, %v7701
        %v7703 = vpop.f32.mrb[0].mxu0
        %7704 = vmatprep.mubr.f32.mxu0 0.0
        %7705 = vmatmul.mubr.f32.gmra.mrb[0].mxu0 %v7515
        %v7706 = vpop.f32.mrb[0].mxu0
        %v7707 = vadd.f32 0.0, %v7706
        %v7708 = vpop.f32.mrb[0].mxu0
        %7709 = vmatprep.mubr.f32.mxu0 0.0
        %7710 = vmatmul.mubr.f32.gmra.mrb[0].mxu0 %v7518
        %v7711 = vpop.f32.mrb[0].mxu0
        %v7712 = vadd.f32 0.0, %v7711
        %v7713 = vpop.f32.mrb[0].mxu0
        %7714 = vmatprep.mubr.f32.mxu0 0.0
        %7715 = vmatmul.mubr.f32.gmra.mrb[0].mxu0 %v7521
        %v7716 = vpop.f32.mrb[0].mxu0
        %v7717 = vadd.f32 0.0, %v7716
        %v7718 = vpop.f32.mrb[0].mxu0
        %7719 = vmatprep.mubr.f32.mxu0 0.0
        %7720 = vmatmul.mubr.f32.gmra.mrb[0].mxu0 %v7524
        %v7721 = vpop.f32.mrb[0].mxu0
        %v7722 = vadd.f32 0.0, %v7721
        %v7723 = vpop.f32.mrb[0].mxu0
        %7724 = vmatprep.mubr.f32.mxu0 0.0
        %7725 = vmatmul.mubr.f32.gmra.mrb[0].mxu0 %v7527
        %v7726 = vpop.f32.mrb[0].mxu0
        %v7727 = vadd.f32 0.0, %v7726
        %v7728 = vpop.f32.mrb[0].mxu0
        %7729 = vmatprep.mubr.f32.mxu0 0.0
        %7730 = vmatmul.mubr.f32.gmra.mrb[0].mxu0 %v7530
        %v7731 = vpop.f32.mrb[0].mxu0
        %v7732 = vadd.f32 0.0, %v7731
        %v7733 = vpop.f32.mrb[0].mxu0
        %7734 = vmatprep.mubr.f32.mxu0 0.0
        %7735 = vmatmul.mubr.f32.gmra.mrb[0].mxu0 %v7533
        %v7736 = vpop.f32.mrb[0].mxu0
        %v7737 = vadd.f32 0.0, %v7736
        %v7738 = vpop.f32.mrb[0].mxu0
        %7739 = vmatprep.mubr.f32.mxu0 0.0
        %7740 = vmatmul.mubr.f32.gmra.mrb[0].mxu0 %v7536
        %v7741 = vpop.f32.mrb[0].mxu0
        %v7742 = vadd.f32 0.0, %v7741
        %v7743 = vpop.f32.mrb[0].mxu0
        %7744 = vmatprep.mubr.f32.mxu0 0.0
        %7745 = vmatmul.mubr.f32.gmra.mrb[0].mxu0 %v7539
        %v7746 = vpop.f32.mrb[0].mxu0
        %v7747 = vadd.f32 0.0, %v7746
        %v7748 = vpop.f32.mrb[0].mxu0
        %7749 = vmatprep.mubr.f32.mxu0 0.0
        %7750 = vmatmul.mubr.f32.gmra.mrb[0].mxu0 %v7542
        %v7751 = vpop.f32.mrb[0].mxu0
        %v7752 = vadd.f32 0.0, %v7751
        %v7753 = vpop.f32.mrb[0].mxu0
        %7754 = vmatprep.mubr.f32.mxu0 0.0
        %7755 = vmatmul.mubr.f32.gmra.mrb[0].mxu0 %v7545
        %v7756 = vpop.f32.mrb[0].mxu0
        %v7757 = vadd.f32 0.0, %v7756
        %v7758 = vpop.f32.mrb[0].mxu0
        %7759 = vmatprep.mubr.f32.mxu0 0.0
        %7760 = vmatmul.mubr.f32.gmra.mrb[0].mxu0 %v7548
        %v7761 = vpop.f32.mrb[0].mxu0
        %v7762 = vadd.f32 0.0, %v7761
        %v7763 = vpop.f32.mrb[0].mxu0
        %7764 = vmatprep.mubr.f32.mxu0 0.0
        %7765 = vmatmul.mubr.f32.gmra.mrb[0].mxu0 %v7551
        %v7766 = vpop.f32.mrb[0].mxu0
        %v7767 = vadd.f32 0.0, %v7766
        %v7768 = vpop.f32.mrb[0].mxu0
        %7769 = vmatprep.mubr.f32.mxu0 0.0
        %7770 = vmatmul.mubr.f32.gmra.mrb[0].mxu0 %v7554
        %v7771 = vpop.f32.mrb[0].mxu0
        %v7772 = vadd.f32 0.0, %v7771
        %v7773 = vpop.f32.mrb[0].mxu0
        %7774 = vmatprep.mubr.f32.mxu0 0.0
        %7775 = vmatmul.mubr.f32.gmra.mrb[0].mxu0 %v7557
        %v7776 = vpop.f32.mrb[0].mxu0
        %v7777 = vadd.f32 0.0, %v7776
        %v7778 = vpop.f32.mrb[0].mxu0
        %7779 = vmatprep.mubr.f32.mxu0 0.0
        %7780 = vmatmul.mubr.f32.gmra.mrb[0].mxu0 %v7560
        %v7781 = vpop.f32.mrb[0].mxu0
        %v7782 = vadd.f32 0.0, %v7781
        %v7783 = vpop.f32.mrb[0].mxu0
        %7784 = vmatprep.mubr.f32.mxu0 0.0
        %7785 = vmatmul.mubr.f32.gmra.mrb[0].mxu0 %v7563
        %v7786 = vpop.f32.mrb[0].mxu0
        %v7787 = vadd.f32 0.0, %v7786
        %v7788 = vpop.f32.mrb[0].mxu0
        %7789 = vmatprep.mubr.f32.mxu0 0.0
        %7790 = vmatmul.mubr.f32.gmra.mrb[0].mxu0 %v7566
        %v7791 = vpop.f32.mrb[0].mxu0
        %v7792 = vadd.f32 0.0, %v7791
        %v7793 = vpop.f32.mrb[0].mxu0
        %7794 = vmatprep.mubr.f32.mxu0 0.0
        %7795 = vmatmul.mubr.f32.gmra.mrb[0].mxu0 %v7569
        %v7796 = vpop.f32.mrb[0].mxu0
        %v7797 = vadd.f32 0.0, %v7796
        %v7798 = vpop.f32.mrb[0].mxu0
        %7799 = vmatprep.mubr.f32.mxu0 0.0
        %7800 = vmatmul.mubr.f32.gmra.mrb[0].mxu0 %v7572
        %v7801 = vpop.f32.mrb[0].mxu0
        %v7802 = vadd.f32 0.0, %v7801
        %v7803 = vpop.f32.mrb[0].mxu0
        %7804 = vmatprep.mubr.f32.mxu0 0.0
        %7805 = vmatmul.mubr.f32.gmra.mrb[0].mxu0 %v7575
        %v7806 = vpop.f32.mrb[0].mxu0
        %v7807 = vadd.f32 0.0, %v7806
        %v7808 = vpop.f32.mrb[0].mxu0
        %7809 = vmatprep.mubr.f32.mxu0 0.0
        %7810 = vmatmul.mubr.f32.gmra.mrb[0].mxu0 %v7578
        %v7811 = vpop.f32.mrb[0].mxu0
        %v7812 = vadd.f32 0.0, %v7811
        %v7813 = vpop.f32.mrb[0].mxu0
        %7814 = vmatprep.mubr.f32.mxu0 0.0
        %7815 = vmatmul.mubr.f32.gmra.mrb[0].mxu0 %v7581
        %v7816 = vpop.f32.mrb[0].mxu0
        %v7817 = vadd.f32 0.0, %v7816
        %v7818 = vpop.f32.mrb[0].mxu0
        %7819 = vmatprep.mubr.f32.mxu0 0.0
        %7820 = vmatmul.mubr.f32.gmra.mrb[0].mxu0 %v7584
        %v7821 = vpop.f32.mrb[0].mxu0
        %v7822 = vadd.f32 0.0, %v7821
        %v7823 = vpop.f32.mrb[0].mxu0
        %7824 = vmatprep.mubr.f32.mxu0 0.0
        %7825 = vmatmul.mubr.f32.gmra.mrb[0].mxu0 %v7587
        %v7826 = vpop.f32.mrb[0].mxu0
        %v7827 = vadd.f32 0.0, %v7826
        %v7828 = vpop.f32.mrb[0].mxu0
        %7829 = vmatprep.mubr.f32.mxu0 0.0
        %7830 = vmatmul.mubr.f32.gmra.mrb[0].mxu0 %v7590
        %v7831 = vpop.f32.mrb[0].mxu0
        %v7832 = vadd.f32 0.0, %v7831
        %v7833 = vpop.f32.mrb[0].mxu0
        %7834 = vmatprep.mubr.f32.mxu0 0.0
        %7835 = vmatmul.mubr.f32.gmra.mrb[0].mxu0 %v7593
        %v7836 = vpop.f32.mrb[0].mxu0
        %v7837 = vadd.f32 0.0, %v7836
        %v7838 = vpop.f32.mrb[0].mxu0
        %7839 = vdwg.mxu0
        %v7840 = vadd.f32 %v7415, %v7662
        %v7841 = vadd.f32 %v7416, %v7667
        %v7842 = vadd.f32 %v7417, %v7672
        %v7843 = vadd.f32 %v7418, %v7677
        %v7844 = vadd.f32 %v7419, %v7682
        %v7845 = vadd.f32 %v7420, %v7687
        %v7846 = vadd.f32 %v7421, %v7692
        %v7847 = vadd.f32 %v7422, %v7697
        %v7848 = vadd.f32 %v7423, %v7702
        %v7849 = vadd.f32 %v7424, %v7707
        %v7850 = vadd.f32 %v7425, %v7712
        %v7851 = vadd.f32 %v7426, %v7717
        %v7852 = vadd.f32 %v7427, %v7722
        %v7853 = vadd.f32 %v7428, %v7727
        %v7854 = vadd.f32 %v7429, %v7732
        %v7855 = vadd.f32 %v7430, %v7737
        %v7856 = vadd.f32 %v7431, %v7742
        %v7857 = vadd.f32 %v7432, %v7747
        %v7858 = vadd.f32 %v7433, %v7752
        %v7859 = vadd.f32 %v7434, %v7757
        %v7860 = vadd.f32 %v7435, %v7762
        %v7861 = vadd.f32 %v7436, %v7767
        %v7862 = vadd.f32 %v7437, %v7772
        %v7863 = vadd.f32 %v7438, %v7777
        %v7864 = vadd.f32 %v7439, %v7782
        %v7865 = vadd.f32 %v7440, %v7787
        %v7866 = vadd.f32 %v7441, %v7792
        %v7867 = vadd.f32 %v7442, %v7797
        %v7868 = vadd.f32 %v7443, %v7802
        %v7869 = vadd.f32 %v7444, %v7807
        %v7870 = vadd.f32 %v7445, %v7812
        %v7871 = vadd.f32 %v7446, %v7817
        %v7872 = vadd.f32 %v7447, %v7822
        %v7873 = vadd.f32 %v7448, %v7827
        %v7874 = vadd.f32 %v7449, %v7832
        %v7875 = vadd.f32 %v7450, %v7837
        %v7876 = vld [vmem:[#allocation2 + $0x26] sm:$0xff]
        %v7877 = vld [vmem:[#allocation2 + $0x2e] sm:$0xff]
        %v7878 = vld [vmem:[#allocation2 + $0x36] sm:$0xff]
        %v7879 = vld [vmem:[#allocation2 + $0x3e] sm:$0xff]
        %v7880 = vld [vmem:[#allocation2 + $0x46] sm:$0xff]
        %v7881 = vld [vmem:[#allocation2 + $0x4e] sm:$0xff]
        %v7882 = vld [vmem:[#allocation2 + $0x56] sm:$0xff]
        %v7883 = vld [vmem:[#allocation2 + $0x5e] sm:$0xff]
        %v7884 = vld [vmem:[#allocation2 + $0x66] sm:$0xff]
        %v7885 = vld [vmem:[#allocation2 + $0x6e] sm:$0xff]
        %v7886 = vld [vmem:[#allocation2 + $0x76] sm:$0xff]
        %v7887 = vld [vmem:[#allocation2 + $0x7e] sm:$0xff]
        %v7888 = vld [vmem:[#allocation2 + $0x86] sm:$0xff]
        %v7889 = vld [vmem:[#allocation2 + $0x8e] sm:$0xff]
        %v7890 = vld [vmem:[#allocation2 + $0x96] sm:$0xff]
        %v7891 = vld [vmem:[#allocation2 + $0x9e] sm:$0xff]
        %v7892 = vld [vmem:[#allocation2 + $0xa6] sm:$0xff]
        %v7893 = vld [vmem:[#allocation2 + $0xae] sm:$0xff]
        %v7894 = vld [vmem:[#allocation2 + $0xb6] sm:$0xff]
        %v7895 = vld [vmem:[#allocation2 + $0xbe] sm:$0xff]
        %v7896 = vld [vmem:[#allocation2 + $0xc6] sm:$0xff]
        %v7897 = vld [vmem:[#allocation2 + $0xce] sm:$0xff]
        %v7898 = vld [vmem:[#allocation2 + $0xd6] sm:$0xff]
        %v7899 = vld [vmem:[#allocation2 + $0xde] sm:$0xff]
        %v7900 = vld [vmem:[#allocation2 + $0xe6] sm:$0xff]
        %v7901 = vld [vmem:[#allocation2 + $0xee] sm:$0xff]
        %v7902 = vld [vmem:[#allocation2 + $0xf6] sm:$0xff]
        %v7903 = vld [vmem:[#allocation2 + $0xfe] sm:$0xff]
        %v7904 = vld [vmem:[#allocation2 + $0x106] sm:$0xff]
        %v7905 = vld [vmem:[#allocation2 + $0x10e] sm:$0xff]
        %v7906 = vld [vmem:[#allocation2 + $0x116] sm:$0xff]
        %v7907 = vld [vmem:[#allocation2 + $0x11e] sm:$0xff]
        %v7908 = vld [vmem:[#allocation2 + $0x126] sm:$0xff]
        %v7909 = vld [vmem:[#allocation2 + $0x12e] sm:$0xff]
        %v7910 = vld [vmem:[#allocation2 + $0x136] sm:$0xff]
        %v7911 = vld [vmem:[#allocation2 + $0x13e] sm:$0xff]
        %v7913 = vsel %vm4470, %v7876, 0
        %v7916 = vsel %vm4470, %v7877, 0
        %v7919 = vsel %vm4470, %v7878, 0
        %v7922 = vsel %vm4470, %v7879, 0
        %v7925 = vsel %vm4470, %v7880, 0
        %v7928 = vsel %vm4470, %v7881, 0
        %v7931 = vsel %vm4470, %v7882, 0
        %v7934 = vsel %vm4470, %v7883, 0
        %v7937 = vsel %vm4470, %v7884, 0
        %v7940 = vsel %vm4470, %v7885, 0
        %v7943 = vsel %vm4470, %v7886, 0
        %v7946 = vsel %vm4470, %v7887, 0
        %v7949 = vsel %vm4470, %v7888, 0
        %v7952 = vsel %vm4470, %v7889, 0
        %v7955 = vsel %vm4470, %v7890, 0
        %v7958 = vsel %vm4470, %v7891, 0
        %v7961 = vsel %vm4470, %v7892, 0
        %v7964 = vsel %vm4470, %v7893, 0
        %v7967 = vsel %vm4470, %v7894, 0
        %v7970 = vsel %vm4470, %v7895, 0
        %v7973 = vsel %vm4470, %v7896, 0
        %v7976 = vsel %vm4470, %v7897, 0
        %v7979 = vsel %vm4470, %v7898, 0
        %v7982 = vsel %vm4470, %v7899, 0
        %v7985 = vsel %vm4470, %v7900, 0
        %v7988 = vsel %vm4470, %v7901, 0
        %v7991 = vsel %vm4470, %v7902, 0
        %v7994 = vsel %vm4470, %v7903, 0
        %v7997 = vsel %vm4470, %v7904, 0
        %v8000 = vsel %vm4470, %v7905, 0
        %v8003 = vsel %vm4470, %v7906, 0
        %v8006 = vsel %vm4470, %v7907, 0
        %v8009 = vsel %vm4470, %v7908, 0
        %v8012 = vsel %vm4470, %v7909, 0
        %v8015 = vsel %vm4470, %v7910, 0
        %v8018 = vsel %vm4470, %v7911, 0
        %8020 = vmatprep.subr.mxu0 0.0
        %8021 = vmatpush1.msra.mxu0 %v355
        %8022 = vmatprep.subr.mxu0 0.0
        %8023 = vmatpush1.msra.mxu0 %v356
        %8024 = vmatprep.subr.mxu0 0.0
        %8025 = vmatpush1.msra.mxu0 0.0
        %8026 = vmatprep.subr.mxu0 0.0
        %8027 = vmatpush1.msra.mxu0 0.0
        %8028 = vmatprep.subr.mxu0 0.0
        %8029 = vmatpush1.msra.mxu0 0.0
        %8030 = vmatprep.subr.mxu0 0.0
        %8031 = vmatpush1.msra.mxu0 0.0
        %8032 = vmatprep.subr.mxu0 0.0
        %8033 = vmatpush1.msra.mxu0 0.0
        %8034 = vmatprep.subr.mxu0 0.0
        %8035 = vmatpush1.msra.mxu0 0.0
        %8036 = vmatprep.subr.mxu0 0.0
        %8037 = vmatpush1.msra.mxu0 0.0
        %8038 = vmatprep.subr.mxu0 0.0
        %8039 = vmatpush1.msra.mxu0 0.0
        %8040 = vmatprep.subr.mxu0 0.0
        %8041 = vmatpush1.msra.mxu0 0.0
        %8042 = vmatprep.subr.mxu0 0.0
        %8043 = vmatpush1.msra.mxu0 0.0
        %8044 = vmatprep.subr.mxu0 0.0
        %8045 = vmatpush1.msra.mxu0 0.0
        %8046 = vmatprep.subr.mxu0 0.0
        %8047 = vmatpush1.msra.mxu0 0.0
        %8048 = vmatprep.subr.mxu0 0.0
        %8049 = vmatpush1.msra.mxu0 0.0
        %8050 = vmatprep.subr.mxu0 0.0
        %8051 = vmatpush1.msra.mxu0 0.0
        %8052 = vmatprep.subr.mxu0 0.0
        %8053 = vmatpush1.msra.mxu0 0.0
        %8054 = vmatprep.subr.mxu0 0.0
        %8055 = vmatpush1.msra.mxu0 0.0
        %8056 = vmatprep.subr.mxu0 0.0
        %8057 = vmatpush1.msra.mxu0 0.0
        %8058 = vmatprep.subr.mxu0 0.0
        %8059 = vmatpush1.msra.mxu0 0.0
        %8060 = vmatprep.subr.mxu0 0.0
        %8061 = vmatpush1.msra.mxu0 0.0
        %8062 = vmatprep.subr.mxu0 0.0
        %8063 = vmatpush1.msra.mxu0 0.0
        %8064 = vmatprep.subr.mxu0 0.0
        %8065 = vmatpush1.msra.mxu0 0.0
        %8066 = vmatprep.subr.mxu0 0.0
        %8067 = vmatpush1.msra.mxu0 0.0
        %8068 = vmatprep.subr.mxu0 0.0
        %8069 = vmatpush1.msra.mxu0 0.0
        %8070 = vmatprep.subr.mxu0 0.0
        %8071 = vmatpush1.msra.mxu0 0.0
        %8072 = vmatprep.subr.mxu0 0.0
        %8073 = vmatpush1.msra.mxu0 0.0
        %8074 = vmatprep.subr.mxu0 0.0
        %8075 = vmatpush1.msra.mxu0 0.0
        %8076 = vmatprep.subr.mxu0 0.0
        %8077 = vmatpush1.msra.mxu0 0.0
        %8078 = vmatprep.subr.mxu0 0.0
        %8079 = vmatpush1.msra.mxu0 0.0
        %8080 = vmatprep.subr.mxu0 0.0
        %8081 = vmatpush1.msra.mxu0 0.0
        %8082 = vmatprep.subr.mxu0 0.0
        %8083 = vmatpush1.msra.mxu0 0.0
        %8084 = vmatprep.mubr.f32.mxu0 0.0
        %8085 = vmatmul.mubr.f32.gmra.mrb[0].mxu0 %v7913
        %v8086 = vpop.f32.mrb[0].mxu0
        %v8087 = vadd.f32 0.0, %v8086
        %v8088 = vpop.f32.mrb[0].mxu0
        %8089 = vmatprep.mubr.f32.mxu0 0.0
        %8090 = vmatmul.mubr.f32.gmra.mrb[0].mxu0 %v7916
        %v8091 = vpop.f32.mrb[0].mxu0
        %v8092 = vadd.f32 0.0, %v8091
        %v8093 = vpop.f32.mrb[0].mxu0
        %8094 = vmatprep.mubr.f32.mxu0 0.0
        %8095 = vmatmul.mubr.f32.gmra.mrb[0].mxu0 %v7919
        %v8096 = vpop.f32.mrb[0].mxu0
        %v8097 = vadd.f32 0.0, %v8096
        %v8098 = vpop.f32.mrb[0].mxu0
        %8099 = vmatprep.mubr.f32.mxu0 0.0
        %8100 = vmatmul.mubr.f32.gmra.mrb[0].mxu0 %v7922
        %v8101 = vpop.f32.mrb[0].mxu0
        %v8102 = vadd.f32 0.0, %v8101
        %v8103 = vpop.f32.mrb[0].mxu0
        %8104 = vmatprep.mubr.f32.mxu0 0.0
        %8105 = vmatmul.mubr.f32.gmra.mrb[0].mxu0 %v7925
        %v8106 = vpop.f32.mrb[0].mxu0
        %v8107 = vadd.f32 0.0, %v8106
        %v8108 = vpop.f32.mrb[0].mxu0
        %8109 = vmatprep.mubr.f32.mxu0 0.0
        %8110 = vmatmul.mubr.f32.gmra.mrb[0].mxu0 %v7928
        %v8111 = vpop.f32.mrb[0].mxu0
        %v8112 = vadd.f32 0.0, %v8111
        %v8113 = vpop.f32.mrb[0].mxu0
        %8114 = vmatprep.mubr.f32.mxu0 0.0
        %8115 = vmatmul.mubr.f32.gmra.mrb[0].mxu0 %v7931
        %v8116 = vpop.f32.mrb[0].mxu0
        %v8117 = vadd.f32 0.0, %v8116
        %v8118 = vpop.f32.mrb[0].mxu0
        %8119 = vmatprep.mubr.f32.mxu0 0.0
        %8120 = vmatmul.mubr.f32.gmra.mrb[0].mxu0 %v7934
        %v8121 = vpop.f32.mrb[0].mxu0
        %v8122 = vadd.f32 0.0, %v8121
        %v8123 = vpop.f32.mrb[0].mxu0
        %8124 = vmatprep.mubr.f32.mxu0 0.0
        %8125 = vmatmul.mubr.f32.gmra.mrb[0].mxu0 %v7937
        %v8126 = vpop.f32.mrb[0].mxu0
        %v8127 = vadd.f32 0.0, %v8126
        %v8128 = vpop.f32.mrb[0].mxu0
        %8129 = vmatprep.mubr.f32.mxu0 0.0
        %8130 = vmatmul.mubr.f32.gmra.mrb[0].mxu0 %v7940
        %v8131 = vpop.f32.mrb[0].mxu0
        %v8132 = vadd.f32 0.0, %v8131
        %v8133 = vpop.f32.mrb[0].mxu0
        %8134 = vmatprep.mubr.f32.mxu0 0.0
        %8135 = vmatmul.mubr.f32.gmra.mrb[0].mxu0 %v7943
        %v8136 = vpop.f32.mrb[0].mxu0
        %v8137 = vadd.f32 0.0, %v8136
        %v8138 = vpop.f32.mrb[0].mxu0
        %8139 = vmatprep.mubr.f32.mxu0 0.0
        %8140 = vmatmul.mubr.f32.gmra.mrb[0].mxu0 %v7946
        %v8141 = vpop.f32.mrb[0].mxu0
        %v8142 = vadd.f32 0.0, %v8141
        %v8143 = vpop.f32.mrb[0].mxu0
        %8144 = vmatprep.mubr.f32.mxu0 0.0
        %8145 = vmatmul.mubr.f32.gmra.mrb[0].mxu0 %v7949
        %v8146 = vpop.f32.mrb[0].mxu0
        %v8147 = vadd.f32 0.0, %v8146
        %v8148 = vpop.f32.mrb[0].mxu0
        %8149 = vmatprep.mubr.f32.mxu0 0.0
        %8150 = vmatmul.mubr.f32.gmra.mrb[0].mxu0 %v7952
        %v8151 = vpop.f32.mrb[0].mxu0
        %v8152 = vadd.f32 0.0, %v8151
        %v8153 = vpop.f32.mrb[0].mxu0
        %8154 = vmatprep.mubr.f32.mxu0 0.0
        %8155 = vmatmul.mubr.f32.gmra.mrb[0].mxu0 %v7955
        %v8156 = vpop.f32.mrb[0].mxu0
        %v8157 = vadd.f32 0.0, %v8156
        %v8158 = vpop.f32.mrb[0].mxu0
        %8159 = vmatprep.mubr.f32.mxu0 0.0
        %8160 = vmatmul.mubr.f32.gmra.mrb[0].mxu0 %v7958
        %v8161 = vpop.f32.mrb[0].mxu0
        %v8162 = vadd.f32 0.0, %v8161
        %v8163 = vpop.f32.mrb[0].mxu0
        %8164 = vmatprep.mubr.f32.mxu0 0.0
        %8165 = vmatmul.mubr.f32.gmra.mrb[0].mxu0 %v7961
        %v8166 = vpop.f32.mrb[0].mxu0
        %v8167 = vadd.f32 0.0, %v8166
        %v8168 = vpop.f32.mrb[0].mxu0
        %8169 = vmatprep.mubr.f32.mxu0 0.0
        %8170 = vmatmul.mubr.f32.gmra.mrb[0].mxu0 %v7964
        %v8171 = vpop.f32.mrb[0].mxu0
        %v8172 = vadd.f32 0.0, %v8171
        %v8173 = vpop.f32.mrb[0].mxu0
        %8174 = vmatprep.mubr.f32.mxu0 0.0
        %8175 = vmatmul.mubr.f32.gmra.mrb[0].mxu0 %v7967
        %v8176 = vpop.f32.mrb[0].mxu0
        %v8177 = vadd.f32 0.0, %v8176
        %v8178 = vpop.f32.mrb[0].mxu0
        %8179 = vmatprep.mubr.f32.mxu0 0.0
        %8180 = vmatmul.mubr.f32.gmra.mrb[0].mxu0 %v7970
        %v8181 = vpop.f32.mrb[0].mxu0
        %v8182 = vadd.f32 0.0, %v8181
        %v8183 = vpop.f32.mrb[0].mxu0
        %8184 = vmatprep.mubr.f32.mxu0 0.0
        %8185 = vmatmul.mubr.f32.gmra.mrb[0].mxu0 %v7973
        %v8186 = vpop.f32.mrb[0].mxu0
        %v8187 = vadd.f32 0.0, %v8186
        %v8188 = vpop.f32.mrb[0].mxu0
        %8189 = vmatprep.mubr.f32.mxu0 0.0
        %8190 = vmatmul.mubr.f32.gmra.mrb[0].mxu0 %v7976
        %v8191 = vpop.f32.mrb[0].mxu0
        %v8192 = vadd.f32 0.0, %v8191
        %v8193 = vpop.f32.mrb[0].mxu0
        %8194 = vmatprep.mubr.f32.mxu0 0.0
        %8195 = vmatmul.mubr.f32.gmra.mrb[0].mxu0 %v7979
        %v8196 = vpop.f32.mrb[0].mxu0
        %v8197 = vadd.f32 0.0, %v8196
        %v8198 = vpop.f32.mrb[0].mxu0
        %8199 = vmatprep.mubr.f32.mxu0 0.0
        %8200 = vmatmul.mubr.f32.gmra.mrb[0].mxu0 %v7982
        %v8201 = vpop.f32.mrb[0].mxu0
        %v8202 = vadd.f32 0.0, %v8201
        %v8203 = vpop.f32.mrb[0].mxu0
        %8204 = vmatprep.mubr.f32.mxu0 0.0
        %8205 = vmatmul.mubr.f32.gmra.mrb[0].mxu0 %v7985
        %v8206 = vpop.f32.mrb[0].mxu0
        %v8207 = vadd.f32 0.0, %v8206
        %v8208 = vpop.f32.mrb[0].mxu0
        %8209 = vmatprep.mubr.f32.mxu0 0.0
        %8210 = vmatmul.mubr.f32.gmra.mrb[0].mxu0 %v7988
        %v8211 = vpop.f32.mrb[0].mxu0
        %v8212 = vadd.f32 0.0, %v8211
        %v8213 = vpop.f32.mrb[0].mxu0
        %8214 = vmatprep.mubr.f32.mxu0 0.0
        %8215 = vmatmul.mubr.f32.gmra.mrb[0].mxu0 %v7991
        %v8216 = vpop.f32.mrb[0].mxu0
        %v8217 = vadd.f32 0.0, %v8216
        %v8218 = vpop.f32.mrb[0].mxu0
        %8219 = vmatprep.mubr.f32.mxu0 0.0
        %8220 = vmatmul.mubr.f32.gmra.mrb[0].mxu0 %v7994
        %v8221 = vpop.f32.mrb[0].mxu0
        %v8222 = vadd.f32 0.0, %v8221
        %v8223 = vpop.f32.mrb[0].mxu0
        %8224 = vmatprep.mubr.f32.mxu0 0.0
        %8225 = vmatmul.mubr.f32.gmra.mrb[0].mxu0 %v7997
        %v8226 = vpop.f32.mrb[0].mxu0
        %v8227 = vadd.f32 0.0, %v8226
        %v8228 = vpop.f32.mrb[0].mxu0
        %8229 = vmatprep.mubr.f32.mxu0 0.0
        %8230 = vmatmul.mubr.f32.gmra.mrb[0].mxu0 %v8000
        %v8231 = vpop.f32.mrb[0].mxu0
        %v8232 = vadd.f32 0.0, %v8231
        %v8233 = vpop.f32.mrb[0].mxu0
        %8234 = vmatprep.mubr.f32.mxu0 0.0
        %8235 = vmatmul.mubr.f32.gmra.mrb[0].mxu0 %v8003
        %v8236 = vpop.f32.mrb[0].mxu0
        %v8237 = vadd.f32 0.0, %v8236
        %v8238 = vpop.f32.mrb[0].mxu0
        %8239 = vmatprep.mubr.f32.mxu0 0.0
        %8240 = vmatmul.mubr.f32.gmra.mrb[0].mxu0 %v8006
        %v8241 = vpop.f32.mrb[0].mxu0
        %v8242 = vadd.f32 0.0, %v8241
        %v8243 = vpop.f32.mrb[0].mxu0
        %8244 = vmatprep.mubr.f32.mxu0 0.0
        %8245 = vmatmul.mubr.f32.gmra.mrb[0].mxu0 %v8009
        %v8246 = vpop.f32.mrb[0].mxu0
        %v8247 = vadd.f32 0.0, %v8246
        %v8248 = vpop.f32.mrb[0].mxu0
        %8249 = vmatprep.mubr.f32.mxu0 0.0
        %8250 = vmatmul.mubr.f32.gmra.mrb[0].mxu0 %v8012
        %v8251 = vpop.f32.mrb[0].mxu0
        %v8252 = vadd.f32 0.0, %v8251
        %v8253 = vpop.f32.mrb[0].mxu0
        %8254 = vmatprep.mubr.f32.mxu0 0.0
        %8255 = vmatmul.mubr.f32.gmra.mrb[0].mxu0 %v8015
        %v8256 = vpop.f32.mrb[0].mxu0
        %v8257 = vadd.f32 0.0, %v8256
        %v8258 = vpop.f32.mrb[0].mxu0
        %8259 = vmatprep.mubr.f32.mxu0 0.0
        %8260 = vmatmul.mubr.f32.gmra.mrb[0].mxu0 %v8018
        %v8261 = vpop.f32.mrb[0].mxu0
        %v8262 = vadd.f32 0.0, %v8261
        %v8263 = vpop.f32.mrb[0].mxu0
        %8264 = vdwg.mxu0
        %v8265 = vadd.f32 %v7840, %v8087
        %v8266 = vadd.f32 %v7841, %v8092
        %v8267 = vadd.f32 %v7842, %v8097
        %v8268 = vadd.f32 %v7843, %v8102
        %v8269 = vadd.f32 %v7844, %v8107
        %v8270 = vadd.f32 %v7845, %v8112
        %v8271 = vadd.f32 %v7846, %v8117
        %v8272 = vadd.f32 %v7847, %v8122
        %v8273 = vadd.f32 %v7848, %v8127
        %v8274 = vadd.f32 %v7849, %v8132
        %v8275 = vadd.f32 %v7850, %v8137
        %v8276 = vadd.f32 %v7851, %v8142
        %v8277 = vadd.f32 %v7852, %v8147
        %v8278 = vadd.f32 %v7853, %v8152
        %v8279 = vadd.f32 %v7854, %v8157
        %v8280 = vadd.f32 %v7855, %v8162
        %v8281 = vadd.f32 %v7856, %v8167
        %v8282 = vadd.f32 %v7857, %v8172
        %v8283 = vadd.f32 %v7858, %v8177
        %v8284 = vadd.f32 %v7859, %v8182
        %v8285 = vadd.f32 %v7860, %v8187
        %v8286 = vadd.f32 %v7861, %v8192
        %v8287 = vadd.f32 %v7862, %v8197
        %v8288 = vadd.f32 %v7863, %v8202
        %v8289 = vadd.f32 %v7864, %v8207
        %v8290 = vadd.f32 %v7865, %v8212
        %v8291 = vadd.f32 %v7866, %v8217
        %v8292 = vadd.f32 %v7867, %v8222
        %v8293 = vadd.f32 %v7868, %v8227
        %v8294 = vadd.f32 %v7869, %v8232
        %v8295 = vadd.f32 %v7870, %v8237
        %v8296 = vadd.f32 %v7871, %v8242
        %v8297 = vadd.f32 %v7872, %v8247
        %v8298 = vadd.f32 %v7873, %v8252
        %v8299 = vadd.f32 %v7874, %v8257
        %v8300 = vadd.f32 %v7875, %v8262
        %v8301 = vld [vmem:[%s4] sm:$0x1]
        %v8303 = vlaneseq
        %v8304 = vshrl.u32 %v8303, 7
        %v8305 = vsub.s32 0, %v8304
        %v8306 = vrot.slane %v8301, %v8305
        %v8308 = vadd.f32 %v8265, %v8306
        %v8309 = vadd.f32 %v8266, %v8306
        %v8310 = vadd.f32 %v8267, %v8306
        %v8311 = vadd.f32 %v8268, %v8306
        %v8312 = vadd.f32 %v8269, %v8306
        %v8313 = vadd.f32 %v8270, %v8306
        %v8314 = vadd.f32 %v8271, %v8306
        %v8315 = vadd.f32 %v8272, %v8306
        %v8316 = vadd.f32 %v8273, %v8306
        %v8317 = vadd.f32 %v8274, %v8306
        %v8318 = vadd.f32 %v8275, %v8306
        %v8319 = vadd.f32 %v8276, %v8306
        %v8320 = vadd.f32 %v8277, %v8306
        %v8321 = vadd.f32 %v8278, %v8306
        %v8322 = vadd.f32 %v8279, %v8306
        %v8323 = vadd.f32 %v8280, %v8306
        %v8324 = vadd.f32 %v8281, %v8306
        %v8325 = vadd.f32 %v8282, %v8306
        %v8326 = vadd.f32 %v8283, %v8306
        %v8327 = vadd.f32 %v8284, %v8306
        %v8328 = vadd.f32 %v8285, %v8306
        %v8329 = vadd.f32 %v8286, %v8306
        %v8330 = vadd.f32 %v8287, %v8306
        %v8331 = vadd.f32 %v8288, %v8306
        %v8332 = vadd.f32 %v8289, %v8306
        %v8333 = vadd.f32 %v8290, %v8306
        %v8334 = vadd.f32 %v8291, %v8306
        %v8335 = vadd.f32 %v8292, %v8306
        %v8336 = vadd.f32 %v8293, %v8306
        %v8337 = vadd.f32 %v8294, %v8306
        %v8338 = vadd.f32 %v8295, %v8306
        %v8339 = vadd.f32 %v8296, %v8306
        %v8340 = vadd.f32 %v8297, %v8306
        %v8341 = vadd.f32 %v8298, %v8306
        %v8342 = vadd.f32 %v8299, %v8306
        %v8343 = vadd.f32 %v8300, %v8306
        %v8344 = vmax.f32 %v8308, 0.0
        %v8345 = vmax.f32 %v8309, 0.0
        %v8346 = vmax.f32 %v8310, 0.0
        %v8347 = vmax.f32 %v8311, 0.0
        %v8348 = vmax.f32 %v8312, 0.0
        %v8349 = vmax.f32 %v8313, 0.0
        %v8350 = vmax.f32 %v8314, 0.0
        %v8351 = vmax.f32 %v8315, 0.0
        %v8352 = vmax.f32 %v8316, 0.0
        %v8353 = vmax.f32 %v8317, 0.0
        %v8354 = vmax.f32 %v8318, 0.0
        %v8355 = vmax.f32 %v8319, 0.0
        %v8356 = vmax.f32 %v8320, 0.0
        %v8357 = vmax.f32 %v8321, 0.0
        %v8358 = vmax.f32 %v8322, 0.0
        %v8359 = vmax.f32 %v8323, 0.0
        %v8360 = vmax.f32 %v8324, 0.0
        %v8361 = vmax.f32 %v8325, 0.0
        %v8362 = vmax.f32 %v8326, 0.0
        %v8363 = vmax.f32 %v8327, 0.0
        %v8364 = vmax.f32 %v8328, 0.0
        %v8365 = vmax.f32 %v8329, 0.0
        %v8366 = vmax.f32 %v8330, 0.0
        %v8367 = vmax.f32 %v8331, 0.0
        %v8368 = vmax.f32 %v8332, 0.0
        %v8369 = vmax.f32 %v8333, 0.0
        %v8370 = vmax.f32 %v8334, 0.0
        %v8371 = vmax.f32 %v8335, 0.0
        %v8372 = vmax.f32 %v8336, 0.0
        %v8373 = vmax.f32 %v8337, 0.0
        %v8374 = vmax.f32 %v8338, 0.0
        %v8375 = vmax.f32 %v8339, 0.0
        %v8376 = vmax.f32 %v8340, 0.0
        %v8377 = vmax.f32 %v8341, 0.0
        %v8378 = vmax.f32 %v8342, 0.0
        %v8379 = vmax.f32 %v8343, 0.0
        %v8380 = vld [vmem:[%s5] sm:$0xff]
        %v8381 = vld [vmem:[%s5 + $0x8] sm:$0xff]
        %v8382 = vld [vmem:[%s5 + $0x10] sm:$0xff]
        %v8383 = vld [vmem:[%s5 + $0x18] sm:$0xff]
        %v8384 = vld [vmem:[%s6] sm:$0x1]
        %v8386 = vlaneseq
        %v8387 = vshrl.u32 %v8386, 7
        %v8388 = vsub.s32 0, %v8387
        %v8389 = vrot.slane %v8384, %v8388
        %vm8391 = vcmask 261120
        %v8393 = vsel %vm8391, %v8344, 0
        %v8396 = vsel %vm8391, %v8345, 0
        %v8399 = vsel %vm8391, %v8346, 0
        %v8402 = vsel %vm8391, %v8347, 0
        %v8405 = vsel %vm8391, %v8348, 0
        %v8408 = vsel %vm8391, %v8349, 0
        %v8411 = vsel %vm8391, %v8350, 0
        %v8414 = vsel %vm8391, %v8351, 0
        %v8417 = vsel %vm8391, %v8352, 0
        %v8420 = vsel %vm8391, %v8353, 0
        %v8423 = vsel %vm8391, %v8354, 0
        %v8426 = vsel %vm8391, %v8355, 0
        %v8429 = vsel %vm8391, %v8356, 0
        %v8432 = vsel %vm8391, %v8357, 0
        %v8435 = vsel %vm8391, %v8358, 0
        %v8438 = vsel %vm8391, %v8359, 0
        %v8441 = vsel %vm8391, %v8360, 0
        %v8444 = vsel %vm8391, %v8361, 0
        %v8447 = vsel %vm8391, %v8362, 0
        %v8450 = vsel %vm8391, %v8363, 0
        %v8453 = vsel %vm8391, %v8364, 0
        %v8456 = vsel %vm8391, %v8365, 0
        %v8459 = vsel %vm8391, %v8366, 0
        %v8462 = vsel %vm8391, %v8367, 0
        %v8465 = vsel %vm8391, %v8368, 0
        %v8468 = vsel %vm8391, %v8369, 0
        %v8471 = vsel %vm8391, %v8370, 0
        %v8474 = vsel %vm8391, %v8371, 0
        %v8477 = vsel %vm8391, %v8372, 0
        %v8480 = vsel %vm8391, %v8373, 0
        %v8483 = vsel %vm8391, %v8374, 0
        %v8486 = vsel %vm8391, %v8375, 0
        %v8489 = vsel %vm8391, %v8376, 0
        %v8492 = vsel %vm8391, %v8377, 0
        %v8495 = vsel %vm8391, %v8378, 0
        %v8498 = vsel %vm8391, %v8379, 0
        %8500 = vmatprep.subr.mxu0 0.0
        %8501 = vmatpush1.msra.mxu0 %v8380
        %8502 = vmatprep.subr.mxu0 0.0
        %8503 = vmatpush1.msra.mxu0 %v8381
        %8504 = vmatprep.subr.mxu0 0.0
        %8505 = vmatpush1.msra.mxu0 %v8382
        %8506 = vmatprep.subr.mxu0 0.0
        %8507 = vmatpush1.msra.mxu0 %v8383
        %8508 = vmatprep.subr.mxu0 0.0
        %8509 = vmatpush1.msra.mxu0 0.0
        %8510 = vmatprep.subr.mxu0 0.0
        %8511 = vmatpush1.msra.mxu0 0.0
        %8512 = vmatprep.subr.mxu0 0.0
        %8513 = vmatpush1.msra.mxu0 0.0
        %8514 = vmatprep.subr.mxu0 0.0
        %8515 = vmatpush1.msra.mxu0 0.0
        %8516 = vmatprep.subr.mxu0 0.0
        %8517 = vmatpush1.msra.mxu0 0.0
        %8518 = vmatprep.subr.mxu0 0.0
        %8519 = vmatpush1.msra.mxu0 0.0
        %8520 = vmatprep.subr.mxu0 0.0
        %8521 = vmatpush1.msra.mxu0 0.0
        %8522 = vmatprep.subr.mxu0 0.0
        %8523 = vmatpush1.msra.mxu0 0.0
        %8524 = vmatprep.subr.mxu0 0.0
        %8525 = vmatpush1.msra.mxu0 0.0
        %8526 = vmatprep.subr.mxu0 0.0
        %8527 = vmatpush1.msra.mxu0 0.0
        %8528 = vmatprep.subr.mxu0 0.0
        %8529 = vmatpush1.msra.mxu0 0.0
        %8530 = vmatprep.subr.mxu0 0.0
        %8531 = vmatpush1.msra.mxu0 0.0
        %8532 = vmatprep.subr.mxu0 0.0
        %8533 = vmatpush1.msra.mxu0 0.0
        %8534 = vmatprep.subr.mxu0 0.0
        %8535 = vmatpush1.msra.mxu0 0.0
        %8536 = vmatprep.subr.mxu0 0.0
        %8537 = vmatpush1.msra.mxu0 0.0
        %8538 = vmatprep.subr.mxu0 0.0
        %8539 = vmatpush1.msra.mxu0 0.0
        %8540 = vmatprep.subr.mxu0 0.0
        %8541 = vmatpush1.msra.mxu0 0.0
        %8542 = vmatprep.subr.mxu0 0.0
        %8543 = vmatpush1.msra.mxu0 0.0
        %8544 = vmatprep.subr.mxu0 0.0
        %8545 = vmatpush1.msra.mxu0 0.0
        %8546 = vmatprep.subr.mxu0 0.0
        %8547 = vmatpush1.msra.mxu0 0.0
        %8548 = vmatprep.subr.mxu0 0.0
        %8549 = vmatpush1.msra.mxu0 0.0
        %8550 = vmatprep.subr.mxu0 0.0
        %8551 = vmatpush1.msra.mxu0 0.0
        %8552 = vmatprep.subr.mxu0 0.0
        %8553 = vmatpush1.msra.mxu0 0.0
        %8554 = vmatprep.subr.mxu0 0.0
        %8555 = vmatpush1.msra.mxu0 0.0
        %8556 = vmatprep.subr.mxu0 0.0
        %8557 = vmatpush1.msra.mxu0 0.0
        %8558 = vmatprep.subr.mxu0 0.0
        %8559 = vmatpush1.msra.mxu0 0.0
        %8560 = vmatprep.subr.mxu0 0.0
        %8561 = vmatpush1.msra.mxu0 0.0
        %8562 = vmatprep.subr.mxu0 0.0
        %8563 = vmatpush1.msra.mxu0 0.0
        %8564 = vmatprep.mubr.f32.mxu0 0.0
        %8565 = vmatmul.mubr.f32.gmra.mrb[0].mxu0 %v8393
        %v8566 = vpop.f32.mrb[0].mxu0
        %v8567 = vadd.f32 %v8389, %v8566
        %v8568 = vpop.f32.mrb[0].mxu0
        %8569 = vmatprep.mubr.f32.mxu0 0.0
        %8570 = vmatmul.mubr.f32.gmra.mrb[0].mxu0 %v8396
        %v8571 = vpop.f32.mrb[0].mxu0
        %v8572 = vadd.f32 %v8389, %v8571
        %v8573 = vpop.f32.mrb[0].mxu0
        %8574 = vmatprep.mubr.f32.mxu0 0.0
        %8575 = vmatmul.mubr.f32.gmra.mrb[0].mxu0 %v8399
        %v8576 = vpop.f32.mrb[0].mxu0
        %v8577 = vadd.f32 %v8389, %v8576
        %v8578 = vpop.f32.mrb[0].mxu0
        %8579 = vmatprep.mubr.f32.mxu0 0.0
        %8580 = vmatmul.mubr.f32.gmra.mrb[0].mxu0 %v8402
        %v8581 = vpop.f32.mrb[0].mxu0
        %v8582 = vadd.f32 %v8389, %v8581
        %v8583 = vpop.f32.mrb[0].mxu0
        %8584 = vmatprep.mubr.f32.mxu0 0.0
        %8585 = vmatmul.mubr.f32.gmra.mrb[0].mxu0 %v8405
        %v8586 = vpop.f32.mrb[0].mxu0
        %v8587 = vadd.f32 %v8389, %v8586
        %v8588 = vpop.f32.mrb[0].mxu0
        %8589 = vmatprep.mubr.f32.mxu0 0.0
        %8590 = vmatmul.mubr.f32.gmra.mrb[0].mxu0 %v8408
        %v8591 = vpop.f32.mrb[0].mxu0
        %v8592 = vadd.f32 %v8389, %v8591
        %v8593 = vpop.f32.mrb[0].mxu0
        %8594 = vmatprep.mubr.f32.mxu0 0.0
        %8595 = vmatmul.mubr.f32.gmra.mrb[0].mxu0 %v8411
        %v8596 = vpop.f32.mrb[0].mxu0
        %v8597 = vadd.f32 %v8389, %v8596
        %v8598 = vpop.f32.mrb[0].mxu0
        %8599 = vmatprep.mubr.f32.mxu0 0.0
        %8600 = vmatmul.mubr.f32.gmra.mrb[0].mxu0 %v8414
        %v8601 = vpop.f32.mrb[0].mxu0
        %v8602 = vadd.f32 %v8389, %v8601
        %v8603 = vpop.f32.mrb[0].mxu0
        %8604 = vmatprep.mubr.f32.mxu0 0.0
        %8605 = vmatmul.mubr.f32.gmra.mrb[0].mxu0 %v8417
        %v8606 = vpop.f32.mrb[0].mxu0
        %v8607 = vadd.f32 %v8389, %v8606
        %v8608 = vpop.f32.mrb[0].mxu0
        %8609 = vmatprep.mubr.f32.mxu0 0.0
        %8610 = vmatmul.mubr.f32.gmra.mrb[0].mxu0 %v8420
        %v8611 = vpop.f32.mrb[0].mxu0
        %v8612 = vadd.f32 %v8389, %v8611
        %v8613 = vpop.f32.mrb[0].mxu0
        %8614 = vmatprep.mubr.f32.mxu0 0.0
        %8615 = vmatmul.mubr.f32.gmra.mrb[0].mxu0 %v8423
        %v8616 = vpop.f32.mrb[0].mxu0
        %v8617 = vadd.f32 %v8389, %v8616
        %v8618 = vpop.f32.mrb[0].mxu0
        %8619 = vmatprep.mubr.f32.mxu0 0.0
        %8620 = vmatmul.mubr.f32.gmra.mrb[0].mxu0 %v8426
        %v8621 = vpop.f32.mrb[0].mxu0
        %v8622 = vadd.f32 %v8389, %v8621
        %v8623 = vpop.f32.mrb[0].mxu0
        %8624 = vmatprep.mubr.f32.mxu0 0.0
        %8625 = vmatmul.mubr.f32.gmra.mrb[0].mxu0 %v8429
        %v8626 = vpop.f32.mrb[0].mxu0
        %v8627 = vadd.f32 %v8389, %v8626
        %v8628 = vpop.f32.mrb[0].mxu0
        %8629 = vmatprep.mubr.f32.mxu0 0.0
        %8630 = vmatmul.mubr.f32.gmra.mrb[0].mxu0 %v8432
        %v8631 = vpop.f32.mrb[0].mxu0
        %v8632 = vadd.f32 %v8389, %v8631
        %v8633 = vpop.f32.mrb[0].mxu0
        %8634 = vmatprep.mubr.f32.mxu0 0.0
        %8635 = vmatmul.mubr.f32.gmra.mrb[0].mxu0 %v8435
        %v8636 = vpop.f32.mrb[0].mxu0
        %v8637 = vadd.f32 %v8389, %v8636
        %v8638 = vpop.f32.mrb[0].mxu0
        %8639 = vmatprep.mubr.f32.mxu0 0.0
        %8640 = vmatmul.mubr.f32.gmra.mrb[0].mxu0 %v8438
        %v8641 = vpop.f32.mrb[0].mxu0
        %v8642 = vadd.f32 %v8389, %v8641
        %v8643 = vpop.f32.mrb[0].mxu0
        %8644 = vmatprep.mubr.f32.mxu0 0.0
        %8645 = vmatmul.mubr.f32.gmra.mrb[0].mxu0 %v8441
        %v8646 = vpop.f32.mrb[0].mxu0
        %v8647 = vadd.f32 %v8389, %v8646
        %v8648 = vpop.f32.mrb[0].mxu0
        %8649 = vmatprep.mubr.f32.mxu0 0.0
        %8650 = vmatmul.mubr.f32.gmra.mrb[0].mxu0 %v8444
        %v8651 = vpop.f32.mrb[0].mxu0
        %v8652 = vadd.f32 %v8389, %v8651
        %v8653 = vpop.f32.mrb[0].mxu0
        %8654 = vmatprep.mubr.f32.mxu0 0.0
        %8655 = vmatmul.mubr.f32.gmra.mrb[0].mxu0 %v8447
        %v8656 = vpop.f32.mrb[0].mxu0
        %v8657 = vadd.f32 %v8389, %v8656
        %v8658 = vpop.f32.mrb[0].mxu0
        %8659 = vmatprep.mubr.f32.mxu0 0.0
        %8660 = vmatmul.mubr.f32.gmra.mrb[0].mxu0 %v8450
        %v8661 = vpop.f32.mrb[0].mxu0
        %v8662 = vadd.f32 %v8389, %v8661
        %v8663 = vpop.f32.mrb[0].mxu0
        %8664 = vmatprep.mubr.f32.mxu0 0.0
        %8665 = vmatmul.mubr.f32.gmra.mrb[0].mxu0 %v8453
        %v8666 = vpop.f32.mrb[0].mxu0
        %v8667 = vadd.f32 %v8389, %v8666
        %v8668 = vpop.f32.mrb[0].mxu0
        %8669 = vmatprep.mubr.f32.mxu0 0.0
        %8670 = vmatmul.mubr.f32.gmra.mrb[0].mxu0 %v8456
        %v8671 = vpop.f32.mrb[0].mxu0
        %v8672 = vadd.f32 %v8389, %v8671
        %v8673 = vpop.f32.mrb[0].mxu0
        %8674 = vmatprep.mubr.f32.mxu0 0.0
        %8675 = vmatmul.mubr.f32.gmra.mrb[0].mxu0 %v8459
        %v8676 = vpop.f32.mrb[0].mxu0
        %v8677 = vadd.f32 %v8389, %v8676
        %v8678 = vpop.f32.mrb[0].mxu0
        %8679 = vmatprep.mubr.f32.mxu0 0.0
        %8680 = vmatmul.mubr.f32.gmra.mrb[0].mxu0 %v8462
        %v8681 = vpop.f32.mrb[0].mxu0
        %v8682 = vadd.f32 %v8389, %v8681
        %v8683 = vpop.f32.mrb[0].mxu0
        %8684 = vmatprep.mubr.f32.mxu0 0.0
        %8685 = vmatmul.mubr.f32.gmra.mrb[0].mxu0 %v8465
        %v8686 = vpop.f32.mrb[0].mxu0
        %v8687 = vadd.f32 %v8389, %v8686
        %v8688 = vpop.f32.mrb[0].mxu0
        %8689 = vmatprep.mubr.f32.mxu0 0.0
        %8690 = vmatmul.mubr.f32.gmra.mrb[0].mxu0 %v8468
        %v8691 = vpop.f32.mrb[0].mxu0
        %v8692 = vadd.f32 %v8389, %v8691
        %v8693 = vpop.f32.mrb[0].mxu0
        %8694 = vmatprep.mubr.f32.mxu0 0.0
        %8695 = vmatmul.mubr.f32.gmra.mrb[0].mxu0 %v8471
        %v8696 = vpop.f32.mrb[0].mxu0
        %v8697 = vadd.f32 %v8389, %v8696
        %v8698 = vpop.f32.mrb[0].mxu0
        %8699 = vmatprep.mubr.f32.mxu0 0.0
        %8700 = vmatmul.mubr.f32.gmra.mrb[0].mxu0 %v8474
        %v8701 = vpop.f32.mrb[0].mxu0
        %v8702 = vadd.f32 %v8389, %v8701
        %v8703 = vpop.f32.mrb[0].mxu0
        %8704 = vmatprep.mubr.f32.mxu0 0.0
        %8705 = vmatmul.mubr.f32.gmra.mrb[0].mxu0 %v8477
        %v8706 = vpop.f32.mrb[0].mxu0
        %v8707 = vadd.f32 %v8389, %v8706
        %v8708 = vpop.f32.mrb[0].mxu0
        %8709 = vmatprep.mubr.f32.mxu0 0.0
        %8710 = vmatmul.mubr.f32.gmra.mrb[0].mxu0 %v8480
        %v8711 = vpop.f32.mrb[0].mxu0
        %v8712 = vadd.f32 %v8389, %v8711
        %v8713 = vpop.f32.mrb[0].mxu0
        %8714 = vmatprep.mubr.f32.mxu0 0.0
        %8715 = vmatmul.mubr.f32.gmra.mrb[0].mxu0 %v8483
        %v8716 = vpop.f32.mrb[0].mxu0
        %v8717 = vadd.f32 %v8389, %v8716
        %v8718 = vpop.f32.mrb[0].mxu0
        %8719 = vmatprep.mubr.f32.mxu0 0.0
        %8720 = vmatmul.mubr.f32.gmra.mrb[0].mxu0 %v8486
        %v8721 = vpop.f32.mrb[0].mxu0
        %v8722 = vadd.f32 %v8389, %v8721
        %v8723 = vpop.f32.mrb[0].mxu0
        %8724 = vmatprep.mubr.f32.mxu0 0.0
        %8725 = vmatmul.mubr.f32.gmra.mrb[0].mxu0 %v8489
        %v8726 = vpop.f32.mrb[0].mxu0
        %v8727 = vadd.f32 %v8389, %v8726
        %v8728 = vpop.f32.mrb[0].mxu0
        %8729 = vmatprep.mubr.f32.mxu0 0.0
        %8730 = vmatmul.mubr.f32.gmra.mrb[0].mxu0 %v8492
        %v8731 = vpop.f32.mrb[0].mxu0
        %v8732 = vadd.f32 %v8389, %v8731
        %v8733 = vpop.f32.mrb[0].mxu0
        %8734 = vmatprep.mubr.f32.mxu0 0.0
        %8735 = vmatmul.mubr.f32.gmra.mrb[0].mxu0 %v8495
        %v8736 = vpop.f32.mrb[0].mxu0
        %v8737 = vadd.f32 %v8389, %v8736
        %v8738 = vpop.f32.mrb[0].mxu0
        %8739 = vmatprep.mubr.f32.mxu0 0.0
        %8740 = vmatmul.mubr.f32.gmra.mrb[0].mxu0 %v8498
        %v8741 = vpop.f32.mrb[0].mxu0
        %v8742 = vadd.f32 %v8389, %v8741
        %v8743 = vpop.f32.mrb[0].mxu0
        %8744 = vdwg.mxu0
        %v8745 = vmax.f32 %v8567, 0.0
        %v8746 = vmax.f32 %v8572, 0.0
        %v8747 = vmax.f32 %v8577, 0.0
        %v8748 = vmax.f32 %v8582, 0.0
        %v8749 = vmax.f32 %v8587, 0.0
        %v8750 = vmax.f32 %v8592, 0.0
        %v8751 = vmax.f32 %v8597, 0.0
        %v8752 = vmax.f32 %v8602, 0.0
        %v8753 = vmax.f32 %v8607, 0.0
        %v8754 = vmax.f32 %v8612, 0.0
        %v8755 = vmax.f32 %v8617, 0.0
        %v8756 = vmax.f32 %v8622, 0.0
        %v8757 = vmax.f32 %v8627, 0.0
        %v8758 = vmax.f32 %v8632, 0.0
        %v8759 = vmax.f32 %v8637, 0.0
        %v8760 = vmax.f32 %v8642, 0.0
        %v8761 = vmax.f32 %v8647, 0.0
        %v8762 = vmax.f32 %v8652, 0.0
        %v8763 = vmax.f32 %v8657, 0.0
        %v8764 = vmax.f32 %v8662, 0.0
        %v8765 = vmax.f32 %v8667, 0.0
        %v8766 = vmax.f32 %v8672, 0.0
        %v8767 = vmax.f32 %v8677, 0.0
        %v8768 = vmax.f32 %v8682, 0.0
        %v8769 = vmax.f32 %v8687, 0.0
        %v8770 = vmax.f32 %v8692, 0.0
        %v8771 = vmax.f32 %v8697, 0.0
        %v8772 = vmax.f32 %v8702, 0.0
        %v8773 = vmax.f32 %v8707, 0.0
        %v8774 = vmax.f32 %v8712, 0.0
        %v8775 = vmax.f32 %v8717, 0.0
        %v8776 = vmax.f32 %v8722, 0.0
        %v8777 = vmax.f32 %v8727, 0.0
        %v8778 = vmax.f32 %v8732, 0.0
        %v8779 = vmax.f32 %v8737, 0.0
        %v8780 = vmax.f32 %v8742, 0.0
        %v8781 = vld [vmem:[%s8] sm:$0xff]
        %v8782 = vld [vmem:[%s8 + $0x8] sm:$0xff]
        %v8783 = vld [vmem:[%s8 + $0x10] sm:$0xff]
        %v8784 = vld [vmem:[%s8 + $0x18] sm:$0xff]
        %v8785 = vld [vmem:[%s8 + $0x20] sm:$0xff]
        %v8786 = vld [vmem:[%s8 + $0x28] sm:$0xff]
        %v8787 = vld [vmem:[%s8 + $0x30] sm:$0xff]
        %v8788 = vld [vmem:[%s8 + $0x38] sm:$0xff]
        %v8789 = vld [vmem:[%s8 + $0x40] sm:$0xff]
        %v8790 = vld [vmem:[%s8 + $0x48] sm:$0xff]
        %v8791 = vld [vmem:[%s8 + $0x50] sm:$0xff]
        %v8792 = vld [vmem:[%s8 + $0x58] sm:$0xff]
        %v8793 = vld [vmem:[%s8 + $0x60] sm:$0xff]
        %v8794 = vld [vmem:[%s8 + $0x68] sm:$0xff]
        %v8795 = vld [vmem:[%s8 + $0x70] sm:$0xff]
        %v8796 = vld [vmem:[%s8 + $0x78] sm:$0xff]
        %v8797 = vld [vmem:[%s8 + $0x80] sm:$0xff]
        %v8798 = vld [vmem:[%s8 + $0x88] sm:$0xff]
        %v8799 = vld [vmem:[%s8 + $0x90] sm:$0xff]
        %v8800 = vld [vmem:[%s8 + $0x98] sm:$0xff]
        %v8801 = vld [vmem:[%s8 + $0xa0] sm:$0xff]
        %v8802 = vld [vmem:[%s8 + $0xa8] sm:$0xff]
        %v8803 = vld [vmem:[%s8 + $0xb0] sm:$0xff]
        %v8804 = vld [vmem:[%s8 + $0xb8] sm:$0xff]
        %v8805 = vld [vmem:[%s8 + $0xc0] sm:$0xff]
        %v8806 = vld [vmem:[%s8 + $0xc8] sm:$0xff]
        %v8807 = vld [vmem:[%s8 + $0xd0] sm:$0xff]
        %v8808 = vld [vmem:[%s8 + $0xd8] sm:$0xff]
        %v8809 = vld [vmem:[%s8 + $0xe0] sm:$0xff]
        %v8810 = vld [vmem:[%s8 + $0xe8] sm:$0xff]
        %v8811 = vld [vmem:[%s8 + $0xf0] sm:$0xff]
        %v8812 = vld [vmem:[%s8 + $0xf8] sm:$0xff]
        %v8813 = vld [vmem:[%s8 + $0x100] sm:$0xff]
        %v8814 = vld [vmem:[%s8 + $0x108] sm:$0xff]
        %v8815 = vld [vmem:[%s8 + $0x110] sm:$0xff]
        %v8816 = vld [vmem:[%s8 + $0x118] sm:$0xff]
        %8818 = vset.pattern.permute.xlu0 0
        %8819 = vperm.xlu0 %8818, %v8781
        %v8820 = vpop.permute.xlu0 %8819
        %8823 = vset.pattern.permute.xlu0 0
        %8824 = vperm.xlu0 %8823, %v8782
        %v8825 = vpop.permute.xlu0 %8824
        %8828 = vset.pattern.permute.xlu0 0
        %8829 = vperm.xlu0 %8828, %v8783
        %v8830 = vpop.permute.xlu0 %8829
        %8833 = vset.pattern.permute.xlu0 0
        %8834 = vperm.xlu0 %8833, %v8784
        %v8835 = vpop.permute.xlu0 %8834
        %8838 = vset.pattern.permute.xlu0 0
        %8839 = vperm.xlu0 %8838, %v8785
        %v8840 = vpop.permute.xlu0 %8839
        %8843 = vset.pattern.permute.xlu0 0
        %8844 = vperm.xlu0 %8843, %v8786
        %v8845 = vpop.permute.xlu0 %8844
        %8848 = vset.pattern.permute.xlu0 0
        %8849 = vperm.xlu0 %8848, %v8787
        %v8850 = vpop.permute.xlu0 %8849
        %8853 = vset.pattern.permute.xlu0 0
        %8854 = vperm.xlu0 %8853, %v8788
        %v8855 = vpop.permute.xlu0 %8854
        %8858 = vset.pattern.permute.xlu0 0
        %8859 = vperm.xlu0 %8858, %v8789
        %v8860 = vpop.permute.xlu0 %8859
        %8863 = vset.pattern.permute.xlu0 0
        %8864 = vperm.xlu0 %8863, %v8790
        %v8865 = vpop.permute.xlu0 %8864
        %8868 = vset.pattern.permute.xlu0 0
        %8869 = vperm.xlu0 %8868, %v8791
        %v8870 = vpop.permute.xlu0 %8869
        %8873 = vset.pattern.permute.xlu0 0
        %8874 = vperm.xlu0 %8873, %v8792
        %v8875 = vpop.permute.xlu0 %8874
        %8878 = vset.pattern.permute.xlu0 0
        %8879 = vperm.xlu0 %8878, %v8793
        %v8880 = vpop.permute.xlu0 %8879
        %8883 = vset.pattern.permute.xlu0 0
        %8884 = vperm.xlu0 %8883, %v8794
        %v8885 = vpop.permute.xlu0 %8884
        %8888 = vset.pattern.permute.xlu0 0
        %8889 = vperm.xlu0 %8888, %v8795
        %v8890 = vpop.permute.xlu0 %8889
        %8893 = vset.pattern.permute.xlu0 0
        %8894 = vperm.xlu0 %8893, %v8796
        %v8895 = vpop.permute.xlu0 %8894
        %8898 = vset.pattern.permute.xlu0 0
        %8899 = vperm.xlu0 %8898, %v8797
        %v8900 = vpop.permute.xlu0 %8899
        %8903 = vset.pattern.permute.xlu0 0
        %8904 = vperm.xlu0 %8903, %v8798
        %v8905 = vpop.permute.xlu0 %8904
        %8908 = vset.pattern.permute.xlu0 0
        %8909 = vperm.xlu0 %8908, %v8799
        %v8910 = vpop.permute.xlu0 %8909
        %8913 = vset.pattern.permute.xlu0 0
        %8914 = vperm.xlu0 %8913, %v8800
        %v8915 = vpop.permute.xlu0 %8914
        %8918 = vset.pattern.permute.xlu0 0
        %8919 = vperm.xlu0 %8918, %v8801
        %v8920 = vpop.permute.xlu0 %8919
        %8923 = vset.pattern.permute.xlu0 0
        %8924 = vperm.xlu0 %8923, %v8802
        %v8925 = vpop.permute.xlu0 %8924
        %8928 = vset.pattern.permute.xlu0 0
        %8929 = vperm.xlu0 %8928, %v8803
        %v8930 = vpop.permute.xlu0 %8929
        %8933 = vset.pattern.permute.xlu0 0
        %8934 = vperm.xlu0 %8933, %v8804
        %v8935 = vpop.permute.xlu0 %8934
        %8938 = vset.pattern.permute.xlu0 0
        %8939 = vperm.xlu0 %8938, %v8805
        %v8940 = vpop.permute.xlu0 %8939
        %8943 = vset.pattern.permute.xlu0 0
        %8944 = vperm.xlu0 %8943, %v8806
        %v8945 = vpop.permute.xlu0 %8944
        %8948 = vset.pattern.permute.xlu0 0
        %8949 = vperm.xlu0 %8948, %v8807
        %v8950 = vpop.permute.xlu0 %8949
        %8953 = vset.pattern.permute.xlu0 0
        %8954 = vperm.xlu0 %8953, %v8808
        %v8955 = vpop.permute.xlu0 %8954
        %8958 = vset.pattern.permute.xlu0 0
        %8959 = vperm.xlu0 %8958, %v8809
        %v8960 = vpop.permute.xlu0 %8959
        %8963 = vset.pattern.permute.xlu0 0
        %8964 = vperm.xlu0 %8963, %v8810
        %v8965 = vpop.permute.xlu0 %8964
        %8968 = vset.pattern.permute.xlu0 0
        %8969 = vperm.xlu0 %8968, %v8811
        %v8970 = vpop.permute.xlu0 %8969
        %8973 = vset.pattern.permute.xlu0 0
        %8974 = vperm.xlu0 %8973, %v8812
        %v8975 = vpop.permute.xlu0 %8974
        %8978 = vset.pattern.permute.xlu0 0
        %8979 = vperm.xlu0 %8978, %v8813
        %v8980 = vpop.permute.xlu0 %8979
        %8983 = vset.pattern.permute.xlu0 0
        %8984 = vperm.xlu0 %8983, %v8814
        %v8985 = vpop.permute.xlu0 %8984
        %8988 = vset.pattern.permute.xlu0 0
        %8989 = vperm.xlu0 %8988, %v8815
        %v8990 = vpop.permute.xlu0 %8989
        %8993 = vset.pattern.permute.xlu0 0
        %8994 = vperm.xlu0 %8993, %v8816
        %v8995 = vpop.permute.xlu0 %8994
        %v8997 = vmul.f32 %v8745, %v8820
        %v8998 = vmul.f32 %v8746, %v8825
        %v8999 = vmul.f32 %v8747, %v8830
        %v9000 = vmul.f32 %v8748, %v8835
        %v9001 = vmul.f32 %v8749, %v8840
        %v9002 = vmul.f32 %v8750, %v8845
        %v9003 = vmul.f32 %v8751, %v8850
        %v9004 = vmul.f32 %v8752, %v8855
        %v9005 = vmul.f32 %v8753, %v8860
        %v9006 = vmul.f32 %v8754, %v8865
        %v9007 = vmul.f32 %v8755, %v8870
        %v9008 = vmul.f32 %v8756, %v8875
        %v9009 = vmul.f32 %v8757, %v8880
        %v9010 = vmul.f32 %v8758, %v8885
        %v9011 = vmul.f32 %v8759, %v8890
        %v9012 = vmul.f32 %v8760, %v8895
        %v9013 = vmul.f32 %v8761, %v8900
        %v9014 = vmul.f32 %v8762, %v8905
        %v9015 = vmul.f32 %v8763, %v8910
        %v9016 = vmul.f32 %v8764, %v8915
        %v9017 = vmul.f32 %v8765, %v8920
        %v9018 = vmul.f32 %v8766, %v8925
        %v9019 = vmul.f32 %v8767, %v8930
        %v9020 = vmul.f32 %v8768, %v8935
        %v9021 = vmul.f32 %v8769, %v8940
        %v9022 = vmul.f32 %v8770, %v8945
        %v9023 = vmul.f32 %v8771, %v8950
        %v9024 = vmul.f32 %v8772, %v8955
        %v9025 = vmul.f32 %v8773, %v8960
        %v9026 = vmul.f32 %v8774, %v8965
        %v9027 = vmul.f32 %v8775, %v8970
        %v9028 = vmul.f32 %v8776, %v8975
        %v9029 = vmul.f32 %v8777, %v8980
        %v9030 = vmul.f32 %v8778, %v8985
        %v9031 = vmul.f32 %v8779, %v8990
        %v9032 = vmul.f32 %v8780, %v8995
        %vm9033 = vcmask 64512
        %v9034 = vsel %vm9033, %v8997, 0.0
        %v9035 = vsel %vm9033, %v8998, 0.0
        %v9036 = vadd.f32 %v9034, %v9035
        %v9037 = vsel %vm9033, %v8999, 0.0
        %v9038 = vadd.f32 %v9036, %v9037
        %v9039 = vsel %vm9033, %v9000, 0.0
        %v9040 = vadd.f32 %v9038, %v9039
        %v9041 = vsel %vm9033, %v9001, 0.0
        %v9042 = vadd.f32 %v9040, %v9041
        %v9043 = vsel %vm9033, %v9002, 0.0
        %v9044 = vadd.f32 %v9042, %v9043
        %v9045 = vsel %vm9033, %v9003, 0.0
        %v9046 = vadd.f32 %v9044, %v9045
        %v9047 = vsel %vm9033, %v9004, 0.0
        %v9048 = vadd.f32 %v9046, %v9047
        %v9049 = vsel %vm9033, %v9005, 0.0
        %v9050 = vadd.f32 %v9048, %v9049
        %v9051 = vsel %vm9033, %v9006, 0.0
        %v9052 = vadd.f32 %v9050, %v9051
        %v9053 = vsel %vm9033, %v9007, 0.0
        %v9054 = vadd.f32 %v9052, %v9053
        %v9055 = vsel %vm9033, %v9008, 0.0
        %v9056 = vadd.f32 %v9054, %v9055
        %v9057 = vsel %vm9033, %v9009, 0.0
        %v9058 = vadd.f32 %v9056, %v9057
        %v9059 = vsel %vm9033, %v9010, 0.0
        %v9060 = vadd.f32 %v9058, %v9059
        %v9061 = vsel %vm9033, %v9011, 0.0
        %v9062 = vadd.f32 %v9060, %v9061
        %v9063 = vsel %vm9033, %v9012, 0.0
        %v9064 = vadd.f32 %v9062, %v9063
        %v9065 = vsel %vm9033, %v9013, 0.0
        %v9066 = vadd.f32 %v9064, %v9065
        %v9067 = vsel %vm9033, %v9014, 0.0
        %v9068 = vadd.f32 %v9066, %v9067
        %v9069 = vsel %vm9033, %v9015, 0.0
        %v9070 = vadd.f32 %v9068, %v9069
        %v9071 = vsel %vm9033, %v9016, 0.0
        %v9072 = vadd.f32 %v9070, %v9071
        %v9073 = vsel %vm9033, %v9017, 0.0
        %v9074 = vadd.f32 %v9072, %v9073
        %v9075 = vsel %vm9033, %v9018, 0.0
        %v9076 = vadd.f32 %v9074, %v9075
        %v9077 = vsel %vm9033, %v9019, 0.0
        %v9078 = vadd.f32 %v9076, %v9077
        %v9079 = vsel %vm9033, %v9020, 0.0
        %v9080 = vadd.f32 %v9078, %v9079
        %v9081 = vsel %vm9033, %v9021, 0.0
        %v9082 = vadd.f32 %v9080, %v9081
        %v9083 = vsel %vm9033, %v9022, 0.0
        %v9084 = vadd.f32 %v9082, %v9083
        %v9085 = vsel %vm9033, %v9023, 0.0
        %v9086 = vadd.f32 %v9084, %v9085
        %v9087 = vsel %vm9033, %v9024, 0.0
        %v9088 = vadd.f32 %v9086, %v9087
        %v9089 = vsel %vm9033, %v9025, 0.0
        %v9090 = vadd.f32 %v9088, %v9089
        %v9091 = vsel %vm9033, %v9026, 0.0
        %v9092 = vadd.f32 %v9090, %v9091
        %v9093 = vsel %vm9033, %v9027, 0.0
        %v9094 = vadd.f32 %v9092, %v9093
        %v9095 = vsel %vm9033, %v9028, 0.0
        %v9096 = vadd.f32 %v9094, %v9095
        %v9097 = vsel %vm9033, %v9029, 0.0
        %v9098 = vadd.f32 %v9096, %v9097
        %v9099 = vsel %vm9033, %v9030, 0.0
        %v9100 = vadd.f32 %v9098, %v9099
        %v9101 = vsel %vm9033, %v9031, 0.0
        %v9102 = vadd.f32 %v9100, %v9101
        %v9103 = vsel %vm9033, %v9032, 0.0
        %v9104 = vadd.f32 %v9102, %v9103
        %v9105 = vrot.slane %v9104, 4
        %v9106 = vadd.f32 %v9104, %v9105
        %v9107 = vrot.slane %v9106, 2
        %v9108 = vadd.f32 %v9106, %v9107
        %v9109 = vrot.slane %v9108, 1
        %v9110 = vadd.f32 %v9108, %v9109
        %vm9111 = vcmask 57344
        %9112 = vst.msk [vmem:[%s324] sm:$0x1] %vm9111, %v9110
        %s9113 = sand.u32 %s225, 1
        %s9114 = scalar_lea.sflag [#allocation4], %s9113
        %s9115 = sand.u32 %s225, 1
        %s9116 = scalar_lea.vmem [#allocation3], %s9115
        // Predicated region
        $region57: #{tpu_custom_call.1} parent=55 // pred_check
          %p9117 = pneg %p235
        $region58: #{tpu_custom_call.1} parent=55 // pred_check_branch
          %9119 = sbr.rel (%p9117) target = $region60
        $region59: #{tpu_custom_call.1} parent=55 // pred_region
          %s9121 = ssub.s32 16, 16
          %9122 = vsyncadd %s9114, %s9121
          %s9123 = smul.addr %s23, 16
          %s9124 = scalar_lea.hbm %s9, %s9123
          %s9126 = sshll.u32 %s9116, 4
          %s9127 = int_to_ptr.vmem [resolvable:$true] %s9126
          %9129 = dma.vmem_to_hbm [thread:$0]  %s9127, 16, %s9124, %s9114
        $region60: #{tpu_custom_call.1} parent=55 // pred_fallthru
          _
      $region56: #{tpu_custom_call.1} parent=5 // pred_fallthru
        _
      %p9130 = scmp.le.s32.totalorder 2, %s18
      // Predicated region
      $region61: #{tpu_custom_call.1} parent=5 // pred_check
        %p9131 = pneg %p9130
      $region62: #{tpu_custom_call.1} parent=5 // pred_check_branch
        %9133 = sbr.rel (%p9131) target = $region64
      $region63: #{tpu_custom_call.1} parent=5 // pred_region
        %s9134 = ssub.s32 %s18, 2
        // Predicated region
        $region65: #{tpu_custom_call.1} parent=63 // pred_check
          %p9135 = pneg %p241
        $region66: #{tpu_custom_call.1} parent=63 // pred_check_branch
          %9137 = sbr.rel (%p9135) target = $region68
        $region67: #{tpu_custom_call.1} parent=63 // pred_region
          %s9138 = sand.u32 %s226, 1
          %s9139 = scalar_lea.sflag [#allocation4], %s9138
          %s9140 = sand.u32 %s226, 1
          %s9141 = scalar_lea.vmem [#allocation3], %s9140
          %9142 = dma.done %s9139, 16
        $region68: #{tpu_custom_call.1} parent=63 // pred_fallthru
          _
      $region64: #{tpu_custom_call.1} parent=5 // pred_fallthru
        _
    $region6: #{tpu_custom_call.1} parent=1 // loop_footer
      %s22 = sadd.s32 1, %s18
    $region7: #{tpu_custom_call.1} parent=1 // loop_footer_branch
      %17 = sbr.rel target = $region3
    $region8: #{tpu_custom_call.1} parent=1 // loop_exit
      _
    %9143 = vsyncpa [#allocation4], 1
    %s9144 = scalar_lea.sflag [#allocation4], 1
    %9145 = vsyncpa %s9144, 1

</llo_original>
